<compile_context>
chip_gen: v7x
topology: tpu7x:2x2x1
jax: 0.10.0
libtpu: 0.0.40
codegen_flags: <defaults>
</compile_context>

<pallas_src>
import functools

import jax
import jax.numpy as jnp
from jax.experimental import pallas as pl
from jax.experimental.pallas import tpu as pltpu


def _round_up(n, m):
    return ((n + m - 1) // m) * m


def _pick_tile(n, max_tile):
    # n is always a multiple of 128 by construction (padded in the wrapper).
    if n <= max_tile:
        return n
    for t in (max_tile, 1024, 512, 256, 128):
        if t <= max_tile and n % t == 0:
            return t
    return 128


# ------------------------------------------------------------------
# Kernel 0: K/V projection, computed exactly once per (b, kv-tile).
#   kv (2C, tk) = [Wk; Wv] @ x_tile   (bf16 MXU, f32 accumulate)
# ------------------------------------------------------------------
def _kv_proj_kernel(x_ref, wkv_ref, kv_ref):
    x = x_ref[0].astype(jnp.bfloat16)                            # (C, tk)
    kv_ref[0] = jnp.dot(wkv_ref[...], x,
                        preferred_element_type=jnp.float32).astype(jnp.bfloat16)


# ------------------------------------------------------------------
# Kernel 1: flash attention over kv tiles + output transform + BN stats.
#   Lane-dense layout: q/acc are (C, tq), m/l are (1, tq), scores are (tk, tq).
# ------------------------------------------------------------------
def _attn_kernel(xq_ref, kv_ref, wq_ref, wo_ref,
                 pre_ref, stats_ref,
                 q_sc, m_sc, l_sc, acc_sc, *,
                 cp, tq, tk, hw_valid, mask_kv, mask_q):
    ki = pl.program_id(2)

    @pl.when(ki == 0)
    def _init():
        # Project q once per (b, q-tile); 1/sqrt(C) is pre-folded into Wq.
        q = jnp.dot(wq_ref[...], xq_ref[0].astype(jnp.bfloat16),
                    preferred_element_type=jnp.float32)          # (C, tq)
        q_sc[...] = q.astype(jnp.bfloat16)
        m_sc[...] = jnp.full(m_sc.shape, -jnp.inf, dtype=m_sc.dtype)
        l_sc[...] = jnp.zeros(l_sc.shape, dtype=l_sc.dtype)
        acc_sc[...] = jnp.zeros(acc_sc.shape, dtype=acc_sc.dtype)

    kv = kv_ref[0]                                               # (2C, tk) bf16
    k = kv[:cp]                                                  # (C, tk)
    v = kv[cp:]                                                  # (C, tk)

    # Scores (tk, tq): contract the C axis of k and q (scale already in Wq).
    s = jax.lax.dot_general(k, q_sc[...], (((0,), (0,)), ((), ())),
                            preferred_element_type=jnp.float32)  # (tk, tq)
    if mask_kv:
        kv_idx = ki * tk + jax.lax.broadcasted_iota(jnp.int32, (tk, 1), 0)
        s = jnp.where(kv_idx < hw_valid, s, -jnp.inf)

    # Online softmax over the kv (sublane) axis, f32 math.
    m_prev = m_sc[...]                                           # (1, tq)
    m_new = jnp.maximum(m_prev, jnp.max(s, axis=0, keepdims=True))
    alpha = jnp.exp(m_prev - m_new)
    p = jnp.exp(s - m_new)                                       # (tk, tq)
    l_sc[...] = alpha * l_sc[...] + jnp.sum(p, axis=0, keepdims=True)
    m_sc[...] = m_new

    # acc (C, tq): contract the kv axis of v (C, tk) and p (tk, tq).
    pv = jax.lax.dot_general(v, p.astype(jnp.bfloat16),
                             (((1,), (0,)), ((), ())),
                             preferred_element_type=jnp.float32)
    acc_sc[...] = alpha * acc_sc[...] + pv

    @pl.when(ki == pl.num_programs(2) - 1)
    def _finalize():
        inv_l = pl.reciprocal(l_sc[...], approx=True)            # (1, tq)
        r = (acc_sc[...] * inv_l).astype(jnp.bfloat16)           # (C, tq)
        # Output transform already in the (C, tq) store layout.
        o = jnp.dot(wo_ref[...], r, preferred_element_type=jnp.float32)
        pre_ref[0] = o.astype(pre_ref.dtype)                     # bf16 writeback
        if mask_q:
            qi = pl.program_id(1)
            q_idx = qi * tq + jax.lax.broadcasted_iota(jnp.int32, (1, tq), 1)
            o = jnp.where(q_idx < hw_valid, o, 0.0)
        # Per-tile BatchNorm partial statistics, lane-dense (C on lanes).
        stats_ref[0, 0, 0] = jnp.sum(o, axis=1)
        stats_ref[0, 0, 1] = jnp.sum(o * o, axis=1)


# ------------------------------------------------------------------
# Kernel 2: streamed BatchNorm normalize + residual add (pure streaming).
#   out = x + pre * scale + shift   with  scale = gamma*rsqrt(var+eps),
#                                         shift = beta - mean*scale
# ------------------------------------------------------------------
def _bn_residual_kernel(x_ref, pre_ref, scale_ref, shift_ref, o_ref):
    o_ref[0] = (x_ref[0]
                + pre_ref[0].astype(jnp.float32) * scale_ref[...]
                + shift_ref[...])


def gcn_forward(x, wq, wk, wv, wo, gamma, beta, eps=1e-4):
    """x: (B,C,H,W) f32. wq/wk/wv/wo: (C,C) 1x1-conv weights. gamma/beta: (C,)."""
    B, C, H, W = x.shape
    HW = H * W
    scale = 1.0 / (C ** 0.5)

    Cp = _round_up(C, 8)          # sublane alignment
    HWp = _round_up(HW, 128)      # lane alignment

    # CHW layout: a free reshape of NCHW; pad (zeros) only if misaligned.
    x3 = x.reshape(B, C, HW).astype(jnp.float32)
    if Cp != C or HWp != HW:
        x3 = jnp.pad(x3, ((0, 0), (0, Cp - C), (0, HWp - HW)))

    def pad_w(w):
        if Cp != C:
            w = jnp.pad(w, ((0, Cp - C), (0, Cp - C)))
        return w.astype(jnp.bfloat16)

    wq_b = pad_w(wq * scale)                                    # scale folded in
    wkv_b = jnp.concatenate([pad_w(wk), pad_w(wv)], axis=0)     # (2Cp, Cp)
    wo_b = pad_w(wo)

    if Cp != C:
        gamma_p = jnp.pad(gamma.astype(jnp.float32), (0, Cp - C),
                          constant_values=1.0)
        beta_p = jnp.pad(beta.astype(jnp.float32), (0, Cp - C))
    else:
        gamma_p = gamma.astype(jnp.float32)
        beta_p = beta.astype(jnp.float32)

    tq = _pick_tile(HWp, 1024)
    tk = _pick_tile(HWp, 1024)
    n_q = HWp // tq
    n_kv = HWp // tk
    needs_mask = (HWp != HW)

    # ---- K/V projected once per (b, kv-tile): no n_q-fold recompute. ----
    kv_buf = pl.pallas_call(
        _kv_proj_kernel,
        grid=(B, n_kv),
        in_specs=[
            pl.BlockSpec((1, Cp, tk), lambda b, k: (b, 0, k)),
            pl.BlockSpec((2 * Cp, Cp), lambda b, k: (0, 0)),
        ],
        out_specs=pl.BlockSpec((1, 2 * Cp, tk), lambda b, k: (b, 0, k)),
        out_shape=jax.ShapeDtypeStruct((B, 2 * Cp, HWp), jnp.bfloat16),
        compiler_params=pltpu.CompilerParams(
            dimension_semantics=("parallel", "parallel")),
    )(x3, wkv_b)

    # ---- flash attention + output transform + BN partial stats ----
    attn = functools.partial(
        _attn_kernel, cp=Cp, tq=tq, tk=tk, hw_valid=HW,
        mask_kv=needs_mask, mask_q=needs_mask)

    pre, stats = pl.pallas_call(
        attn,
        grid=(B, n_q, n_kv),
        in_specs=[
            pl.BlockSpec((1, Cp, tq), lambda b, qi, ki: (b, 0, qi)),      # x (q)
            pl.BlockSpec((1, 2 * Cp, tk), lambda b, qi, ki: (b, 0, ki)),  # K|V
            pl.BlockSpec((Cp, Cp), lambda b, qi, ki: (0, 0)),             # Wq*s
            pl.BlockSpec((Cp, Cp), lambda b, qi, ki: (0, 0)),             # Wo
        ],
        out_specs=(
            pl.BlockSpec((1, Cp, tq), lambda b, qi, ki: (b, 0, qi)),      # pre
            pl.BlockSpec((1, 1, 2, Cp), lambda b, qi, ki: (b, qi, 0, 0)),  # stats
        ),
        out_shape=(
            jax.ShapeDtypeStruct((B, Cp, HWp), jnp.bfloat16),
            jax.ShapeDtypeStruct((B, n_q, 2, Cp), jnp.float32),
        ),
        scratch_shapes=[
            pltpu.VMEM((Cp, tq), jnp.bfloat16),   # projected q (C, tq)
            pltpu.VMEM((1, tq), jnp.float32),     # running max m
            pltpu.VMEM((1, tq), jnp.float32),     # running denom l
            pltpu.VMEM((Cp, tq), jnp.float32),    # output accumulator
        ],
        compiler_params=pltpu.CompilerParams(
            dimension_semantics=("parallel", "parallel", "arbitrary"),
            # ~10-16 MiB of tile temporaries at tq=tk=1024; safe on all gens.
            vmem_limit_bytes=32 * 1024 * 1024,
        ),
    )(x3, kv_buf, wq_b, wo_b)

    # Combine tiny per-tile partial stats -> per-channel batch statistics.
    n = B * HW
    s1 = jnp.sum(stats[:, :, 0, :], axis=(0, 1))           # (Cp,)
    s2 = jnp.sum(stats[:, :, 1, :], axis=(0, 1))           # (Cp,)
    mean = s1 / n
    var = jnp.maximum(s2 / n - mean * mean, 0.0)            # biased variance
    inv = jax.lax.rsqrt(var + eps)
    bn_scale = (gamma_p * inv).reshape(Cp, 1)
    bn_shift = (beta_p - mean * gamma_p * inv).reshape(Cp, 1)

    # ---- streamed normalize + residual, fully parallel grid ----
    tn = _pick_tile(HWp, 2048)
    out = pl.pallas_call(
        _bn_residual_kernel,
        grid=(B, HWp // tn),
        in_specs=[
            pl.BlockSpec((1, Cp, tn), lambda b, i: (b, 0, i)),
            pl.BlockSpec((1, Cp, tn), lambda b, i: (b, 0, i)),
            pl.BlockSpec((Cp, 1), lambda b, i: (0, 0)),
            pl.BlockSpec((Cp, 1), lambda b, i: (0, 0)),
        ],
        out_specs=pl.BlockSpec((1, Cp, tn), lambda b, i: (b, 0, i)),
        out_shape=jax.ShapeDtypeStruct((B, Cp, HWp), jnp.float32),
        input_output_aliases={0: 0},   # reuse the residual buffer for output
        compiler_params=pltpu.CompilerParams(
            dimension_semantics=("parallel", "parallel")),
    )(x3, pre, bn_scale, bn_shift)

    out = out[:, :C, :HW]
    return out.reshape(B, C, H, W)


# ------------------------------------------------------------------
# Pure-JAX reference (f32) for a sanity check.
# ------------------------------------------------------------------
def _reference(x, wq, wk, wv, wo, gamma, beta, eps=1e-4):
    B, C, H, W = x.shape
    HW = H * W
    scale = 1.0 / (C ** 0.5)
    xf = x.reshape(B, C, HW)
    q = jnp.einsum('oc,bcn->bno', wq, xf)
    k = jnp.einsum('oc,bcn->bon', wk, xf)
    v = jnp.einsum('oc,bcn->bno', wv, xf)
    s = jnp.einsum('bnc,bcm->bnm', q, k) * scale
    p = jax.nn.softmax(s, axis=-1)
    r = jnp.einsum('bnm,bmc->bnc', p, v)
    o = jnp.einsum('oc,bnc->bon', wo, r)                       # (B, C, HW)
    mean = jnp.mean(o, axis=(0, 2))[None, :, None]
    var = jnp.mean((o - mean) ** 2, axis=(0, 2))[None, :, None]
    normed = (o - mean) * jax.lax.rsqrt(var + eps)
    normed = normed * gamma[None, :, None] + beta[None, :, None]
    return (xf + normed).reshape(B, C, H, W)


if __name__ == "__main__":
    B, C, H, W = 2, 8, 32, 32   # HW = 1024 -> tq = tk = 1024, grid (2, 1, 1)

    key = jax.random.PRNGKey(0)
    kx, kq, kk, kv_, ko = jax.random.split(key, 5)

    x = jax.random.normal(kx, (B, C, H, W), dtype=jnp.float32)

    # 1x1 conv weights (out_channels, in_channels), no bias.
    winit = 1.0 / (C ** 0.5)
    wq = jax.random.normal(kq, (C, C), dtype=jnp.float32) * winit
    wk = jax.random.normal(kk, (C, C), dtype=jnp.float32) * winit
    wv = jax.random.normal(kv_, (C, C), dtype=jnp.float32) * winit
    wo = jax.random.normal(ko, (C, C), dtype=jnp.float32) * winit

    # BatchNorm2d default affine init.
    gamma = jnp.ones((C,), dtype=jnp.float32)
    beta = jnp.zeros((C,), dtype=jnp.float32)

    fwd = jax.jit(gcn_forward)
    out = fwd(x, wq, wk, wv, wo, gamma, beta)
    out = jax.block_until_ready(out)
    assert out.shape == (B, C, H, W) and out.dtype == jnp.float32

    # bf16 MXU math + bf16 'pre' writeback vs f32 reference -> generous tol.
    ref = _reference(x, wq, wk, wv, wo, gamma, beta)
    assert jnp.allclose(out, ref, atol=0.2, rtol=0.1), \
        float(jnp.max(jnp.abs(out - ref)))

    print("KERNEL_OK")
</pallas_src>

<mosaic_0001>
module attributes {stable_mosaic.version = 11 : i64} {
  func.func @_kv_proj_kernel(%arg0: i32, %arg1: i32, %arg2: memref<1x8x1024xf32, #tpu.memory_space<vmem>>, %arg3: memref<16x8xbf16, #tpu.memory_space<vmem>>, %arg4: memref<1x16x1024xbf16, #tpu.memory_space<vmem>>) attributes {dimension_semantics = [#tpu.dimension_semantics<parallel>, #tpu.dimension_semantics<parallel>], iteration_bounds = array<i64: 2, 1>, scalar_prefetch = 0 : i64, scratch_operands = 0 : i64, tpu.core_type = #tpu.core_type<tc>, window_params = [{transform_indices = @transform_0, window_bounds = array<i64: 1, 8, 1024>}, {pipeline_mode = #tpu.pipeline_mode<synchronous>, transform_indices = @transform_1, window_bounds = array<i64: 16, 8>}, {transform_indices = @transform_2, window_bounds = array<i64: 1, 16, 1024>}]} {
    %c0 = arith.constant 0 : index
    %c0_0 = arith.constant 0 : index
    %c0_1 = arith.constant 0 : index
    %0 = vector.load %arg2[%c0, %c0_0, %c0_1] : memref<1x8x1024xf32, #tpu.memory_space<vmem>>, vector<1x8x1024xf32>
    %1 = vector.shape_cast %0 : vector<1x8x1024xf32> to vector<8x1024xf32>
    %2 = arith.truncf %1 : vector<8x1024xf32> to vector<8x1024xbf16>
    %c0_2 = arith.constant 0 : index
    %c0_3 = arith.constant 0 : index
    %3 = vector.load %arg3[%c0_2, %c0_3] : memref<16x8xbf16, #tpu.memory_space<vmem>>, vector<16x8xbf16>
    %cst = arith.constant dense<0.000000e+00> : vector<16x1024xf32>
    %4 = tpu.matmul %3, %2, %cst {dimension_numbers = #tpu.dot_dimension_numbers<[1], [0], [0], [1], [0, 0, 1, 1], [], []>} : vector<16x8xbf16>, vector<8x1024xbf16>, vector<16x1024xf32> -> vector<16x1024xf32>
    %5 = arith.truncf %4 : vector<16x1024xf32> to vector<16x1024xbf16>
    %c0_4 = arith.constant 0 : index
    %c0_5 = arith.constant 0 : index
    %c0_6 = arith.constant 0 : index
    %6 = vector.load %arg4[%c0_4, %c0_5, %c0_6] : memref<1x16x1024xbf16, #tpu.memory_space<vmem>>, vector<1x16x1024xbf16>
    %7 = vector.shape_cast %6 : vector<1x16x1024xbf16> to vector<16x1024xbf16>
    %8 = vector.shape_cast %5 : vector<16x1024xbf16> to vector<1x16x1024xbf16>
    tpu.vector_store %arg4[%c0_4, %c0_5, %c0_6], %8 {strides = array<i32>} : memref<1x16x1024xbf16, #tpu.memory_space<vmem>>, vector<1x16x1024xbf16>,
    return
  }
  func.func @transform_0(%arg0: i32, %arg1: i32) -> (i32, i32, i32) {
    %c0_i32 = arith.constant 0 : i32
    %c0_i32_0 = arith.constant 0 : i32
    return %arg0, %c0_i32, %arg1 : i32, i32, i32
  }
  func.func @transform_1(%arg0: i32, %arg1: i32) -> (i32, i32) {
    %c0_i32 = arith.constant 0 : i32
    %c0_i32_0 = arith.constant 0 : i32
    %c0_i32_1 = arith.constant 0 : i32
    return %c0_i32, %c0_i32_0 : i32, i32
  }
  func.func @transform_2(%arg0: i32, %arg1: i32) -> (i32, i32, i32) {
    %c0_i32 = arith.constant 0 : i32
    %c0_i32_0 = arith.constant 0 : i32
    return %arg0, %c0_i32, %arg1 : i32, i32, i32
  }
}

module attributes {stable_mosaic.version = 11 : i64} {
  func.func @_attn_kernel(%arg0: i32, %arg1: i32, %arg2: i32, %arg3: memref<1x8x1024xf32, #tpu.memory_space<vmem>>, %arg4: memref<1x16x1024xbf16, #tpu.memory_space<vmem>>, %arg5: memref<8x8xbf16, #tpu.memory_space<vmem>>, %arg6: memref<8x8xbf16, #tpu.memory_space<vmem>>, %arg7: memref<1x8x1024xbf16, #tpu.memory_space<vmem>>, %arg8: memref<1x1x2x8xf32, #tpu.memory_space<vmem>>, %arg9: memref<8x1024xbf16, #tpu.memory_space<vmem>>, %arg10: memref<1x1024xf32, #tpu.memory_space<vmem>>, %arg11: memref<1x1024xf32, #tpu.memory_space<vmem>>, %arg12: memref<8x1024xf32, #tpu.memory_space<vmem>>) attributes {dimension_semantics = [#tpu.dimension_semantics<parallel>, #tpu.dimension_semantics<parallel>, #tpu.dimension_semantics<arbitrary>], iteration_bounds = array<i64: 2, 1, 1>, scalar_prefetch = 0 : i64, scratch_operands = 4 : i64, tpu.core_type = #tpu.core_type<tc>, window_params = [{transform_indices = @transform_0, window_bounds = array<i64: 1, 8, 1024>}, {transform_indices = @transform_1, window_bounds = array<i64: 1, 16, 1024>}, {pipeline_mode = #tpu.pipeline_mode<synchronous>, transform_indices = @transform_2, window_bounds = array<i64: 8, 8>}, {pipeline_mode = #tpu.pipeline_mode<synchronous>, transform_indices = @transform_3, window_bounds = array<i64: 8, 8>}, {transform_indices = @transform_4, window_bounds = array<i64: 1, 8, 1024>}, {transform_indices = @transform_5, window_bounds = array<i64: 1, 1, 2, 8>}]} {
    %c0_i32 = arith.constant 0 : i32
    %0 = arith.cmpi eq, %arg2, %c0_i32 : i32
    %1 = arith.extui %0 : i1 to i32
    %c0_i32_0 = arith.constant 0 : i32
    %2 = arith.cmpi ne, %1, %c0_i32_0 : i32
    scf.if %2 {
      %c0_22 = arith.constant 0 : index
      %c0_23 = arith.constant 0 : index
      %35 = vector.load %arg5[%c0_22, %c0_23] : memref<8x8xbf16, #tpu.memory_space<vmem>>, vector<8x8xbf16>
      %c0_24 = arith.constant 0 : index
      %c0_25 = arith.constant 0 : index
      %c0_26 = arith.constant 0 : index
      %36 = vector.load %arg3[%c0_24, %c0_25, %c0_26] : memref<1x8x1024xf32, #tpu.memory_space<vmem>>, vector<1x8x1024xf32>
      %37 = vector.shape_cast %36 : vector<1x8x1024xf32> to vector<8x1024xf32>
      %38 = arith.truncf %37 : vector<8x1024xf32> to vector<8x1024xbf16>
      %cst_27 = arith.constant dense<0.000000e+00> : vector<8x1024xf32>
      %39 = tpu.matmul %35, %38, %cst_27 {dimension_numbers = #tpu.dot_dimension_numbers<[1], [0], [0], [1], [0, 0, 1, 1], [], []>} : vector<8x8xbf16>, vector<8x1024xbf16>, vector<8x1024xf32> -> vector<8x1024xf32>
      %40 = arith.truncf %39 : vector<8x1024xf32> to vector<8x1024xbf16>
      %c0_28 = arith.constant 0 : index
      %c0_29 = arith.constant 0 : index
      %41 = vector.load %arg9[%c0_28, %c0_29] : memref<8x1024xbf16, #tpu.memory_space<vmem>>, vector<8x1024xbf16>
      tpu.vector_store %arg9[%c0_28, %c0_29], %40 {strides = array<i32>} : memref<8x1024xbf16, #tpu.memory_space<vmem>>, vector<8x1024xbf16>,
      %cst_30 = arith.constant 0xFF800000 : f32
      %42 = vector.broadcast %cst_30 : f32 to vector<1x1024xf32>
      %c0_31 = arith.constant 0 : index
      %c0_32 = arith.constant 0 : index
      %43 = vector.load %arg10[%c0_31, %c0_32] : memref<1x1024xf32, #tpu.memory_space<vmem>>, vector<1x1024xf32>
      tpu.vector_store %arg10[%c0_31, %c0_32], %42 {strides = array<i32>} : memref<1x1024xf32, #tpu.memory_space<vmem>>, vector<1x1024xf32>,
      %cst_33 = arith.constant 0.000000e+00 : f32
      %44 = vector.broadcast %cst_33 : f32 to vector<1x1024xf32>
      %c0_34 = arith.constant 0 : index
      %c0_35 = arith.constant 0 : index
      %45 = vector.load %arg11[%c0_34, %c0_35] : memref<1x1024xf32, #tpu.memory_space<vmem>>, vector<1x1024xf32>
      tpu.vector_store %arg11[%c0_34, %c0_35], %44 {strides = array<i32>} : memref<1x1024xf32, #tpu.memory_space<vmem>>, vector<1x1024xf32>,
      %cst_36 = arith.constant 0.000000e+00 : f32
      %46 = vector.broadcast %cst_36 : f32 to vector<8x1024xf32>
      %c0_37 = arith.constant 0 : index
      %c0_38 = arith.constant 0 : index
      %47 = vector.load %arg12[%c0_37, %c0_38] : memref<8x1024xf32, #tpu.memory_space<vmem>>, vector<8x1024xf32>
      tpu.vector_store %arg12[%c0_37, %c0_38], %46 {strides = array<i32>} : memref<8x1024xf32, #tpu.memory_space<vmem>>, vector<8x1024xf32>,
    } else {
    }
    %c0 = arith.constant 0 : index
    %c0_1 = arith.constant 0 : index
    %c0_2 = arith.constant 0 : index
    %3 = vector.load %arg4[%c0, %c0_1, %c0_2] : memref<1x16x1024xbf16, #tpu.memory_space<vmem>>, vector<1x16x1024xbf16>
    %4 = vector.shape_cast %3 : vector<1x16x1024xbf16> to vector<16x1024xbf16>
    %5 = vector.extract_strided_slice %4 {offsets = [0, 0], sizes = [8, 1024], strides = [1, 1]} : vector<16x1024xbf16> to vector<8x1024xbf16>
    %6 = vector.extract_strided_slice %4 {offsets = [8, 0], sizes = [8, 1024], strides = [1, 1]} : vector<16x1024xbf16> to vector<8x1024xbf16>
    %c0_3 = arith.constant 0 : index
    %c0_4 = arith.constant 0 : index
    %7 = vector.load %arg9[%c0_3, %c0_4] : memref<8x1024xbf16, #tpu.memory_space<vmem>>, vector<8x1024xbf16>
    %cst = arith.constant dense<0.000000e+00> : vector<1024x1024xf32>
    %8 = tpu.matmul %5, %7, %cst {dimension_numbers = #tpu.dot_dimension_numbers<[0], [0], [1], [1], [0, 1, 1, 1], [], []>} : vector<8x1024xbf16>, vector<8x1024xbf16>, vector<1024x1024xf32> -> vector<1024x1024xf32>
    %c0_5 = arith.constant 0 : index
    %c0_6 = arith.constant 0 : index
    %9 = vector.load %arg10[%c0_5, %c0_6] : memref<1x1024xf32, #tpu.memory_space<vmem>>, vector<1x1024xf32>
    %cst_7 = arith.constant dense<0xFF800000> : vector<1024xf32>
    %10 = vector.multi_reduction <maximumf>, %8, %cst_7 [0] : vector<1024x1024xf32> to vector<1024xf32>
    %11 = vector.shape_cast %10 : vector<1024xf32> to vector<1x1024xf32>
    %12 = arith.maximumf %9, %11 : vector<1x1024xf32>
    %13 = arith.subf %9, %12 : vector<1x1024xf32>
    %14 = math.exp %13 : vector<1x1024xf32>
    %15 = vector.broadcast %12 : vector<1x1024xf32> to vector<1024x1024xf32>
    %16 = arith.subf %8, %15 : vector<1024x1024xf32>
    %17 = math.exp %16 : vector<1024x1024xf32>
    %c0_8 = arith.constant 0 : index
    %c0_9 = arith.constant 0 : index
    %18 = vector.load %arg11[%c0_8, %c0_9] : memref<1x1024xf32, #tpu.memory_space<vmem>>, vector<1x1024xf32>
    %19 = arith.mulf %14, %18 : vector<1x1024xf32>
    %cst_10 = arith.constant dense<0.000000e+00> : vector<1024xf32>
    %20 = vector.multi_reduction <add>, %17, %cst_10 [0] : vector<1024x1024xf32> to vector<1024xf32>
    %21 = vector.shape_cast %20 : vector<1024xf32> to vector<1x1024xf32>
    %22 = arith.addf %19, %21 : vector<1x1024xf32>
    %c0_11 = arith.constant 0 : index
    %c0_12 = arith.constant 0 : index
    %23 = vector.load %arg11[%c0_11, %c0_12] : memref<1x1024xf32, #tpu.memory_space<vmem>>, vector<1x1024xf32>
    tpu.vector_store %arg11[%c0_11, %c0_12], %22 {strides = array<i32>} : memref<1x1024xf32, #tpu.memory_space<vmem>>, vector<1x1024xf32>,
    %c0_13 = arith.constant 0 : index
    %c0_14 = arith.constant 0 : index
    %24 = vector.load %arg10[%c0_13, %c0_14] : memref<1x1024xf32, #tpu.memory_space<vmem>>, vector<1x1024xf32>
    tpu.vector_store %arg10[%c0_13, %c0_14], %12 {strides = array<i32>} : memref<1x1024xf32, #tpu.memory_space<vmem>>, vector<1x1024xf32>,
    %25 = arith.truncf %17 : vector<1024x1024xf32> to vector<1024x1024xbf16>
    %cst_15 = arith.constant dense<0.000000e+00> : vector<8x1024xf32>
    %26 = tpu.matmul %6, %25, %cst_15 {dimension_numbers = #tpu.dot_dimension_numbers<[1], [0], [0], [1], [0, 0, 1, 1], [], []>} : vector<8x1024xbf16>, vector<1024x1024xbf16>, vector<8x1024xf32> -> vector<8x1024xf32>
    %c0_16 = arith.constant 0 : index
    %c0_17 = arith.constant 0 : index
    %27 = vector.load %arg12[%c0_16, %c0_17] : memref<8x1024xf32, #tpu.memory_space<vmem>>, vector<8x1024xf32>
    %28 = vector.broadcast %14 : vector<1x1024xf32> to vector<8x1024xf32>
    %29 = arith.mulf %28, %27 : vector<8x1024xf32>
    %30 = arith.addf %29, %26 : vector<8x1024xf32>
    %c0_18 = arith.constant 0 : index
    %c0_19 = arith.constant 0 : index
    %31 = vector.load %arg12[%c0_18, %c0_19] : memref<8x1024xf32, #tpu.memory_space<vmem>>, vector<8x1024xf32>
    tpu.vector_store %arg12[%c0_18, %c0_19], %30 {strides = array<i32>} : memref<8x1024xf32, #tpu.memory_space<vmem>>, vector<8x1024xf32>,
    %c0_i32_20 = arith.constant 0 : i32
    %32 = arith.cmpi eq, %arg2, %c0_i32_20 : i32
    %33 = arith.extui %32 : i1 to i32
    %c0_i32_21 = arith.constant 0 : i32
    %34 = arith.cmpi ne, %33, %c0_i32_21 : i32
    scf.if %34 {
      %c0_22 = arith.constant 0 : index
      %c0_23 = arith.constant 0 : index
      %35 = vector.load %arg11[%c0_22, %c0_23] : memref<1x1024xf32, #tpu.memory_space<vmem>>, vector<1x1024xf32>
      %36 = tpu.reciprocal %35 {approx = true} : vector<1x1024xf32> -> vector<1x1024xf32>
      %c0_24 = arith.constant 0 : index
      %c0_25 = arith.constant 0 : index
      %37 = vector.load %arg12[%c0_24, %c0_25] : memref<8x1024xf32, #tpu.memory_space<vmem>>, vector<8x1024xf32>
      %38 = vector.broadcast %36 : vector<1x1024xf32> to vector<8x1024xf32>
      %39 = arith.mulf %37, %38 : vector<8x1024xf32>
      %40 = arith.truncf %39 : vector<8x1024xf32> to vector<8x1024xbf16>
      %c0_26 = arith.constant 0 : index
      %c0_27 = arith.constant 0 : index
      %41 = vector.load %arg6[%c0_26, %c0_27] : memref<8x8xbf16, #tpu.memory_space<vmem>>, vector<8x8xbf16>
      %cst_28 = arith.constant dense<0.000000e+00> : vector<8x1024xf32>
      %42 = tpu.matmul %41, %40, %cst_28 {dimension_numbers = #tpu.dot_dimension_numbers<[1], [0], [0], [1], [0, 0, 1, 1], [], []>} : vector<8x8xbf16>, vector<8x1024xbf16>, vector<8x1024xf32> -> vector<8x1024xf32>
      %43 = arith.truncf %42 : vector<8x1024xf32> to vector<8x1024xbf16>
      %c0_29 = arith.constant 0 : index
      %c0_30 = arith.constant 0 : index
      %c0_31 = arith.constant 0 : index
      %44 = vector.load %arg7[%c0_29, %c0_30, %c0_31] : memref<1x8x1024xbf16, #tpu.memory_space<vmem>>, vector<1x8x1024xbf16>
      %45 = vector.shape_cast %44 : vector<1x8x1024xbf16> to vector<8x1024xbf16>
      %46 = vector.shape_cast %43 : vector<8x1024xbf16> to vector<1x8x1024xbf16>
      tpu.vector_store %arg7[%c0_29, %c0_30, %c0_31], %46 {strides = array<i32>} : memref<1x8x1024xbf16, #tpu.memory_space<vmem>>, vector<1x8x1024xbf16>,
      %cst_32 = arith.constant dense<0.000000e+00> : vector<8xf32>
      %47 = vector.multi_reduction <add>, %42, %cst_32 [1] : vector<8x1024xf32> to vector<8xf32>
      %c0_33 = arith.constant 0 : index
      %c0_34 = arith.constant 0 : index
      %c0_35 = arith.constant 0 : index
      %c0_36 = arith.constant 0 : index
      %48 = vector.load %arg8[%c0_33, %c0_34, %c0_35, %c0_36] : memref<1x1x2x8xf32, #tpu.memory_space<vmem>>, vector<1x1x1x8xf32>
      %49 = vector.shape_cast %48 : vector<1x1x1x8xf32> to vector<8xf32>
      %50 = vector.shape_cast %47 : vector<8xf32> to vector<1x1x1x8xf32>
      tpu.vector_store %arg8[%c0_33, %c0_34, %c0_35, %c0_36], %50 {strides = array<i32>} : memref<1x1x2x8xf32, #tpu.memory_space<vmem>>, vector<1x1x1x8xf32>,
      %51 = arith.mulf %42, %42 : vector<8x1024xf32>
      %cst_37 = arith.constant dense<0.000000e+00> : vector<8xf32>
      %52 = vector.multi_reduction <add>, %51, %cst_37 [1] : vector<8x1024xf32> to vector<8xf32>
      %c0_38 = arith.constant 0 : index
      %c0_39 = arith.constant 0 : index
      %c1 = arith.constant 1 : index
      %c0_40 = arith.constant 0 : index
      %53 = vector.load %arg8[%c0_38, %c0_39, %c1, %c0_40] : memref<1x1x2x8xf32, #tpu.memory_space<vmem>>, vector<1x1x1x8xf32>
      %54 = vector.shape_cast %53 : vector<1x1x1x8xf32> to vector<8xf32>
      %55 = vector.shape_cast %52 : vector<8xf32> to vector<1x1x1x8xf32>
      tpu.vector_store %arg8[%c0_38, %c0_39, %c1, %c0_40], %55 {strides = array<i32>} : memref<1x1x2x8xf32, #tpu.memory_space<vmem>>, vector<1x1x1x8xf32>,
    } else {
    }
    return
  }
  func.func @transform_0(%arg0: i32, %arg1: i32, %arg2: i32) -> (i32, i32, i32) {
    %c0_i32 = arith.constant 0 : i32
    %c0_i32_0 = arith.constant 0 : i32
    return %arg0, %c0_i32, %arg1 : i32, i32, i32
  }
  func.func @transform_1(%arg0: i32, %arg1: i32, %arg2: i32) -> (i32, i32, i32) {
    %c0_i32 = arith.constant 0 : i32
    %c0_i32_0 = arith.constant 0 : i32
    return %arg0, %c0_i32, %arg2 : i32, i32, i32
  }
  func.func @transform_2(%arg0: i32, %arg1: i32, %arg2: i32) -> (i32, i32) {
    %c0_i32 = arith.constant 0 : i32
    %c0_i32_0 = arith.constant 0 : i32
    %c0_i32_1 = arith.constant 0 : i32
    return %c0_i32, %c0_i32_0 : i32, i32
  }
  func.func @transform_3(%arg0: i32, %arg1: i32, %arg2: i32) -> (i32, i32) {
    %c0_i32 = arith.constant 0 : i32
    %c0_i32_0 = arith.constant 0 : i32
    %c0_i32_1 = arith.constant 0 : i32
    return %c0_i32, %c0_i32_0 : i32, i32
  }
  func.func @transform_4(%arg0: i32, %arg1: i32, %arg2: i32) -> (i32, i32, i32) {
    %c0_i32 = arith.constant 0 : i32
    %c0_i32_0 = arith.constant 0 : i32
    return %arg0, %c0_i32, %arg1 : i32, i32, i32
  }
  func.func @transform_5(%arg0: i32, %arg1: i32, %arg2: i32) -> (i32, i32, i32, i32) {
    %c0_i32 = arith.constant 0 : i32
    %c0_i32_0 = arith.constant 0 : i32
    %c0_i32_1 = arith.constant 0 : i32
    return %arg0, %arg1, %c0_i32, %c0_i32_0 : i32, i32, i32, i32
  }
}

module attributes {stable_mosaic.version = 11 : i64} {
  func.func @_bn_residual_kernel(%arg0: i32, %arg1: i32, %arg2: memref<1x8x1024xf32, #tpu.memory_space<vmem>>, %arg3: memref<1x8x1024xbf16, #tpu.memory_space<vmem>>, %arg4: memref<8x1xf32, #tpu.memory_space<vmem>>, %arg5: memref<8x1xf32, #tpu.memory_space<vmem>>, %arg6: memref<1x8x1024xf32, #tpu.memory_space<vmem>>) attributes {dimension_semantics = [#tpu.dimension_semantics<parallel>, #tpu.dimension_semantics<parallel>], iteration_bounds = array<i64: 2, 1>, scalar_prefetch = 0 : i64, scratch_operands = 0 : i64, tpu.core_type = #tpu.core_type<tc>, window_params = [{transform_indices = @transform_0, window_bounds = array<i64: 1, 8, 1024>}, {transform_indices = @transform_1, window_bounds = array<i64: 1, 8, 1024>}, {pipeline_mode = #tpu.pipeline_mode<synchronous>, transform_indices = @transform_2, window_bounds = array<i64: 8, 1>}, {pipeline_mode = #tpu.pipeline_mode<synchronous>, transform_indices = @transform_3, window_bounds = array<i64: 8, 1>}, {transform_indices = @transform_4, window_bounds = array<i64: 1, 8, 1024>}]} {
    %c0 = arith.constant 0 : index
    %c0_0 = arith.constant 0 : index
    %c0_1 = arith.constant 0 : index
    %0 = vector.load %arg2[%c0, %c0_0, %c0_1] : memref<1x8x1024xf32, #tpu.memory_space<vmem>>, vector<1x8x1024xf32>
    %1 = vector.shape_cast %0 : vector<1x8x1024xf32> to vector<8x1024xf32>
    %c0_2 = arith.constant 0 : index
    %c0_3 = arith.constant 0 : index
    %c0_4 = arith.constant 0 : index
    %2 = vector.load %arg3[%c0_2, %c0_3, %c0_4] : memref<1x8x1024xbf16, #tpu.memory_space<vmem>>, vector<1x8x1024xbf16>
    %3 = vector.shape_cast %2 : vector<1x8x1024xbf16> to vector<8x1024xbf16>
    %4 = arith.extf %3 : vector<8x1024xbf16> to vector<8x1024xf32>
    %c0_5 = arith.constant 0 : index
    %c0_6 = arith.constant 0 : index
    %5 = vector.load %arg4[%c0_5, %c0_6] : memref<8x1xf32, #tpu.memory_space<vmem>>, vector<8x1xf32>
    %6 = vector.broadcast %5 : vector<8x1xf32> to vector<8x1024xf32>
    %7 = arith.mulf %4, %6 : vector<8x1024xf32>
    %8 = arith.addf %1, %7 : vector<8x1024xf32>
    %c0_7 = arith.constant 0 : index
    %c0_8 = arith.constant 0 : index
    %9 = vector.load %arg5[%c0_7, %c0_8] : memref<8x1xf32, #tpu.memory_space<vmem>>, vector<8x1xf32>
    %10 = vector.broadcast %9 : vector<8x1xf32> to vector<8x1024xf32>
    %11 = arith.addf %8, %10 : vector<8x1024xf32>
    %c0_9 = arith.constant 0 : index
    %c0_10 = arith.constant 0 : index
    %c0_11 = arith.constant 0 : index
    %12 = vector.load %arg6[%c0_9, %c0_10, %c0_11] : memref<1x8x1024xf32, #tpu.memory_space<vmem>>, vector<1x8x1024xf32>
    %13 = vector.shape_cast %12 : vector<1x8x1024xf32> to vector<8x1024xf32>
    %14 = vector.shape_cast %11 : vector<8x1024xf32> to vector<1x8x1024xf32>
    tpu.vector_store %arg6[%c0_9, %c0_10, %c0_11], %14 {strides = array<i32>} : memref<1x8x1024xf32, #tpu.memory_space<vmem>>, vector<1x8x1024xf32>,
    return
  }
  func.func @transform_0(%arg0: i32, %arg1: i32) -> (i32, i32, i32) {
    %c0_i32 = arith.constant 0 : i32
    %c0_i32_0 = arith.constant 0 : i32
    return %arg0, %c0_i32, %arg1 : i32, i32, i32
  }
  func.func @transform_1(%arg0: i32, %arg1: i32) -> (i32, i32, i32) {
    %c0_i32 = arith.constant 0 : i32
    %c0_i32_0 = arith.constant 0 : i32
    return %arg0, %c0_i32, %arg1 : i32, i32, i32
  }
  func.func @transform_2(%arg0: i32, %arg1: i32) -> (i32, i32) {
    %c0_i32 = arith.constant 0 : i32
    %c0_i32_0 = arith.constant 0 : i32
    %c0_i32_1 = arith.constant 0 : i32
    return %c0_i32, %c0_i32_0 : i32, i32
  }
  func.func @transform_3(%arg0: i32, %arg1: i32) -> (i32, i32) {
    %c0_i32 = arith.constant 0 : i32
    %c0_i32_0 = arith.constant 0 : i32
    %c0_i32_1 = arith.constant 0 : i32
    return %c0_i32, %c0_i32_0 : i32, i32
  }
  func.func @transform_4(%arg0: i32, %arg1: i32) -> (i32, i32, i32) {
    %c0_i32 = arith.constant 0 : i32
    %c0_i32_0 = arith.constant 0 : i32
    return %arg0, %c0_i32, %arg1 : i32, i32, i32
  }
}

</mosaic_0001>

<llo_original>
// kernel: gcn_forward.3
$region0: #{gcn_forward.3}
  #allocation0 [shape = 'u32[]', space=smem, size = 0x4, offset = 0x4, fixed_abs, tag = 'smem constant byte address 0x4 - core index']
  #allocation1 [shape = 'u32[144,128]{1,0:T(1,128)}', space=vmem, size = 0x12000, scoped, tag = 'internal scratch']
  %s0 = inlined_call_operand.vmem [shape: f32[2,8,1024], index: 0, kind: input, shape index: {}]
  %s1 = inlined_call_operand.vmem [shape: bf16[16,8], index: 1, kind: input, shape index: {}]
  %s2 = inlined_call_operand.vmem [shape: bf16[2,16,1024], index: 2, kind: output, shape index: {}]
  %s3 = sld [smem:[#allocation0]]
  $region41: #{gcn_forward.3} parent=0
    _
  %s5 = ssub.s32 1, %s3
  %s6 = scalar_select 0, %s5, %s3
  loop: start=0, step=1, limit=4
  $region2: #{gcn_forward.3} parent=0 // loop_pre_header
    _
  $region3: #{gcn_forward.3} parent=0 // loop_header
    %s8 = sphi 0, %s12
    %p9 = scmp.ge.s32.totalorder %s8, 4
    %s15 = sphi 0, %s27
    %s16 = sphi 0, %s23
    %s17 = sphi 0, %s15
    %s18 = sphi 0, %s16
    %s19 = sphi 0, %s17
    %s20 = sphi 0, %s18
    %s32 = sphi 0, %s34
    %s35 = sphi 0, %s32
    %s36 = sphi 0, %s35
    %s52 = sphi 0, %s36
    %s56 = sphi 0, %s56
    %s58 = sphi 0, %s56
    %s59 = sphi 0, %s58
    %s73 = sphi 0, %s59
    %s81 = sphi 0, %s83
    %s84 = sphi 0, %s81
    %s85 = sphi 0, %s84
    %s101 = sphi 0, %s85
  $region4: #{gcn_forward.3} parent=0 // loop_header_branch
    %11 = sbr.rel (%p9) target = $region8
  $region5: #{gcn_forward.3} parent=0 // loop_body
    %s13 = ssub.s32 %s8, 1
    %s14 = ssub.s32 %s8, 2
    %s21 = sadd.s32 1, %s16
    %p22 = scmp.ge.s32.totalorder %s21, 1
    %s23 = scalar_select %p22, 0, %s21
    %s24 = sadd.s32 1, %s15
    %s25 = scalar_select %p22, %s24, %s15
    %p26 = scmp.ge.s32.totalorder %s25, 2
    %s27 = scalar_select %p26, 0, %s25
    %s28 = ssub.s32 %s15, %s27
    %s29 = ssub.s32 %s16, %s23
    %s30 = sor.u32 %s28, %s29
    %p31 = scmp.eq.s32.totalorder %s30, 0
    %s33 = sadd.s32 %s32, 1
    %s34 = scalar_select %p31, %s32, %s33
    %p37 = pneg %p31
    %p38 = scmp.eq.s32.totalorder %s8, 1
    %p39 = por %p37, %p38
    %p40 = scmp.ne.s32.totalorder %s32, %s35
    %p41 = scmp.eq.s32.totalorder %s8, 0
    %p42 = por %p40, %p41
    %p43 = scmp.ne.s32.totalorder %s32, %s35
    %p44 = scmp.eq.s32.totalorder %s13, 1
    %p45 = por %p43, %p44
    %p46 = scmp.ne.s32.totalorder %s35, %s36
    %p47 = scmp.eq.s32.totalorder %s13, 0
    %p48 = por %p46, %p47
    %p49 = scmp.ne.s32.totalorder %s35, %s36
    %p50 = scmp.eq.s32.totalorder %s14, 1
    %p51 = por %p49, %p50
    %p53 = scmp.ne.s32.totalorder %s36, %s52
    %p54 = scmp.eq.s32.totalorder %s14, 0
    %p55 = por %p53, %p54
    %s57 = sadd.s32 %s56, 1
    %p60 = scmp.eq.s32.totalorder %s8, 1
    %p61 = scmp.ne.s32.totalorder %s56, %s58
    %p62 = scmp.eq.s32.totalorder %s8, 0
    %p63 = por %p61, %p62
    %p64 = scmp.ne.s32.totalorder %s56, %s58
    %p65 = scmp.eq.s32.totalorder %s13, 1
    %p66 = por %p64, %p65
    %p67 = scmp.ne.s32.totalorder %s58, %s59
    %p68 = scmp.eq.s32.totalorder %s13, 0
    %p69 = por %p67, %p68
    %p70 = scmp.ne.s32.totalorder %s58, %s59
    %p71 = scmp.eq.s32.totalorder %s14, 1
    %p72 = por %p70, %p71
    %p74 = scmp.ne.s32.totalorder %s59, %s73
    %p75 = scmp.eq.s32.totalorder %s14, 0
    %p76 = por %p74, %p75
    %s77 = ssub.s32 %s15, %s27
    %s78 = ssub.s32 %s16, %s23
    %s79 = sor.u32 %s77, %s78
    %p80 = scmp.eq.s32.totalorder %s79, 0
    %s82 = sadd.s32 %s81, 1
    %s83 = scalar_select %p80, %s81, %s82
    %p86 = pneg %p80
    %p87 = scmp.eq.s32.totalorder %s8, 1
    %p88 = por %p86, %p87
    %p89 = scmp.ne.s32.totalorder %s81, %s84
    %p90 = scmp.eq.s32.totalorder %s8, 0
    %p91 = por %p89, %p90
    %p92 = scmp.ne.s32.totalorder %s81, %s84
    %p93 = scmp.eq.s32.totalorder %s13, 1
    %p94 = por %p92, %p93
    %p95 = scmp.ne.s32.totalorder %s84, %s85
    %p96 = scmp.eq.s32.totalorder %s13, 0
    %p97 = por %p95, %p96
    %p98 = scmp.ne.s32.totalorder %s84, %s85
    %p99 = scmp.eq.s32.totalorder %s14, 1
    %p100 = por %p98, %p99
    %p102 = scmp.ne.s32.totalorder %s85, %s101
    %p103 = scmp.eq.s32.totalorder %s14, 0
    %p104 = por %p102, %p103
    %p105 = scmp.le.s32.totalorder 1, %s8
    %p106 = scmp.lt.s32.totalorder %s8, 3
    %p107 = pnand %p105, %p106
    %p108 = pneg %p107
    // Predicated region
    $region9: #{gcn_forward.3} parent=5 // pred_check
      _
    $region10: #{gcn_forward.3} parent=5 // pred_check_branch
      %110 = sbr.rel (%p107) target = $region12
    $region11: #{gcn_forward.3} parent=5 // pred_region
      %s111 = ssub.s32 %s8, 1
      // Predicated region
      $region13: #{gcn_forward.3} parent=11 // pred_check
        %p112 = pneg %p69
      $region14: #{gcn_forward.3} parent=11 // pred_check_branch
        %114 = sbr.rel (%p112) target = $region16
      $region15: #{gcn_forward.3} parent=11 // pred_region
        _
      $region16: #{gcn_forward.3} parent=11 // pred_fallthru
        _
    $region12: #{gcn_forward.3} parent=5 // pred_fallthru
      _
    %p115 = scmp.lt.s32.totalorder %s8, 2
    // Predicated region
    $region17: #{gcn_forward.3} parent=5 // pred_check
      %p116 = pneg %p115
    $region18: #{gcn_forward.3} parent=5 // pred_check_branch
      %118 = sbr.rel (%p116) target = $region20
    $region19: #{gcn_forward.3} parent=5 // pred_region
      // Predicated region
      $region21: #{gcn_forward.3} parent=19 // pred_check
        %p119 = pneg %p42
      $region22: #{gcn_forward.3} parent=19 // pred_check_branch
        %121 = sbr.rel (%p119) target = $region24
      $region23: #{gcn_forward.3} parent=19 // pred_region
        %s122 = smul.u32 8, %s16
        %p123 = scmp.lt.s32.totalorder %s15, 1
        %s124 = scalar_select %p123, %s15, 1
        %p125 = scmp.lt.s32.totalorder %s122, 7
        %s126 = scalar_select %p125, %s122, 7
        %s127 = smul.addr %s124, 8
        %s128 = sadd.s32 %s126, %s127
        %s129 = smul.addr %s128, 8
        %s130 = scalar_lea.vmem %s0, %s129
        %s131 = smul.u32 8, %s16
      $region24: #{gcn_forward.3} parent=19 // pred_fallthru
        _
    $region20: #{gcn_forward.3} parent=5 // pred_fallthru
      _
    %p132 = scmp.le.s32.totalorder 1, %s8
    %p133 = scmp.lt.s32.totalorder %s8, 3
    %p134 = pnand %p132, %p133
    %p135 = pneg %p134
    // Predicated region
    $region25: #{gcn_forward.3} parent=5 // pred_check
      _
    $region26: #{gcn_forward.3} parent=5 // pred_check_branch
      %137 = sbr.rel (%p134) target = $region28
    $region27: #{gcn_forward.3} parent=5 // pred_region
      %s138 = ssub.s32 %s8, 1
      %s139 = smul.u32 8, %s18
      %p140 = scmp.lt.s32.totalorder %s17, 1
      %s141 = scalar_select %p140, %s17, 1
      %p142 = scmp.lt.s32.totalorder %s139, 7
      %s143 = scalar_select %p142, %s139, 7
      %s144 = smul.addr %s141, 8
      %s145 = sadd.s32 %s143, %s144
      %s146 = smul.addr %s145, 8
      %s147 = scalar_lea.vmem %s0, %s146
      %p148 = pneg %p48
      %p149 = pneg %p45
      %p150 = pneg %p69
      %p151 = pneg %p66
      %p152 = pneg %p97
      %p153 = pneg %p94
      %s154 = smul.u32 8, %s18
      %p155 = scmp.lt.s32.totalorder %s17, 1
      %s156 = scalar_select %p155, %s17, 1
      %p157 = scmp.lt.s32.totalorder %s154, 7
      %s158 = scalar_select %p157, %s154, 7
      %s159 = smul.addr %s156, 16
      %s160 = sadd.s32 %s158, %s159
      %s161 = smul.addr %s160, 4
      %s162 = scalar_lea.vmem %s2, %s161
      %s163 = smul.u32 8, %s18
      %p164 = scmp.lt.s32.totalorder %s17, 1
      %s165 = scalar_select %p164, %s17, 1
      %p166 = scmp.lt.s32.totalorder %s163, 7
      %s167 = scalar_select %p166, %s163, 7
      %s168 = smul.addr %s165, 8
      %s169 = sadd.s32 %s167, %s168
      %s170 = smul.addr %s169, 8
      %s171 = scalar_lea.vmem %s0, %s170
      %s172 = smul.u32 8, %s18
      %s173 = smul.u32 8, %s18
      %p174 = scmp.lt.s32.totalorder %s17, 1
      %s175 = scalar_select %p174, %s17, 1
      %p176 = scmp.lt.s32.totalorder %s173, 7
      %s177 = scalar_select %p176, %s173, 7
      %s178 = smul.addr %s175, 16
      %s179 = sadd.s32 %s177, %s178
      %s180 = smul.addr %s179, 4
      %s181 = scalar_lea.vmem %s2, %s180
      %s182 = smul.u32 8, %s18
      %v184 = vld [vmem:[%s171] sm:$0xff]
      %v185 = vld [vmem:[%s171 + $0x8] sm:$0xff]
      %v186 = vld [vmem:[%s171 + $0x10] sm:$0xff]
      %v187 = vld [vmem:[%s171 + $0x18] sm:$0xff]
      %v188 = vld [vmem:[%s171 + $0x20] sm:$0xff]
      %v189 = vld [vmem:[%s171 + $0x28] sm:$0xff]
      %v190 = vld [vmem:[%s171 + $0x30] sm:$0xff]
      %v191 = vld [vmem:[%s171 + $0x38] sm:$0xff]
      %v192 = vpack.c.bf16 %v184, %v184
      %v193 = vpack.c.bf16 %v185, %v185
      %v194 = vpack.c.bf16 %v186, %v186
      %v195 = vpack.c.bf16 %v187, %v187
      %v196 = vpack.c.bf16 %v188, %v188
      %v197 = vpack.c.bf16 %v189, %v189
      %v198 = vpack.c.bf16 %v190, %v190
      %v199 = vpack.c.bf16 %v191, %v191
      %v200 = vld [vmem:[%s1] sm:$0xf]
      %v201 = vld [vmem:[%s1 + $0x4] sm:$0xf]
      %v204 = vunpack.c.l.b16 %v200
      %v205 = vunpack.c.l.b16 %v201
      %v206 = vpack.c.b16 %v205, %v204
      %vm207 = vcmask 64512
      %v209 = vsel %vm207, %v206, 0
      %vm211 = vcmask 1043456
      %v213 = vsel %vm211, %v192, 0
      %v216 = vsel %vm211, %v193, 0
      %v219 = vsel %vm211, %v194, 0
      %v222 = vsel %vm211, %v195, 0
      %v225 = vsel %vm211, %v196, 0
      %v228 = vsel %vm211, %v197, 0
      %v231 = vsel %vm211, %v198, 0
      %v234 = vsel %vm211, %v199, 0
      %236 = vmatprep.subr.bf16.mxu0 %v216
      %237 = vmatpush1.bf16.msra.mxu0 %v213
      %238 = vmatprep.subr.bf16.mxu0 0
      %239 = vmatpush1.bf16.msra.mxu0 0
      %240 = vmatprep.subr.bf16.mxu0 0
      %241 = vmatpush1.bf16.msra.mxu0 0
      %242 = vmatprep.subr.bf16.mxu0 0
      %243 = vmatpush1.bf16.msra.mxu0 0
      %244 = vmatprep.subr.bf16.mxu0 0
      %245 = vmatpush1.bf16.msra.mxu0 0
      %246 = vmatprep.subr.bf16.mxu0 0
      %247 = vmatpush1.bf16.msra.mxu0 0
      %248 = vmatprep.subr.bf16.mxu0 0
      %249 = vmatpush1.bf16.msra.mxu0 0
      %250 = vmatprep.subr.bf16.mxu0 0
      %251 = vmatpush1.bf16.msra.mxu0 0
      %252 = vmatprep.subr.bf16.mxu0 0
      %253 = vmatpush1.bf16.msra.mxu0 0
      %254 = vmatprep.subr.bf16.mxu0 0
      %255 = vmatpush1.bf16.msra.mxu0 0
      %256 = vmatprep.subr.bf16.mxu0 0
      %257 = vmatpush1.bf16.msra.mxu0 0
      %258 = vmatprep.subr.bf16.mxu0 0
      %259 = vmatpush1.bf16.msra.mxu0 0
      %260 = vmatprep.subr.bf16.mxu0 0
      %261 = vmatpush1.bf16.msra.mxu0 0
      %262 = vmatprep.subr.bf16.mxu0 0
      %263 = vmatpush1.bf16.msra.mxu0 0
      %264 = vmatprep.subr.bf16.mxu0 0
      %265 = vmatpush1.bf16.msra.mxu0 0
      %266 = vmatprep.subr.bf16.mxu0 0
      %267 = vmatpush1.bf16.msra.mxu0 0
      %268 = vmatprep.mubr.bf16.mxu0 0
      %269 = vmatmul.mubr.bf16.gmra.mrb[0].mxu0 %v209
      %v270 = vpop.f32.mrb[0].mxu0
      %v271 = vadd.f32 0.0, %v270
      %v272 = vpop.f32.mrb[0].mxu0
      %v273 = vadd.f32 0.0, %v272
      %v274 = vpop.f32.mrb[0].mxu0
      %v275 = vadd.f32 0.0, %v274
      %v276 = vpop.f32.mrb[0].mxu0
      %v277 = vadd.f32 0.0, %v276
      %278 = vdwg.mxu0
      %279 = vmatprep.subr.bf16.mxu0 %v222
      %280 = vmatpush1.bf16.msra.mxu0 %v219
      %281 = vmatprep.subr.bf16.mxu0 0
      %282 = vmatpush1.bf16.msra.mxu0 0
      %283 = vmatprep.subr.bf16.mxu0 0
      %284 = vmatpush1.bf16.msra.mxu0 0
      %285 = vmatprep.subr.bf16.mxu0 0
      %286 = vmatpush1.bf16.msra.mxu0 0
      %287 = vmatprep.subr.bf16.mxu0 0
      %288 = vmatpush1.bf16.msra.mxu0 0
      %289 = vmatprep.subr.bf16.mxu0 0
      %290 = vmatpush1.bf16.msra.mxu0 0
      %291 = vmatprep.subr.bf16.mxu0 0
      %292 = vmatpush1.bf16.msra.mxu0 0
      %293 = vmatprep.subr.bf16.mxu0 0
      %294 = vmatpush1.bf16.msra.mxu0 0
      %295 = vmatprep.subr.bf16.mxu0 0
      %296 = vmatpush1.bf16.msra.mxu0 0
      %297 = vmatprep.subr.bf16.mxu0 0
      %298 = vmatpush1.bf16.msra.mxu0 0
      %299 = vmatprep.subr.bf16.mxu0 0
      %300 = vmatpush1.bf16.msra.mxu0 0
      %301 = vmatprep.subr.bf16.mxu0 0
      %302 = vmatpush1.bf16.msra.mxu0 0
      %303 = vmatprep.subr.bf16.mxu0 0
      %304 = vmatpush1.bf16.msra.mxu0 0
      %305 = vmatprep.subr.bf16.mxu0 0
      %306 = vmatpush1.bf16.msra.mxu0 0
      %307 = vmatprep.subr.bf16.mxu0 0
      %308 = vmatpush1.bf16.msra.mxu0 0
      %309 = vmatprep.subr.bf16.mxu0 0
      %310 = vmatpush1.bf16.msra.mxu0 0
      %311 = vmatprep.mubr.bf16.mxu0 0
      %312 = vmatmul.mubr.bf16.gmra.mrb[0].mxu0 %v209
      %v313 = vpop.f32.mrb[0].mxu0
      %v314 = vadd.f32 0.0, %v313
      %v315 = vpop.f32.mrb[0].mxu0
      %v316 = vadd.f32 0.0, %v315
      %v317 = vpop.f32.mrb[0].mxu0
      %v318 = vadd.f32 0.0, %v317
      %v319 = vpop.f32.mrb[0].mxu0
      %v320 = vadd.f32 0.0, %v319
      %321 = vdwg.mxu0
      %322 = vmatprep.subr.bf16.mxu0 %v228
      %323 = vmatpush1.bf16.msra.mxu0 %v225
      %324 = vmatprep.subr.bf16.mxu0 0
      %325 = vmatpush1.bf16.msra.mxu0 0
      %326 = vmatprep.subr.bf16.mxu0 0
      %327 = vmatpush1.bf16.msra.mxu0 0
      %328 = vmatprep.subr.bf16.mxu0 0
      %329 = vmatpush1.bf16.msra.mxu0 0
      %330 = vmatprep.subr.bf16.mxu0 0
      %331 = vmatpush1.bf16.msra.mxu0 0
      %332 = vmatprep.subr.bf16.mxu0 0
      %333 = vmatpush1.bf16.msra.mxu0 0
      %334 = vmatprep.subr.bf16.mxu0 0
      %335 = vmatpush1.bf16.msra.mxu0 0
      %336 = vmatprep.subr.bf16.mxu0 0
      %337 = vmatpush1.bf16.msra.mxu0 0
      %338 = vmatprep.subr.bf16.mxu0 0
      %339 = vmatpush1.bf16.msra.mxu0 0
      %340 = vmatprep.subr.bf16.mxu0 0
      %341 = vmatpush1.bf16.msra.mxu0 0
      %342 = vmatprep.subr.bf16.mxu0 0
      %343 = vmatpush1.bf16.msra.mxu0 0
      %344 = vmatprep.subr.bf16.mxu0 0
      %345 = vmatpush1.bf16.msra.mxu0 0
      %346 = vmatprep.subr.bf16.mxu0 0
      %347 = vmatpush1.bf16.msra.mxu0 0
      %348 = vmatprep.subr.bf16.mxu0 0
      %349 = vmatpush1.bf16.msra.mxu0 0
      %350 = vmatprep.subr.bf16.mxu0 0
      %351 = vmatpush1.bf16.msra.mxu0 0
      %352 = vmatprep.subr.bf16.mxu0 0
      %353 = vmatpush1.bf16.msra.mxu0 0
      %354 = vmatprep.mubr.bf16.mxu0 0
      %355 = vmatmul.mubr.bf16.gmra.mrb[0].mxu0 %v209
      %v356 = vpop.f32.mrb[0].mxu0
      %v357 = vadd.f32 0.0, %v356
      %v358 = vpop.f32.mrb[0].mxu0
      %v359 = vadd.f32 0.0, %v358
      %v360 = vpop.f32.mrb[0].mxu0
      %v361 = vadd.f32 0.0, %v360
      %v362 = vpop.f32.mrb[0].mxu0
      %v363 = vadd.f32 0.0, %v362
      %364 = vdwg.mxu0
      %365 = vmatprep.subr.bf16.mxu0 %v234
      %366 = vmatpush1.bf16.msra.mxu0 %v231
      %367 = vmatprep.subr.bf16.mxu0 0
      %368 = vmatpush1.bf16.msra.mxu0 0
      %369 = vmatprep.subr.bf16.mxu0 0
      %370 = vmatpush1.bf16.msra.mxu0 0
      %371 = vmatprep.subr.bf16.mxu0 0
      %372 = vmatpush1.bf16.msra.mxu0 0
      %373 = vmatprep.subr.bf16.mxu0 0
      %374 = vmatpush1.bf16.msra.mxu0 0
      %375 = vmatprep.subr.bf16.mxu0 0
      %376 = vmatpush1.bf16.msra.mxu0 0
      %377 = vmatprep.subr.bf16.mxu0 0
      %378 = vmatpush1.bf16.msra.mxu0 0
      %379 = vmatprep.subr.bf16.mxu0 0
      %380 = vmatpush1.bf16.msra.mxu0 0
      %381 = vmatprep.subr.bf16.mxu0 0
      %382 = vmatpush1.bf16.msra.mxu0 0
      %383 = vmatprep.subr.bf16.mxu0 0
      %384 = vmatpush1.bf16.msra.mxu0 0
      %385 = vmatprep.subr.bf16.mxu0 0
      %386 = vmatpush1.bf16.msra.mxu0 0
      %387 = vmatprep.subr.bf16.mxu0 0
      %388 = vmatpush1.bf16.msra.mxu0 0
      %389 = vmatprep.subr.bf16.mxu0 0
      %390 = vmatpush1.bf16.msra.mxu0 0
      %391 = vmatprep.subr.bf16.mxu0 0
      %392 = vmatpush1.bf16.msra.mxu0 0
      %393 = vmatprep.subr.bf16.mxu0 0
      %394 = vmatpush1.bf16.msra.mxu0 0
      %395 = vmatprep.subr.bf16.mxu0 0
      %396 = vmatpush1.bf16.msra.mxu0 0
      %397 = vmatprep.mubr.bf16.mxu0 0
      %398 = vmatmul.mubr.bf16.gmra.mrb[0].mxu0 %v209
      %v399 = vpop.f32.mrb[0].mxu0
      %v400 = vadd.f32 0.0, %v399
      %v401 = vpop.f32.mrb[0].mxu0
      %v402 = vadd.f32 0.0, %v401
      %v403 = vpop.f32.mrb[0].mxu0
      %v404 = vadd.f32 0.0, %v403
      %v405 = vpop.f32.mrb[0].mxu0
      %v406 = vadd.f32 0.0, %v405
      %407 = vdwg.mxu0
      %v408 = vpack.c.bf16 %v275, %v271
      %v409 = vpack.c.bf16 %v277, %v273
      %v410 = vpack.c.bf16 %v318, %v314
      %v411 = vpack.c.bf16 %v320, %v316
      %v412 = vpack.c.bf16 %v361, %v357
      %v413 = vpack.c.bf16 %v363, %v359
      %v414 = vpack.c.bf16 %v404, %v400
      %v415 = vpack.c.bf16 %v406, %v402
      %v424 = vunpack.c.l.b16 %v408
      %v425 = vunpack.c.l.b16 %v409
      %v426 = vunpack.c.l.b16 %v410
      %v427 = vunpack.c.l.b16 %v411
      %v428 = vunpack.c.l.b16 %v412
      %v429 = vunpack.c.l.b16 %v413
      %v430 = vunpack.c.l.b16 %v414
      %v431 = vunpack.c.l.b16 %v415
      %v432 = vunpack.c.h.b16 %v408
      %v433 = vunpack.c.h.b16 %v409
      %v434 = vunpack.c.h.b16 %v410
      %v435 = vunpack.c.h.b16 %v411
      %v436 = vunpack.c.h.b16 %v412
      %v437 = vunpack.c.h.b16 %v413
      %v438 = vunpack.c.h.b16 %v414
      %v439 = vunpack.c.h.b16 %v415
      %v440 = vpack.c.b16 %v425, %v424
      %v441 = vpack.c.b16 %v427, %v426
      %v442 = vpack.c.b16 %v429, %v428
      %v443 = vpack.c.b16 %v431, %v430
      %v444 = vpack.c.b16 %v433, %v432
      %v445 = vpack.c.b16 %v435, %v434
      %v446 = vpack.c.b16 %v437, %v436
      %v447 = vpack.c.b16 %v439, %v438
      %456 = vst [vmem:[%s181] sm:$0xff] %v440
      %457 = vst [vmem:[%s181 + $0x8] sm:$0xff] %v441
      %458 = vst [vmem:[%s181 + $0x10] sm:$0xff] %v442
      %459 = vst [vmem:[%s181 + $0x18] sm:$0xff] %v443
      %460 = vst [vmem:[%s181 + $0x20] sm:$0xff] %v444
      %461 = vst [vmem:[%s181 + $0x28] sm:$0xff] %v445
      %462 = vst [vmem:[%s181 + $0x30] sm:$0xff] %v446
      %463 = vst [vmem:[%s181 + $0x38] sm:$0xff] %v447
      %s464 = smul.u32 8, %s18
      %p465 = scmp.lt.s32.totalorder %s17, 1
      %s466 = scalar_select %p465, %s17, 1
      %p467 = scmp.lt.s32.totalorder %s464, 7
      %s468 = scalar_select %p467, %s464, 7
      %s469 = smul.addr %s466, 16
      %s470 = sadd.s32 %s468, %s469
      %s471 = smul.addr %s470, 4
      %s472 = scalar_lea.vmem %s2, %s471
      // Predicated region
      $region29: #{gcn_forward.3} parent=27 // pred_check
        %p473 = pneg %p94
      $region30: #{gcn_forward.3} parent=27 // pred_check_branch
        %475 = sbr.rel (%p473) target = $region32
      $region31: #{gcn_forward.3} parent=27 // pred_region
        %s476 = smul.u32 8, %s18
      $region32: #{gcn_forward.3} parent=27 // pred_fallthru
        _
    $region28: #{gcn_forward.3} parent=5 // pred_fallthru
      _
    %p477 = scmp.le.s32.totalorder 2, %s8
    // Predicated region
    $region33: #{gcn_forward.3} parent=5 // pred_check
      %p478 = pneg %p477
    $region34: #{gcn_forward.3} parent=5 // pred_check_branch
      %480 = sbr.rel (%p478) target = $region36
    $region35: #{gcn_forward.3} parent=5 // pred_region
      %s481 = ssub.s32 %s8, 2
      // Predicated region
      $region37: #{gcn_forward.3} parent=35 // pred_check
        %p482 = pneg %p100
      $region38: #{gcn_forward.3} parent=35 // pred_check_branch
        %484 = sbr.rel (%p482) target = $region40
      $region39: #{gcn_forward.3} parent=35 // pred_region
        %s485 = smul.u32 8, %s20
        %p486 = scmp.lt.s32.totalorder %s19, 1
        %s487 = scalar_select %p486, %s19, 1
        %p488 = scmp.lt.s32.totalorder %s485, 7
        %s489 = scalar_select %p488, %s485, 7
        %s490 = smul.addr %s487, 16
        %s491 = sadd.s32 %s489, %s490
        %s492 = smul.addr %s491, 4
        %s493 = scalar_lea.vmem %s2, %s492
      $region40: #{gcn_forward.3} parent=35 // pred_fallthru
        _
    $region36: #{gcn_forward.3} parent=5 // pred_fallthru
      _
  $region6: #{gcn_forward.3} parent=0 // loop_footer
    %s12 = sadd.s32 1, %s8
  $region7: #{gcn_forward.3} parent=0 // loop_footer_branch
    %7 = sbr.rel target = $region3
  $region8: #{gcn_forward.3} parent=0 // loop_exit
    _

// kernel: gcn_forward.5
$region0: #{gcn_forward.5}
  #allocation0 [shape = 'u32[]', space=smem, size = 0x4, offset = 0x4, fixed_abs, tag = 'smem constant byte address 0x4 - core index']
  #allocation1 [shape = 'u32[144,128]{1,0:T(1,128)}', space=vmem, size = 0x12000, scoped, tag = 'internal scratch']
  %s0 = inlined_call_operand.vmem [shape: f32[2,8,1024], index: 0, kind: input, shape index: {}, may-alias: {0,4}]
  %s1 = inlined_call_operand.vmem [shape: bf16[2,8,1024], index: 1, kind: input, shape index: {}]
  %s2 = inlined_call_operand.vmem [shape: f32[8,1], index: 2, kind: input, shape index: {}]
  %s3 = inlined_call_operand.vmem [shape: f32[8,1], index: 3, kind: input, shape index: {}]
  %s4 = inlined_call_operand.vmem [shape: f32[2,8,1024], index: 4, kind: output, shape index: {}, may-alias: {0,4}]
  %s5 = sld [smem:[#allocation0]]
  $region49: #{gcn_forward.5} parent=0
    _
  %s7 = ssub.s32 1, %s5
  %s8 = scalar_select 0, %s7, %s5
  loop: start=0, step=1, limit=4
  $region2: #{gcn_forward.5} parent=0 // loop_pre_header
    _
  $region3: #{gcn_forward.5} parent=0 // loop_header
    %s10 = sphi 0, %s14
    %p11 = scmp.ge.s32.totalorder %s10, 4
    %s17 = sphi 0, %s29
    %s18 = sphi 0, %s25
    %s19 = sphi 0, %s17
    %s20 = sphi 0, %s18
    %s21 = sphi 0, %s19
    %s22 = sphi 0, %s20
    %s34 = sphi 0, %s36
    %s37 = sphi 0, %s34
    %s38 = sphi 0, %s37
    %s54 = sphi 0, %s38
    %s62 = sphi 0, %s64
    %s65 = sphi 0, %s62
    %s66 = sphi 0, %s65
    %s82 = sphi 0, %s66
    %s86 = sphi 0, %s86
    %s88 = sphi 0, %s86
    %s89 = sphi 0, %s88
    %s103 = sphi 0, %s89
    %s107 = sphi 0, %s107
    %s109 = sphi 0, %s107
    %s110 = sphi 0, %s109
    %s124 = sphi 0, %s110
    %s132 = sphi 0, %s134
    %s135 = sphi 0, %s132
    %s136 = sphi 0, %s135
    %s152 = sphi 0, %s136
  $region4: #{gcn_forward.5} parent=0 // loop_header_branch
    %13 = sbr.rel (%p11) target = $region8
  $region5: #{gcn_forward.5} parent=0 // loop_body
    %s15 = ssub.s32 %s10, 1
    %s16 = ssub.s32 %s10, 2
    %s23 = sadd.s32 1, %s18
    %p24 = scmp.ge.s32.totalorder %s23, 1
    %s25 = scalar_select %p24, 0, %s23
    %s26 = sadd.s32 1, %s17
    %s27 = scalar_select %p24, %s26, %s17
    %p28 = scmp.ge.s32.totalorder %s27, 2
    %s29 = scalar_select %p28, 0, %s27
    %s30 = ssub.s32 %s17, %s29
    %s31 = ssub.s32 %s18, %s25
    %s32 = sor.u32 %s30, %s31
    %p33 = scmp.eq.s32.totalorder %s32, 0
    %s35 = sadd.s32 %s34, 1
    %s36 = scalar_select %p33, %s34, %s35
    %p39 = pneg %p33
    %p40 = scmp.eq.s32.totalorder %s10, 1
    %p41 = por %p39, %p40
    %p42 = scmp.ne.s32.totalorder %s34, %s37
    %p43 = scmp.eq.s32.totalorder %s10, 0
    %p44 = por %p42, %p43
    %p45 = scmp.ne.s32.totalorder %s34, %s37
    %p46 = scmp.eq.s32.totalorder %s15, 1
    %p47 = por %p45, %p46
    %p48 = scmp.ne.s32.totalorder %s37, %s38
    %p49 = scmp.eq.s32.totalorder %s15, 0
    %p50 = por %p48, %p49
    %p51 = scmp.ne.s32.totalorder %s37, %s38
    %p52 = scmp.eq.s32.totalorder %s16, 1
    %p53 = por %p51, %p52
    %p55 = scmp.ne.s32.totalorder %s38, %s54
    %p56 = scmp.eq.s32.totalorder %s16, 0
    %p57 = por %p55, %p56
    %s58 = ssub.s32 %s17, %s29
    %s59 = ssub.s32 %s18, %s25
    %s60 = sor.u32 %s58, %s59
    %p61 = scmp.eq.s32.totalorder %s60, 0
    %s63 = sadd.s32 %s62, 1
    %s64 = scalar_select %p61, %s62, %s63
    %p67 = pneg %p61
    %p68 = scmp.eq.s32.totalorder %s10, 1
    %p69 = por %p67, %p68
    %p70 = scmp.ne.s32.totalorder %s62, %s65
    %p71 = scmp.eq.s32.totalorder %s10, 0
    %p72 = por %p70, %p71
    %p73 = scmp.ne.s32.totalorder %s62, %s65
    %p74 = scmp.eq.s32.totalorder %s15, 1
    %p75 = por %p73, %p74
    %p76 = scmp.ne.s32.totalorder %s65, %s66
    %p77 = scmp.eq.s32.totalorder %s15, 0
    %p78 = por %p76, %p77
    %p79 = scmp.ne.s32.totalorder %s65, %s66
    %p80 = scmp.eq.s32.totalorder %s16, 1
    %p81 = por %p79, %p80
    %p83 = scmp.ne.s32.totalorder %s66, %s82
    %p84 = scmp.eq.s32.totalorder %s16, 0
    %p85 = por %p83, %p84
    %s87 = sadd.s32 %s86, 1
    %p90 = scmp.eq.s32.totalorder %s10, 1
    %p91 = scmp.ne.s32.totalorder %s86, %s88
    %p92 = scmp.eq.s32.totalorder %s10, 0
    %p93 = por %p91, %p92
    %p94 = scmp.ne.s32.totalorder %s86, %s88
    %p95 = scmp.eq.s32.totalorder %s15, 1
    %p96 = por %p94, %p95
    %p97 = scmp.ne.s32.totalorder %s88, %s89
    %p98 = scmp.eq.s32.totalorder %s15, 0
    %p99 = por %p97, %p98
    %p100 = scmp.ne.s32.totalorder %s88, %s89
    %p101 = scmp.eq.s32.totalorder %s16, 1
    %p102 = por %p100, %p101
    %p104 = scmp.ne.s32.totalorder %s89, %s103
    %p105 = scmp.eq.s32.totalorder %s16, 0
    %p106 = por %p104, %p105
    %s108 = sadd.s32 %s107, 1
    %p111 = scmp.eq.s32.totalorder %s10, 1
    %p112 = scmp.ne.s32.totalorder %s107, %s109
    %p113 = scmp.eq.s32.totalorder %s10, 0
    %p114 = por %p112, %p113
    %p115 = scmp.ne.s32.totalorder %s107, %s109
    %p116 = scmp.eq.s32.totalorder %s15, 1
    %p117 = por %p115, %p116
    %p118 = scmp.ne.s32.totalorder %s109, %s110
    %p119 = scmp.eq.s32.totalorder %s15, 0
    %p120 = por %p118, %p119
    %p121 = scmp.ne.s32.totalorder %s109, %s110
    %p122 = scmp.eq.s32.totalorder %s16, 1
    %p123 = por %p121, %p122
    %p125 = scmp.ne.s32.totalorder %s110, %s124
    %p126 = scmp.eq.s32.totalorder %s16, 0
    %p127 = por %p125, %p126
    %s128 = ssub.s32 %s17, %s29
    %s129 = ssub.s32 %s18, %s25
    %s130 = sor.u32 %s128, %s129
    %p131 = scmp.eq.s32.totalorder %s130, 0
    %s133 = sadd.s32 %s132, 1
    %s134 = scalar_select %p131, %s132, %s133
    %p137 = pneg %p131
    %p138 = scmp.eq.s32.totalorder %s10, 1
    %p139 = por %p137, %p138
    %p140 = scmp.ne.s32.totalorder %s132, %s135
    %p141 = scmp.eq.s32.totalorder %s10, 0
    %p142 = por %p140, %p141
    %p143 = scmp.ne.s32.totalorder %s132, %s135
    %p144 = scmp.eq.s32.totalorder %s15, 1
    %p145 = por %p143, %p144
    %p146 = scmp.ne.s32.totalorder %s135, %s136
    %p147 = scmp.eq.s32.totalorder %s15, 0
    %p148 = por %p146, %p147
    %p149 = scmp.ne.s32.totalorder %s135, %s136
    %p150 = scmp.eq.s32.totalorder %s16, 1
    %p151 = por %p149, %p150
    %p153 = scmp.ne.s32.totalorder %s136, %s152
    %p154 = scmp.eq.s32.totalorder %s16, 0
    %p155 = por %p153, %p154
    %p156 = scmp.le.s32.totalorder 1, %s10
    %p157 = scmp.lt.s32.totalorder %s10, 3
    %p158 = pnand %p156, %p157
    %p159 = pneg %p158
    // Predicated region
    $region9: #{gcn_forward.5} parent=5 // pred_check
      _
    $region10: #{gcn_forward.5} parent=5 // pred_check_branch
      %161 = sbr.rel (%p158) target = $region12
    $region11: #{gcn_forward.5} parent=5 // pred_region
      %s162 = ssub.s32 %s10, 1
      // Predicated region
      $region13: #{gcn_forward.5} parent=11 // pred_check
        %p163 = pneg %p99
      $region14: #{gcn_forward.5} parent=11 // pred_check_branch
        %165 = sbr.rel (%p163) target = $region16
      $region15: #{gcn_forward.5} parent=11 // pred_region
        _
      $region16: #{gcn_forward.5} parent=11 // pred_fallthru
        _
      // Predicated region
      $region17: #{gcn_forward.5} parent=11 // pred_check
        %p166 = pneg %p120
      $region18: #{gcn_forward.5} parent=11 // pred_check_branch
        %168 = sbr.rel (%p166) target = $region20
      $region19: #{gcn_forward.5} parent=11 // pred_region
        _
      $region20: #{gcn_forward.5} parent=11 // pred_fallthru
        _
    $region12: #{gcn_forward.5} parent=5 // pred_fallthru
      _
    %p169 = scmp.lt.s32.totalorder %s10, 2
    // Predicated region
    $region21: #{gcn_forward.5} parent=5 // pred_check
      %p170 = pneg %p169
    $region22: #{gcn_forward.5} parent=5 // pred_check_branch
      %172 = sbr.rel (%p170) target = $region24
    $region23: #{gcn_forward.5} parent=5 // pred_region
      // Predicated region
      $region25: #{gcn_forward.5} parent=23 // pred_check
        %p173 = pneg %p44
      $region26: #{gcn_forward.5} parent=23 // pred_check_branch
        %175 = sbr.rel (%p173) target = $region28
      $region27: #{gcn_forward.5} parent=23 // pred_region
        %s176 = smul.u32 8, %s18
        %p177 = scmp.lt.s32.totalorder %s17, 1
        %s178 = scalar_select %p177, %s17, 1
        %p179 = scmp.lt.s32.totalorder %s176, 7
        %s180 = scalar_select %p179, %s176, 7
        %s181 = smul.addr %s178, 8
        %s182 = sadd.s32 %s180, %s181
        %s183 = smul.addr %s182, 8
        %s184 = scalar_lea.vmem %s0, %s183
        %s185 = smul.u32 8, %s18
      $region28: #{gcn_forward.5} parent=23 // pred_fallthru
        _
      // Predicated region
      $region29: #{gcn_forward.5} parent=23 // pred_check
        %p186 = pneg %p72
      $region30: #{gcn_forward.5} parent=23 // pred_check_branch
        %188 = sbr.rel (%p186) target = $region32
      $region31: #{gcn_forward.5} parent=23 // pred_region
        %s189 = smul.u32 8, %s18
        %p190 = scmp.lt.s32.totalorder %s17, 1
        %s191 = scalar_select %p190, %s17, 1
        %p192 = scmp.lt.s32.totalorder %s189, 7
        %s193 = scalar_select %p192, %s189, 7
        %s194 = smul.addr %s191, 8
        %s195 = sadd.s32 %s193, %s194
        %s196 = smul.addr %s195, 4
        %s197 = scalar_lea.vmem %s1, %s196
        %s198 = smul.u32 8, %s18
      $region32: #{gcn_forward.5} parent=23 // pred_fallthru
        _
    $region24: #{gcn_forward.5} parent=5 // pred_fallthru
      _
    %p199 = scmp.le.s32.totalorder 1, %s10
    %p200 = scmp.lt.s32.totalorder %s10, 3
    %p201 = pnand %p199, %p200
    %p202 = pneg %p201
    // Predicated region
    $region33: #{gcn_forward.5} parent=5 // pred_check
      _
    $region34: #{gcn_forward.5} parent=5 // pred_check_branch
      %204 = sbr.rel (%p201) target = $region36
    $region35: #{gcn_forward.5} parent=5 // pred_region
      %s205 = ssub.s32 %s10, 1
      %s206 = smul.u32 8, %s20
      %p207 = scmp.lt.s32.totalorder %s19, 1
      %s208 = scalar_select %p207, %s19, 1
      %p209 = scmp.lt.s32.totalorder %s206, 7
      %s210 = scalar_select %p209, %s206, 7
      %s211 = smul.addr %s208, 8
      %s212 = sadd.s32 %s210, %s211
      %s213 = smul.addr %s212, 8
      %s214 = scalar_lea.vmem %s0, %s213
      %p215 = pneg %p50
      %p216 = pneg %p47
      %s217 = smul.u32 8, %s20
      %p218 = scmp.lt.s32.totalorder %s19, 1
      %s219 = scalar_select %p218, %s19, 1
      %p220 = scmp.lt.s32.totalorder %s217, 7
      %s221 = scalar_select %p220, %s217, 7
      %s222 = smul.addr %s219, 8
      %s223 = sadd.s32 %s221, %s222
      %s224 = smul.addr %s223, 4
      %s225 = scalar_lea.vmem %s1, %s224
      %p226 = pneg %p78
      %p227 = pneg %p75
      %p228 = pneg %p99
      %p229 = pneg %p96
      %p230 = pneg %p120
      %p231 = pneg %p117
      %p232 = pneg %p148
      %p233 = pneg %p145
      %s234 = smul.u32 8, %s20
      %p235 = scmp.lt.s32.totalorder %s19, 1
      %s236 = scalar_select %p235, %s19, 1
      %p237 = scmp.lt.s32.totalorder %s234, 7
      %s238 = scalar_select %p237, %s234, 7
      %s239 = smul.addr %s236, 8
      %s240 = sadd.s32 %s238, %s239
      %s241 = smul.addr %s240, 8
      %s242 = scalar_lea.vmem %s4, %s241
      %s243 = smul.u32 8, %s20
      %p244 = scmp.lt.s32.totalorder %s19, 1
      %s245 = scalar_select %p244, %s19, 1
      %p246 = scmp.lt.s32.totalorder %s243, 7
      %s247 = scalar_select %p246, %s243, 7
      %s248 = smul.addr %s245, 8
      %s249 = sadd.s32 %s247, %s248
      %s250 = smul.addr %s249, 8
      %s251 = scalar_lea.vmem %s0, %s250
      %s252 = smul.u32 8, %s20
      %s253 = smul.u32 8, %s20
      %p254 = scmp.lt.s32.totalorder %s19, 1
      %s255 = scalar_select %p254, %s19, 1
      %p256 = scmp.lt.s32.totalorder %s253, 7
      %s257 = scalar_select %p256, %s253, 7
      %s258 = smul.addr %s255, 8
      %s259 = sadd.s32 %s257, %s258
      %s260 = smul.addr %s259, 4
      %s261 = scalar_lea.vmem %s1, %s260
      %s262 = smul.u32 8, %s20
      %s263 = smul.u32 8, %s20
      %p264 = scmp.lt.s32.totalorder %s19, 1
      %s265 = scalar_select %p264, %s19, 1
      %p266 = scmp.lt.s32.totalorder %s263, 7
      %s267 = scalar_select %p266, %s263, 7
      %s268 = smul.addr %s265, 8
      %s269 = sadd.s32 %s267, %s268
      %s270 = smul.addr %s269, 8
      %s271 = scalar_lea.vmem %s4, %s270
      %s272 = smul.u32 8, %s20
      %v273 = vld [vmem:[%s251] sm:$0xff]
      %v274 = vld [vmem:[%s251 + $0x8] sm:$0xff]
      %v275 = vld [vmem:[%s251 + $0x10] sm:$0xff]
      %v276 = vld [vmem:[%s251 + $0x18] sm:$0xff]
      %v277 = vld [vmem:[%s251 + $0x20] sm:$0xff]
      %v278 = vld [vmem:[%s251 + $0x28] sm:$0xff]
      %v279 = vld [vmem:[%s251 + $0x30] sm:$0xff]
      %v280 = vld [vmem:[%s251 + $0x38] sm:$0xff]
      %v281 = vld [vmem:[%s261] sm:$0xff]
      %v282 = vld [vmem:[%s261 + $0x8] sm:$0xff]
      %v283 = vld [vmem:[%s261 + $0x10] sm:$0xff]
      %v284 = vld [vmem:[%s261 + $0x18] sm:$0xff]
      %v285 = vunpack.c.l.bf16 %v281
      %v286 = vunpack.c.h.bf16 %v281
      %v287 = vunpack.c.l.bf16 %v282
      %v288 = vunpack.c.h.bf16 %v282
      %v289 = vunpack.c.l.bf16 %v283
      %v290 = vunpack.c.h.bf16 %v283
      %v291 = vunpack.c.l.bf16 %v284
      %v292 = vunpack.c.h.bf16 %v284
      %v293 = vld [vmem:[%s2] sm:$0xff]
      %295 = vset.pattern.permute.xlu0 0
      %296 = vperm.xlu0 %295, %v293
      %v297 = vpop.permute.xlu0 %296
      %v299 = vmul.f32 %v285, %v297
      %v300 = vmul.f32 %v286, %v297
      %v301 = vmul.f32 %v287, %v297
      %v302 = vmul.f32 %v288, %v297
      %v303 = vmul.f32 %v289, %v297
      %v304 = vmul.f32 %v290, %v297
      %v305 = vmul.f32 %v291, %v297
      %v306 = vmul.f32 %v292, %v297
      %v307 = vadd.f32 %v273, %v299
      %v308 = vadd.f32 %v274, %v300
      %v309 = vadd.f32 %v275, %v301
      %v310 = vadd.f32 %v276, %v302
      %v311 = vadd.f32 %v277, %v303
      %v312 = vadd.f32 %v278, %v304
      %v313 = vadd.f32 %v279, %v305
      %v314 = vadd.f32 %v280, %v306
      %v315 = vld [vmem:[%s3] sm:$0xff]
      %317 = vset.pattern.permute.xlu0 0
      %318 = vperm.xlu0 %317, %v315
      %v319 = vpop.permute.xlu0 %318
      %v321 = vadd.f32 %v307, %v319
      %v322 = vadd.f32 %v308, %v319
      %v323 = vadd.f32 %v309, %v319
      %v324 = vadd.f32 %v310, %v319
      %v325 = vadd.f32 %v311, %v319
      %v326 = vadd.f32 %v312, %v319
      %v327 = vadd.f32 %v313, %v319
      %v328 = vadd.f32 %v314, %v319
      %329 = vst [vmem:[%s271] sm:$0xff] %v321
      %330 = vst [vmem:[%s271 + $0x8] sm:$0xff] %v322
      %331 = vst [vmem:[%s271 + $0x10] sm:$0xff] %v323
      %332 = vst [vmem:[%s271 + $0x18] sm:$0xff] %v324
      %333 = vst [vmem:[%s271 + $0x20] sm:$0xff] %v325
      %334 = vst [vmem:[%s271 + $0x28] sm:$0xff] %v326
      %335 = vst [vmem:[%s271 + $0x30] sm:$0xff] %v327
      %336 = vst [vmem:[%s271 + $0x38] sm:$0xff] %v328
      %s337 = smul.u32 8, %s20
      %p338 = scmp.lt.s32.totalorder %s19, 1
      %s339 = scalar_select %p338, %s19, 1
      %p340 = scmp.lt.s32.totalorder %s337, 7
      %s341 = scalar_select %p340, %s337, 7
      %s342 = smul.addr %s339, 8
      %s343 = sadd.s32 %s341, %s342
      %s344 = smul.addr %s343, 8
      %s345 = scalar_lea.vmem %s4, %s344
      // Predicated region
      $region37: #{gcn_forward.5} parent=35 // pred_check
        %p346 = pneg %p145
      $region38: #{gcn_forward.5} parent=35 // pred_check_branch
        %348 = sbr.rel (%p346) target = $region40
      $region39: #{gcn_forward.5} parent=35 // pred_region
        %s349 = smul.u32 8, %s20
      $region40: #{gcn_forward.5} parent=35 // pred_fallthru
        _
    $region36: #{gcn_forward.5} parent=5 // pred_fallthru
      _
    %p350 = scmp.le.s32.totalorder 2, %s10
    // Predicated region
    $region41: #{gcn_forward.5} parent=5 // pred_check
      %p351 = pneg %p350
    $region42: #{gcn_forward.5} parent=5 // pred_check_branch
      %353 = sbr.rel (%p351) target = $region44
    $region43: #{gcn_forward.5} parent=5 // pred_region
      %s354 = ssub.s32 %s10, 2
      // Predicated region
      $region45: #{gcn_forward.5} parent=43 // pred_check
        %p355 = pneg %p151
      $region46: #{gcn_forward.5} parent=43 // pred_check_branch
        %357 = sbr.rel (%p355) target = $region48
      $region47: #{gcn_forward.5} parent=43 // pred_region
        %s358 = smul.u32 8, %s22
        %p359 = scmp.lt.s32.totalorder %s21, 1
        %s360 = scalar_select %p359, %s21, 1
        %p361 = scmp.lt.s32.totalorder %s358, 7
        %s362 = scalar_select %p361, %s358, 7
        %s363 = smul.addr %s360, 8
        %s364 = sadd.s32 %s362, %s363
        %s365 = smul.addr %s364, 8
        %s366 = scalar_lea.vmem %s4, %s365
      $region48: #{gcn_forward.5} parent=43 // pred_fallthru
        _
    $region44: #{gcn_forward.5} parent=5 // pred_fallthru
      _
  $region6: #{gcn_forward.5} parent=0 // loop_footer
    %s14 = sadd.s32 1, %s10
  $region7: #{gcn_forward.5} parent=0 // loop_footer_branch
    %9 = sbr.rel target = $region3
  $region8: #{gcn_forward.5} parent=0 // loop_exit
    _

// kernel: gcn_forward.4
$region0: #{gcn_forward.4}
  #allocation0 [shape = 'u32[]', space=smem, size = 0x4, offset = 0x4, fixed_abs, tag = 'smem constant byte address 0x4 - core index']
  #allocation1 [shape = 'u32[144,128]{1,0:T(1,128)}', space=vmem, size = 0x12000, scoped, tag = 'internal scratch']
  #allocation2 [shape = 'bf16[8,1024]{1,0:T(8,128)(2,1)}', space=vmem, size = 0x4000, scoped, tag = 'scratch operand']
  #allocation3 [shape = 'f32[1,1024]{1,0:T(1,128)}', space=vmem, size = 0x1000, scoped, tag = 'scratch operand']
  #allocation4 [shape = 'f32[1,1024]{1,0:T(1,128)}', space=vmem, size = 0x1000, scoped, tag = 'scratch operand']
  #allocation5 [shape = 'f32[8,1024]{1,0:T(8,128)}', space=vmem, size = 0x8000, scoped, tag = 'scratch operand']
  %s0 = inlined_call_operand.vmem [shape: f32[2,8,1024], index: 0, kind: input, shape index: {}]
  %s1 = inlined_call_operand.vmem [shape: bf16[2,16,1024], index: 1, kind: input, shape index: {}]
  %s2 = inlined_call_operand.vmem [shape: bf16[8,8], index: 2, kind: input, shape index: {}]
  %s3 = inlined_call_operand.vmem [shape: bf16[8,8], index: 3, kind: input, shape index: {}]
  %s4 = inlined_call_operand.vmem [shape: bf16[2,8,1024], index: 4, kind: output, shape index: {0}]
  %s5 = inlined_call_operand.vmem [shape: f32[2,1,2,8], index: 5, kind: output, shape index: {1}]
  %6 = xla_tuple %s4, %s5
  %s7 = sld [smem:[#allocation0]]
  $region65: #{gcn_forward.4} parent=0
    _
  %s9 = ssub.s32 1, %s7
  %s10 = scalar_select 0, %s9, %s7
  loop: start=0, step=1, limit=4
  $region2: #{gcn_forward.4} parent=0 // loop_pre_header
    _
  $region3: #{gcn_forward.4} parent=0 // loop_header
    %s12 = sphi 0, %s16
    %p13 = scmp.ge.s32.totalorder %s12, 4
    %s19 = sphi 0, %s38
    %s20 = sphi 0, %s34
    %s21 = sphi 0, %s30
    %s22 = sphi 0, %s19
    %s23 = sphi 0, %s20
    %s24 = sphi 0, %s21
    %s25 = sphi 0, %s22
    %s26 = sphi 0, %s23
    %s27 = sphi 0, %s24
    %s43 = sphi 0, %s45
    %s46 = sphi 0, %s43
    %s47 = sphi 0, %s46
    %s63 = sphi 0, %s47
    %s71 = sphi 0, %s73
    %s74 = sphi 0, %s71
    %s75 = sphi 0, %s74
    %s91 = sphi 0, %s75
    %s95 = sphi 0, %s95
    %s97 = sphi 0, %s95
    %s98 = sphi 0, %s97
    %s112 = sphi 0, %s98
    %s116 = sphi 0, %s116
    %s118 = sphi 0, %s116
    %s119 = sphi 0, %s118
    %s133 = sphi 0, %s119
    %s141 = sphi 0, %s143
    %s144 = sphi 0, %s141
    %s145 = sphi 0, %s144
    %s161 = sphi 0, %s145
    %s169 = sphi 0, %s171
    %s172 = sphi 0, %s169
    %s173 = sphi 0, %s172
    %s189 = sphi 0, %s173
  $region4: #{gcn_forward.4} parent=0 // loop_header_branch
    %15 = sbr.rel (%p13) target = $region8
  $region5: #{gcn_forward.4} parent=0 // loop_body
    %s17 = ssub.s32 %s12, 1
    %s18 = ssub.s32 %s12, 2
    %s28 = sadd.s32 1, %s21
    %p29 = scmp.ge.s32.totalorder %s28, 1
    %s30 = scalar_select %p29, 0, %s28
    %s31 = sadd.s32 1, %s20
    %s32 = scalar_select %p29, %s31, %s20
    %p33 = scmp.ge.s32.totalorder %s32, 1
    %s34 = scalar_select %p33, 0, %s32
    %s35 = sadd.s32 1, %s19
    %s36 = scalar_select %p33, %s35, %s19
    %p37 = scmp.ge.s32.totalorder %s36, 2
    %s38 = scalar_select %p37, 0, %s36
    %s39 = ssub.s32 %s19, %s38
    %s40 = ssub.s32 %s20, %s34
    %s41 = sor.u32 %s39, %s40
    %p42 = scmp.eq.s32.totalorder %s41, 0
    %s44 = sadd.s32 %s43, 1
    %s45 = scalar_select %p42, %s43, %s44
    %p48 = pneg %p42
    %p49 = scmp.eq.s32.totalorder %s12, 1
    %p50 = por %p48, %p49
    %p51 = scmp.ne.s32.totalorder %s43, %s46
    %p52 = scmp.eq.s32.totalorder %s12, 0
    %p53 = por %p51, %p52
    %p54 = scmp.ne.s32.totalorder %s43, %s46
    %p55 = scmp.eq.s32.totalorder %s17, 1
    %p56 = por %p54, %p55
    %p57 = scmp.ne.s32.totalorder %s46, %s47
    %p58 = scmp.eq.s32.totalorder %s17, 0
    %p59 = por %p57, %p58
    %p60 = scmp.ne.s32.totalorder %s46, %s47
    %p61 = scmp.eq.s32.totalorder %s18, 1
    %p62 = por %p60, %p61
    %p64 = scmp.ne.s32.totalorder %s47, %s63
    %p65 = scmp.eq.s32.totalorder %s18, 0
    %p66 = por %p64, %p65
    %s67 = ssub.s32 %s19, %s38
    %s68 = ssub.s32 %s21, %s30
    %s69 = sor.u32 %s67, %s68
    %p70 = scmp.eq.s32.totalorder %s69, 0
    %s72 = sadd.s32 %s71, 1
    %s73 = scalar_select %p70, %s71, %s72
    %p76 = pneg %p70
    %p77 = scmp.eq.s32.totalorder %s12, 1
    %p78 = por %p76, %p77
    %p79 = scmp.ne.s32.totalorder %s71, %s74
    %p80 = scmp.eq.s32.totalorder %s12, 0
    %p81 = por %p79, %p80
    %p82 = scmp.ne.s32.totalorder %s71, %s74
    %p83 = scmp.eq.s32.totalorder %s17, 1
    %p84 = por %p82, %p83
    %p85 = scmp.ne.s32.totalorder %s74, %s75
    %p86 = scmp.eq.s32.totalorder %s17, 0
    %p87 = por %p85, %p86
    %p88 = scmp.ne.s32.totalorder %s74, %s75
    %p89 = scmp.eq.s32.totalorder %s18, 1
    %p90 = por %p88, %p89
    %p92 = scmp.ne.s32.totalorder %s75, %s91
    %p93 = scmp.eq.s32.totalorder %s18, 0
    %p94 = por %p92, %p93
    %s96 = sadd.s32 %s95, 1
    %p99 = scmp.eq.s32.totalorder %s12, 1
    %p100 = scmp.ne.s32.totalorder %s95, %s97
    %p101 = scmp.eq.s32.totalorder %s12, 0
    %p102 = por %p100, %p101
    %p103 = scmp.ne.s32.totalorder %s95, %s97
    %p104 = scmp.eq.s32.totalorder %s17, 1
    %p105 = por %p103, %p104
    %p106 = scmp.ne.s32.totalorder %s97, %s98
    %p107 = scmp.eq.s32.totalorder %s17, 0
    %p108 = por %p106, %p107
    %p109 = scmp.ne.s32.totalorder %s97, %s98
    %p110 = scmp.eq.s32.totalorder %s18, 1
    %p111 = por %p109, %p110
    %p113 = scmp.ne.s32.totalorder %s98, %s112
    %p114 = scmp.eq.s32.totalorder %s18, 0
    %p115 = por %p113, %p114
    %s117 = sadd.s32 %s116, 1
    %p120 = scmp.eq.s32.totalorder %s12, 1
    %p121 = scmp.ne.s32.totalorder %s116, %s118
    %p122 = scmp.eq.s32.totalorder %s12, 0
    %p123 = por %p121, %p122
    %p124 = scmp.ne.s32.totalorder %s116, %s118
    %p125 = scmp.eq.s32.totalorder %s17, 1
    %p126 = por %p124, %p125
    %p127 = scmp.ne.s32.totalorder %s118, %s119
    %p128 = scmp.eq.s32.totalorder %s17, 0
    %p129 = por %p127, %p128
    %p130 = scmp.ne.s32.totalorder %s118, %s119
    %p131 = scmp.eq.s32.totalorder %s18, 1
    %p132 = por %p130, %p131
    %p134 = scmp.ne.s32.totalorder %s119, %s133
    %p135 = scmp.eq.s32.totalorder %s18, 0
    %p136 = por %p134, %p135
    %s137 = ssub.s32 %s19, %s38
    %s138 = ssub.s32 %s20, %s34
    %s139 = sor.u32 %s137, %s138
    %p140 = scmp.eq.s32.totalorder %s139, 0
    %s142 = sadd.s32 %s141, 1
    %s143 = scalar_select %p140, %s141, %s142
    %p146 = pneg %p140
    %p147 = scmp.eq.s32.totalorder %s12, 1
    %p148 = por %p146, %p147
    %p149 = scmp.ne.s32.totalorder %s141, %s144
    %p150 = scmp.eq.s32.totalorder %s12, 0
    %p151 = por %p149, %p150
    %p152 = scmp.ne.s32.totalorder %s141, %s144
    %p153 = scmp.eq.s32.totalorder %s17, 1
    %p154 = por %p152, %p153
    %p155 = scmp.ne.s32.totalorder %s144, %s145
    %p156 = scmp.eq.s32.totalorder %s17, 0
    %p157 = por %p155, %p156
    %p158 = scmp.ne.s32.totalorder %s144, %s145
    %p159 = scmp.eq.s32.totalorder %s18, 1
    %p160 = por %p158, %p159
    %p162 = scmp.ne.s32.totalorder %s145, %s161
    %p163 = scmp.eq.s32.totalorder %s18, 0
    %p164 = por %p162, %p163
    %s165 = ssub.s32 %s19, %s38
    %s166 = ssub.s32 %s20, %s34
    %s167 = sor.u32 %s165, %s166
    %p168 = scmp.eq.s32.totalorder %s167, 0
    %s170 = sadd.s32 %s169, 1
    %s171 = scalar_select %p168, %s169, %s170
    %p174 = pneg %p168
    %p175 = scmp.eq.s32.totalorder %s12, 1
    %p176 = por %p174, %p175
    %p177 = scmp.ne.s32.totalorder %s169, %s172
    %p178 = scmp.eq.s32.totalorder %s12, 0
    %p179 = por %p177, %p178
    %p180 = scmp.ne.s32.totalorder %s169, %s172
    %p181 = scmp.eq.s32.totalorder %s17, 1
    %p182 = por %p180, %p181
    %p183 = scmp.ne.s32.totalorder %s172, %s173
    %p184 = scmp.eq.s32.totalorder %s17, 0
    %p185 = por %p183, %p184
    %p186 = scmp.ne.s32.totalorder %s172, %s173
    %p187 = scmp.eq.s32.totalorder %s18, 1
    %p188 = por %p186, %p187
    %p190 = scmp.ne.s32.totalorder %s173, %s189
    %p191 = scmp.eq.s32.totalorder %s18, 0
    %p192 = por %p190, %p191
    %p193 = scmp.le.s32.totalorder 1, %s12
    %p194 = scmp.lt.s32.totalorder %s12, 3
    %p195 = pnand %p193, %p194
    %p196 = pneg %p195
    // Predicated region
    $region9: #{gcn_forward.4} parent=5 // pred_check
      _
    $region10: #{gcn_forward.4} parent=5 // pred_check_branch
      %198 = sbr.rel (%p195) target = $region12
    $region11: #{gcn_forward.4} parent=5 // pred_region
      %s199 = ssub.s32 %s12, 1
      // Predicated region
      $region13: #{gcn_forward.4} parent=11 // pred_check
        %p200 = pneg %p108
      $region14: #{gcn_forward.4} parent=11 // pred_check_branch
        %202 = sbr.rel (%p200) target = $region16
      $region15: #{gcn_forward.4} parent=11 // pred_region
        _
      $region16: #{gcn_forward.4} parent=11 // pred_fallthru
        _
      // Predicated region
      $region17: #{gcn_forward.4} parent=11 // pred_check
        %p203 = pneg %p129
      $region18: #{gcn_forward.4} parent=11 // pred_check_branch
        %205 = sbr.rel (%p203) target = $region20
      $region19: #{gcn_forward.4} parent=11 // pred_region
        _
      $region20: #{gcn_forward.4} parent=11 // pred_fallthru
        _
    $region12: #{gcn_forward.4} parent=5 // pred_fallthru
      _
    %p206 = scmp.lt.s32.totalorder %s12, 2
    // Predicated region
    $region21: #{gcn_forward.4} parent=5 // pred_check
      %p207 = pneg %p206
    $region22: #{gcn_forward.4} parent=5 // pred_check_branch
      %209 = sbr.rel (%p207) target = $region24
    $region23: #{gcn_forward.4} parent=5 // pred_region
      // Predicated region
      $region25: #{gcn_forward.4} parent=23 // pred_check
        %p210 = pneg %p53
      $region26: #{gcn_forward.4} parent=23 // pred_check_branch
        %212 = sbr.rel (%p210) target = $region28
      $region27: #{gcn_forward.4} parent=23 // pred_region
        %s213 = smul.u32 8, %s20
        %p214 = scmp.lt.s32.totalorder %s19, 1
        %s215 = scalar_select %p214, %s19, 1
        %p216 = scmp.lt.s32.totalorder %s213, 7
        %s217 = scalar_select %p216, %s213, 7
        %s218 = smul.addr %s215, 8
        %s219 = sadd.s32 %s217, %s218
        %s220 = smul.addr %s219, 8
        %s221 = scalar_lea.vmem %s0, %s220
        %s222 = smul.u32 8, %s20
      $region28: #{gcn_forward.4} parent=23 // pred_fallthru
        _
      // Predicated region
      $region29: #{gcn_forward.4} parent=23 // pred_check
        %p223 = pneg %p81
      $region30: #{gcn_forward.4} parent=23 // pred_check_branch
        %225 = sbr.rel (%p223) target = $region32
      $region31: #{gcn_forward.4} parent=23 // pred_region
        %s226 = smul.u32 8, %s21
        %p227 = scmp.lt.s32.totalorder %s19, 1
        %s228 = scalar_select %p227, %s19, 1
        %p229 = scmp.lt.s32.totalorder %s226, 7
        %s230 = scalar_select %p229, %s226, 7
        %s231 = smul.addr %s228, 16
        %s232 = sadd.s32 %s230, %s231
        %s233 = smul.addr %s232, 4
        %s234 = scalar_lea.vmem %s1, %s233
        %s235 = smul.u32 8, %s21
      $region32: #{gcn_forward.4} parent=23 // pred_fallthru
        _
    $region24: #{gcn_forward.4} parent=5 // pred_fallthru
      _
    %p236 = scmp.le.s32.totalorder 1, %s12
    %p237 = scmp.lt.s32.totalorder %s12, 3
    %p238 = pnand %p236, %p237
    %p239 = pneg %p238
    // Predicated region
    $region33: #{gcn_forward.4} parent=5 // pred_check
      _
    $region34: #{gcn_forward.4} parent=5 // pred_check_branch
      %241 = sbr.rel (%p238) target = $region36
    $region35: #{gcn_forward.4} parent=5 // pred_region
      %s242 = ssub.s32 %s12, 1
      %s243 = smul.u32 8, %s23
      %p244 = scmp.lt.s32.totalorder %s22, 1
      %s245 = scalar_select %p244, %s22, 1
      %p246 = scmp.lt.s32.totalorder %s243, 7
      %s247 = scalar_select %p246, %s243, 7
      %s248 = smul.addr %s245, 8
      %s249 = sadd.s32 %s247, %s248
      %s250 = smul.addr %s249, 8
      %s251 = scalar_lea.vmem %s0, %s250
      %p252 = pneg %p59
      %p253 = pneg %p56
      %s254 = smul.u32 8, %s24
      %p255 = scmp.lt.s32.totalorder %s22, 1
      %s256 = scalar_select %p255, %s22, 1
      %p257 = scmp.lt.s32.totalorder %s254, 7
      %s258 = scalar_select %p257, %s254, 7
      %s259 = smul.addr %s256, 16
      %s260 = sadd.s32 %s258, %s259
      %s261 = smul.addr %s260, 4
      %s262 = scalar_lea.vmem %s1, %s261
      %p263 = pneg %p87
      %p264 = pneg %p84
      %p265 = pneg %p108
      %p266 = pneg %p105
      %p267 = pneg %p129
      %p268 = pneg %p126
      %p269 = pneg %p157
      %p270 = pneg %p154
      %s271 = smul.u32 8, %s23
      %p272 = scmp.lt.s32.totalorder %s22, 1
      %s273 = scalar_select %p272, %s22, 1
      %p274 = scmp.lt.s32.totalorder %s271, 7
      %s275 = scalar_select %p274, %s271, 7
      %s276 = smul.addr %s273, 8
      %s277 = sadd.s32 %s275, %s276
      %s278 = smul.addr %s277, 4
      %s279 = scalar_lea.vmem %s4, %s278
      %p280 = pneg %p185
      %p281 = pneg %p182
      %p282 = scmp.lt.s32.totalorder %s22, 1
      %s283 = scalar_select %p282, %s22, 1
      %p284 = scmp.lt.s32.totalorder %s23, 0
      %s285 = scalar_select %p284, %s23, 0
      %s286 = sadd.s32 %s285, %s283
      %s287 = smul.addr %s286, 2
      %s288 = scalar_lea.vmem %s5, %s287
      %s289 = smul.u32 8, %s23
      %p290 = scmp.lt.s32.totalorder %s22, 1
      %s291 = scalar_select %p290, %s22, 1
      %p292 = scmp.lt.s32.totalorder %s289, 7
      %s293 = scalar_select %p292, %s289, 7
      %s294 = smul.addr %s291, 8
      %s295 = sadd.s32 %s293, %s294
      %s296 = smul.addr %s295, 8
      %s297 = scalar_lea.vmem %s0, %s296
      %s298 = smul.u32 8, %s23
      %s299 = smul.u32 8, %s24
      %p300 = scmp.lt.s32.totalorder %s22, 1
      %s301 = scalar_select %p300, %s22, 1
      %p302 = scmp.lt.s32.totalorder %s299, 7
      %s303 = scalar_select %p302, %s299, 7
      %s304 = smul.addr %s301, 16
      %s305 = sadd.s32 %s303, %s304
      %s306 = smul.addr %s305, 4
      %s307 = scalar_lea.vmem %s1, %s306
      %s308 = smul.u32 8, %s24
      %s309 = smul.u32 8, %s23
      %p310 = scmp.lt.s32.totalorder %s22, 1
      %s311 = scalar_select %p310, %s22, 1
      %p312 = scmp.lt.s32.totalorder %s309, 7
      %s313 = scalar_select %p312, %s309, 7
      %s314 = smul.addr %s311, 8
      %s315 = sadd.s32 %s313, %s314
      %s316 = smul.addr %s315, 4
      %s317 = scalar_lea.vmem %s4, %s316
      %s318 = smul.u32 8, %s23
      %p319 = scmp.lt.s32.totalorder %s22, 1
      %s320 = scalar_select %p319, %s22, 1
      %p321 = scmp.lt.s32.totalorder %s23, 0
      %s322 = scalar_select %p321, %s23, 0
      %s323 = sadd.s32 %s322, %s320
      %s324 = smul.addr %s323, 2
      %s325 = scalar_lea.vmem %s5, %s324
      %p327 = scmp.eq.s32.totalorder %s24, 0
      // Predicated region
      $region37: #{gcn_forward.4} parent=35 // pred_check
        %p328 = pneg %p327
      $region38: #{gcn_forward.4} parent=35 // pred_check_branch
        %330 = sbr.rel (%p328) target = $region40
      $region39: #{gcn_forward.4} parent=35 // pred_region
        %v331 = vld [vmem:[%s2] sm:$0xf]
        %v332 = vld [vmem:[%s297] sm:$0xff]
        %v333 = vld [vmem:[%s297 + $0x8] sm:$0xff]
        %v334 = vld [vmem:[%s297 + $0x10] sm:$0xff]
        %v335 = vld [vmem:[%s297 + $0x18] sm:$0xff]
        %v336 = vld [vmem:[%s297 + $0x20] sm:$0xff]
        %v337 = vld [vmem:[%s297 + $0x28] sm:$0xff]
        %v338 = vld [vmem:[%s297 + $0x30] sm:$0xff]
        %v339 = vld [vmem:[%s297 + $0x38] sm:$0xff]
        %v340 = vpack.c.bf16 %v332, %v332
        %v341 = vpack.c.bf16 %v333, %v333
        %v342 = vpack.c.bf16 %v334, %v334
        %v343 = vpack.c.bf16 %v335, %v335
        %v344 = vpack.c.bf16 %v336, %v336
        %v345 = vpack.c.bf16 %v337, %v337
        %v346 = vpack.c.bf16 %v338, %v338
        %v347 = vpack.c.bf16 %v339, %v339
        %vm348 = vcmask 64512
        %v350 = vsel %vm348, %v331, 0
        %vm352 = vcmask 1043456
        %v354 = vsel %vm352, %v340, 0
        %v357 = vsel %vm352, %v341, 0
        %v360 = vsel %vm352, %v342, 0
        %v363 = vsel %vm352, %v343, 0
        %v366 = vsel %vm352, %v344, 0
        %v369 = vsel %vm352, %v345, 0
        %v372 = vsel %vm352, %v346, 0
        %v375 = vsel %vm352, %v347, 0
        %377 = vmatprep.subr.bf16.mxu0 %v357
        %378 = vmatpush1.bf16.msra.mxu0 %v354
        %379 = vmatprep.subr.bf16.mxu0 0
        %380 = vmatpush1.bf16.msra.mxu0 0
        %381 = vmatprep.subr.bf16.mxu0 0
        %382 = vmatpush1.bf16.msra.mxu0 0
        %383 = vmatprep.subr.bf16.mxu0 0
        %384 = vmatpush1.bf16.msra.mxu0 0
        %385 = vmatprep.subr.bf16.mxu0 0
        %386 = vmatpush1.bf16.msra.mxu0 0
        %387 = vmatprep.subr.bf16.mxu0 0
        %388 = vmatpush1.bf16.msra.mxu0 0
        %389 = vmatprep.subr.bf16.mxu0 0
        %390 = vmatpush1.bf16.msra.mxu0 0
        %391 = vmatprep.subr.bf16.mxu0 0
        %392 = vmatpush1.bf16.msra.mxu0 0
        %393 = vmatprep.subr.bf16.mxu0 0
        %394 = vmatpush1.bf16.msra.mxu0 0
        %395 = vmatprep.subr.bf16.mxu0 0
        %396 = vmatpush1.bf16.msra.mxu0 0
        %397 = vmatprep.subr.bf16.mxu0 0
        %398 = vmatpush1.bf16.msra.mxu0 0
        %399 = vmatprep.subr.bf16.mxu0 0
        %400 = vmatpush1.bf16.msra.mxu0 0
        %401 = vmatprep.subr.bf16.mxu0 0
        %402 = vmatpush1.bf16.msra.mxu0 0
        %403 = vmatprep.subr.bf16.mxu0 0
        %404 = vmatpush1.bf16.msra.mxu0 0
        %405 = vmatprep.subr.bf16.mxu0 0
        %406 = vmatpush1.bf16.msra.mxu0 0
        %407 = vmatprep.subr.bf16.mxu0 0
        %408 = vmatpush1.bf16.msra.mxu0 0
        %409 = vmatprep.mubr.bf16.mxu0 0
        %410 = vmatmul.mubr.bf16.gmra.mrb[0].mxu0 %v350
        %v411 = vpop.f32.mrb[0].mxu0
        %v412 = vadd.f32 0.0, %v411
        %v413 = vpop.f32.mrb[0].mxu0
        %v414 = vadd.f32 0.0, %v413
        %v415 = vpop.f32.mrb[0].mxu0
        %v416 = vpop.f32.mrb[0].mxu0
        %417 = vdwg.mxu0
        %418 = vmatprep.subr.bf16.mxu0 %v363
        %419 = vmatpush1.bf16.msra.mxu0 %v360
        %420 = vmatprep.subr.bf16.mxu0 0
        %421 = vmatpush1.bf16.msra.mxu0 0
        %422 = vmatprep.subr.bf16.mxu0 0
        %423 = vmatpush1.bf16.msra.mxu0 0
        %424 = vmatprep.subr.bf16.mxu0 0
        %425 = vmatpush1.bf16.msra.mxu0 0
        %426 = vmatprep.subr.bf16.mxu0 0
        %427 = vmatpush1.bf16.msra.mxu0 0
        %428 = vmatprep.subr.bf16.mxu0 0
        %429 = vmatpush1.bf16.msra.mxu0 0
        %430 = vmatprep.subr.bf16.mxu0 0
        %431 = vmatpush1.bf16.msra.mxu0 0
        %432 = vmatprep.subr.bf16.mxu0 0
        %433 = vmatpush1.bf16.msra.mxu0 0
        %434 = vmatprep.subr.bf16.mxu0 0
        %435 = vmatpush1.bf16.msra.mxu0 0
        %436 = vmatprep.subr.bf16.mxu0 0
        %437 = vmatpush1.bf16.msra.mxu0 0
        %438 = vmatprep.subr.bf16.mxu0 0
        %439 = vmatpush1.bf16.msra.mxu0 0
        %440 = vmatprep.subr.bf16.mxu0 0
        %441 = vmatpush1.bf16.msra.mxu0 0
        %442 = vmatprep.subr.bf16.mxu0 0
        %443 = vmatpush1.bf16.msra.mxu0 0
        %444 = vmatprep.subr.bf16.mxu0 0
        %445 = vmatpush1.bf16.msra.mxu0 0
        %446 = vmatprep.subr.bf16.mxu0 0
        %447 = vmatpush1.bf16.msra.mxu0 0
        %448 = vmatprep.subr.bf16.mxu0 0
        %449 = vmatpush1.bf16.msra.mxu0 0
        %450 = vmatprep.mubr.bf16.mxu0 0
        %451 = vmatmul.mubr.bf16.gmra.mrb[0].mxu0 %v350
        %v452 = vpop.f32.mrb[0].mxu0
        %v453 = vadd.f32 0.0, %v452
        %v454 = vpop.f32.mrb[0].mxu0
        %v455 = vadd.f32 0.0, %v454
        %v456 = vpop.f32.mrb[0].mxu0
        %v457 = vpop.f32.mrb[0].mxu0
        %458 = vdwg.mxu0
        %459 = vmatprep.subr.bf16.mxu0 %v369
        %460 = vmatpush1.bf16.msra.mxu0 %v366
        %461 = vmatprep.subr.bf16.mxu0 0
        %462 = vmatpush1.bf16.msra.mxu0 0
        %463 = vmatprep.subr.bf16.mxu0 0
        %464 = vmatpush1.bf16.msra.mxu0 0
        %465 = vmatprep.subr.bf16.mxu0 0
        %466 = vmatpush1.bf16.msra.mxu0 0
        %467 = vmatprep.subr.bf16.mxu0 0
        %468 = vmatpush1.bf16.msra.mxu0 0
        %469 = vmatprep.subr.bf16.mxu0 0
        %470 = vmatpush1.bf16.msra.mxu0 0
        %471 = vmatprep.subr.bf16.mxu0 0
        %472 = vmatpush1.bf16.msra.mxu0 0
        %473 = vmatprep.subr.bf16.mxu0 0
        %474 = vmatpush1.bf16.msra.mxu0 0
        %475 = vmatprep.subr.bf16.mxu0 0
        %476 = vmatpush1.bf16.msra.mxu0 0
        %477 = vmatprep.subr.bf16.mxu0 0
        %478 = vmatpush1.bf16.msra.mxu0 0
        %479 = vmatprep.subr.bf16.mxu0 0
        %480 = vmatpush1.bf16.msra.mxu0 0
        %481 = vmatprep.subr.bf16.mxu0 0
        %482 = vmatpush1.bf16.msra.mxu0 0
        %483 = vmatprep.subr.bf16.mxu0 0
        %484 = vmatpush1.bf16.msra.mxu0 0
        %485 = vmatprep.subr.bf16.mxu0 0
        %486 = vmatpush1.bf16.msra.mxu0 0
        %487 = vmatprep.subr.bf16.mxu0 0
        %488 = vmatpush1.bf16.msra.mxu0 0
        %489 = vmatprep.subr.bf16.mxu0 0
        %490 = vmatpush1.bf16.msra.mxu0 0
        %491 = vmatprep.mubr.bf16.mxu0 0
        %492 = vmatmul.mubr.bf16.gmra.mrb[0].mxu0 %v350
        %v493 = vpop.f32.mrb[0].mxu0
        %v494 = vadd.f32 0.0, %v493
        %v495 = vpop.f32.mrb[0].mxu0
        %v496 = vadd.f32 0.0, %v495
        %v497 = vpop.f32.mrb[0].mxu0
        %v498 = vpop.f32.mrb[0].mxu0
        %499 = vdwg.mxu0
        %500 = vmatprep.subr.bf16.mxu0 %v375
        %501 = vmatpush1.bf16.msra.mxu0 %v372
        %502 = vmatprep.subr.bf16.mxu0 0
        %503 = vmatpush1.bf16.msra.mxu0 0
        %504 = vmatprep.subr.bf16.mxu0 0
        %505 = vmatpush1.bf16.msra.mxu0 0
        %506 = vmatprep.subr.bf16.mxu0 0
        %507 = vmatpush1.bf16.msra.mxu0 0
        %508 = vmatprep.subr.bf16.mxu0 0
        %509 = vmatpush1.bf16.msra.mxu0 0
        %510 = vmatprep.subr.bf16.mxu0 0
        %511 = vmatpush1.bf16.msra.mxu0 0
        %512 = vmatprep.subr.bf16.mxu0 0
        %513 = vmatpush1.bf16.msra.mxu0 0
        %514 = vmatprep.subr.bf16.mxu0 0
        %515 = vmatpush1.bf16.msra.mxu0 0
        %516 = vmatprep.subr.bf16.mxu0 0
        %517 = vmatpush1.bf16.msra.mxu0 0
        %518 = vmatprep.subr.bf16.mxu0 0
        %519 = vmatpush1.bf16.msra.mxu0 0
        %520 = vmatprep.subr.bf16.mxu0 0
        %521 = vmatpush1.bf16.msra.mxu0 0
        %522 = vmatprep.subr.bf16.mxu0 0
        %523 = vmatpush1.bf16.msra.mxu0 0
        %524 = vmatprep.subr.bf16.mxu0 0
        %525 = vmatpush1.bf16.msra.mxu0 0
        %526 = vmatprep.subr.bf16.mxu0 0
        %527 = vmatpush1.bf16.msra.mxu0 0
        %528 = vmatprep.subr.bf16.mxu0 0
        %529 = vmatpush1.bf16.msra.mxu0 0
        %530 = vmatprep.subr.bf16.mxu0 0
        %531 = vmatpush1.bf16.msra.mxu0 0
        %532 = vmatprep.mubr.bf16.mxu0 0
        %533 = vmatmul.mubr.bf16.gmra.mrb[0].mxu0 %v350
        %v534 = vpop.f32.mrb[0].mxu0
        %v535 = vadd.f32 0.0, %v534
        %v536 = vpop.f32.mrb[0].mxu0
        %v537 = vadd.f32 0.0, %v536
        %v538 = vpop.f32.mrb[0].mxu0
        %v539 = vpop.f32.mrb[0].mxu0
        %540 = vdwg.mxu0
        %v541 = vpack.c.bf16 %v412, %v412
        %v542 = vpack.c.bf16 %v414, %v414
        %v543 = vpack.c.bf16 %v453, %v453
        %v544 = vpack.c.bf16 %v455, %v455
        %v545 = vpack.c.bf16 %v494, %v494
        %v546 = vpack.c.bf16 %v496, %v496
        %v547 = vpack.c.bf16 %v535, %v535
        %v548 = vpack.c.bf16 %v537, %v537
        %v557 = vunpack.c.l.b16 %v541
        %v558 = vunpack.c.l.b16 %v542
        %v559 = vunpack.c.l.b16 %v543
        %v560 = vunpack.c.l.b16 %v544
        %v561 = vunpack.c.l.b16 %v545
        %v562 = vunpack.c.l.b16 %v546
        %v563 = vunpack.c.l.b16 %v547
        %v564 = vunpack.c.l.b16 %v548
        %v565 = vpack.c.b16 %v558, %v557
        %v566 = vpack.c.b16 %v560, %v559
        %v567 = vpack.c.b16 %v562, %v561
        %v568 = vpack.c.b16 %v564, %v563
        %573 = vst [vmem:[#allocation2] sm:$0xff] %v565
        %574 = vst [vmem:[#allocation2 + $0x8] sm:$0xff] %v566
        %575 = vst [vmem:[#allocation2 + $0x10] sm:$0xff] %v567
        %576 = vst [vmem:[#allocation2 + $0x18] sm:$0xff] %v568
        %577 = vst [vmem:[#allocation3] sm:$0xff] -inf
        %578 = vst [vmem:[#allocation4] sm:$0xff] 0.0
        %579 = vst [vmem:[#allocation5] sm:$0xff] 0.0
        %580 = vst [vmem:[#allocation5 + $0x8] sm:$0xff] 0.0
        %581 = vst [vmem:[#allocation5 + $0x10] sm:$0xff] 0.0
        %582 = vst [vmem:[#allocation5 + $0x18] sm:$0xff] 0.0
        %583 = vst [vmem:[#allocation5 + $0x20] sm:$0xff] 0.0
        %584 = vst [vmem:[#allocation5 + $0x28] sm:$0xff] 0.0
        %585 = vst [vmem:[#allocation5 + $0x30] sm:$0xff] 0.0
        %586 = vst [vmem:[#allocation5 + $0x38] sm:$0xff] 0.0
      $region40: #{gcn_forward.4} parent=35 // pred_fallthru
        _
      %v587 = vld [vmem:[%s307] sm:$0xff]
      %v588 = vld [vmem:[%s307 + $0x8] sm:$0xff]
      %v589 = vld [vmem:[%s307 + $0x10] sm:$0xff]
      %v590 = vld [vmem:[%s307 + $0x18] sm:$0xff]
      %v591 = vld [vmem:[%s307 + $0x20] sm:$0xff]
      %v592 = vld [vmem:[%s307 + $0x28] sm:$0xff]
      %v593 = vld [vmem:[%s307 + $0x30] sm:$0xff]
      %v594 = vld [vmem:[%s307 + $0x38] sm:$0xff]
      %v595 = vld [vmem:[#allocation2] sm:$0xff]
      %v596 = vld [vmem:[#allocation2 + $0x8] sm:$0xff]
      %v597 = vld [vmem:[#allocation2 + $0x10] sm:$0xff]
      %v598 = vld [vmem:[#allocation2 + $0x18] sm:$0xff]
      %v603 = vunpack.c.l.b16 %v587
      %v604 = vunpack.c.h.b16 %v587
      %v605 = vunpack.c.l.b16 %v588
      %v606 = vunpack.c.h.b16 %v588
      %v607 = vunpack.c.l.b16 %v589
      %v608 = vunpack.c.h.b16 %v589
      %v609 = vunpack.c.l.b16 %v590
      %v610 = vunpack.c.h.b16 %v590
      %v611 = vpack.c.b16 %v603, %v603
      %v612 = vpack.c.b16 %v604, %v604
      %v613 = vpack.c.b16 %v605, %v605
      %v614 = vpack.c.b16 %v606, %v606
      %v615 = vpack.c.b16 %v607, %v607
      %v616 = vpack.c.b16 %v608, %v608
      %v617 = vpack.c.b16 %v609, %v609
      %v618 = vpack.c.b16 %v610, %v610
      %627 = vxpose.xlu0.c.b16.start [1/8] %v611, 128
      %628 = vxpose.xlu0.c.b16.cont [2/8] 0, 128
      %629 = vxpose.xlu0.c.b16.cont [3/8] 0, 128
      %630 = vxpose.xlu0.c.b16.cont [4/8] 0, 128
      %631 = vxpose.xlu0.c.b16.cont [5/8] 0, 128
      %632 = vxpose.xlu0.c.b16.cont [6/8] 0, 128
      %633 = vxpose.xlu0.c.b16.cont [7/8] 0, 128
      %634 = vxpose.xlu0.c.b16.end [8/8] 0, 128
      %v635 = vpop.trf.xlu0
      %v636 = vpop.trf.xlu0
      %v637 = vpop.trf.xlu0
      %v638 = vpop.trf.xlu0
      %v639 = vpop.trf.xlu0
      %v640 = vpop.trf.xlu0
      %v641 = vpop.trf.xlu0
      %v642 = vpop.trf.xlu0
      %643 = vxpose.xlu0.c.b16.start [1/8] %v612, 128
      %644 = vxpose.xlu0.c.b16.cont [2/8] 0, 128
      %645 = vxpose.xlu0.c.b16.cont [3/8] 0, 128
      %646 = vxpose.xlu0.c.b16.cont [4/8] 0, 128
      %647 = vxpose.xlu0.c.b16.cont [5/8] 0, 128
      %648 = vxpose.xlu0.c.b16.cont [6/8] 0, 128
      %649 = vxpose.xlu0.c.b16.cont [7/8] 0, 128
      %650 = vxpose.xlu0.c.b16.end [8/8] 0, 128
      %v651 = vpop.trf.xlu0
      %v652 = vpop.trf.xlu0
      %v653 = vpop.trf.xlu0
      %v654 = vpop.trf.xlu0
      %v655 = vpop.trf.xlu0
      %v656 = vpop.trf.xlu0
      %v657 = vpop.trf.xlu0
      %v658 = vpop.trf.xlu0
      %659 = vxpose.xlu0.c.b16.start [1/8] %v613, 128
      %660 = vxpose.xlu0.c.b16.cont [2/8] 0, 128
      %661 = vxpose.xlu0.c.b16.cont [3/8] 0, 128
      %662 = vxpose.xlu0.c.b16.cont [4/8] 0, 128
      %663 = vxpose.xlu0.c.b16.cont [5/8] 0, 128
      %664 = vxpose.xlu0.c.b16.cont [6/8] 0, 128
      %665 = vxpose.xlu0.c.b16.cont [7/8] 0, 128
      %666 = vxpose.xlu0.c.b16.end [8/8] 0, 128
      %v667 = vpop.trf.xlu0
      %v668 = vpop.trf.xlu0
      %v669 = vpop.trf.xlu0
      %v670 = vpop.trf.xlu0
      %v671 = vpop.trf.xlu0
      %v672 = vpop.trf.xlu0
      %v673 = vpop.trf.xlu0
      %v674 = vpop.trf.xlu0
      %675 = vxpose.xlu0.c.b16.start [1/8] %v614, 128
      %676 = vxpose.xlu0.c.b16.cont [2/8] 0, 128
      %677 = vxpose.xlu0.c.b16.cont [3/8] 0, 128
      %678 = vxpose.xlu0.c.b16.cont [4/8] 0, 128
      %679 = vxpose.xlu0.c.b16.cont [5/8] 0, 128
      %680 = vxpose.xlu0.c.b16.cont [6/8] 0, 128
      %681 = vxpose.xlu0.c.b16.cont [7/8] 0, 128
      %682 = vxpose.xlu0.c.b16.end [8/8] 0, 128
      %v683 = vpop.trf.xlu0
      %v684 = vpop.trf.xlu0
      %v685 = vpop.trf.xlu0
      %v686 = vpop.trf.xlu0
      %v687 = vpop.trf.xlu0
      %v688 = vpop.trf.xlu0
      %v689 = vpop.trf.xlu0
      %v690 = vpop.trf.xlu0
      %691 = vxpose.xlu0.c.b16.start [1/8] %v615, 128
      %692 = vxpose.xlu0.c.b16.cont [2/8] 0, 128
      %693 = vxpose.xlu0.c.b16.cont [3/8] 0, 128
      %694 = vxpose.xlu0.c.b16.cont [4/8] 0, 128
      %695 = vxpose.xlu0.c.b16.cont [5/8] 0, 128
      %696 = vxpose.xlu0.c.b16.cont [6/8] 0, 128
      %697 = vxpose.xlu0.c.b16.cont [7/8] 0, 128
      %698 = vxpose.xlu0.c.b16.end [8/8] 0, 128
      %v699 = vpop.trf.xlu0
      %v700 = vpop.trf.xlu0
      %v701 = vpop.trf.xlu0
      %v702 = vpop.trf.xlu0
      %v703 = vpop.trf.xlu0
      %v704 = vpop.trf.xlu0
      %v705 = vpop.trf.xlu0
      %v706 = vpop.trf.xlu0
      %707 = vxpose.xlu0.c.b16.start [1/8] %v616, 128
      %708 = vxpose.xlu0.c.b16.cont [2/8] 0, 128
      %709 = vxpose.xlu0.c.b16.cont [3/8] 0, 128
      %710 = vxpose.xlu0.c.b16.cont [4/8] 0, 128
      %711 = vxpose.xlu0.c.b16.cont [5/8] 0, 128
      %712 = vxpose.xlu0.c.b16.cont [6/8] 0, 128
      %713 = vxpose.xlu0.c.b16.cont [7/8] 0, 128
      %714 = vxpose.xlu0.c.b16.end [8/8] 0, 128
      %v715 = vpop.trf.xlu0
      %v716 = vpop.trf.xlu0
      %v717 = vpop.trf.xlu0
      %v718 = vpop.trf.xlu0
      %v719 = vpop.trf.xlu0
      %v720 = vpop.trf.xlu0
      %v721 = vpop.trf.xlu0
      %v722 = vpop.trf.xlu0
      %723 = vxpose.xlu0.c.b16.start [1/8] %v617, 128
      %724 = vxpose.xlu0.c.b16.cont [2/8] 0, 128
      %725 = vxpose.xlu0.c.b16.cont [3/8] 0, 128
      %726 = vxpose.xlu0.c.b16.cont [4/8] 0, 128
      %727 = vxpose.xlu0.c.b16.cont [5/8] 0, 128
      %728 = vxpose.xlu0.c.b16.cont [6/8] 0, 128
      %729 = vxpose.xlu0.c.b16.cont [7/8] 0, 128
      %730 = vxpose.xlu0.c.b16.end [8/8] 0, 128
      %v731 = vpop.trf.xlu0
      %v732 = vpop.trf.xlu0
      %v733 = vpop.trf.xlu0
      %v734 = vpop.trf.xlu0
      %v735 = vpop.trf.xlu0
      %v736 = vpop.trf.xlu0
      %v737 = vpop.trf.xlu0
      %v738 = vpop.trf.xlu0
      %739 = vxpose.xlu0.c.b16.start [1/8] %v618, 128
      %740 = vxpose.xlu0.c.b16.cont [2/8] 0, 128
      %741 = vxpose.xlu0.c.b16.cont [3/8] 0, 128
      %742 = vxpose.xlu0.c.b16.cont [4/8] 0, 128
      %743 = vxpose.xlu0.c.b16.cont [5/8] 0, 128
      %744 = vxpose.xlu0.c.b16.cont [6/8] 0, 128
      %745 = vxpose.xlu0.c.b16.cont [7/8] 0, 128
      %746 = vxpose.xlu0.c.b16.end [8/8] 0, 128
      %v747 = vpop.trf.xlu0
      %v748 = vpop.trf.xlu0
      %v749 = vpop.trf.xlu0
      %v750 = vpop.trf.xlu0
      %v751 = vpop.trf.xlu0
      %v752 = vpop.trf.xlu0
      %v753 = vpop.trf.xlu0
      %v754 = vpop.trf.xlu0
      %v759 = vunpack.c.l.b16 %v595
      %v760 = vunpack.c.h.b16 %v595
      %v761 = vunpack.c.l.b16 %v596
      %v762 = vunpack.c.h.b16 %v596
      %v763 = vunpack.c.l.b16 %v597
      %v764 = vunpack.c.h.b16 %v597
      %v765 = vunpack.c.l.b16 %v598
      %v766 = vunpack.c.h.b16 %v598
      %v767 = vpack.c.b16 %v759, %v759
      %v768 = vpack.c.b16 %v760, %v760
      %v769 = vpack.c.b16 %v761, %v761
      %v770 = vpack.c.b16 %v762, %v762
      %v771 = vpack.c.b16 %v763, %v763
      %v772 = vpack.c.b16 %v764, %v764
      %v773 = vpack.c.b16 %v765, %v765
      %v774 = vpack.c.b16 %v766, %v766
      %vm775 = vcmask 64512
      %v777 = vsel %vm775, %v635, 0
      %v780 = vsel %vm775, %v636, 0
      %v783 = vsel %vm775, %v637, 0
      %v786 = vsel %vm775, %v638, 0
      %v789 = vsel %vm775, %v639, 0
      %v792 = vsel %vm775, %v640, 0
      %v795 = vsel %vm775, %v641, 0
      %v798 = vsel %vm775, %v642, 0
      %v801 = vsel %vm775, %v651, 0
      %v804 = vsel %vm775, %v652, 0
      %v807 = vsel %vm775, %v653, 0
      %v810 = vsel %vm775, %v654, 0
      %v813 = vsel %vm775, %v655, 0
      %v816 = vsel %vm775, %v656, 0
      %v819 = vsel %vm775, %v657, 0
      %v822 = vsel %vm775, %v658, 0
      %v825 = vsel %vm775, %v667, 0
      %v828 = vsel %vm775, %v668, 0
      %v831 = vsel %vm775, %v669, 0
      %v834 = vsel %vm775, %v670, 0
      %v837 = vsel %vm775, %v671, 0
      %v840 = vsel %vm775, %v672, 0
      %v843 = vsel %vm775, %v673, 0
      %v846 = vsel %vm775, %v674, 0
      %v849 = vsel %vm775, %v683, 0
      %v852 = vsel %vm775, %v684, 0
      %v855 = vsel %vm775, %v685, 0
      %v858 = vsel %vm775, %v686, 0
      %v861 = vsel %vm775, %v687, 0
      %v864 = vsel %vm775, %v688, 0
      %v867 = vsel %vm775, %v689, 0
      %v870 = vsel %vm775, %v690, 0
      %v873 = vsel %vm775, %v699, 0
      %v876 = vsel %vm775, %v700, 0
      %v879 = vsel %vm775, %v701, 0
      %v882 = vsel %vm775, %v702, 0
      %v885 = vsel %vm775, %v703, 0
      %v888 = vsel %vm775, %v704, 0
      %v891 = vsel %vm775, %v705, 0
      %v894 = vsel %vm775, %v706, 0
      %v897 = vsel %vm775, %v715, 0
      %v900 = vsel %vm775, %v716, 0
      %v903 = vsel %vm775, %v717, 0
      %v906 = vsel %vm775, %v718, 0
      %v909 = vsel %vm775, %v719, 0
      %v912 = vsel %vm775, %v720, 0
      %v915 = vsel %vm775, %v721, 0
      %v918 = vsel %vm775, %v722, 0
      %v921 = vsel %vm775, %v731, 0
      %v924 = vsel %vm775, %v732, 0
      %v927 = vsel %vm775, %v733, 0
      %v930 = vsel %vm775, %v734, 0
      %v933 = vsel %vm775, %v735, 0
      %v936 = vsel %vm775, %v736, 0
      %v939 = vsel %vm775, %v737, 0
      %v942 = vsel %vm775, %v738, 0
      %v945 = vsel %vm775, %v747, 0
      %v948 = vsel %vm775, %v748, 0
      %v951 = vsel %vm775, %v749, 0
      %v954 = vsel %vm775, %v750, 0
      %v957 = vsel %vm775, %v751, 0
      %v960 = vsel %vm775, %v752, 0
      %v963 = vsel %vm775, %v753, 0
      %v966 = vsel %vm775, %v754, 0
      %vm968 = vcmask 1043456
      %v970 = vsel %vm968, %v767, 0
      %v973 = vsel %vm968, %v768, 0
      %v976 = vsel %vm968, %v769, 0
      %v979 = vsel %vm968, %v770, 0
      %v982 = vsel %vm968, %v771, 0
      %v985 = vsel %vm968, %v772, 0
      %v988 = vsel %vm968, %v773, 0
      %v991 = vsel %vm968, %v774, 0
      %993 = vmatprep.subr.bf16.mxu0 %v973
      %994 = vmatpush1.bf16.msra.mxu0 %v970
      %995 = vmatprep.subr.bf16.mxu0 0
      %996 = vmatpush1.bf16.msra.mxu0 0
      %997 = vmatprep.subr.bf16.mxu0 0
      %998 = vmatpush1.bf16.msra.mxu0 0
      %999 = vmatprep.subr.bf16.mxu0 0
      %1000 = vmatpush1.bf16.msra.mxu0 0
      %1001 = vmatprep.subr.bf16.mxu0 0
      %1002 = vmatpush1.bf16.msra.mxu0 0
      %1003 = vmatprep.subr.bf16.mxu0 0
      %1004 = vmatpush1.bf16.msra.mxu0 0
      %1005 = vmatprep.subr.bf16.mxu0 0
      %1006 = vmatpush1.bf16.msra.mxu0 0
      %1007 = vmatprep.subr.bf16.mxu0 0
      %1008 = vmatpush1.bf16.msra.mxu0 0
      %1009 = vmatprep.subr.bf16.mxu0 0
      %1010 = vmatpush1.bf16.msra.mxu0 0
      %1011 = vmatprep.subr.bf16.mxu0 0
      %1012 = vmatpush1.bf16.msra.mxu0 0
      %1013 = vmatprep.subr.bf16.mxu0 0
      %1014 = vmatpush1.bf16.msra.mxu0 0
      %1015 = vmatprep.subr.bf16.mxu0 0
      %1016 = vmatpush1.bf16.msra.mxu0 0
      %1017 = vmatprep.subr.bf16.mxu0 0
      %1018 = vmatpush1.bf16.msra.mxu0 0
      %1019 = vmatprep.subr.bf16.mxu0 0
      %1020 = vmatpush1.bf16.msra.mxu0 0
      %1021 = vmatprep.subr.bf16.mxu0 0
      %1022 = vmatpush1.bf16.msra.mxu0 0
      %1023 = vmatprep.subr.bf16.mxu0 0
      %1024 = vmatpush1.bf16.msra.mxu0 0
      %1025 = vmatprep.mubr.bf16.mxu0 0
      %1026 = vmatmul.mubr.bf16.gmra.mrb[0].mxu0 %v777
      %v1027 = vpop.f32.mrb[0].mxu0
      %v1028 = vadd.f32 0.0, %v1027
      %v1029 = vpop.f32.mrb[0].mxu0
      %v1030 = vadd.f32 0.0, %v1029
      %v1031 = vpop.f32.mrb[0].mxu0
      %v1032 = vadd.f32 0.0, %v1031
      %v1033 = vpop.f32.mrb[0].mxu0
      %v1034 = vadd.f32 0.0, %v1033
      %1035 = vmatprep.mubr.bf16.mxu0 0
      %1036 = vmatmul.mubr.bf16.gmra.mrb[0].mxu0 %v780
      %v1037 = vpop.f32.mrb[0].mxu0
      %v1038 = vadd.f32 0.0, %v1037
      %v1039 = vpop.f32.mrb[0].mxu0
      %v1040 = vadd.f32 0.0, %v1039
      %v1041 = vpop.f32.mrb[0].mxu0
      %v1042 = vadd.f32 0.0, %v1041
      %v1043 = vpop.f32.mrb[0].mxu0
      %v1044 = vadd.f32 0.0, %v1043
      %1045 = vmatprep.mubr.bf16.mxu0 0
      %1046 = vmatmul.mubr.bf16.gmra.mrb[0].mxu0 %v783
      %v1047 = vpop.f32.mrb[0].mxu0
      %v1048 = vadd.f32 0.0, %v1047
      %v1049 = vpop.f32.mrb[0].mxu0
      %v1050 = vadd.f32 0.0, %v1049
      %v1051 = vpop.f32.mrb[0].mxu0
      %v1052 = vadd.f32 0.0, %v1051
      %v1053 = vpop.f32.mrb[0].mxu0
      %v1054 = vadd.f32 0.0, %v1053
      %1055 = vmatprep.mubr.bf16.mxu0 0
      %1056 = vmatmul.mubr.bf16.gmra.mrb[0].mxu0 %v786
      %v1057 = vpop.f32.mrb[0].mxu0
      %v1058 = vadd.f32 0.0, %v1057
      %v1059 = vpop.f32.mrb[0].mxu0
      %v1060 = vadd.f32 0.0, %v1059
      %v1061 = vpop.f32.mrb[0].mxu0
      %v1062 = vadd.f32 0.0, %v1061
      %v1063 = vpop.f32.mrb[0].mxu0
      %v1064 = vadd.f32 0.0, %v1063
      %1065 = vmatprep.mubr.bf16.mxu0 0
      %1066 = vmatmul.mubr.bf16.gmra.mrb[0].mxu0 %v789
      %v1067 = vpop.f32.mrb[0].mxu0
      %v1068 = vadd.f32 0.0, %v1067
      %v1069 = vpop.f32.mrb[0].mxu0
      %v1070 = vadd.f32 0.0, %v1069
      %v1071 = vpop.f32.mrb[0].mxu0
      %v1072 = vadd.f32 0.0, %v1071
      %v1073 = vpop.f32.mrb[0].mxu0
      %v1074 = vadd.f32 0.0, %v1073
      %1075 = vmatprep.mubr.bf16.mxu0 0
      %1076 = vmatmul.mubr.bf16.gmra.mrb[0].mxu0 %v792
      %v1077 = vpop.f32.mrb[0].mxu0
      %v1078 = vadd.f32 0.0, %v1077
      %v1079 = vpop.f32.mrb[0].mxu0
      %v1080 = vadd.f32 0.0, %v1079
      %v1081 = vpop.f32.mrb[0].mxu0
      %v1082 = vadd.f32 0.0, %v1081
      %v1083 = vpop.f32.mrb[0].mxu0
      %v1084 = vadd.f32 0.0, %v1083
      %1085 = vmatprep.mubr.bf16.mxu0 0
      %1086 = vmatmul.mubr.bf16.gmra.mrb[0].mxu0 %v795
      %v1087 = vpop.f32.mrb[0].mxu0
      %v1088 = vadd.f32 0.0, %v1087
      %v1089 = vpop.f32.mrb[0].mxu0
      %v1090 = vadd.f32 0.0, %v1089
      %v1091 = vpop.f32.mrb[0].mxu0
      %v1092 = vadd.f32 0.0, %v1091
      %v1093 = vpop.f32.mrb[0].mxu0
      %v1094 = vadd.f32 0.0, %v1093
      %1095 = vmatprep.mubr.bf16.mxu0 0
      %1096 = vmatmul.mubr.bf16.gmra.mrb[0].mxu0 %v798
      %v1097 = vpop.f32.mrb[0].mxu0
      %v1098 = vadd.f32 0.0, %v1097
      %v1099 = vpop.f32.mrb[0].mxu0
      %v1100 = vadd.f32 0.0, %v1099
      %v1101 = vpop.f32.mrb[0].mxu0
      %v1102 = vadd.f32 0.0, %v1101
      %v1103 = vpop.f32.mrb[0].mxu0
      %v1104 = vadd.f32 0.0, %v1103
      %1105 = vmatprep.mubr.bf16.mxu0 0
      %1106 = vmatmul.mubr.bf16.gmra.mrb[0].mxu0 %v801
      %v1107 = vpop.f32.mrb[0].mxu0
      %v1108 = vadd.f32 0.0, %v1107
      %v1109 = vpop.f32.mrb[0].mxu0
      %v1110 = vadd.f32 0.0, %v1109
      %v1111 = vpop.f32.mrb[0].mxu0
      %v1112 = vadd.f32 0.0, %v1111
      %v1113 = vpop.f32.mrb[0].mxu0
      %v1114 = vadd.f32 0.0, %v1113
      %1115 = vmatprep.mubr.bf16.mxu0 0
      %1116 = vmatmul.mubr.bf16.gmra.mrb[0].mxu0 %v804
      %v1117 = vpop.f32.mrb[0].mxu0
      %v1118 = vadd.f32 0.0, %v1117
      %v1119 = vpop.f32.mrb[0].mxu0
      %v1120 = vadd.f32 0.0, %v1119
      %v1121 = vpop.f32.mrb[0].mxu0
      %v1122 = vadd.f32 0.0, %v1121
      %v1123 = vpop.f32.mrb[0].mxu0
      %v1124 = vadd.f32 0.0, %v1123
      %1125 = vmatprep.mubr.bf16.mxu0 0
      %1126 = vmatmul.mubr.bf16.gmra.mrb[0].mxu0 %v807
      %v1127 = vpop.f32.mrb[0].mxu0
      %v1128 = vadd.f32 0.0, %v1127
      %v1129 = vpop.f32.mrb[0].mxu0
      %v1130 = vadd.f32 0.0, %v1129
      %v1131 = vpop.f32.mrb[0].mxu0
      %v1132 = vadd.f32 0.0, %v1131
      %v1133 = vpop.f32.mrb[0].mxu0
      %v1134 = vadd.f32 0.0, %v1133
      %1135 = vmatprep.mubr.bf16.mxu0 0
      %1136 = vmatmul.mubr.bf16.gmra.mrb[0].mxu0 %v810
      %v1137 = vpop.f32.mrb[0].mxu0
      %v1138 = vadd.f32 0.0, %v1137
      %v1139 = vpop.f32.mrb[0].mxu0
      %v1140 = vadd.f32 0.0, %v1139
      %v1141 = vpop.f32.mrb[0].mxu0
      %v1142 = vadd.f32 0.0, %v1141
      %v1143 = vpop.f32.mrb[0].mxu0
      %v1144 = vadd.f32 0.0, %v1143
      %1145 = vmatprep.mubr.bf16.mxu0 0
      %1146 = vmatmul.mubr.bf16.gmra.mrb[0].mxu0 %v813
      %v1147 = vpop.f32.mrb[0].mxu0
      %v1148 = vadd.f32 0.0, %v1147
      %v1149 = vpop.f32.mrb[0].mxu0
      %v1150 = vadd.f32 0.0, %v1149
      %v1151 = vpop.f32.mrb[0].mxu0
      %v1152 = vadd.f32 0.0, %v1151
      %v1153 = vpop.f32.mrb[0].mxu0
      %v1154 = vadd.f32 0.0, %v1153
      %1155 = vmatprep.mubr.bf16.mxu0 0
      %1156 = vmatmul.mubr.bf16.gmra.mrb[0].mxu0 %v816
      %v1157 = vpop.f32.mrb[0].mxu0
      %v1158 = vadd.f32 0.0, %v1157
      %v1159 = vpop.f32.mrb[0].mxu0
      %v1160 = vadd.f32 0.0, %v1159
      %v1161 = vpop.f32.mrb[0].mxu0
      %v1162 = vadd.f32 0.0, %v1161
      %v1163 = vpop.f32.mrb[0].mxu0
      %v1164 = vadd.f32 0.0, %v1163
      %1165 = vmatprep.mubr.bf16.mxu0 0
      %1166 = vmatmul.mubr.bf16.gmra.mrb[0].mxu0 %v819
      %v1167 = vpop.f32.mrb[0].mxu0
      %v1168 = vadd.f32 0.0, %v1167
      %v1169 = vpop.f32.mrb[0].mxu0
      %v1170 = vadd.f32 0.0, %v1169
      %v1171 = vpop.f32.mrb[0].mxu0
      %v1172 = vadd.f32 0.0, %v1171
      %v1173 = vpop.f32.mrb[0].mxu0
      %v1174 = vadd.f32 0.0, %v1173
      %1175 = vmatprep.mubr.bf16.mxu0 0
      %1176 = vmatmul.mubr.bf16.gmra.mrb[0].mxu0 %v822
      %v1177 = vpop.f32.mrb[0].mxu0
      %v1178 = vadd.f32 0.0, %v1177
      %v1179 = vpop.f32.mrb[0].mxu0
      %v1180 = vadd.f32 0.0, %v1179
      %v1181 = vpop.f32.mrb[0].mxu0
      %v1182 = vadd.f32 0.0, %v1181
      %v1183 = vpop.f32.mrb[0].mxu0
      %v1184 = vadd.f32 0.0, %v1183
      %1185 = vmatprep.mubr.bf16.mxu0 0
      %1186 = vmatmul.mubr.bf16.gmra.mrb[0].mxu0 %v825
      %v1187 = vpop.f32.mrb[0].mxu0
      %v1188 = vadd.f32 0.0, %v1187
      %v1189 = vpop.f32.mrb[0].mxu0
      %v1190 = vadd.f32 0.0, %v1189
      %v1191 = vpop.f32.mrb[0].mxu0
      %v1192 = vadd.f32 0.0, %v1191
      %v1193 = vpop.f32.mrb[0].mxu0
      %v1194 = vadd.f32 0.0, %v1193
      %1195 = vmatprep.mubr.bf16.mxu0 0
      %1196 = vmatmul.mubr.bf16.gmra.mrb[0].mxu0 %v828
      %v1197 = vpop.f32.mrb[0].mxu0
      %v1198 = vadd.f32 0.0, %v1197
      %v1199 = vpop.f32.mrb[0].mxu0
      %v1200 = vadd.f32 0.0, %v1199
      %v1201 = vpop.f32.mrb[0].mxu0
      %v1202 = vadd.f32 0.0, %v1201
      %v1203 = vpop.f32.mrb[0].mxu0
      %v1204 = vadd.f32 0.0, %v1203
      %1205 = vmatprep.mubr.bf16.mxu0 0
      %1206 = vmatmul.mubr.bf16.gmra.mrb[0].mxu0 %v831
      %v1207 = vpop.f32.mrb[0].mxu0
      %v1208 = vadd.f32 0.0, %v1207
      %v1209 = vpop.f32.mrb[0].mxu0
      %v1210 = vadd.f32 0.0, %v1209
      %v1211 = vpop.f32.mrb[0].mxu0
      %v1212 = vadd.f32 0.0, %v1211
      %v1213 = vpop.f32.mrb[0].mxu0
      %v1214 = vadd.f32 0.0, %v1213
      %1215 = vmatprep.mubr.bf16.mxu0 0
      %1216 = vmatmul.mubr.bf16.gmra.mrb[0].mxu0 %v834
      %v1217 = vpop.f32.mrb[0].mxu0
      %v1218 = vadd.f32 0.0, %v1217
      %v1219 = vpop.f32.mrb[0].mxu0
      %v1220 = vadd.f32 0.0, %v1219
      %v1221 = vpop.f32.mrb[0].mxu0
      %v1222 = vadd.f32 0.0, %v1221
      %v1223 = vpop.f32.mrb[0].mxu0
      %v1224 = vadd.f32 0.0, %v1223
      %1225 = vmatprep.mubr.bf16.mxu0 0
      %1226 = vmatmul.mubr.bf16.gmra.mrb[0].mxu0 %v837
      %v1227 = vpop.f32.mrb[0].mxu0
      %v1228 = vadd.f32 0.0, %v1227
      %v1229 = vpop.f32.mrb[0].mxu0
      %v1230 = vadd.f32 0.0, %v1229
      %v1231 = vpop.f32.mrb[0].mxu0
      %v1232 = vadd.f32 0.0, %v1231
      %v1233 = vpop.f32.mrb[0].mxu0
      %v1234 = vadd.f32 0.0, %v1233
      %1235 = vmatprep.mubr.bf16.mxu0 0
      %1236 = vmatmul.mubr.bf16.gmra.mrb[0].mxu0 %v840
      %v1237 = vpop.f32.mrb[0].mxu0
      %v1238 = vadd.f32 0.0, %v1237
      %v1239 = vpop.f32.mrb[0].mxu0
      %v1240 = vadd.f32 0.0, %v1239
      %v1241 = vpop.f32.mrb[0].mxu0
      %v1242 = vadd.f32 0.0, %v1241
      %v1243 = vpop.f32.mrb[0].mxu0
      %v1244 = vadd.f32 0.0, %v1243
      %1245 = vmatprep.mubr.bf16.mxu0 0
      %1246 = vmatmul.mubr.bf16.gmra.mrb[0].mxu0 %v843
      %v1247 = vpop.f32.mrb[0].mxu0
      %v1248 = vadd.f32 0.0, %v1247
      %v1249 = vpop.f32.mrb[0].mxu0
      %v1250 = vadd.f32 0.0, %v1249
      %v1251 = vpop.f32.mrb[0].mxu0
      %v1252 = vadd.f32 0.0, %v1251
      %v1253 = vpop.f32.mrb[0].mxu0
      %v1254 = vadd.f32 0.0, %v1253
      %1255 = vmatprep.mubr.bf16.mxu0 0
      %1256 = vmatmul.mubr.bf16.gmra.mrb[0].mxu0 %v846
      %v1257 = vpop.f32.mrb[0].mxu0
      %v1258 = vadd.f32 0.0, %v1257
      %v1259 = vpop.f32.mrb[0].mxu0
      %v1260 = vadd.f32 0.0, %v1259
      %v1261 = vpop.f32.mrb[0].mxu0
      %v1262 = vadd.f32 0.0, %v1261
      %v1263 = vpop.f32.mrb[0].mxu0
      %v1264 = vadd.f32 0.0, %v1263
      %1265 = vmatprep.mubr.bf16.mxu0 0
      %1266 = vmatmul.mubr.bf16.gmra.mrb[0].mxu0 %v849
      %v1267 = vpop.f32.mrb[0].mxu0
      %v1268 = vadd.f32 0.0, %v1267
      %v1269 = vpop.f32.mrb[0].mxu0
      %v1270 = vadd.f32 0.0, %v1269
      %v1271 = vpop.f32.mrb[0].mxu0
      %v1272 = vadd.f32 0.0, %v1271
      %v1273 = vpop.f32.mrb[0].mxu0
      %v1274 = vadd.f32 0.0, %v1273
      %1275 = vmatprep.mubr.bf16.mxu0 0
      %1276 = vmatmul.mubr.bf16.gmra.mrb[0].mxu0 %v852
      %v1277 = vpop.f32.mrb[0].mxu0
      %v1278 = vadd.f32 0.0, %v1277
      %v1279 = vpop.f32.mrb[0].mxu0
      %v1280 = vadd.f32 0.0, %v1279
      %v1281 = vpop.f32.mrb[0].mxu0
      %v1282 = vadd.f32 0.0, %v1281
      %v1283 = vpop.f32.mrb[0].mxu0
      %v1284 = vadd.f32 0.0, %v1283
      %1285 = vmatprep.mubr.bf16.mxu0 0
      %1286 = vmatmul.mubr.bf16.gmra.mrb[0].mxu0 %v855
      %v1287 = vpop.f32.mrb[0].mxu0
      %v1288 = vadd.f32 0.0, %v1287
      %v1289 = vpop.f32.mrb[0].mxu0
      %v1290 = vadd.f32 0.0, %v1289
      %v1291 = vpop.f32.mrb[0].mxu0
      %v1292 = vadd.f32 0.0, %v1291
      %v1293 = vpop.f32.mrb[0].mxu0
      %v1294 = vadd.f32 0.0, %v1293
      %1295 = vmatprep.mubr.bf16.mxu0 0
      %1296 = vmatmul.mubr.bf16.gmra.mrb[0].mxu0 %v858
      %v1297 = vpop.f32.mrb[0].mxu0
      %v1298 = vadd.f32 0.0, %v1297
      %v1299 = vpop.f32.mrb[0].mxu0
      %v1300 = vadd.f32 0.0, %v1299
      %v1301 = vpop.f32.mrb[0].mxu0
      %v1302 = vadd.f32 0.0, %v1301
      %v1303 = vpop.f32.mrb[0].mxu0
      %v1304 = vadd.f32 0.0, %v1303
      %1305 = vmatprep.mubr.bf16.mxu0 0
      %1306 = vmatmul.mubr.bf16.gmra.mrb[0].mxu0 %v861
      %v1307 = vpop.f32.mrb[0].mxu0
      %v1308 = vadd.f32 0.0, %v1307
      %v1309 = vpop.f32.mrb[0].mxu0
      %v1310 = vadd.f32 0.0, %v1309
      %v1311 = vpop.f32.mrb[0].mxu0
      %v1312 = vadd.f32 0.0, %v1311
      %v1313 = vpop.f32.mrb[0].mxu0
      %v1314 = vadd.f32 0.0, %v1313
      %1315 = vmatprep.mubr.bf16.mxu0 0
      %1316 = vmatmul.mubr.bf16.gmra.mrb[0].mxu0 %v864
      %v1317 = vpop.f32.mrb[0].mxu0
      %v1318 = vadd.f32 0.0, %v1317
      %v1319 = vpop.f32.mrb[0].mxu0
      %v1320 = vadd.f32 0.0, %v1319
      %v1321 = vpop.f32.mrb[0].mxu0
      %v1322 = vadd.f32 0.0, %v1321
      %v1323 = vpop.f32.mrb[0].mxu0
      %v1324 = vadd.f32 0.0, %v1323
      %1325 = vmatprep.mubr.bf16.mxu0 0
      %1326 = vmatmul.mubr.bf16.gmra.mrb[0].mxu0 %v867
      %v1327 = vpop.f32.mrb[0].mxu0
      %v1328 = vadd.f32 0.0, %v1327
      %v1329 = vpop.f32.mrb[0].mxu0
      %v1330 = vadd.f32 0.0, %v1329
      %v1331 = vpop.f32.mrb[0].mxu0
      %v1332 = vadd.f32 0.0, %v1331
      %v1333 = vpop.f32.mrb[0].mxu0
      %v1334 = vadd.f32 0.0, %v1333
      %1335 = vmatprep.mubr.bf16.mxu0 0
      %1336 = vmatmul.mubr.bf16.gmra.mrb[0].mxu0 %v870
      %v1337 = vpop.f32.mrb[0].mxu0
      %v1338 = vadd.f32 0.0, %v1337
      %v1339 = vpop.f32.mrb[0].mxu0
      %v1340 = vadd.f32 0.0, %v1339
      %v1341 = vpop.f32.mrb[0].mxu0
      %v1342 = vadd.f32 0.0, %v1341
      %v1343 = vpop.f32.mrb[0].mxu0
      %v1344 = vadd.f32 0.0, %v1343
      %1345 = vmatprep.mubr.bf16.mxu0 0
      %1346 = vmatmul.mubr.bf16.gmra.mrb[0].mxu0 %v873
      %v1347 = vpop.f32.mrb[0].mxu0
      %v1348 = vadd.f32 0.0, %v1347
      %v1349 = vpop.f32.mrb[0].mxu0
      %v1350 = vadd.f32 0.0, %v1349
      %v1351 = vpop.f32.mrb[0].mxu0
      %v1352 = vadd.f32 0.0, %v1351
      %v1353 = vpop.f32.mrb[0].mxu0
      %v1354 = vadd.f32 0.0, %v1353
      %1355 = vmatprep.mubr.bf16.mxu0 0
      %1356 = vmatmul.mubr.bf16.gmra.mrb[0].mxu0 %v876
      %v1357 = vpop.f32.mrb[0].mxu0
      %v1358 = vadd.f32 0.0, %v1357
      %v1359 = vpop.f32.mrb[0].mxu0
      %v1360 = vadd.f32 0.0, %v1359
      %v1361 = vpop.f32.mrb[0].mxu0
      %v1362 = vadd.f32 0.0, %v1361
      %v1363 = vpop.f32.mrb[0].mxu0
      %v1364 = vadd.f32 0.0, %v1363
      %1365 = vmatprep.mubr.bf16.mxu0 0
      %1366 = vmatmul.mubr.bf16.gmra.mrb[0].mxu0 %v879
      %v1367 = vpop.f32.mrb[0].mxu0
      %v1368 = vadd.f32 0.0, %v1367
      %v1369 = vpop.f32.mrb[0].mxu0
      %v1370 = vadd.f32 0.0, %v1369
      %v1371 = vpop.f32.mrb[0].mxu0
      %v1372 = vadd.f32 0.0, %v1371
      %v1373 = vpop.f32.mrb[0].mxu0
      %v1374 = vadd.f32 0.0, %v1373
      %1375 = vmatprep.mubr.bf16.mxu0 0
      %1376 = vmatmul.mubr.bf16.gmra.mrb[0].mxu0 %v882
      %v1377 = vpop.f32.mrb[0].mxu0
      %v1378 = vadd.f32 0.0, %v1377
      %v1379 = vpop.f32.mrb[0].mxu0
      %v1380 = vadd.f32 0.0, %v1379
      %v1381 = vpop.f32.mrb[0].mxu0
      %v1382 = vadd.f32 0.0, %v1381
      %v1383 = vpop.f32.mrb[0].mxu0
      %v1384 = vadd.f32 0.0, %v1383
      %1385 = vmatprep.mubr.bf16.mxu0 0
      %1386 = vmatmul.mubr.bf16.gmra.mrb[0].mxu0 %v885
      %v1387 = vpop.f32.mrb[0].mxu0
      %v1388 = vadd.f32 0.0, %v1387
      %v1389 = vpop.f32.mrb[0].mxu0
      %v1390 = vadd.f32 0.0, %v1389
      %v1391 = vpop.f32.mrb[0].mxu0
      %v1392 = vadd.f32 0.0, %v1391
      %v1393 = vpop.f32.mrb[0].mxu0
      %v1394 = vadd.f32 0.0, %v1393
      %1395 = vmatprep.mubr.bf16.mxu0 0
      %1396 = vmatmul.mubr.bf16.gmra.mrb[0].mxu0 %v888
      %v1397 = vpop.f32.mrb[0].mxu0
      %v1398 = vadd.f32 0.0, %v1397
      %v1399 = vpop.f32.mrb[0].mxu0
      %v1400 = vadd.f32 0.0, %v1399
      %v1401 = vpop.f32.mrb[0].mxu0
      %v1402 = vadd.f32 0.0, %v1401
      %v1403 = vpop.f32.mrb[0].mxu0
      %v1404 = vadd.f32 0.0, %v1403
      %1405 = vmatprep.mubr.bf16.mxu0 0
      %1406 = vmatmul.mubr.bf16.gmra.mrb[0].mxu0 %v891
      %v1407 = vpop.f32.mrb[0].mxu0
      %v1408 = vadd.f32 0.0, %v1407
      %v1409 = vpop.f32.mrb[0].mxu0
      %v1410 = vadd.f32 0.0, %v1409
      %v1411 = vpop.f32.mrb[0].mxu0
      %v1412 = vadd.f32 0.0, %v1411
      %v1413 = vpop.f32.mrb[0].mxu0
      %v1414 = vadd.f32 0.0, %v1413
      %1415 = vmatprep.mubr.bf16.mxu0 0
      %1416 = vmatmul.mubr.bf16.gmra.mrb[0].mxu0 %v894
      %v1417 = vpop.f32.mrb[0].mxu0
      %v1418 = vadd.f32 0.0, %v1417
      %v1419 = vpop.f32.mrb[0].mxu0
      %v1420 = vadd.f32 0.0, %v1419
      %v1421 = vpop.f32.mrb[0].mxu0
      %v1422 = vadd.f32 0.0, %v1421
      %v1423 = vpop.f32.mrb[0].mxu0
      %v1424 = vadd.f32 0.0, %v1423
      %1425 = vmatprep.mubr.bf16.mxu0 0
      %1426 = vmatmul.mubr.bf16.gmra.mrb[0].mxu0 %v897
      %v1427 = vpop.f32.mrb[0].mxu0
      %v1428 = vadd.f32 0.0, %v1427
      %v1429 = vpop.f32.mrb[0].mxu0
      %v1430 = vadd.f32 0.0, %v1429
      %v1431 = vpop.f32.mrb[0].mxu0
      %v1432 = vadd.f32 0.0, %v1431
      %v1433 = vpop.f32.mrb[0].mxu0
      %v1434 = vadd.f32 0.0, %v1433
      %1435 = vmatprep.mubr.bf16.mxu0 0
      %1436 = vmatmul.mubr.bf16.gmra.mrb[0].mxu0 %v900
      %v1437 = vpop.f32.mrb[0].mxu0
      %v1438 = vadd.f32 0.0, %v1437
      %v1439 = vpop.f32.mrb[0].mxu0
      %v1440 = vadd.f32 0.0, %v1439
      %v1441 = vpop.f32.mrb[0].mxu0
      %v1442 = vadd.f32 0.0, %v1441
      %v1443 = vpop.f32.mrb[0].mxu0
      %v1444 = vadd.f32 0.0, %v1443
      %1445 = vmatprep.mubr.bf16.mxu0 0
      %1446 = vmatmul.mubr.bf16.gmra.mrb[0].mxu0 %v903
      %v1447 = vpop.f32.mrb[0].mxu0
      %v1448 = vadd.f32 0.0, %v1447
      %v1449 = vpop.f32.mrb[0].mxu0
      %v1450 = vadd.f32 0.0, %v1449
      %v1451 = vpop.f32.mrb[0].mxu0
      %v1452 = vadd.f32 0.0, %v1451
      %v1453 = vpop.f32.mrb[0].mxu0
      %v1454 = vadd.f32 0.0, %v1453
      %1455 = vmatprep.mubr.bf16.mxu0 0
      %1456 = vmatmul.mubr.bf16.gmra.mrb[0].mxu0 %v906
      %v1457 = vpop.f32.mrb[0].mxu0
      %v1458 = vadd.f32 0.0, %v1457
      %v1459 = vpop.f32.mrb[0].mxu0
      %v1460 = vadd.f32 0.0, %v1459
      %v1461 = vpop.f32.mrb[0].mxu0
      %v1462 = vadd.f32 0.0, %v1461
      %v1463 = vpop.f32.mrb[0].mxu0
      %v1464 = vadd.f32 0.0, %v1463
      %1465 = vmatprep.mubr.bf16.mxu0 0
      %1466 = vmatmul.mubr.bf16.gmra.mrb[0].mxu0 %v909
      %v1467 = vpop.f32.mrb[0].mxu0
      %v1468 = vadd.f32 0.0, %v1467
      %v1469 = vpop.f32.mrb[0].mxu0
      %v1470 = vadd.f32 0.0, %v1469
      %v1471 = vpop.f32.mrb[0].mxu0
      %v1472 = vadd.f32 0.0, %v1471
      %v1473 = vpop.f32.mrb[0].mxu0
      %v1474 = vadd.f32 0.0, %v1473
      %1475 = vmatprep.mubr.bf16.mxu0 0
      %1476 = vmatmul.mubr.bf16.gmra.mrb[0].mxu0 %v912
      %v1477 = vpop.f32.mrb[0].mxu0
      %v1478 = vadd.f32 0.0, %v1477
      %v1479 = vpop.f32.mrb[0].mxu0
      %v1480 = vadd.f32 0.0, %v1479
      %v1481 = vpop.f32.mrb[0].mxu0
      %v1482 = vadd.f32 0.0, %v1481
      %v1483 = vpop.f32.mrb[0].mxu0
      %v1484 = vadd.f32 0.0, %v1483
      %1485 = vmatprep.mubr.bf16.mxu0 0
      %1486 = vmatmul.mubr.bf16.gmra.mrb[0].mxu0 %v915
      %v1487 = vpop.f32.mrb[0].mxu0
      %v1488 = vadd.f32 0.0, %v1487
      %v1489 = vpop.f32.mrb[0].mxu0
      %v1490 = vadd.f32 0.0, %v1489
      %v1491 = vpop.f32.mrb[0].mxu0
      %v1492 = vadd.f32 0.0, %v1491
      %v1493 = vpop.f32.mrb[0].mxu0
      %v1494 = vadd.f32 0.0, %v1493
      %1495 = vmatprep.mubr.bf16.mxu0 0
      %1496 = vmatmul.mubr.bf16.gmra.mrb[0].mxu0 %v918
      %v1497 = vpop.f32.mrb[0].mxu0
      %v1498 = vadd.f32 0.0, %v1497
      %v1499 = vpop.f32.mrb[0].mxu0
      %v1500 = vadd.f32 0.0, %v1499
      %v1501 = vpop.f32.mrb[0].mxu0
      %v1502 = vadd.f32 0.0, %v1501
      %v1503 = vpop.f32.mrb[0].mxu0
      %v1504 = vadd.f32 0.0, %v1503
      %1505 = vmatprep.mubr.bf16.mxu0 0
      %1506 = vmatmul.mubr.bf16.gmra.mrb[0].mxu0 %v921
      %v1507 = vpop.f32.mrb[0].mxu0
      %v1508 = vadd.f32 0.0, %v1507
      %v1509 = vpop.f32.mrb[0].mxu0
      %v1510 = vadd.f32 0.0, %v1509
      %v1511 = vpop.f32.mrb[0].mxu0
      %v1512 = vadd.f32 0.0, %v1511
      %v1513 = vpop.f32.mrb[0].mxu0
      %v1514 = vadd.f32 0.0, %v1513
      %1515 = vmatprep.mubr.bf16.mxu0 0
      %1516 = vmatmul.mubr.bf16.gmra.mrb[0].mxu0 %v924
      %v1517 = vpop.f32.mrb[0].mxu0
      %v1518 = vadd.f32 0.0, %v1517
      %v1519 = vpop.f32.mrb[0].mxu0
      %v1520 = vadd.f32 0.0, %v1519
      %v1521 = vpop.f32.mrb[0].mxu0
      %v1522 = vadd.f32 0.0, %v1521
      %v1523 = vpop.f32.mrb[0].mxu0
      %v1524 = vadd.f32 0.0, %v1523
      %1525 = vmatprep.mubr.bf16.mxu0 0
      %1526 = vmatmul.mubr.bf16.gmra.mrb[0].mxu0 %v927
      %v1527 = vpop.f32.mrb[0].mxu0
      %v1528 = vadd.f32 0.0, %v1527
      %v1529 = vpop.f32.mrb[0].mxu0
      %v1530 = vadd.f32 0.0, %v1529
      %v1531 = vpop.f32.mrb[0].mxu0
      %v1532 = vadd.f32 0.0, %v1531
      %v1533 = vpop.f32.mrb[0].mxu0
      %v1534 = vadd.f32 0.0, %v1533
      %1535 = vmatprep.mubr.bf16.mxu0 0
      %1536 = vmatmul.mubr.bf16.gmra.mrb[0].mxu0 %v930
      %v1537 = vpop.f32.mrb[0].mxu0
      %v1538 = vadd.f32 0.0, %v1537
      %v1539 = vpop.f32.mrb[0].mxu0
      %v1540 = vadd.f32 0.0, %v1539
      %v1541 = vpop.f32.mrb[0].mxu0
      %v1542 = vadd.f32 0.0, %v1541
      %v1543 = vpop.f32.mrb[0].mxu0
      %v1544 = vadd.f32 0.0, %v1543
      %1545 = vmatprep.mubr.bf16.mxu0 0
      %1546 = vmatmul.mubr.bf16.gmra.mrb[0].mxu0 %v933
      %v1547 = vpop.f32.mrb[0].mxu0
      %v1548 = vadd.f32 0.0, %v1547
      %v1549 = vpop.f32.mrb[0].mxu0
      %v1550 = vadd.f32 0.0, %v1549
      %v1551 = vpop.f32.mrb[0].mxu0
      %v1552 = vadd.f32 0.0, %v1551
      %v1553 = vpop.f32.mrb[0].mxu0
      %v1554 = vadd.f32 0.0, %v1553
      %1555 = vmatprep.mubr.bf16.mxu0 0
      %1556 = vmatmul.mubr.bf16.gmra.mrb[0].mxu0 %v936
      %v1557 = vpop.f32.mrb[0].mxu0
      %v1558 = vadd.f32 0.0, %v1557
      %v1559 = vpop.f32.mrb[0].mxu0
      %v1560 = vadd.f32 0.0, %v1559
      %v1561 = vpop.f32.mrb[0].mxu0
      %v1562 = vadd.f32 0.0, %v1561
      %v1563 = vpop.f32.mrb[0].mxu0
      %v1564 = vadd.f32 0.0, %v1563
      %1565 = vmatprep.mubr.bf16.mxu0 0
      %1566 = vmatmul.mubr.bf16.gmra.mrb[0].mxu0 %v939
      %v1567 = vpop.f32.mrb[0].mxu0
      %v1568 = vadd.f32 0.0, %v1567
      %v1569 = vpop.f32.mrb[0].mxu0
      %v1570 = vadd.f32 0.0, %v1569
      %v1571 = vpop.f32.mrb[0].mxu0
      %v1572 = vadd.f32 0.0, %v1571
      %v1573 = vpop.f32.mrb[0].mxu0
      %v1574 = vadd.f32 0.0, %v1573
      %1575 = vmatprep.mubr.bf16.mxu0 0
      %1576 = vmatmul.mubr.bf16.gmra.mrb[0].mxu0 %v942
      %v1577 = vpop.f32.mrb[0].mxu0
      %v1578 = vadd.f32 0.0, %v1577
      %v1579 = vpop.f32.mrb[0].mxu0
      %v1580 = vadd.f32 0.0, %v1579
      %v1581 = vpop.f32.mrb[0].mxu0
      %v1582 = vadd.f32 0.0, %v1581
      %v1583 = vpop.f32.mrb[0].mxu0
      %v1584 = vadd.f32 0.0, %v1583
      %1585 = vmatprep.mubr.bf16.mxu0 0
      %1586 = vmatmul.mubr.bf16.gmra.mrb[0].mxu0 %v945
      %v1587 = vpop.f32.mrb[0].mxu0
      %v1588 = vadd.f32 0.0, %v1587
      %v1589 = vpop.f32.mrb[0].mxu0
      %v1590 = vadd.f32 0.0, %v1589
      %v1591 = vpop.f32.mrb[0].mxu0
      %v1592 = vadd.f32 0.0, %v1591
      %v1593 = vpop.f32.mrb[0].mxu0
      %v1594 = vadd.f32 0.0, %v1593
      %1595 = vmatprep.mubr.bf16.mxu0 0
      %1596 = vmatmul.mubr.bf16.gmra.mrb[0].mxu0 %v948
      %v1597 = vpop.f32.mrb[0].mxu0
      %v1598 = vadd.f32 0.0, %v1597
      %v1599 = vpop.f32.mrb[0].mxu0
      %v1600 = vadd.f32 0.0, %v1599
      %v1601 = vpop.f32.mrb[0].mxu0
      %v1602 = vadd.f32 0.0, %v1601
      %v1603 = vpop.f32.mrb[0].mxu0
      %v1604 = vadd.f32 0.0, %v1603
      %1605 = vmatprep.mubr.bf16.mxu0 0
      %1606 = vmatmul.mubr.bf16.gmra.mrb[0].mxu0 %v951
      %v1607 = vpop.f32.mrb[0].mxu0
      %v1608 = vadd.f32 0.0, %v1607
      %v1609 = vpop.f32.mrb[0].mxu0
      %v1610 = vadd.f32 0.0, %v1609
      %v1611 = vpop.f32.mrb[0].mxu0
      %v1612 = vadd.f32 0.0, %v1611
      %v1613 = vpop.f32.mrb[0].mxu0
      %v1614 = vadd.f32 0.0, %v1613
      %1615 = vmatprep.mubr.bf16.mxu0 0
      %1616 = vmatmul.mubr.bf16.gmra.mrb[0].mxu0 %v954
      %v1617 = vpop.f32.mrb[0].mxu0
      %v1618 = vadd.f32 0.0, %v1617
      %v1619 = vpop.f32.mrb[0].mxu0
      %v1620 = vadd.f32 0.0, %v1619
      %v1621 = vpop.f32.mrb[0].mxu0
      %v1622 = vadd.f32 0.0, %v1621
      %v1623 = vpop.f32.mrb[0].mxu0
      %v1624 = vadd.f32 0.0, %v1623
      %1625 = vmatprep.mubr.bf16.mxu0 0
      %1626 = vmatmul.mubr.bf16.gmra.mrb[0].mxu0 %v957
      %v1627 = vpop.f32.mrb[0].mxu0
      %v1628 = vadd.f32 0.0, %v1627
      %v1629 = vpop.f32.mrb[0].mxu0
      %v1630 = vadd.f32 0.0, %v1629
      %v1631 = vpop.f32.mrb[0].mxu0
      %v1632 = vadd.f32 0.0, %v1631
      %v1633 = vpop.f32.mrb[0].mxu0
      %v1634 = vadd.f32 0.0, %v1633
      %1635 = vmatprep.mubr.bf16.mxu0 0
      %1636 = vmatmul.mubr.bf16.gmra.mrb[0].mxu0 %v960
      %v1637 = vpop.f32.mrb[0].mxu0
      %v1638 = vadd.f32 0.0, %v1637
      %v1639 = vpop.f32.mrb[0].mxu0
      %v1640 = vadd.f32 0.0, %v1639
      %v1641 = vpop.f32.mrb[0].mxu0
      %v1642 = vadd.f32 0.0, %v1641
      %v1643 = vpop.f32.mrb[0].mxu0
      %v1644 = vadd.f32 0.0, %v1643
      %1645 = vmatprep.mubr.bf16.mxu0 0
      %1646 = vmatmul.mubr.bf16.gmra.mrb[0].mxu0 %v963
      %v1647 = vpop.f32.mrb[0].mxu0
      %v1648 = vadd.f32 0.0, %v1647
      %v1649 = vpop.f32.mrb[0].mxu0
      %v1650 = vadd.f32 0.0, %v1649
      %v1651 = vpop.f32.mrb[0].mxu0
      %v1652 = vadd.f32 0.0, %v1651
      %v1653 = vpop.f32.mrb[0].mxu0
      %v1654 = vadd.f32 0.0, %v1653
      %1655 = vmatprep.mubr.bf16.mxu0 0
      %1656 = vmatmul.mubr.bf16.gmra.mrb[0].mxu0 %v966
      %v1657 = vpop.f32.mrb[0].mxu0
      %v1658 = vadd.f32 0.0, %v1657
      %v1659 = vpop.f32.mrb[0].mxu0
      %v1660 = vadd.f32 0.0, %v1659
      %v1661 = vpop.f32.mrb[0].mxu0
      %v1662 = vadd.f32 0.0, %v1661
      %v1663 = vpop.f32.mrb[0].mxu0
      %v1664 = vadd.f32 0.0, %v1663
      %1665 = vdwg.mxu0
      %1666 = vmatprep.subr.bf16.mxu0 %v979
      %1667 = vmatpush1.bf16.msra.mxu0 %v976
      %1668 = vmatprep.subr.bf16.mxu0 0
      %1669 = vmatpush1.bf16.msra.mxu0 0
      %1670 = vmatprep.subr.bf16.mxu0 0
      %1671 = vmatpush1.bf16.msra.mxu0 0
      %1672 = vmatprep.subr.bf16.mxu0 0
      %1673 = vmatpush1.bf16.msra.mxu0 0
      %1674 = vmatprep.subr.bf16.mxu0 0
      %1675 = vmatpush1.bf16.msra.mxu0 0
      %1676 = vmatprep.subr.bf16.mxu0 0
      %1677 = vmatpush1.bf16.msra.mxu0 0
      %1678 = vmatprep.subr.bf16.mxu0 0
      %1679 = vmatpush1.bf16.msra.mxu0 0
      %1680 = vmatprep.subr.bf16.mxu0 0
      %1681 = vmatpush1.bf16.msra.mxu0 0
      %1682 = vmatprep.subr.bf16.mxu0 0
      %1683 = vmatpush1.bf16.msra.mxu0 0
      %1684 = vmatprep.subr.bf16.mxu0 0
      %1685 = vmatpush1.bf16.msra.mxu0 0
      %1686 = vmatprep.subr.bf16.mxu0 0
      %1687 = vmatpush1.bf16.msra.mxu0 0
      %1688 = vmatprep.subr.bf16.mxu0 0
      %1689 = vmatpush1.bf16.msra.mxu0 0
      %1690 = vmatprep.subr.bf16.mxu0 0
      %1691 = vmatpush1.bf16.msra.mxu0 0
      %1692 = vmatprep.subr.bf16.mxu0 0
      %1693 = vmatpush1.bf16.msra.mxu0 0
      %1694 = vmatprep.subr.bf16.mxu0 0
      %1695 = vmatpush1.bf16.msra.mxu0 0
      %1696 = vmatprep.subr.bf16.mxu0 0
      %1697 = vmatpush1.bf16.msra.mxu0 0
      %1698 = vmatprep.mubr.bf16.mxu0 0
      %1699 = vmatmul.mubr.bf16.gmra.mrb[0].mxu0 %v777
      %v1700 = vpop.f32.mrb[0].mxu0
      %v1701 = vadd.f32 0.0, %v1700
      %v1702 = vpop.f32.mrb[0].mxu0
      %v1703 = vadd.f32 0.0, %v1702
      %v1704 = vpop.f32.mrb[0].mxu0
      %v1705 = vadd.f32 0.0, %v1704
      %v1706 = vpop.f32.mrb[0].mxu0
      %v1707 = vadd.f32 0.0, %v1706
      %1708 = vmatprep.mubr.bf16.mxu0 0
      %1709 = vmatmul.mubr.bf16.gmra.mrb[0].mxu0 %v780
      %v1710 = vpop.f32.mrb[0].mxu0
      %v1711 = vadd.f32 0.0, %v1710
      %v1712 = vpop.f32.mrb[0].mxu0
      %v1713 = vadd.f32 0.0, %v1712
      %v1714 = vpop.f32.mrb[0].mxu0
      %v1715 = vadd.f32 0.0, %v1714
      %v1716 = vpop.f32.mrb[0].mxu0
      %v1717 = vadd.f32 0.0, %v1716
      %1718 = vmatprep.mubr.bf16.mxu0 0
      %1719 = vmatmul.mubr.bf16.gmra.mrb[0].mxu0 %v783
      %v1720 = vpop.f32.mrb[0].mxu0
      %v1721 = vadd.f32 0.0, %v1720
      %v1722 = vpop.f32.mrb[0].mxu0
      %v1723 = vadd.f32 0.0, %v1722
      %v1724 = vpop.f32.mrb[0].mxu0
      %v1725 = vadd.f32 0.0, %v1724
      %v1726 = vpop.f32.mrb[0].mxu0
      %v1727 = vadd.f32 0.0, %v1726
      %1728 = vmatprep.mubr.bf16.mxu0 0
      %1729 = vmatmul.mubr.bf16.gmra.mrb[0].mxu0 %v786
      %v1730 = vpop.f32.mrb[0].mxu0
      %v1731 = vadd.f32 0.0, %v1730
      %v1732 = vpop.f32.mrb[0].mxu0
      %v1733 = vadd.f32 0.0, %v1732
      %v1734 = vpop.f32.mrb[0].mxu0
      %v1735 = vadd.f32 0.0, %v1734
      %v1736 = vpop.f32.mrb[0].mxu0
      %v1737 = vadd.f32 0.0, %v1736
      %1738 = vmatprep.mubr.bf16.mxu0 0
      %1739 = vmatmul.mubr.bf16.gmra.mrb[0].mxu0 %v789
      %v1740 = vpop.f32.mrb[0].mxu0
      %v1741 = vadd.f32 0.0, %v1740
      %v1742 = vpop.f32.mrb[0].mxu0
      %v1743 = vadd.f32 0.0, %v1742
      %v1744 = vpop.f32.mrb[0].mxu0
      %v1745 = vadd.f32 0.0, %v1744
      %v1746 = vpop.f32.mrb[0].mxu0
      %v1747 = vadd.f32 0.0, %v1746
      %1748 = vmatprep.mubr.bf16.mxu0 0
      %1749 = vmatmul.mubr.bf16.gmra.mrb[0].mxu0 %v792
      %v1750 = vpop.f32.mrb[0].mxu0
      %v1751 = vadd.f32 0.0, %v1750
      %v1752 = vpop.f32.mrb[0].mxu0
      %v1753 = vadd.f32 0.0, %v1752
      %v1754 = vpop.f32.mrb[0].mxu0
      %v1755 = vadd.f32 0.0, %v1754
      %v1756 = vpop.f32.mrb[0].mxu0
      %v1757 = vadd.f32 0.0, %v1756
      %1758 = vmatprep.mubr.bf16.mxu0 0
      %1759 = vmatmul.mubr.bf16.gmra.mrb[0].mxu0 %v795
      %v1760 = vpop.f32.mrb[0].mxu0
      %v1761 = vadd.f32 0.0, %v1760
      %v1762 = vpop.f32.mrb[0].mxu0
      %v1763 = vadd.f32 0.0, %v1762
      %v1764 = vpop.f32.mrb[0].mxu0
      %v1765 = vadd.f32 0.0, %v1764
      %v1766 = vpop.f32.mrb[0].mxu0
      %v1767 = vadd.f32 0.0, %v1766
      %1768 = vmatprep.mubr.bf16.mxu0 0
      %1769 = vmatmul.mubr.bf16.gmra.mrb[0].mxu0 %v798
      %v1770 = vpop.f32.mrb[0].mxu0
      %v1771 = vadd.f32 0.0, %v1770
      %v1772 = vpop.f32.mrb[0].mxu0
      %v1773 = vadd.f32 0.0, %v1772
      %v1774 = vpop.f32.mrb[0].mxu0
      %v1775 = vadd.f32 0.0, %v1774
      %v1776 = vpop.f32.mrb[0].mxu0
      %v1777 = vadd.f32 0.0, %v1776
      %1778 = vmatprep.mubr.bf16.mxu0 0
      %1779 = vmatmul.mubr.bf16.gmra.mrb[0].mxu0 %v801
      %v1780 = vpop.f32.mrb[0].mxu0
      %v1781 = vadd.f32 0.0, %v1780
      %v1782 = vpop.f32.mrb[0].mxu0
      %v1783 = vadd.f32 0.0, %v1782
      %v1784 = vpop.f32.mrb[0].mxu0
      %v1785 = vadd.f32 0.0, %v1784
      %v1786 = vpop.f32.mrb[0].mxu0
      %v1787 = vadd.f32 0.0, %v1786
      %1788 = vmatprep.mubr.bf16.mxu0 0
      %1789 = vmatmul.mubr.bf16.gmra.mrb[0].mxu0 %v804
      %v1790 = vpop.f32.mrb[0].mxu0
      %v1791 = vadd.f32 0.0, %v1790
      %v1792 = vpop.f32.mrb[0].mxu0
      %v1793 = vadd.f32 0.0, %v1792
      %v1794 = vpop.f32.mrb[0].mxu0
      %v1795 = vadd.f32 0.0, %v1794
      %v1796 = vpop.f32.mrb[0].mxu0
      %v1797 = vadd.f32 0.0, %v1796
      %1798 = vmatprep.mubr.bf16.mxu0 0
      %1799 = vmatmul.mubr.bf16.gmra.mrb[0].mxu0 %v807
      %v1800 = vpop.f32.mrb[0].mxu0
      %v1801 = vadd.f32 0.0, %v1800
      %v1802 = vpop.f32.mrb[0].mxu0
      %v1803 = vadd.f32 0.0, %v1802
      %v1804 = vpop.f32.mrb[0].mxu0
      %v1805 = vadd.f32 0.0, %v1804
      %v1806 = vpop.f32.mrb[0].mxu0
      %v1807 = vadd.f32 0.0, %v1806
      %1808 = vmatprep.mubr.bf16.mxu0 0
      %1809 = vmatmul.mubr.bf16.gmra.mrb[0].mxu0 %v810
      %v1810 = vpop.f32.mrb[0].mxu0
      %v1811 = vadd.f32 0.0, %v1810
      %v1812 = vpop.f32.mrb[0].mxu0
      %v1813 = vadd.f32 0.0, %v1812
      %v1814 = vpop.f32.mrb[0].mxu0
      %v1815 = vadd.f32 0.0, %v1814
      %v1816 = vpop.f32.mrb[0].mxu0
      %v1817 = vadd.f32 0.0, %v1816
      %1818 = vmatprep.mubr.bf16.mxu0 0
      %1819 = vmatmul.mubr.bf16.gmra.mrb[0].mxu0 %v813
      %v1820 = vpop.f32.mrb[0].mxu0
      %v1821 = vadd.f32 0.0, %v1820
      %v1822 = vpop.f32.mrb[0].mxu0
      %v1823 = vadd.f32 0.0, %v1822
      %v1824 = vpop.f32.mrb[0].mxu0
      %v1825 = vadd.f32 0.0, %v1824
      %v1826 = vpop.f32.mrb[0].mxu0
      %v1827 = vadd.f32 0.0, %v1826
      %1828 = vmatprep.mubr.bf16.mxu0 0
      %1829 = vmatmul.mubr.bf16.gmra.mrb[0].mxu0 %v816
      %v1830 = vpop.f32.mrb[0].mxu0
      %v1831 = vadd.f32 0.0, %v1830
      %v1832 = vpop.f32.mrb[0].mxu0
      %v1833 = vadd.f32 0.0, %v1832
      %v1834 = vpop.f32.mrb[0].mxu0
      %v1835 = vadd.f32 0.0, %v1834
      %v1836 = vpop.f32.mrb[0].mxu0
      %v1837 = vadd.f32 0.0, %v1836
      %1838 = vmatprep.mubr.bf16.mxu0 0
      %1839 = vmatmul.mubr.bf16.gmra.mrb[0].mxu0 %v819
      %v1840 = vpop.f32.mrb[0].mxu0
      %v1841 = vadd.f32 0.0, %v1840
      %v1842 = vpop.f32.mrb[0].mxu0
      %v1843 = vadd.f32 0.0, %v1842
      %v1844 = vpop.f32.mrb[0].mxu0
      %v1845 = vadd.f32 0.0, %v1844
      %v1846 = vpop.f32.mrb[0].mxu0
      %v1847 = vadd.f32 0.0, %v1846
      %1848 = vmatprep.mubr.bf16.mxu0 0
      %1849 = vmatmul.mubr.bf16.gmra.mrb[0].mxu0 %v822
      %v1850 = vpop.f32.mrb[0].mxu0
      %v1851 = vadd.f32 0.0, %v1850
      %v1852 = vpop.f32.mrb[0].mxu0
      %v1853 = vadd.f32 0.0, %v1852
      %v1854 = vpop.f32.mrb[0].mxu0
      %v1855 = vadd.f32 0.0, %v1854
      %v1856 = vpop.f32.mrb[0].mxu0
      %v1857 = vadd.f32 0.0, %v1856
      %1858 = vmatprep.mubr.bf16.mxu0 0
      %1859 = vmatmul.mubr.bf16.gmra.mrb[0].mxu0 %v825
      %v1860 = vpop.f32.mrb[0].mxu0
      %v1861 = vadd.f32 0.0, %v1860
      %v1862 = vpop.f32.mrb[0].mxu0
      %v1863 = vadd.f32 0.0, %v1862
      %v1864 = vpop.f32.mrb[0].mxu0
      %v1865 = vadd.f32 0.0, %v1864
      %v1866 = vpop.f32.mrb[0].mxu0
      %v1867 = vadd.f32 0.0, %v1866
      %1868 = vmatprep.mubr.bf16.mxu0 0
      %1869 = vmatmul.mubr.bf16.gmra.mrb[0].mxu0 %v828
      %v1870 = vpop.f32.mrb[0].mxu0
      %v1871 = vadd.f32 0.0, %v1870
      %v1872 = vpop.f32.mrb[0].mxu0
      %v1873 = vadd.f32 0.0, %v1872
      %v1874 = vpop.f32.mrb[0].mxu0
      %v1875 = vadd.f32 0.0, %v1874
      %v1876 = vpop.f32.mrb[0].mxu0
      %v1877 = vadd.f32 0.0, %v1876
      %1878 = vmatprep.mubr.bf16.mxu0 0
      %1879 = vmatmul.mubr.bf16.gmra.mrb[0].mxu0 %v831
      %v1880 = vpop.f32.mrb[0].mxu0
      %v1881 = vadd.f32 0.0, %v1880
      %v1882 = vpop.f32.mrb[0].mxu0
      %v1883 = vadd.f32 0.0, %v1882
      %v1884 = vpop.f32.mrb[0].mxu0
      %v1885 = vadd.f32 0.0, %v1884
      %v1886 = vpop.f32.mrb[0].mxu0
      %v1887 = vadd.f32 0.0, %v1886
      %1888 = vmatprep.mubr.bf16.mxu0 0
      %1889 = vmatmul.mubr.bf16.gmra.mrb[0].mxu0 %v834
      %v1890 = vpop.f32.mrb[0].mxu0
      %v1891 = vadd.f32 0.0, %v1890
      %v1892 = vpop.f32.mrb[0].mxu0
      %v1893 = vadd.f32 0.0, %v1892
      %v1894 = vpop.f32.mrb[0].mxu0
      %v1895 = vadd.f32 0.0, %v1894
      %v1896 = vpop.f32.mrb[0].mxu0
      %v1897 = vadd.f32 0.0, %v1896
      %1898 = vmatprep.mubr.bf16.mxu0 0
      %1899 = vmatmul.mubr.bf16.gmra.mrb[0].mxu0 %v837
      %v1900 = vpop.f32.mrb[0].mxu0
      %v1901 = vadd.f32 0.0, %v1900
      %v1902 = vpop.f32.mrb[0].mxu0
      %v1903 = vadd.f32 0.0, %v1902
      %v1904 = vpop.f32.mrb[0].mxu0
      %v1905 = vadd.f32 0.0, %v1904
      %v1906 = vpop.f32.mrb[0].mxu0
      %v1907 = vadd.f32 0.0, %v1906
      %1908 = vmatprep.mubr.bf16.mxu0 0
      %1909 = vmatmul.mubr.bf16.gmra.mrb[0].mxu0 %v840
      %v1910 = vpop.f32.mrb[0].mxu0
      %v1911 = vadd.f32 0.0, %v1910
      %v1912 = vpop.f32.mrb[0].mxu0
      %v1913 = vadd.f32 0.0, %v1912
      %v1914 = vpop.f32.mrb[0].mxu0
      %v1915 = vadd.f32 0.0, %v1914
      %v1916 = vpop.f32.mrb[0].mxu0
      %v1917 = vadd.f32 0.0, %v1916
      %1918 = vmatprep.mubr.bf16.mxu0 0
      %1919 = vmatmul.mubr.bf16.gmra.mrb[0].mxu0 %v843
      %v1920 = vpop.f32.mrb[0].mxu0
      %v1921 = vadd.f32 0.0, %v1920
      %v1922 = vpop.f32.mrb[0].mxu0
      %v1923 = vadd.f32 0.0, %v1922
      %v1924 = vpop.f32.mrb[0].mxu0
      %v1925 = vadd.f32 0.0, %v1924
      %v1926 = vpop.f32.mrb[0].mxu0
      %v1927 = vadd.f32 0.0, %v1926
      %1928 = vmatprep.mubr.bf16.mxu0 0
      %1929 = vmatmul.mubr.bf16.gmra.mrb[0].mxu0 %v846
      %v1930 = vpop.f32.mrb[0].mxu0
      %v1931 = vadd.f32 0.0, %v1930
      %v1932 = vpop.f32.mrb[0].mxu0
      %v1933 = vadd.f32 0.0, %v1932
      %v1934 = vpop.f32.mrb[0].mxu0
      %v1935 = vadd.f32 0.0, %v1934
      %v1936 = vpop.f32.mrb[0].mxu0
      %v1937 = vadd.f32 0.0, %v1936
      %1938 = vmatprep.mubr.bf16.mxu0 0
      %1939 = vmatmul.mubr.bf16.gmra.mrb[0].mxu0 %v849
      %v1940 = vpop.f32.mrb[0].mxu0
      %v1941 = vadd.f32 0.0, %v1940
      %v1942 = vpop.f32.mrb[0].mxu0
      %v1943 = vadd.f32 0.0, %v1942
      %v1944 = vpop.f32.mrb[0].mxu0
      %v1945 = vadd.f32 0.0, %v1944
      %v1946 = vpop.f32.mrb[0].mxu0
      %v1947 = vadd.f32 0.0, %v1946
      %1948 = vmatprep.mubr.bf16.mxu0 0
      %1949 = vmatmul.mubr.bf16.gmra.mrb[0].mxu0 %v852
      %v1950 = vpop.f32.mrb[0].mxu0
      %v1951 = vadd.f32 0.0, %v1950
      %v1952 = vpop.f32.mrb[0].mxu0
      %v1953 = vadd.f32 0.0, %v1952
      %v1954 = vpop.f32.mrb[0].mxu0
      %v1955 = vadd.f32 0.0, %v1954
      %v1956 = vpop.f32.mrb[0].mxu0
      %v1957 = vadd.f32 0.0, %v1956
      %1958 = vmatprep.mubr.bf16.mxu0 0
      %1959 = vmatmul.mubr.bf16.gmra.mrb[0].mxu0 %v855
      %v1960 = vpop.f32.mrb[0].mxu0
      %v1961 = vadd.f32 0.0, %v1960
      %v1962 = vpop.f32.mrb[0].mxu0
      %v1963 = vadd.f32 0.0, %v1962
      %v1964 = vpop.f32.mrb[0].mxu0
      %v1965 = vadd.f32 0.0, %v1964
      %v1966 = vpop.f32.mrb[0].mxu0
      %v1967 = vadd.f32 0.0, %v1966
      %1968 = vmatprep.mubr.bf16.mxu0 0
      %1969 = vmatmul.mubr.bf16.gmra.mrb[0].mxu0 %v858
      %v1970 = vpop.f32.mrb[0].mxu0
      %v1971 = vadd.f32 0.0, %v1970
      %v1972 = vpop.f32.mrb[0].mxu0
      %v1973 = vadd.f32 0.0, %v1972
      %v1974 = vpop.f32.mrb[0].mxu0
      %v1975 = vadd.f32 0.0, %v1974
      %v1976 = vpop.f32.mrb[0].mxu0
      %v1977 = vadd.f32 0.0, %v1976
      %1978 = vmatprep.mubr.bf16.mxu0 0
      %1979 = vmatmul.mubr.bf16.gmra.mrb[0].mxu0 %v861
      %v1980 = vpop.f32.mrb[0].mxu0
      %v1981 = vadd.f32 0.0, %v1980
      %v1982 = vpop.f32.mrb[0].mxu0
      %v1983 = vadd.f32 0.0, %v1982
      %v1984 = vpop.f32.mrb[0].mxu0
      %v1985 = vadd.f32 0.0, %v1984
      %v1986 = vpop.f32.mrb[0].mxu0
      %v1987 = vadd.f32 0.0, %v1986
      %1988 = vmatprep.mubr.bf16.mxu0 0
      %1989 = vmatmul.mubr.bf16.gmra.mrb[0].mxu0 %v864
      %v1990 = vpop.f32.mrb[0].mxu0
      %v1991 = vadd.f32 0.0, %v1990
      %v1992 = vpop.f32.mrb[0].mxu0
      %v1993 = vadd.f32 0.0, %v1992
      %v1994 = vpop.f32.mrb[0].mxu0
      %v1995 = vadd.f32 0.0, %v1994
      %v1996 = vpop.f32.mrb[0].mxu0
      %v1997 = vadd.f32 0.0, %v1996
      %1998 = vmatprep.mubr.bf16.mxu0 0
      %1999 = vmatmul.mubr.bf16.gmra.mrb[0].mxu0 %v867
      %v2000 = vpop.f32.mrb[0].mxu0
      %v2001 = vadd.f32 0.0, %v2000
      %v2002 = vpop.f32.mrb[0].mxu0
      %v2003 = vadd.f32 0.0, %v2002
      %v2004 = vpop.f32.mrb[0].mxu0
      %v2005 = vadd.f32 0.0, %v2004
      %v2006 = vpop.f32.mrb[0].mxu0
      %v2007 = vadd.f32 0.0, %v2006
      %2008 = vmatprep.mubr.bf16.mxu0 0
      %2009 = vmatmul.mubr.bf16.gmra.mrb[0].mxu0 %v870
      %v2010 = vpop.f32.mrb[0].mxu0
      %v2011 = vadd.f32 0.0, %v2010
      %v2012 = vpop.f32.mrb[0].mxu0
      %v2013 = vadd.f32 0.0, %v2012
      %v2014 = vpop.f32.mrb[0].mxu0
      %v2015 = vadd.f32 0.0, %v2014
      %v2016 = vpop.f32.mrb[0].mxu0
      %v2017 = vadd.f32 0.0, %v2016
      %2018 = vmatprep.mubr.bf16.mxu0 0
      %2019 = vmatmul.mubr.bf16.gmra.mrb[0].mxu0 %v873
      %v2020 = vpop.f32.mrb[0].mxu0
      %v2021 = vadd.f32 0.0, %v2020
      %v2022 = vpop.f32.mrb[0].mxu0
      %v2023 = vadd.f32 0.0, %v2022
      %v2024 = vpop.f32.mrb[0].mxu0
      %v2025 = vadd.f32 0.0, %v2024
      %v2026 = vpop.f32.mrb[0].mxu0
      %v2027 = vadd.f32 0.0, %v2026
      %2028 = vmatprep.mubr.bf16.mxu0 0
      %2029 = vmatmul.mubr.bf16.gmra.mrb[0].mxu0 %v876
      %v2030 = vpop.f32.mrb[0].mxu0
      %v2031 = vadd.f32 0.0, %v2030
      %v2032 = vpop.f32.mrb[0].mxu0
      %v2033 = vadd.f32 0.0, %v2032
      %v2034 = vpop.f32.mrb[0].mxu0
      %v2035 = vadd.f32 0.0, %v2034
      %v2036 = vpop.f32.mrb[0].mxu0
      %v2037 = vadd.f32 0.0, %v2036
      %2038 = vmatprep.mubr.bf16.mxu0 0
      %2039 = vmatmul.mubr.bf16.gmra.mrb[0].mxu0 %v879
      %v2040 = vpop.f32.mrb[0].mxu0
      %v2041 = vadd.f32 0.0, %v2040
      %v2042 = vpop.f32.mrb[0].mxu0
      %v2043 = vadd.f32 0.0, %v2042
      %v2044 = vpop.f32.mrb[0].mxu0
      %v2045 = vadd.f32 0.0, %v2044
      %v2046 = vpop.f32.mrb[0].mxu0
      %v2047 = vadd.f32 0.0, %v2046
      %2048 = vmatprep.mubr.bf16.mxu0 0
      %2049 = vmatmul.mubr.bf16.gmra.mrb[0].mxu0 %v882
      %v2050 = vpop.f32.mrb[0].mxu0
      %v2051 = vadd.f32 0.0, %v2050
      %v2052 = vpop.f32.mrb[0].mxu0
      %v2053 = vadd.f32 0.0, %v2052
      %v2054 = vpop.f32.mrb[0].mxu0
      %v2055 = vadd.f32 0.0, %v2054
      %v2056 = vpop.f32.mrb[0].mxu0
      %v2057 = vadd.f32 0.0, %v2056
      %2058 = vmatprep.mubr.bf16.mxu0 0
      %2059 = vmatmul.mubr.bf16.gmra.mrb[0].mxu0 %v885
      %v2060 = vpop.f32.mrb[0].mxu0
      %v2061 = vadd.f32 0.0, %v2060
      %v2062 = vpop.f32.mrb[0].mxu0
      %v2063 = vadd.f32 0.0, %v2062
      %v2064 = vpop.f32.mrb[0].mxu0
      %v2065 = vadd.f32 0.0, %v2064
      %v2066 = vpop.f32.mrb[0].mxu0
      %v2067 = vadd.f32 0.0, %v2066
      %2068 = vmatprep.mubr.bf16.mxu0 0
      %2069 = vmatmul.mubr.bf16.gmra.mrb[0].mxu0 %v888
      %v2070 = vpop.f32.mrb[0].mxu0
      %v2071 = vadd.f32 0.0, %v2070
      %v2072 = vpop.f32.mrb[0].mxu0
      %v2073 = vadd.f32 0.0, %v2072
      %v2074 = vpop.f32.mrb[0].mxu0
      %v2075 = vadd.f32 0.0, %v2074
      %v2076 = vpop.f32.mrb[0].mxu0
      %v2077 = vadd.f32 0.0, %v2076
      %2078 = vmatprep.mubr.bf16.mxu0 0
      %2079 = vmatmul.mubr.bf16.gmra.mrb[0].mxu0 %v891
      %v2080 = vpop.f32.mrb[0].mxu0
      %v2081 = vadd.f32 0.0, %v2080
      %v2082 = vpop.f32.mrb[0].mxu0
      %v2083 = vadd.f32 0.0, %v2082
      %v2084 = vpop.f32.mrb[0].mxu0
      %v2085 = vadd.f32 0.0, %v2084
      %v2086 = vpop.f32.mrb[0].mxu0
      %v2087 = vadd.f32 0.0, %v2086
      %2088 = vmatprep.mubr.bf16.mxu0 0
      %2089 = vmatmul.mubr.bf16.gmra.mrb[0].mxu0 %v894
      %v2090 = vpop.f32.mrb[0].mxu0
      %v2091 = vadd.f32 0.0, %v2090
      %v2092 = vpop.f32.mrb[0].mxu0
      %v2093 = vadd.f32 0.0, %v2092
      %v2094 = vpop.f32.mrb[0].mxu0
      %v2095 = vadd.f32 0.0, %v2094
      %v2096 = vpop.f32.mrb[0].mxu0
      %v2097 = vadd.f32 0.0, %v2096
      %2098 = vmatprep.mubr.bf16.mxu0 0
      %2099 = vmatmul.mubr.bf16.gmra.mrb[0].mxu0 %v897
      %v2100 = vpop.f32.mrb[0].mxu0
      %v2101 = vadd.f32 0.0, %v2100
      %v2102 = vpop.f32.mrb[0].mxu0
      %v2103 = vadd.f32 0.0, %v2102
      %v2104 = vpop.f32.mrb[0].mxu0
      %v2105 = vadd.f32 0.0, %v2104
      %v2106 = vpop.f32.mrb[0].mxu0
      %v2107 = vadd.f32 0.0, %v2106
      %2108 = vmatprep.mubr.bf16.mxu0 0
      %2109 = vmatmul.mubr.bf16.gmra.mrb[0].mxu0 %v900
      %v2110 = vpop.f32.mrb[0].mxu0
      %v2111 = vadd.f32 0.0, %v2110
      %v2112 = vpop.f32.mrb[0].mxu0
      %v2113 = vadd.f32 0.0, %v2112
      %v2114 = vpop.f32.mrb[0].mxu0
      %v2115 = vadd.f32 0.0, %v2114
      %v2116 = vpop.f32.mrb[0].mxu0
      %v2117 = vadd.f32 0.0, %v2116
      %2118 = vmatprep.mubr.bf16.mxu0 0
      %2119 = vmatmul.mubr.bf16.gmra.mrb[0].mxu0 %v903
      %v2120 = vpop.f32.mrb[0].mxu0
      %v2121 = vadd.f32 0.0, %v2120
      %v2122 = vpop.f32.mrb[0].mxu0
      %v2123 = vadd.f32 0.0, %v2122
      %v2124 = vpop.f32.mrb[0].mxu0
      %v2125 = vadd.f32 0.0, %v2124
      %v2126 = vpop.f32.mrb[0].mxu0
      %v2127 = vadd.f32 0.0, %v2126
      %2128 = vmatprep.mubr.bf16.mxu0 0
      %2129 = vmatmul.mubr.bf16.gmra.mrb[0].mxu0 %v906
      %v2130 = vpop.f32.mrb[0].mxu0
      %v2131 = vadd.f32 0.0, %v2130
      %v2132 = vpop.f32.mrb[0].mxu0
      %v2133 = vadd.f32 0.0, %v2132
      %v2134 = vpop.f32.mrb[0].mxu0
      %v2135 = vadd.f32 0.0, %v2134
      %v2136 = vpop.f32.mrb[0].mxu0
      %v2137 = vadd.f32 0.0, %v2136
      %2138 = vmatprep.mubr.bf16.mxu0 0
      %2139 = vmatmul.mubr.bf16.gmra.mrb[0].mxu0 %v909
      %v2140 = vpop.f32.mrb[0].mxu0
      %v2141 = vadd.f32 0.0, %v2140
      %v2142 = vpop.f32.mrb[0].mxu0
      %v2143 = vadd.f32 0.0, %v2142
      %v2144 = vpop.f32.mrb[0].mxu0
      %v2145 = vadd.f32 0.0, %v2144
      %v2146 = vpop.f32.mrb[0].mxu0
      %v2147 = vadd.f32 0.0, %v2146
      %2148 = vmatprep.mubr.bf16.mxu0 0
      %2149 = vmatmul.mubr.bf16.gmra.mrb[0].mxu0 %v912
      %v2150 = vpop.f32.mrb[0].mxu0
      %v2151 = vadd.f32 0.0, %v2150
      %v2152 = vpop.f32.mrb[0].mxu0
      %v2153 = vadd.f32 0.0, %v2152
      %v2154 = vpop.f32.mrb[0].mxu0
      %v2155 = vadd.f32 0.0, %v2154
      %v2156 = vpop.f32.mrb[0].mxu0
      %v2157 = vadd.f32 0.0, %v2156
      %2158 = vmatprep.mubr.bf16.mxu0 0
      %2159 = vmatmul.mubr.bf16.gmra.mrb[0].mxu0 %v915
      %v2160 = vpop.f32.mrb[0].mxu0
      %v2161 = vadd.f32 0.0, %v2160
      %v2162 = vpop.f32.mrb[0].mxu0
      %v2163 = vadd.f32 0.0, %v2162
      %v2164 = vpop.f32.mrb[0].mxu0
      %v2165 = vadd.f32 0.0, %v2164
      %v2166 = vpop.f32.mrb[0].mxu0
      %v2167 = vadd.f32 0.0, %v2166
      %2168 = vmatprep.mubr.bf16.mxu0 0
      %2169 = vmatmul.mubr.bf16.gmra.mrb[0].mxu0 %v918
      %v2170 = vpop.f32.mrb[0].mxu0
      %v2171 = vadd.f32 0.0, %v2170
      %v2172 = vpop.f32.mrb[0].mxu0
      %v2173 = vadd.f32 0.0, %v2172
      %v2174 = vpop.f32.mrb[0].mxu0
      %v2175 = vadd.f32 0.0, %v2174
      %v2176 = vpop.f32.mrb[0].mxu0
      %v2177 = vadd.f32 0.0, %v2176
      %2178 = vmatprep.mubr.bf16.mxu0 0
      %2179 = vmatmul.mubr.bf16.gmra.mrb[0].mxu0 %v921
      %v2180 = vpop.f32.mrb[0].mxu0
      %v2181 = vadd.f32 0.0, %v2180
      %v2182 = vpop.f32.mrb[0].mxu0
      %v2183 = vadd.f32 0.0, %v2182
      %v2184 = vpop.f32.mrb[0].mxu0
      %v2185 = vadd.f32 0.0, %v2184
      %v2186 = vpop.f32.mrb[0].mxu0
      %v2187 = vadd.f32 0.0, %v2186
      %2188 = vmatprep.mubr.bf16.mxu0 0
      %2189 = vmatmul.mubr.bf16.gmra.mrb[0].mxu0 %v924
      %v2190 = vpop.f32.mrb[0].mxu0
      %v2191 = vadd.f32 0.0, %v2190
      %v2192 = vpop.f32.mrb[0].mxu0
      %v2193 = vadd.f32 0.0, %v2192
      %v2194 = vpop.f32.mrb[0].mxu0
      %v2195 = vadd.f32 0.0, %v2194
      %v2196 = vpop.f32.mrb[0].mxu0
      %v2197 = vadd.f32 0.0, %v2196
      %2198 = vmatprep.mubr.bf16.mxu0 0
      %2199 = vmatmul.mubr.bf16.gmra.mrb[0].mxu0 %v927
      %v2200 = vpop.f32.mrb[0].mxu0
      %v2201 = vadd.f32 0.0, %v2200
      %v2202 = vpop.f32.mrb[0].mxu0
      %v2203 = vadd.f32 0.0, %v2202
      %v2204 = vpop.f32.mrb[0].mxu0
      %v2205 = vadd.f32 0.0, %v2204
      %v2206 = vpop.f32.mrb[0].mxu0
      %v2207 = vadd.f32 0.0, %v2206
      %2208 = vmatprep.mubr.bf16.mxu0 0
      %2209 = vmatmul.mubr.bf16.gmra.mrb[0].mxu0 %v930
      %v2210 = vpop.f32.mrb[0].mxu0
      %v2211 = vadd.f32 0.0, %v2210
      %v2212 = vpop.f32.mrb[0].mxu0
      %v2213 = vadd.f32 0.0, %v2212
      %v2214 = vpop.f32.mrb[0].mxu0
      %v2215 = vadd.f32 0.0, %v2214
      %v2216 = vpop.f32.mrb[0].mxu0
      %v2217 = vadd.f32 0.0, %v2216
      %2218 = vmatprep.mubr.bf16.mxu0 0
      %2219 = vmatmul.mubr.bf16.gmra.mrb[0].mxu0 %v933
      %v2220 = vpop.f32.mrb[0].mxu0
      %v2221 = vadd.f32 0.0, %v2220
      %v2222 = vpop.f32.mrb[0].mxu0
      %v2223 = vadd.f32 0.0, %v2222
      %v2224 = vpop.f32.mrb[0].mxu0
      %v2225 = vadd.f32 0.0, %v2224
      %v2226 = vpop.f32.mrb[0].mxu0
      %v2227 = vadd.f32 0.0, %v2226
      %2228 = vmatprep.mubr.bf16.mxu0 0
      %2229 = vmatmul.mubr.bf16.gmra.mrb[0].mxu0 %v936
      %v2230 = vpop.f32.mrb[0].mxu0
      %v2231 = vadd.f32 0.0, %v2230
      %v2232 = vpop.f32.mrb[0].mxu0
      %v2233 = vadd.f32 0.0, %v2232
      %v2234 = vpop.f32.mrb[0].mxu0
      %v2235 = vadd.f32 0.0, %v2234
      %v2236 = vpop.f32.mrb[0].mxu0
      %v2237 = vadd.f32 0.0, %v2236
      %2238 = vmatprep.mubr.bf16.mxu0 0
      %2239 = vmatmul.mubr.bf16.gmra.mrb[0].mxu0 %v939
      %v2240 = vpop.f32.mrb[0].mxu0
      %v2241 = vadd.f32 0.0, %v2240
      %v2242 = vpop.f32.mrb[0].mxu0
      %v2243 = vadd.f32 0.0, %v2242
      %v2244 = vpop.f32.mrb[0].mxu0
      %v2245 = vadd.f32 0.0, %v2244
      %v2246 = vpop.f32.mrb[0].mxu0
      %v2247 = vadd.f32 0.0, %v2246
      %2248 = vmatprep.mubr.bf16.mxu0 0
      %2249 = vmatmul.mubr.bf16.gmra.mrb[0].mxu0 %v942
      %v2250 = vpop.f32.mrb[0].mxu0
      %v2251 = vadd.f32 0.0, %v2250
      %v2252 = vpop.f32.mrb[0].mxu0
      %v2253 = vadd.f32 0.0, %v2252
      %v2254 = vpop.f32.mrb[0].mxu0
      %v2255 = vadd.f32 0.0, %v2254
      %v2256 = vpop.f32.mrb[0].mxu0
      %v2257 = vadd.f32 0.0, %v2256
      %2258 = vmatprep.mubr.bf16.mxu0 0
      %2259 = vmatmul.mubr.bf16.gmra.mrb[0].mxu0 %v945
      %v2260 = vpop.f32.mrb[0].mxu0
      %v2261 = vadd.f32 0.0, %v2260
      %v2262 = vpop.f32.mrb[0].mxu0
      %v2263 = vadd.f32 0.0, %v2262
      %v2264 = vpop.f32.mrb[0].mxu0
      %v2265 = vadd.f32 0.0, %v2264
      %v2266 = vpop.f32.mrb[0].mxu0
      %v2267 = vadd.f32 0.0, %v2266
      %2268 = vmatprep.mubr.bf16.mxu0 0
      %2269 = vmatmul.mubr.bf16.gmra.mrb[0].mxu0 %v948
      %v2270 = vpop.f32.mrb[0].mxu0
      %v2271 = vadd.f32 0.0, %v2270
      %v2272 = vpop.f32.mrb[0].mxu0
      %v2273 = vadd.f32 0.0, %v2272
      %v2274 = vpop.f32.mrb[0].mxu0
      %v2275 = vadd.f32 0.0, %v2274
      %v2276 = vpop.f32.mrb[0].mxu0
      %v2277 = vadd.f32 0.0, %v2276
      %2278 = vmatprep.mubr.bf16.mxu0 0
      %2279 = vmatmul.mubr.bf16.gmra.mrb[0].mxu0 %v951
      %v2280 = vpop.f32.mrb[0].mxu0
      %v2281 = vadd.f32 0.0, %v2280
      %v2282 = vpop.f32.mrb[0].mxu0
      %v2283 = vadd.f32 0.0, %v2282
      %v2284 = vpop.f32.mrb[0].mxu0
      %v2285 = vadd.f32 0.0, %v2284
      %v2286 = vpop.f32.mrb[0].mxu0
      %v2287 = vadd.f32 0.0, %v2286
      %2288 = vmatprep.mubr.bf16.mxu0 0
      %2289 = vmatmul.mubr.bf16.gmra.mrb[0].mxu0 %v954
      %v2290 = vpop.f32.mrb[0].mxu0
      %v2291 = vadd.f32 0.0, %v2290
      %v2292 = vpop.f32.mrb[0].mxu0
      %v2293 = vadd.f32 0.0, %v2292
      %v2294 = vpop.f32.mrb[0].mxu0
      %v2295 = vadd.f32 0.0, %v2294
      %v2296 = vpop.f32.mrb[0].mxu0
      %v2297 = vadd.f32 0.0, %v2296
      %2298 = vmatprep.mubr.bf16.mxu0 0
      %2299 = vmatmul.mubr.bf16.gmra.mrb[0].mxu0 %v957
      %v2300 = vpop.f32.mrb[0].mxu0
      %v2301 = vadd.f32 0.0, %v2300
      %v2302 = vpop.f32.mrb[0].mxu0
      %v2303 = vadd.f32 0.0, %v2302
      %v2304 = vpop.f32.mrb[0].mxu0
      %v2305 = vadd.f32 0.0, %v2304
      %v2306 = vpop.f32.mrb[0].mxu0
      %v2307 = vadd.f32 0.0, %v2306
      %2308 = vmatprep.mubr.bf16.mxu0 0
      %2309 = vmatmul.mubr.bf16.gmra.mrb[0].mxu0 %v960
      %v2310 = vpop.f32.mrb[0].mxu0
      %v2311 = vadd.f32 0.0, %v2310
      %v2312 = vpop.f32.mrb[0].mxu0
      %v2313 = vadd.f32 0.0, %v2312
      %v2314 = vpop.f32.mrb[0].mxu0
      %v2315 = vadd.f32 0.0, %v2314
      %v2316 = vpop.f32.mrb[0].mxu0
      %v2317 = vadd.f32 0.0, %v2316
      %2318 = vmatprep.mubr.bf16.mxu0 0
      %2319 = vmatmul.mubr.bf16.gmra.mrb[0].mxu0 %v963
      %v2320 = vpop.f32.mrb[0].mxu0
      %v2321 = vadd.f32 0.0, %v2320
      %v2322 = vpop.f32.mrb[0].mxu0
      %v2323 = vadd.f32 0.0, %v2322
      %v2324 = vpop.f32.mrb[0].mxu0
      %v2325 = vadd.f32 0.0, %v2324
      %v2326 = vpop.f32.mrb[0].mxu0
      %v2327 = vadd.f32 0.0, %v2326
      %2328 = vmatprep.mubr.bf16.mxu0 0
      %2329 = vmatmul.mubr.bf16.gmra.mrb[0].mxu0 %v966
      %v2330 = vpop.f32.mrb[0].mxu0
      %v2331 = vadd.f32 0.0, %v2330
      %v2332 = vpop.f32.mrb[0].mxu0
      %v2333 = vadd.f32 0.0, %v2332
      %v2334 = vpop.f32.mrb[0].mxu0
      %v2335 = vadd.f32 0.0, %v2334
      %v2336 = vpop.f32.mrb[0].mxu0
      %v2337 = vadd.f32 0.0, %v2336
      %2338 = vdwg.mxu0
      %2339 = vmatprep.subr.bf16.mxu0 %v985
      %2340 = vmatpush1.bf16.msra.mxu0 %v982
      %2341 = vmatprep.subr.bf16.mxu0 0
      %2342 = vmatpush1.bf16.msra.mxu0 0
      %2343 = vmatprep.subr.bf16.mxu0 0
      %2344 = vmatpush1.bf16.msra.mxu0 0
      %2345 = vmatprep.subr.bf16.mxu0 0
      %2346 = vmatpush1.bf16.msra.mxu0 0
      %2347 = vmatprep.subr.bf16.mxu0 0
      %2348 = vmatpush1.bf16.msra.mxu0 0
      %2349 = vmatprep.subr.bf16.mxu0 0
      %2350 = vmatpush1.bf16.msra.mxu0 0
      %2351 = vmatprep.subr.bf16.mxu0 0
      %2352 = vmatpush1.bf16.msra.mxu0 0
      %2353 = vmatprep.subr.bf16.mxu0 0
      %2354 = vmatpush1.bf16.msra.mxu0 0
      %2355 = vmatprep.subr.bf16.mxu0 0
      %2356 = vmatpush1.bf16.msra.mxu0 0
      %2357 = vmatprep.subr.bf16.mxu0 0
      %2358 = vmatpush1.bf16.msra.mxu0 0
      %2359 = vmatprep.subr.bf16.mxu0 0
      %2360 = vmatpush1.bf16.msra.mxu0 0
      %2361 = vmatprep.subr.bf16.mxu0 0
      %2362 = vmatpush1.bf16.msra.mxu0 0
      %2363 = vmatprep.subr.bf16.mxu0 0
      %2364 = vmatpush1.bf16.msra.mxu0 0
      %2365 = vmatprep.subr.bf16.mxu0 0
      %2366 = vmatpush1.bf16.msra.mxu0 0
      %2367 = vmatprep.subr.bf16.mxu0 0
      %2368 = vmatpush1.bf16.msra.mxu0 0
      %2369 = vmatprep.subr.bf16.mxu0 0
      %2370 = vmatpush1.bf16.msra.mxu0 0
      %2371 = vmatprep.mubr.bf16.mxu0 0
      %2372 = vmatmul.mubr.bf16.gmra.mrb[0].mxu0 %v777
      %v2373 = vpop.f32.mrb[0].mxu0
      %v2374 = vadd.f32 0.0, %v2373
      %v2375 = vpop.f32.mrb[0].mxu0
      %v2376 = vadd.f32 0.0, %v2375
      %v2377 = vpop.f32.mrb[0].mxu0
      %v2378 = vadd.f32 0.0, %v2377
      %v2379 = vpop.f32.mrb[0].mxu0
      %v2380 = vadd.f32 0.0, %v2379
      %2381 = vmatprep.mubr.bf16.mxu0 0
      %2382 = vmatmul.mubr.bf16.gmra.mrb[0].mxu0 %v780
      %v2383 = vpop.f32.mrb[0].mxu0
      %v2384 = vadd.f32 0.0, %v2383
      %v2385 = vpop.f32.mrb[0].mxu0
      %v2386 = vadd.f32 0.0, %v2385
      %v2387 = vpop.f32.mrb[0].mxu0
      %v2388 = vadd.f32 0.0, %v2387
      %v2389 = vpop.f32.mrb[0].mxu0
      %v2390 = vadd.f32 0.0, %v2389
      %2391 = vmatprep.mubr.bf16.mxu0 0
      %2392 = vmatmul.mubr.bf16.gmra.mrb[0].mxu0 %v783
      %v2393 = vpop.f32.mrb[0].mxu0
      %v2394 = vadd.f32 0.0, %v2393
      %v2395 = vpop.f32.mrb[0].mxu0
      %v2396 = vadd.f32 0.0, %v2395
      %v2397 = vpop.f32.mrb[0].mxu0
      %v2398 = vadd.f32 0.0, %v2397
      %v2399 = vpop.f32.mrb[0].mxu0
      %v2400 = vadd.f32 0.0, %v2399
      %2401 = vmatprep.mubr.bf16.mxu0 0
      %2402 = vmatmul.mubr.bf16.gmra.mrb[0].mxu0 %v786
      %v2403 = vpop.f32.mrb[0].mxu0
      %v2404 = vadd.f32 0.0, %v2403
      %v2405 = vpop.f32.mrb[0].mxu0
      %v2406 = vadd.f32 0.0, %v2405
      %v2407 = vpop.f32.mrb[0].mxu0
      %v2408 = vadd.f32 0.0, %v2407
      %v2409 = vpop.f32.mrb[0].mxu0
      %v2410 = vadd.f32 0.0, %v2409
      %2411 = vmatprep.mubr.bf16.mxu0 0
      %2412 = vmatmul.mubr.bf16.gmra.mrb[0].mxu0 %v789
      %v2413 = vpop.f32.mrb[0].mxu0
      %v2414 = vadd.f32 0.0, %v2413
      %v2415 = vpop.f32.mrb[0].mxu0
      %v2416 = vadd.f32 0.0, %v2415
      %v2417 = vpop.f32.mrb[0].mxu0
      %v2418 = vadd.f32 0.0, %v2417
      %v2419 = vpop.f32.mrb[0].mxu0
      %v2420 = vadd.f32 0.0, %v2419
      %2421 = vmatprep.mubr.bf16.mxu0 0
      %2422 = vmatmul.mubr.bf16.gmra.mrb[0].mxu0 %v792
      %v2423 = vpop.f32.mrb[0].mxu0
      %v2424 = vadd.f32 0.0, %v2423
      %v2425 = vpop.f32.mrb[0].mxu0
      %v2426 = vadd.f32 0.0, %v2425
      %v2427 = vpop.f32.mrb[0].mxu0
      %v2428 = vadd.f32 0.0, %v2427
      %v2429 = vpop.f32.mrb[0].mxu0
      %v2430 = vadd.f32 0.0, %v2429
      %2431 = vmatprep.mubr.bf16.mxu0 0
      %2432 = vmatmul.mubr.bf16.gmra.mrb[0].mxu0 %v795
      %v2433 = vpop.f32.mrb[0].mxu0
      %v2434 = vadd.f32 0.0, %v2433
      %v2435 = vpop.f32.mrb[0].mxu0
      %v2436 = vadd.f32 0.0, %v2435
      %v2437 = vpop.f32.mrb[0].mxu0
      %v2438 = vadd.f32 0.0, %v2437
      %v2439 = vpop.f32.mrb[0].mxu0
      %v2440 = vadd.f32 0.0, %v2439
      %2441 = vmatprep.mubr.bf16.mxu0 0
      %2442 = vmatmul.mubr.bf16.gmra.mrb[0].mxu0 %v798
      %v2443 = vpop.f32.mrb[0].mxu0
      %v2444 = vadd.f32 0.0, %v2443
      %v2445 = vpop.f32.mrb[0].mxu0
      %v2446 = vadd.f32 0.0, %v2445
      %v2447 = vpop.f32.mrb[0].mxu0
      %v2448 = vadd.f32 0.0, %v2447
      %v2449 = vpop.f32.mrb[0].mxu0
      %v2450 = vadd.f32 0.0, %v2449
      %2451 = vmatprep.mubr.bf16.mxu0 0
      %2452 = vmatmul.mubr.bf16.gmra.mrb[0].mxu0 %v801
      %v2453 = vpop.f32.mrb[0].mxu0
      %v2454 = vadd.f32 0.0, %v2453
      %v2455 = vpop.f32.mrb[0].mxu0
      %v2456 = vadd.f32 0.0, %v2455
      %v2457 = vpop.f32.mrb[0].mxu0
      %v2458 = vadd.f32 0.0, %v2457
      %v2459 = vpop.f32.mrb[0].mxu0
      %v2460 = vadd.f32 0.0, %v2459
      %2461 = vmatprep.mubr.bf16.mxu0 0
      %2462 = vmatmul.mubr.bf16.gmra.mrb[0].mxu0 %v804
      %v2463 = vpop.f32.mrb[0].mxu0
      %v2464 = vadd.f32 0.0, %v2463
      %v2465 = vpop.f32.mrb[0].mxu0
      %v2466 = vadd.f32 0.0, %v2465
      %v2467 = vpop.f32.mrb[0].mxu0
      %v2468 = vadd.f32 0.0, %v2467
      %v2469 = vpop.f32.mrb[0].mxu0
      %v2470 = vadd.f32 0.0, %v2469
      %2471 = vmatprep.mubr.bf16.mxu0 0
      %2472 = vmatmul.mubr.bf16.gmra.mrb[0].mxu0 %v807
      %v2473 = vpop.f32.mrb[0].mxu0
      %v2474 = vadd.f32 0.0, %v2473
      %v2475 = vpop.f32.mrb[0].mxu0
      %v2476 = vadd.f32 0.0, %v2475
      %v2477 = vpop.f32.mrb[0].mxu0
      %v2478 = vadd.f32 0.0, %v2477
      %v2479 = vpop.f32.mrb[0].mxu0
      %v2480 = vadd.f32 0.0, %v2479
      %2481 = vmatprep.mubr.bf16.mxu0 0
      %2482 = vmatmul.mubr.bf16.gmra.mrb[0].mxu0 %v810
      %v2483 = vpop.f32.mrb[0].mxu0
      %v2484 = vadd.f32 0.0, %v2483
      %v2485 = vpop.f32.mrb[0].mxu0
      %v2486 = vadd.f32 0.0, %v2485
      %v2487 = vpop.f32.mrb[0].mxu0
      %v2488 = vadd.f32 0.0, %v2487
      %v2489 = vpop.f32.mrb[0].mxu0
      %v2490 = vadd.f32 0.0, %v2489
      %2491 = vmatprep.mubr.bf16.mxu0 0
      %2492 = vmatmul.mubr.bf16.gmra.mrb[0].mxu0 %v813
      %v2493 = vpop.f32.mrb[0].mxu0
      %v2494 = vadd.f32 0.0, %v2493
      %v2495 = vpop.f32.mrb[0].mxu0
      %v2496 = vadd.f32 0.0, %v2495
      %v2497 = vpop.f32.mrb[0].mxu0
      %v2498 = vadd.f32 0.0, %v2497
      %v2499 = vpop.f32.mrb[0].mxu0
      %v2500 = vadd.f32 0.0, %v2499
      %2501 = vmatprep.mubr.bf16.mxu0 0
      %2502 = vmatmul.mubr.bf16.gmra.mrb[0].mxu0 %v816
      %v2503 = vpop.f32.mrb[0].mxu0
      %v2504 = vadd.f32 0.0, %v2503
      %v2505 = vpop.f32.mrb[0].mxu0
      %v2506 = vadd.f32 0.0, %v2505
      %v2507 = vpop.f32.mrb[0].mxu0
      %v2508 = vadd.f32 0.0, %v2507
      %v2509 = vpop.f32.mrb[0].mxu0
      %v2510 = vadd.f32 0.0, %v2509
      %2511 = vmatprep.mubr.bf16.mxu0 0
      %2512 = vmatmul.mubr.bf16.gmra.mrb[0].mxu0 %v819
      %v2513 = vpop.f32.mrb[0].mxu0
      %v2514 = vadd.f32 0.0, %v2513
      %v2515 = vpop.f32.mrb[0].mxu0
      %v2516 = vadd.f32 0.0, %v2515
      %v2517 = vpop.f32.mrb[0].mxu0
      %v2518 = vadd.f32 0.0, %v2517
      %v2519 = vpop.f32.mrb[0].mxu0
      %v2520 = vadd.f32 0.0, %v2519
      %2521 = vmatprep.mubr.bf16.mxu0 0
      %2522 = vmatmul.mubr.bf16.gmra.mrb[0].mxu0 %v822
      %v2523 = vpop.f32.mrb[0].mxu0
      %v2524 = vadd.f32 0.0, %v2523
      %v2525 = vpop.f32.mrb[0].mxu0
      %v2526 = vadd.f32 0.0, %v2525
      %v2527 = vpop.f32.mrb[0].mxu0
      %v2528 = vadd.f32 0.0, %v2527
      %v2529 = vpop.f32.mrb[0].mxu0
      %v2530 = vadd.f32 0.0, %v2529
      %2531 = vmatprep.mubr.bf16.mxu0 0
      %2532 = vmatmul.mubr.bf16.gmra.mrb[0].mxu0 %v825
      %v2533 = vpop.f32.mrb[0].mxu0
      %v2534 = vadd.f32 0.0, %v2533
      %v2535 = vpop.f32.mrb[0].mxu0
      %v2536 = vadd.f32 0.0, %v2535
      %v2537 = vpop.f32.mrb[0].mxu0
      %v2538 = vadd.f32 0.0, %v2537
      %v2539 = vpop.f32.mrb[0].mxu0
      %v2540 = vadd.f32 0.0, %v2539
      %2541 = vmatprep.mubr.bf16.mxu0 0
      %2542 = vmatmul.mubr.bf16.gmra.mrb[0].mxu0 %v828
      %v2543 = vpop.f32.mrb[0].mxu0
      %v2544 = vadd.f32 0.0, %v2543
      %v2545 = vpop.f32.mrb[0].mxu0
      %v2546 = vadd.f32 0.0, %v2545
      %v2547 = vpop.f32.mrb[0].mxu0
      %v2548 = vadd.f32 0.0, %v2547
      %v2549 = vpop.f32.mrb[0].mxu0
      %v2550 = vadd.f32 0.0, %v2549
      %2551 = vmatprep.mubr.bf16.mxu0 0
      %2552 = vmatmul.mubr.bf16.gmra.mrb[0].mxu0 %v831
      %v2553 = vpop.f32.mrb[0].mxu0
      %v2554 = vadd.f32 0.0, %v2553
      %v2555 = vpop.f32.mrb[0].mxu0
      %v2556 = vadd.f32 0.0, %v2555
      %v2557 = vpop.f32.mrb[0].mxu0
      %v2558 = vadd.f32 0.0, %v2557
      %v2559 = vpop.f32.mrb[0].mxu0
      %v2560 = vadd.f32 0.0, %v2559
      %2561 = vmatprep.mubr.bf16.mxu0 0
      %2562 = vmatmul.mubr.bf16.gmra.mrb[0].mxu0 %v834
      %v2563 = vpop.f32.mrb[0].mxu0
      %v2564 = vadd.f32 0.0, %v2563
      %v2565 = vpop.f32.mrb[0].mxu0
      %v2566 = vadd.f32 0.0, %v2565
      %v2567 = vpop.f32.mrb[0].mxu0
      %v2568 = vadd.f32 0.0, %v2567
      %v2569 = vpop.f32.mrb[0].mxu0
      %v2570 = vadd.f32 0.0, %v2569
      %2571 = vmatprep.mubr.bf16.mxu0 0
      %2572 = vmatmul.mubr.bf16.gmra.mrb[0].mxu0 %v837
      %v2573 = vpop.f32.mrb[0].mxu0
      %v2574 = vadd.f32 0.0, %v2573
      %v2575 = vpop.f32.mrb[0].mxu0
      %v2576 = vadd.f32 0.0, %v2575
      %v2577 = vpop.f32.mrb[0].mxu0
      %v2578 = vadd.f32 0.0, %v2577
      %v2579 = vpop.f32.mrb[0].mxu0
      %v2580 = vadd.f32 0.0, %v2579
      %2581 = vmatprep.mubr.bf16.mxu0 0
      %2582 = vmatmul.mubr.bf16.gmra.mrb[0].mxu0 %v840
      %v2583 = vpop.f32.mrb[0].mxu0
      %v2584 = vadd.f32 0.0, %v2583
      %v2585 = vpop.f32.mrb[0].mxu0
      %v2586 = vadd.f32 0.0, %v2585
      %v2587 = vpop.f32.mrb[0].mxu0
      %v2588 = vadd.f32 0.0, %v2587
      %v2589 = vpop.f32.mrb[0].mxu0
      %v2590 = vadd.f32 0.0, %v2589
      %2591 = vmatprep.mubr.bf16.mxu0 0
      %2592 = vmatmul.mubr.bf16.gmra.mrb[0].mxu0 %v843
      %v2593 = vpop.f32.mrb[0].mxu0
      %v2594 = vadd.f32 0.0, %v2593
      %v2595 = vpop.f32.mrb[0].mxu0
      %v2596 = vadd.f32 0.0, %v2595
      %v2597 = vpop.f32.mrb[0].mxu0
      %v2598 = vadd.f32 0.0, %v2597
      %v2599 = vpop.f32.mrb[0].mxu0
      %v2600 = vadd.f32 0.0, %v2599
      %2601 = vmatprep.mubr.bf16.mxu0 0
      %2602 = vmatmul.mubr.bf16.gmra.mrb[0].mxu0 %v846
      %v2603 = vpop.f32.mrb[0].mxu0
      %v2604 = vadd.f32 0.0, %v2603
      %v2605 = vpop.f32.mrb[0].mxu0
      %v2606 = vadd.f32 0.0, %v2605
      %v2607 = vpop.f32.mrb[0].mxu0
      %v2608 = vadd.f32 0.0, %v2607
      %v2609 = vpop.f32.mrb[0].mxu0
      %v2610 = vadd.f32 0.0, %v2609
      %2611 = vmatprep.mubr.bf16.mxu0 0
      %2612 = vmatmul.mubr.bf16.gmra.mrb[0].mxu0 %v849
      %v2613 = vpop.f32.mrb[0].mxu0
      %v2614 = vadd.f32 0.0, %v2613
      %v2615 = vpop.f32.mrb[0].mxu0
      %v2616 = vadd.f32 0.0, %v2615
      %v2617 = vpop.f32.mrb[0].mxu0
      %v2618 = vadd.f32 0.0, %v2617
      %v2619 = vpop.f32.mrb[0].mxu0
      %v2620 = vadd.f32 0.0, %v2619
      %2621 = vmatprep.mubr.bf16.mxu0 0
      %2622 = vmatmul.mubr.bf16.gmra.mrb[0].mxu0 %v852
      %v2623 = vpop.f32.mrb[0].mxu0
      %v2624 = vadd.f32 0.0, %v2623
      %v2625 = vpop.f32.mrb[0].mxu0
      %v2626 = vadd.f32 0.0, %v2625
      %v2627 = vpop.f32.mrb[0].mxu0
      %v2628 = vadd.f32 0.0, %v2627
      %v2629 = vpop.f32.mrb[0].mxu0
      %v2630 = vadd.f32 0.0, %v2629
      %2631 = vmatprep.mubr.bf16.mxu0 0
      %2632 = vmatmul.mubr.bf16.gmra.mrb[0].mxu0 %v855
      %v2633 = vpop.f32.mrb[0].mxu0
      %v2634 = vadd.f32 0.0, %v2633
      %v2635 = vpop.f32.mrb[0].mxu0
      %v2636 = vadd.f32 0.0, %v2635
      %v2637 = vpop.f32.mrb[0].mxu0
      %v2638 = vadd.f32 0.0, %v2637
      %v2639 = vpop.f32.mrb[0].mxu0
      %v2640 = vadd.f32 0.0, %v2639
      %2641 = vmatprep.mubr.bf16.mxu0 0
      %2642 = vmatmul.mubr.bf16.gmra.mrb[0].mxu0 %v858
      %v2643 = vpop.f32.mrb[0].mxu0
      %v2644 = vadd.f32 0.0, %v2643
      %v2645 = vpop.f32.mrb[0].mxu0
      %v2646 = vadd.f32 0.0, %v2645
      %v2647 = vpop.f32.mrb[0].mxu0
      %v2648 = vadd.f32 0.0, %v2647
      %v2649 = vpop.f32.mrb[0].mxu0
      %v2650 = vadd.f32 0.0, %v2649
      %2651 = vmatprep.mubr.bf16.mxu0 0
      %2652 = vmatmul.mubr.bf16.gmra.mrb[0].mxu0 %v861
      %v2653 = vpop.f32.mrb[0].mxu0
      %v2654 = vadd.f32 0.0, %v2653
      %v2655 = vpop.f32.mrb[0].mxu0
      %v2656 = vadd.f32 0.0, %v2655
      %v2657 = vpop.f32.mrb[0].mxu0
      %v2658 = vadd.f32 0.0, %v2657
      %v2659 = vpop.f32.mrb[0].mxu0
      %v2660 = vadd.f32 0.0, %v2659
      %2661 = vmatprep.mubr.bf16.mxu0 0
      %2662 = vmatmul.mubr.bf16.gmra.mrb[0].mxu0 %v864
      %v2663 = vpop.f32.mrb[0].mxu0
      %v2664 = vadd.f32 0.0, %v2663
      %v2665 = vpop.f32.mrb[0].mxu0
      %v2666 = vadd.f32 0.0, %v2665
      %v2667 = vpop.f32.mrb[0].mxu0
      %v2668 = vadd.f32 0.0, %v2667
      %v2669 = vpop.f32.mrb[0].mxu0
      %v2670 = vadd.f32 0.0, %v2669
      %2671 = vmatprep.mubr.bf16.mxu0 0
      %2672 = vmatmul.mubr.bf16.gmra.mrb[0].mxu0 %v867
      %v2673 = vpop.f32.mrb[0].mxu0
      %v2674 = vadd.f32 0.0, %v2673
      %v2675 = vpop.f32.mrb[0].mxu0
      %v2676 = vadd.f32 0.0, %v2675
      %v2677 = vpop.f32.mrb[0].mxu0
      %v2678 = vadd.f32 0.0, %v2677
      %v2679 = vpop.f32.mrb[0].mxu0
      %v2680 = vadd.f32 0.0, %v2679
      %2681 = vmatprep.mubr.bf16.mxu0 0
      %2682 = vmatmul.mubr.bf16.gmra.mrb[0].mxu0 %v870
      %v2683 = vpop.f32.mrb[0].mxu0
      %v2684 = vadd.f32 0.0, %v2683
      %v2685 = vpop.f32.mrb[0].mxu0
      %v2686 = vadd.f32 0.0, %v2685
      %v2687 = vpop.f32.mrb[0].mxu0
      %v2688 = vadd.f32 0.0, %v2687
      %v2689 = vpop.f32.mrb[0].mxu0
      %v2690 = vadd.f32 0.0, %v2689
      %2691 = vmatprep.mubr.bf16.mxu0 0
      %2692 = vmatmul.mubr.bf16.gmra.mrb[0].mxu0 %v873
      %v2693 = vpop.f32.mrb[0].mxu0
      %v2694 = vadd.f32 0.0, %v2693
      %v2695 = vpop.f32.mrb[0].mxu0
      %v2696 = vadd.f32 0.0, %v2695
      %v2697 = vpop.f32.mrb[0].mxu0
      %v2698 = vadd.f32 0.0, %v2697
      %v2699 = vpop.f32.mrb[0].mxu0
      %v2700 = vadd.f32 0.0, %v2699
      %2701 = vmatprep.mubr.bf16.mxu0 0
      %2702 = vmatmul.mubr.bf16.gmra.mrb[0].mxu0 %v876
      %v2703 = vpop.f32.mrb[0].mxu0
      %v2704 = vadd.f32 0.0, %v2703
      %v2705 = vpop.f32.mrb[0].mxu0
      %v2706 = vadd.f32 0.0, %v2705
      %v2707 = vpop.f32.mrb[0].mxu0
      %v2708 = vadd.f32 0.0, %v2707
      %v2709 = vpop.f32.mrb[0].mxu0
      %v2710 = vadd.f32 0.0, %v2709
      %2711 = vmatprep.mubr.bf16.mxu0 0
      %2712 = vmatmul.mubr.bf16.gmra.mrb[0].mxu0 %v879
      %v2713 = vpop.f32.mrb[0].mxu0
      %v2714 = vadd.f32 0.0, %v2713
      %v2715 = vpop.f32.mrb[0].mxu0
      %v2716 = vadd.f32 0.0, %v2715
      %v2717 = vpop.f32.mrb[0].mxu0
      %v2718 = vadd.f32 0.0, %v2717
      %v2719 = vpop.f32.mrb[0].mxu0
      %v2720 = vadd.f32 0.0, %v2719
      %2721 = vmatprep.mubr.bf16.mxu0 0
      %2722 = vmatmul.mubr.bf16.gmra.mrb[0].mxu0 %v882
      %v2723 = vpop.f32.mrb[0].mxu0
      %v2724 = vadd.f32 0.0, %v2723
      %v2725 = vpop.f32.mrb[0].mxu0
      %v2726 = vadd.f32 0.0, %v2725
      %v2727 = vpop.f32.mrb[0].mxu0
      %v2728 = vadd.f32 0.0, %v2727
      %v2729 = vpop.f32.mrb[0].mxu0
      %v2730 = vadd.f32 0.0, %v2729
      %2731 = vmatprep.mubr.bf16.mxu0 0
      %2732 = vmatmul.mubr.bf16.gmra.mrb[0].mxu0 %v885
      %v2733 = vpop.f32.mrb[0].mxu0
      %v2734 = vadd.f32 0.0, %v2733
      %v2735 = vpop.f32.mrb[0].mxu0
      %v2736 = vadd.f32 0.0, %v2735
      %v2737 = vpop.f32.mrb[0].mxu0
      %v2738 = vadd.f32 0.0, %v2737
      %v2739 = vpop.f32.mrb[0].mxu0
      %v2740 = vadd.f32 0.0, %v2739
      %2741 = vmatprep.mubr.bf16.mxu0 0
      %2742 = vmatmul.mubr.bf16.gmra.mrb[0].mxu0 %v888
      %v2743 = vpop.f32.mrb[0].mxu0
      %v2744 = vadd.f32 0.0, %v2743
      %v2745 = vpop.f32.mrb[0].mxu0
      %v2746 = vadd.f32 0.0, %v2745
      %v2747 = vpop.f32.mrb[0].mxu0
      %v2748 = vadd.f32 0.0, %v2747
      %v2749 = vpop.f32.mrb[0].mxu0
      %v2750 = vadd.f32 0.0, %v2749
      %2751 = vmatprep.mubr.bf16.mxu0 0
      %2752 = vmatmul.mubr.bf16.gmra.mrb[0].mxu0 %v891
      %v2753 = vpop.f32.mrb[0].mxu0
      %v2754 = vadd.f32 0.0, %v2753
      %v2755 = vpop.f32.mrb[0].mxu0
      %v2756 = vadd.f32 0.0, %v2755
      %v2757 = vpop.f32.mrb[0].mxu0
      %v2758 = vadd.f32 0.0, %v2757
      %v2759 = vpop.f32.mrb[0].mxu0
      %v2760 = vadd.f32 0.0, %v2759
      %2761 = vmatprep.mubr.bf16.mxu0 0
      %2762 = vmatmul.mubr.bf16.gmra.mrb[0].mxu0 %v894
      %v2763 = vpop.f32.mrb[0].mxu0
      %v2764 = vadd.f32 0.0, %v2763
      %v2765 = vpop.f32.mrb[0].mxu0
      %v2766 = vadd.f32 0.0, %v2765
      %v2767 = vpop.f32.mrb[0].mxu0
      %v2768 = vadd.f32 0.0, %v2767
      %v2769 = vpop.f32.mrb[0].mxu0
      %v2770 = vadd.f32 0.0, %v2769
      %2771 = vmatprep.mubr.bf16.mxu0 0
      %2772 = vmatmul.mubr.bf16.gmra.mrb[0].mxu0 %v897
      %v2773 = vpop.f32.mrb[0].mxu0
      %v2774 = vadd.f32 0.0, %v2773
      %v2775 = vpop.f32.mrb[0].mxu0
      %v2776 = vadd.f32 0.0, %v2775
      %v2777 = vpop.f32.mrb[0].mxu0
      %v2778 = vadd.f32 0.0, %v2777
      %v2779 = vpop.f32.mrb[0].mxu0
      %v2780 = vadd.f32 0.0, %v2779
      %2781 = vmatprep.mubr.bf16.mxu0 0
      %2782 = vmatmul.mubr.bf16.gmra.mrb[0].mxu0 %v900
      %v2783 = vpop.f32.mrb[0].mxu0
      %v2784 = vadd.f32 0.0, %v2783
      %v2785 = vpop.f32.mrb[0].mxu0
      %v2786 = vadd.f32 0.0, %v2785
      %v2787 = vpop.f32.mrb[0].mxu0
      %v2788 = vadd.f32 0.0, %v2787
      %v2789 = vpop.f32.mrb[0].mxu0
      %v2790 = vadd.f32 0.0, %v2789
      %2791 = vmatprep.mubr.bf16.mxu0 0
      %2792 = vmatmul.mubr.bf16.gmra.mrb[0].mxu0 %v903
      %v2793 = vpop.f32.mrb[0].mxu0
      %v2794 = vadd.f32 0.0, %v2793
      %v2795 = vpop.f32.mrb[0].mxu0
      %v2796 = vadd.f32 0.0, %v2795
      %v2797 = vpop.f32.mrb[0].mxu0
      %v2798 = vadd.f32 0.0, %v2797
      %v2799 = vpop.f32.mrb[0].mxu0
      %v2800 = vadd.f32 0.0, %v2799
      %2801 = vmatprep.mubr.bf16.mxu0 0
      %2802 = vmatmul.mubr.bf16.gmra.mrb[0].mxu0 %v906
      %v2803 = vpop.f32.mrb[0].mxu0
      %v2804 = vadd.f32 0.0, %v2803
      %v2805 = vpop.f32.mrb[0].mxu0
      %v2806 = vadd.f32 0.0, %v2805
      %v2807 = vpop.f32.mrb[0].mxu0
      %v2808 = vadd.f32 0.0, %v2807
      %v2809 = vpop.f32.mrb[0].mxu0
      %v2810 = vadd.f32 0.0, %v2809
      %2811 = vmatprep.mubr.bf16.mxu0 0
      %2812 = vmatmul.mubr.bf16.gmra.mrb[0].mxu0 %v909
      %v2813 = vpop.f32.mrb[0].mxu0
      %v2814 = vadd.f32 0.0, %v2813
      %v2815 = vpop.f32.mrb[0].mxu0
      %v2816 = vadd.f32 0.0, %v2815
      %v2817 = vpop.f32.mrb[0].mxu0
      %v2818 = vadd.f32 0.0, %v2817
      %v2819 = vpop.f32.mrb[0].mxu0
      %v2820 = vadd.f32 0.0, %v2819
      %2821 = vmatprep.mubr.bf16.mxu0 0
      %2822 = vmatmul.mubr.bf16.gmra.mrb[0].mxu0 %v912
      %v2823 = vpop.f32.mrb[0].mxu0
      %v2824 = vadd.f32 0.0, %v2823
      %v2825 = vpop.f32.mrb[0].mxu0
      %v2826 = vadd.f32 0.0, %v2825
      %v2827 = vpop.f32.mrb[0].mxu0
      %v2828 = vadd.f32 0.0, %v2827
      %v2829 = vpop.f32.mrb[0].mxu0
      %v2830 = vadd.f32 0.0, %v2829
      %2831 = vmatprep.mubr.bf16.mxu0 0
      %2832 = vmatmul.mubr.bf16.gmra.mrb[0].mxu0 %v915
      %v2833 = vpop.f32.mrb[0].mxu0
      %v2834 = vadd.f32 0.0, %v2833
      %v2835 = vpop.f32.mrb[0].mxu0
      %v2836 = vadd.f32 0.0, %v2835
      %v2837 = vpop.f32.mrb[0].mxu0
      %v2838 = vadd.f32 0.0, %v2837
      %v2839 = vpop.f32.mrb[0].mxu0
      %v2840 = vadd.f32 0.0, %v2839
      %2841 = vmatprep.mubr.bf16.mxu0 0
      %2842 = vmatmul.mubr.bf16.gmra.mrb[0].mxu0 %v918
      %v2843 = vpop.f32.mrb[0].mxu0
      %v2844 = vadd.f32 0.0, %v2843
      %v2845 = vpop.f32.mrb[0].mxu0
      %v2846 = vadd.f32 0.0, %v2845
      %v2847 = vpop.f32.mrb[0].mxu0
      %v2848 = vadd.f32 0.0, %v2847
      %v2849 = vpop.f32.mrb[0].mxu0
      %v2850 = vadd.f32 0.0, %v2849
      %2851 = vmatprep.mubr.bf16.mxu0 0
      %2852 = vmatmul.mubr.bf16.gmra.mrb[0].mxu0 %v921
      %v2853 = vpop.f32.mrb[0].mxu0
      %v2854 = vadd.f32 0.0, %v2853
      %v2855 = vpop.f32.mrb[0].mxu0
      %v2856 = vadd.f32 0.0, %v2855
      %v2857 = vpop.f32.mrb[0].mxu0
      %v2858 = vadd.f32 0.0, %v2857
      %v2859 = vpop.f32.mrb[0].mxu0
      %v2860 = vadd.f32 0.0, %v2859
      %2861 = vmatprep.mubr.bf16.mxu0 0
      %2862 = vmatmul.mubr.bf16.gmra.mrb[0].mxu0 %v924
      %v2863 = vpop.f32.mrb[0].mxu0
      %v2864 = vadd.f32 0.0, %v2863
      %v2865 = vpop.f32.mrb[0].mxu0
      %v2866 = vadd.f32 0.0, %v2865
      %v2867 = vpop.f32.mrb[0].mxu0
      %v2868 = vadd.f32 0.0, %v2867
      %v2869 = vpop.f32.mrb[0].mxu0
      %v2870 = vadd.f32 0.0, %v2869
      %2871 = vmatprep.mubr.bf16.mxu0 0
      %2872 = vmatmul.mubr.bf16.gmra.mrb[0].mxu0 %v927
      %v2873 = vpop.f32.mrb[0].mxu0
      %v2874 = vadd.f32 0.0, %v2873
      %v2875 = vpop.f32.mrb[0].mxu0
      %v2876 = vadd.f32 0.0, %v2875
      %v2877 = vpop.f32.mrb[0].mxu0
      %v2878 = vadd.f32 0.0, %v2877
      %v2879 = vpop.f32.mrb[0].mxu0
      %v2880 = vadd.f32 0.0, %v2879
      %2881 = vmatprep.mubr.bf16.mxu0 0
      %2882 = vmatmul.mubr.bf16.gmra.mrb[0].mxu0 %v930
      %v2883 = vpop.f32.mrb[0].mxu0
      %v2884 = vadd.f32 0.0, %v2883
      %v2885 = vpop.f32.mrb[0].mxu0
      %v2886 = vadd.f32 0.0, %v2885
      %v2887 = vpop.f32.mrb[0].mxu0
      %v2888 = vadd.f32 0.0, %v2887
      %v2889 = vpop.f32.mrb[0].mxu0
      %v2890 = vadd.f32 0.0, %v2889
      %2891 = vmatprep.mubr.bf16.mxu0 0
      %2892 = vmatmul.mubr.bf16.gmra.mrb[0].mxu0 %v933
      %v2893 = vpop.f32.mrb[0].mxu0
      %v2894 = vadd.f32 0.0, %v2893
      %v2895 = vpop.f32.mrb[0].mxu0
      %v2896 = vadd.f32 0.0, %v2895
      %v2897 = vpop.f32.mrb[0].mxu0
      %v2898 = vadd.f32 0.0, %v2897
      %v2899 = vpop.f32.mrb[0].mxu0
      %v2900 = vadd.f32 0.0, %v2899
      %2901 = vmatprep.mubr.bf16.mxu0 0
      %2902 = vmatmul.mubr.bf16.gmra.mrb[0].mxu0 %v936
      %v2903 = vpop.f32.mrb[0].mxu0
      %v2904 = vadd.f32 0.0, %v2903
      %v2905 = vpop.f32.mrb[0].mxu0
      %v2906 = vadd.f32 0.0, %v2905
      %v2907 = vpop.f32.mrb[0].mxu0
      %v2908 = vadd.f32 0.0, %v2907
      %v2909 = vpop.f32.mrb[0].mxu0
      %v2910 = vadd.f32 0.0, %v2909
      %2911 = vmatprep.mubr.bf16.mxu0 0
      %2912 = vmatmul.mubr.bf16.gmra.mrb[0].mxu0 %v939
      %v2913 = vpop.f32.mrb[0].mxu0
      %v2914 = vadd.f32 0.0, %v2913
      %v2915 = vpop.f32.mrb[0].mxu0
      %v2916 = vadd.f32 0.0, %v2915
      %v2917 = vpop.f32.mrb[0].mxu0
      %v2918 = vadd.f32 0.0, %v2917
      %v2919 = vpop.f32.mrb[0].mxu0
      %v2920 = vadd.f32 0.0, %v2919
      %2921 = vmatprep.mubr.bf16.mxu0 0
      %2922 = vmatmul.mubr.bf16.gmra.mrb[0].mxu0 %v942
      %v2923 = vpop.f32.mrb[0].mxu0
      %v2924 = vadd.f32 0.0, %v2923
      %v2925 = vpop.f32.mrb[0].mxu0
      %v2926 = vadd.f32 0.0, %v2925
      %v2927 = vpop.f32.mrb[0].mxu0
      %v2928 = vadd.f32 0.0, %v2927
      %v2929 = vpop.f32.mrb[0].mxu0
      %v2930 = vadd.f32 0.0, %v2929
      %2931 = vmatprep.mubr.bf16.mxu0 0
      %2932 = vmatmul.mubr.bf16.gmra.mrb[0].mxu0 %v945
      %v2933 = vpop.f32.mrb[0].mxu0
      %v2934 = vadd.f32 0.0, %v2933
      %v2935 = vpop.f32.mrb[0].mxu0
      %v2936 = vadd.f32 0.0, %v2935
      %v2937 = vpop.f32.mrb[0].mxu0
      %v2938 = vadd.f32 0.0, %v2937
      %v2939 = vpop.f32.mrb[0].mxu0
      %v2940 = vadd.f32 0.0, %v2939
      %2941 = vmatprep.mubr.bf16.mxu0 0
      %2942 = vmatmul.mubr.bf16.gmra.mrb[0].mxu0 %v948
      %v2943 = vpop.f32.mrb[0].mxu0
      %v2944 = vadd.f32 0.0, %v2943
      %v2945 = vpop.f32.mrb[0].mxu0
      %v2946 = vadd.f32 0.0, %v2945
      %v2947 = vpop.f32.mrb[0].mxu0
      %v2948 = vadd.f32 0.0, %v2947
      %v2949 = vpop.f32.mrb[0].mxu0
      %v2950 = vadd.f32 0.0, %v2949
      %2951 = vmatprep.mubr.bf16.mxu0 0
      %2952 = vmatmul.mubr.bf16.gmra.mrb[0].mxu0 %v951
      %v2953 = vpop.f32.mrb[0].mxu0
      %v2954 = vadd.f32 0.0, %v2953
      %v2955 = vpop.f32.mrb[0].mxu0
      %v2956 = vadd.f32 0.0, %v2955
      %v2957 = vpop.f32.mrb[0].mxu0
      %v2958 = vadd.f32 0.0, %v2957
      %v2959 = vpop.f32.mrb[0].mxu0
      %v2960 = vadd.f32 0.0, %v2959
      %2961 = vmatprep.mubr.bf16.mxu0 0
      %2962 = vmatmul.mubr.bf16.gmra.mrb[0].mxu0 %v954
      %v2963 = vpop.f32.mrb[0].mxu0
      %v2964 = vadd.f32 0.0, %v2963
      %v2965 = vpop.f32.mrb[0].mxu0
      %v2966 = vadd.f32 0.0, %v2965
      %v2967 = vpop.f32.mrb[0].mxu0
      %v2968 = vadd.f32 0.0, %v2967
      %v2969 = vpop.f32.mrb[0].mxu0
      %v2970 = vadd.f32 0.0, %v2969
      %2971 = vmatprep.mubr.bf16.mxu0 0
      %2972 = vmatmul.mubr.bf16.gmra.mrb[0].mxu0 %v957
      %v2973 = vpop.f32.mrb[0].mxu0
      %v2974 = vadd.f32 0.0, %v2973
      %v2975 = vpop.f32.mrb[0].mxu0
      %v2976 = vadd.f32 0.0, %v2975
      %v2977 = vpop.f32.mrb[0].mxu0
      %v2978 = vadd.f32 0.0, %v2977
      %v2979 = vpop.f32.mrb[0].mxu0
      %v2980 = vadd.f32 0.0, %v2979
      %2981 = vmatprep.mubr.bf16.mxu0 0
      %2982 = vmatmul.mubr.bf16.gmra.mrb[0].mxu0 %v960
      %v2983 = vpop.f32.mrb[0].mxu0
      %v2984 = vadd.f32 0.0, %v2983
      %v2985 = vpop.f32.mrb[0].mxu0
      %v2986 = vadd.f32 0.0, %v2985
      %v2987 = vpop.f32.mrb[0].mxu0
      %v2988 = vadd.f32 0.0, %v2987
      %v2989 = vpop.f32.mrb[0].mxu0
      %v2990 = vadd.f32 0.0, %v2989
      %2991 = vmatprep.mubr.bf16.mxu0 0
      %2992 = vmatmul.mubr.bf16.gmra.mrb[0].mxu0 %v963
      %v2993 = vpop.f32.mrb[0].mxu0
      %v2994 = vadd.f32 0.0, %v2993
      %v2995 = vpop.f32.mrb[0].mxu0
      %v2996 = vadd.f32 0.0, %v2995
      %v2997 = vpop.f32.mrb[0].mxu0
      %v2998 = vadd.f32 0.0, %v2997
      %v2999 = vpop.f32.mrb[0].mxu0
      %v3000 = vadd.f32 0.0, %v2999
      %3001 = vmatprep.mubr.bf16.mxu0 0
      %3002 = vmatmul.mubr.bf16.gmra.mrb[0].mxu0 %v966
      %v3003 = vpop.f32.mrb[0].mxu0
      %v3004 = vadd.f32 0.0, %v3003
      %v3005 = vpop.f32.mrb[0].mxu0
      %v3006 = vadd.f32 0.0, %v3005
      %v3007 = vpop.f32.mrb[0].mxu0
      %v3008 = vadd.f32 0.0, %v3007
      %v3009 = vpop.f32.mrb[0].mxu0
      %v3010 = vadd.f32 0.0, %v3009
      %3011 = vdwg.mxu0
      %3012 = vmatprep.subr.bf16.mxu0 %v991
      %3013 = vmatpush1.bf16.msra.mxu0 %v988
      %3014 = vmatprep.subr.bf16.mxu0 0
      %3015 = vmatpush1.bf16.msra.mxu0 0
      %3016 = vmatprep.subr.bf16.mxu0 0
      %3017 = vmatpush1.bf16.msra.mxu0 0
      %3018 = vmatprep.subr.bf16.mxu0 0
      %3019 = vmatpush1.bf16.msra.mxu0 0
      %3020 = vmatprep.subr.bf16.mxu0 0
      %3021 = vmatpush1.bf16.msra.mxu0 0
      %3022 = vmatprep.subr.bf16.mxu0 0
      %3023 = vmatpush1.bf16.msra.mxu0 0
      %3024 = vmatprep.subr.bf16.mxu0 0
      %3025 = vmatpush1.bf16.msra.mxu0 0
      %3026 = vmatprep.subr.bf16.mxu0 0
      %3027 = vmatpush1.bf16.msra.mxu0 0
      %3028 = vmatprep.subr.bf16.mxu0 0
      %3029 = vmatpush1.bf16.msra.mxu0 0
      %3030 = vmatprep.subr.bf16.mxu0 0
      %3031 = vmatpush1.bf16.msra.mxu0 0
      %3032 = vmatprep.subr.bf16.mxu0 0
      %3033 = vmatpush1.bf16.msra.mxu0 0
      %3034 = vmatprep.subr.bf16.mxu0 0
      %3035 = vmatpush1.bf16.msra.mxu0 0
      %3036 = vmatprep.subr.bf16.mxu0 0
      %3037 = vmatpush1.bf16.msra.mxu0 0
      %3038 = vmatprep.subr.bf16.mxu0 0
      %3039 = vmatpush1.bf16.msra.mxu0 0
      %3040 = vmatprep.subr.bf16.mxu0 0
      %3041 = vmatpush1.bf16.msra.mxu0 0
      %3042 = vmatprep.subr.bf16.mxu0 0
      %3043 = vmatpush1.bf16.msra.mxu0 0
      %3044 = vmatprep.mubr.bf16.mxu0 0
      %3045 = vmatmul.mubr.bf16.gmra.mrb[0].mxu0 %v777
      %v3046 = vpop.f32.mrb[0].mxu0
      %v3047 = vadd.f32 0.0, %v3046
      %v3048 = vpop.f32.mrb[0].mxu0
      %v3049 = vadd.f32 0.0, %v3048
      %v3050 = vpop.f32.mrb[0].mxu0
      %v3051 = vadd.f32 0.0, %v3050
      %v3052 = vpop.f32.mrb[0].mxu0
      %v3053 = vadd.f32 0.0, %v3052
      %3054 = vmatprep.mubr.bf16.mxu0 0
      %3055 = vmatmul.mubr.bf16.gmra.mrb[0].mxu0 %v780
      %v3056 = vpop.f32.mrb[0].mxu0
      %v3057 = vadd.f32 0.0, %v3056
      %v3058 = vpop.f32.mrb[0].mxu0
      %v3059 = vadd.f32 0.0, %v3058
      %v3060 = vpop.f32.mrb[0].mxu0
      %v3061 = vadd.f32 0.0, %v3060
      %v3062 = vpop.f32.mrb[0].mxu0
      %v3063 = vadd.f32 0.0, %v3062
      %3064 = vmatprep.mubr.bf16.mxu0 0
      %3065 = vmatmul.mubr.bf16.gmra.mrb[0].mxu0 %v783
      %v3066 = vpop.f32.mrb[0].mxu0
      %v3067 = vadd.f32 0.0, %v3066
      %v3068 = vpop.f32.mrb[0].mxu0
      %v3069 = vadd.f32 0.0, %v3068
      %v3070 = vpop.f32.mrb[0].mxu0
      %v3071 = vadd.f32 0.0, %v3070
      %v3072 = vpop.f32.mrb[0].mxu0
      %v3073 = vadd.f32 0.0, %v3072
      %3074 = vmatprep.mubr.bf16.mxu0 0
      %3075 = vmatmul.mubr.bf16.gmra.mrb[0].mxu0 %v786
      %v3076 = vpop.f32.mrb[0].mxu0
      %v3077 = vadd.f32 0.0, %v3076
      %v3078 = vpop.f32.mrb[0].mxu0
      %v3079 = vadd.f32 0.0, %v3078
      %v3080 = vpop.f32.mrb[0].mxu0
      %v3081 = vadd.f32 0.0, %v3080
      %v3082 = vpop.f32.mrb[0].mxu0
      %v3083 = vadd.f32 0.0, %v3082
      %3084 = vmatprep.mubr.bf16.mxu0 0
      %3085 = vmatmul.mubr.bf16.gmra.mrb[0].mxu0 %v789
      %v3086 = vpop.f32.mrb[0].mxu0
      %v3087 = vadd.f32 0.0, %v3086
      %v3088 = vpop.f32.mrb[0].mxu0
      %v3089 = vadd.f32 0.0, %v3088
      %v3090 = vpop.f32.mrb[0].mxu0
      %v3091 = vadd.f32 0.0, %v3090
      %v3092 = vpop.f32.mrb[0].mxu0
      %v3093 = vadd.f32 0.0, %v3092
      %3094 = vmatprep.mubr.bf16.mxu0 0
      %3095 = vmatmul.mubr.bf16.gmra.mrb[0].mxu0 %v792
      %v3096 = vpop.f32.mrb[0].mxu0
      %v3097 = vadd.f32 0.0, %v3096
      %v3098 = vpop.f32.mrb[0].mxu0
      %v3099 = vadd.f32 0.0, %v3098
      %v3100 = vpop.f32.mrb[0].mxu0
      %v3101 = vadd.f32 0.0, %v3100
      %v3102 = vpop.f32.mrb[0].mxu0
      %v3103 = vadd.f32 0.0, %v3102
      %3104 = vmatprep.mubr.bf16.mxu0 0
      %3105 = vmatmul.mubr.bf16.gmra.mrb[0].mxu0 %v795
      %v3106 = vpop.f32.mrb[0].mxu0
      %v3107 = vadd.f32 0.0, %v3106
      %v3108 = vpop.f32.mrb[0].mxu0
      %v3109 = vadd.f32 0.0, %v3108
      %v3110 = vpop.f32.mrb[0].mxu0
      %v3111 = vadd.f32 0.0, %v3110
      %v3112 = vpop.f32.mrb[0].mxu0
      %v3113 = vadd.f32 0.0, %v3112
      %3114 = vmatprep.mubr.bf16.mxu0 0
      %3115 = vmatmul.mubr.bf16.gmra.mrb[0].mxu0 %v798
      %v3116 = vpop.f32.mrb[0].mxu0
      %v3117 = vadd.f32 0.0, %v3116
      %v3118 = vpop.f32.mrb[0].mxu0
      %v3119 = vadd.f32 0.0, %v3118
      %v3120 = vpop.f32.mrb[0].mxu0
      %v3121 = vadd.f32 0.0, %v3120
      %v3122 = vpop.f32.mrb[0].mxu0
      %v3123 = vadd.f32 0.0, %v3122
      %3124 = vmatprep.mubr.bf16.mxu0 0
      %3125 = vmatmul.mubr.bf16.gmra.mrb[0].mxu0 %v801
      %v3126 = vpop.f32.mrb[0].mxu0
      %v3127 = vadd.f32 0.0, %v3126
      %v3128 = vpop.f32.mrb[0].mxu0
      %v3129 = vadd.f32 0.0, %v3128
      %v3130 = vpop.f32.mrb[0].mxu0
      %v3131 = vadd.f32 0.0, %v3130
      %v3132 = vpop.f32.mrb[0].mxu0
      %v3133 = vadd.f32 0.0, %v3132
      %3134 = vmatprep.mubr.bf16.mxu0 0
      %3135 = vmatmul.mubr.bf16.gmra.mrb[0].mxu0 %v804
      %v3136 = vpop.f32.mrb[0].mxu0
      %v3137 = vadd.f32 0.0, %v3136
      %v3138 = vpop.f32.mrb[0].mxu0
      %v3139 = vadd.f32 0.0, %v3138
      %v3140 = vpop.f32.mrb[0].mxu0
      %v3141 = vadd.f32 0.0, %v3140
      %v3142 = vpop.f32.mrb[0].mxu0
      %v3143 = vadd.f32 0.0, %v3142
      %3144 = vmatprep.mubr.bf16.mxu0 0
      %3145 = vmatmul.mubr.bf16.gmra.mrb[0].mxu0 %v807
      %v3146 = vpop.f32.mrb[0].mxu0
      %v3147 = vadd.f32 0.0, %v3146
      %v3148 = vpop.f32.mrb[0].mxu0
      %v3149 = vadd.f32 0.0, %v3148
      %v3150 = vpop.f32.mrb[0].mxu0
      %v3151 = vadd.f32 0.0, %v3150
      %v3152 = vpop.f32.mrb[0].mxu0
      %v3153 = vadd.f32 0.0, %v3152
      %3154 = vmatprep.mubr.bf16.mxu0 0
      %3155 = vmatmul.mubr.bf16.gmra.mrb[0].mxu0 %v810
      %v3156 = vpop.f32.mrb[0].mxu0
      %v3157 = vadd.f32 0.0, %v3156
      %v3158 = vpop.f32.mrb[0].mxu0
      %v3159 = vadd.f32 0.0, %v3158
      %v3160 = vpop.f32.mrb[0].mxu0
      %v3161 = vadd.f32 0.0, %v3160
      %v3162 = vpop.f32.mrb[0].mxu0
      %v3163 = vadd.f32 0.0, %v3162
      %3164 = vmatprep.mubr.bf16.mxu0 0
      %3165 = vmatmul.mubr.bf16.gmra.mrb[0].mxu0 %v813
      %v3166 = vpop.f32.mrb[0].mxu0
      %v3167 = vadd.f32 0.0, %v3166
      %v3168 = vpop.f32.mrb[0].mxu0
      %v3169 = vadd.f32 0.0, %v3168
      %v3170 = vpop.f32.mrb[0].mxu0
      %v3171 = vadd.f32 0.0, %v3170
      %v3172 = vpop.f32.mrb[0].mxu0
      %v3173 = vadd.f32 0.0, %v3172
      %3174 = vmatprep.mubr.bf16.mxu0 0
      %3175 = vmatmul.mubr.bf16.gmra.mrb[0].mxu0 %v816
      %v3176 = vpop.f32.mrb[0].mxu0
      %v3177 = vadd.f32 0.0, %v3176
      %v3178 = vpop.f32.mrb[0].mxu0
      %v3179 = vadd.f32 0.0, %v3178
      %v3180 = vpop.f32.mrb[0].mxu0
      %v3181 = vadd.f32 0.0, %v3180
      %v3182 = vpop.f32.mrb[0].mxu0
      %v3183 = vadd.f32 0.0, %v3182
      %3184 = vmatprep.mubr.bf16.mxu0 0
      %3185 = vmatmul.mubr.bf16.gmra.mrb[0].mxu0 %v819
      %v3186 = vpop.f32.mrb[0].mxu0
      %v3187 = vadd.f32 0.0, %v3186
      %v3188 = vpop.f32.mrb[0].mxu0
      %v3189 = vadd.f32 0.0, %v3188
      %v3190 = vpop.f32.mrb[0].mxu0
      %v3191 = vadd.f32 0.0, %v3190
      %v3192 = vpop.f32.mrb[0].mxu0
      %v3193 = vadd.f32 0.0, %v3192
      %3194 = vmatprep.mubr.bf16.mxu0 0
      %3195 = vmatmul.mubr.bf16.gmra.mrb[0].mxu0 %v822
      %v3196 = vpop.f32.mrb[0].mxu0
      %v3197 = vadd.f32 0.0, %v3196
      %v3198 = vpop.f32.mrb[0].mxu0
      %v3199 = vadd.f32 0.0, %v3198
      %v3200 = vpop.f32.mrb[0].mxu0
      %v3201 = vadd.f32 0.0, %v3200
      %v3202 = vpop.f32.mrb[0].mxu0
      %v3203 = vadd.f32 0.0, %v3202
      %3204 = vmatprep.mubr.bf16.mxu0 0
      %3205 = vmatmul.mubr.bf16.gmra.mrb[0].mxu0 %v825
      %v3206 = vpop.f32.mrb[0].mxu0
      %v3207 = vadd.f32 0.0, %v3206
      %v3208 = vpop.f32.mrb[0].mxu0
      %v3209 = vadd.f32 0.0, %v3208
      %v3210 = vpop.f32.mrb[0].mxu0
      %v3211 = vadd.f32 0.0, %v3210
      %v3212 = vpop.f32.mrb[0].mxu0
      %v3213 = vadd.f32 0.0, %v3212
      %3214 = vmatprep.mubr.bf16.mxu0 0
      %3215 = vmatmul.mubr.bf16.gmra.mrb[0].mxu0 %v828
      %v3216 = vpop.f32.mrb[0].mxu0
      %v3217 = vadd.f32 0.0, %v3216
      %v3218 = vpop.f32.mrb[0].mxu0
      %v3219 = vadd.f32 0.0, %v3218
      %v3220 = vpop.f32.mrb[0].mxu0
      %v3221 = vadd.f32 0.0, %v3220
      %v3222 = vpop.f32.mrb[0].mxu0
      %v3223 = vadd.f32 0.0, %v3222
      %3224 = vmatprep.mubr.bf16.mxu0 0
      %3225 = vmatmul.mubr.bf16.gmra.mrb[0].mxu0 %v831
      %v3226 = vpop.f32.mrb[0].mxu0
      %v3227 = vadd.f32 0.0, %v3226
      %v3228 = vpop.f32.mrb[0].mxu0
      %v3229 = vadd.f32 0.0, %v3228
      %v3230 = vpop.f32.mrb[0].mxu0
      %v3231 = vadd.f32 0.0, %v3230
      %v3232 = vpop.f32.mrb[0].mxu0
      %v3233 = vadd.f32 0.0, %v3232
      %3234 = vmatprep.mubr.bf16.mxu0 0
      %3235 = vmatmul.mubr.bf16.gmra.mrb[0].mxu0 %v834
      %v3236 = vpop.f32.mrb[0].mxu0
      %v3237 = vadd.f32 0.0, %v3236
      %v3238 = vpop.f32.mrb[0].mxu0
      %v3239 = vadd.f32 0.0, %v3238
      %v3240 = vpop.f32.mrb[0].mxu0
      %v3241 = vadd.f32 0.0, %v3240
      %v3242 = vpop.f32.mrb[0].mxu0
      %v3243 = vadd.f32 0.0, %v3242
      %3244 = vmatprep.mubr.bf16.mxu0 0
      %3245 = vmatmul.mubr.bf16.gmra.mrb[0].mxu0 %v837
      %v3246 = vpop.f32.mrb[0].mxu0
      %v3247 = vadd.f32 0.0, %v3246
      %v3248 = vpop.f32.mrb[0].mxu0
      %v3249 = vadd.f32 0.0, %v3248
      %v3250 = vpop.f32.mrb[0].mxu0
      %v3251 = vadd.f32 0.0, %v3250
      %v3252 = vpop.f32.mrb[0].mxu0
      %v3253 = vadd.f32 0.0, %v3252
      %3254 = vmatprep.mubr.bf16.mxu0 0
      %3255 = vmatmul.mubr.bf16.gmra.mrb[0].mxu0 %v840
      %v3256 = vpop.f32.mrb[0].mxu0
      %v3257 = vadd.f32 0.0, %v3256
      %v3258 = vpop.f32.mrb[0].mxu0
      %v3259 = vadd.f32 0.0, %v3258
      %v3260 = vpop.f32.mrb[0].mxu0
      %v3261 = vadd.f32 0.0, %v3260
      %v3262 = vpop.f32.mrb[0].mxu0
      %v3263 = vadd.f32 0.0, %v3262
      %3264 = vmatprep.mubr.bf16.mxu0 0
      %3265 = vmatmul.mubr.bf16.gmra.mrb[0].mxu0 %v843
      %v3266 = vpop.f32.mrb[0].mxu0
      %v3267 = vadd.f32 0.0, %v3266
      %v3268 = vpop.f32.mrb[0].mxu0
      %v3269 = vadd.f32 0.0, %v3268
      %v3270 = vpop.f32.mrb[0].mxu0
      %v3271 = vadd.f32 0.0, %v3270
      %v3272 = vpop.f32.mrb[0].mxu0
      %v3273 = vadd.f32 0.0, %v3272
      %3274 = vmatprep.mubr.bf16.mxu0 0
      %3275 = vmatmul.mubr.bf16.gmra.mrb[0].mxu0 %v846
      %v3276 = vpop.f32.mrb[0].mxu0
      %v3277 = vadd.f32 0.0, %v3276
      %v3278 = vpop.f32.mrb[0].mxu0
      %v3279 = vadd.f32 0.0, %v3278
      %v3280 = vpop.f32.mrb[0].mxu0
      %v3281 = vadd.f32 0.0, %v3280
      %v3282 = vpop.f32.mrb[0].mxu0
      %v3283 = vadd.f32 0.0, %v3282
      %3284 = vmatprep.mubr.bf16.mxu0 0
      %3285 = vmatmul.mubr.bf16.gmra.mrb[0].mxu0 %v849
      %v3286 = vpop.f32.mrb[0].mxu0
      %v3287 = vadd.f32 0.0, %v3286
      %v3288 = vpop.f32.mrb[0].mxu0
      %v3289 = vadd.f32 0.0, %v3288
      %v3290 = vpop.f32.mrb[0].mxu0
      %v3291 = vadd.f32 0.0, %v3290
      %v3292 = vpop.f32.mrb[0].mxu0
      %v3293 = vadd.f32 0.0, %v3292
      %3294 = vmatprep.mubr.bf16.mxu0 0
      %3295 = vmatmul.mubr.bf16.gmra.mrb[0].mxu0 %v852
      %v3296 = vpop.f32.mrb[0].mxu0
      %v3297 = vadd.f32 0.0, %v3296
      %v3298 = vpop.f32.mrb[0].mxu0
      %v3299 = vadd.f32 0.0, %v3298
      %v3300 = vpop.f32.mrb[0].mxu0
      %v3301 = vadd.f32 0.0, %v3300
      %v3302 = vpop.f32.mrb[0].mxu0
      %v3303 = vadd.f32 0.0, %v3302
      %3304 = vmatprep.mubr.bf16.mxu0 0
      %3305 = vmatmul.mubr.bf16.gmra.mrb[0].mxu0 %v855
      %v3306 = vpop.f32.mrb[0].mxu0
      %v3307 = vadd.f32 0.0, %v3306
      %v3308 = vpop.f32.mrb[0].mxu0
      %v3309 = vadd.f32 0.0, %v3308
      %v3310 = vpop.f32.mrb[0].mxu0
      %v3311 = vadd.f32 0.0, %v3310
      %v3312 = vpop.f32.mrb[0].mxu0
      %v3313 = vadd.f32 0.0, %v3312
      %3314 = vmatprep.mubr.bf16.mxu0 0
      %3315 = vmatmul.mubr.bf16.gmra.mrb[0].mxu0 %v858
      %v3316 = vpop.f32.mrb[0].mxu0
      %v3317 = vadd.f32 0.0, %v3316
      %v3318 = vpop.f32.mrb[0].mxu0
      %v3319 = vadd.f32 0.0, %v3318
      %v3320 = vpop.f32.mrb[0].mxu0
      %v3321 = vadd.f32 0.0, %v3320
      %v3322 = vpop.f32.mrb[0].mxu0
      %v3323 = vadd.f32 0.0, %v3322
      %3324 = vmatprep.mubr.bf16.mxu0 0
      %3325 = vmatmul.mubr.bf16.gmra.mrb[0].mxu0 %v861
      %v3326 = vpop.f32.mrb[0].mxu0
      %v3327 = vadd.f32 0.0, %v3326
      %v3328 = vpop.f32.mrb[0].mxu0
      %v3329 = vadd.f32 0.0, %v3328
      %v3330 = vpop.f32.mrb[0].mxu0
      %v3331 = vadd.f32 0.0, %v3330
      %v3332 = vpop.f32.mrb[0].mxu0
      %v3333 = vadd.f32 0.0, %v3332
      %3334 = vmatprep.mubr.bf16.mxu0 0
      %3335 = vmatmul.mubr.bf16.gmra.mrb[0].mxu0 %v864
      %v3336 = vpop.f32.mrb[0].mxu0
      %v3337 = vadd.f32 0.0, %v3336
      %v3338 = vpop.f32.mrb[0].mxu0
      %v3339 = vadd.f32 0.0, %v3338
      %v3340 = vpop.f32.mrb[0].mxu0
      %v3341 = vadd.f32 0.0, %v3340
      %v3342 = vpop.f32.mrb[0].mxu0
      %v3343 = vadd.f32 0.0, %v3342
      %3344 = vmatprep.mubr.bf16.mxu0 0
      %3345 = vmatmul.mubr.bf16.gmra.mrb[0].mxu0 %v867
      %v3346 = vpop.f32.mrb[0].mxu0
      %v3347 = vadd.f32 0.0, %v3346
      %v3348 = vpop.f32.mrb[0].mxu0
      %v3349 = vadd.f32 0.0, %v3348
      %v3350 = vpop.f32.mrb[0].mxu0
      %v3351 = vadd.f32 0.0, %v3350
      %v3352 = vpop.f32.mrb[0].mxu0
      %v3353 = vadd.f32 0.0, %v3352
      %3354 = vmatprep.mubr.bf16.mxu0 0
      %3355 = vmatmul.mubr.bf16.gmra.mrb[0].mxu0 %v870
      %v3356 = vpop.f32.mrb[0].mxu0
      %v3357 = vadd.f32 0.0, %v3356
      %v3358 = vpop.f32.mrb[0].mxu0
      %v3359 = vadd.f32 0.0, %v3358
      %v3360 = vpop.f32.mrb[0].mxu0
      %v3361 = vadd.f32 0.0, %v3360
      %v3362 = vpop.f32.mrb[0].mxu0
      %v3363 = vadd.f32 0.0, %v3362
      %3364 = vmatprep.mubr.bf16.mxu0 0
      %3365 = vmatmul.mubr.bf16.gmra.mrb[0].mxu0 %v873
      %v3366 = vpop.f32.mrb[0].mxu0
      %v3367 = vadd.f32 0.0, %v3366
      %v3368 = vpop.f32.mrb[0].mxu0
      %v3369 = vadd.f32 0.0, %v3368
      %v3370 = vpop.f32.mrb[0].mxu0
      %v3371 = vadd.f32 0.0, %v3370
      %v3372 = vpop.f32.mrb[0].mxu0
      %v3373 = vadd.f32 0.0, %v3372
      %3374 = vmatprep.mubr.bf16.mxu0 0
      %3375 = vmatmul.mubr.bf16.gmra.mrb[0].mxu0 %v876
      %v3376 = vpop.f32.mrb[0].mxu0
      %v3377 = vadd.f32 0.0, %v3376
      %v3378 = vpop.f32.mrb[0].mxu0
      %v3379 = vadd.f32 0.0, %v3378
      %v3380 = vpop.f32.mrb[0].mxu0
      %v3381 = vadd.f32 0.0, %v3380
      %v3382 = vpop.f32.mrb[0].mxu0
      %v3383 = vadd.f32 0.0, %v3382
      %3384 = vmatprep.mubr.bf16.mxu0 0
      %3385 = vmatmul.mubr.bf16.gmra.mrb[0].mxu0 %v879
      %v3386 = vpop.f32.mrb[0].mxu0
      %v3387 = vadd.f32 0.0, %v3386
      %v3388 = vpop.f32.mrb[0].mxu0
      %v3389 = vadd.f32 0.0, %v3388
      %v3390 = vpop.f32.mrb[0].mxu0
      %v3391 = vadd.f32 0.0, %v3390
      %v3392 = vpop.f32.mrb[0].mxu0
      %v3393 = vadd.f32 0.0, %v3392
      %3394 = vmatprep.mubr.bf16.mxu0 0
      %3395 = vmatmul.mubr.bf16.gmra.mrb[0].mxu0 %v882
      %v3396 = vpop.f32.mrb[0].mxu0
      %v3397 = vadd.f32 0.0, %v3396
      %v3398 = vpop.f32.mrb[0].mxu0
      %v3399 = vadd.f32 0.0, %v3398
      %v3400 = vpop.f32.mrb[0].mxu0
      %v3401 = vadd.f32 0.0, %v3400
      %v3402 = vpop.f32.mrb[0].mxu0
      %v3403 = vadd.f32 0.0, %v3402
      %3404 = vmatprep.mubr.bf16.mxu0 0
      %3405 = vmatmul.mubr.bf16.gmra.mrb[0].mxu0 %v885
      %v3406 = vpop.f32.mrb[0].mxu0
      %v3407 = vadd.f32 0.0, %v3406
      %v3408 = vpop.f32.mrb[0].mxu0
      %v3409 = vadd.f32 0.0, %v3408
      %v3410 = vpop.f32.mrb[0].mxu0
      %v3411 = vadd.f32 0.0, %v3410
      %v3412 = vpop.f32.mrb[0].mxu0
      %v3413 = vadd.f32 0.0, %v3412
      %3414 = vmatprep.mubr.bf16.mxu0 0
      %3415 = vmatmul.mubr.bf16.gmra.mrb[0].mxu0 %v888
      %v3416 = vpop.f32.mrb[0].mxu0
      %v3417 = vadd.f32 0.0, %v3416
      %v3418 = vpop.f32.mrb[0].mxu0
      %v3419 = vadd.f32 0.0, %v3418
      %v3420 = vpop.f32.mrb[0].mxu0
      %v3421 = vadd.f32 0.0, %v3420
      %v3422 = vpop.f32.mrb[0].mxu0
      %v3423 = vadd.f32 0.0, %v3422
      %3424 = vmatprep.mubr.bf16.mxu0 0
      %3425 = vmatmul.mubr.bf16.gmra.mrb[0].mxu0 %v891
      %v3426 = vpop.f32.mrb[0].mxu0
      %v3427 = vadd.f32 0.0, %v3426
      %v3428 = vpop.f32.mrb[0].mxu0
      %v3429 = vadd.f32 0.0, %v3428
      %v3430 = vpop.f32.mrb[0].mxu0
      %v3431 = vadd.f32 0.0, %v3430
      %v3432 = vpop.f32.mrb[0].mxu0
      %v3433 = vadd.f32 0.0, %v3432
      %3434 = vmatprep.mubr.bf16.mxu0 0
      %3435 = vmatmul.mubr.bf16.gmra.mrb[0].mxu0 %v894
      %v3436 = vpop.f32.mrb[0].mxu0
      %v3437 = vadd.f32 0.0, %v3436
      %v3438 = vpop.f32.mrb[0].mxu0
      %v3439 = vadd.f32 0.0, %v3438
      %v3440 = vpop.f32.mrb[0].mxu0
      %v3441 = vadd.f32 0.0, %v3440
      %v3442 = vpop.f32.mrb[0].mxu0
      %v3443 = vadd.f32 0.0, %v3442
      %3444 = vmatprep.mubr.bf16.mxu0 0
      %3445 = vmatmul.mubr.bf16.gmra.mrb[0].mxu0 %v897
      %v3446 = vpop.f32.mrb[0].mxu0
      %v3447 = vadd.f32 0.0, %v3446
      %v3448 = vpop.f32.mrb[0].mxu0
      %v3449 = vadd.f32 0.0, %v3448
      %v3450 = vpop.f32.mrb[0].mxu0
      %v3451 = vadd.f32 0.0, %v3450
      %v3452 = vpop.f32.mrb[0].mxu0
      %v3453 = vadd.f32 0.0, %v3452
      %3454 = vmatprep.mubr.bf16.mxu0 0
      %3455 = vmatmul.mubr.bf16.gmra.mrb[0].mxu0 %v900
      %v3456 = vpop.f32.mrb[0].mxu0
      %v3457 = vadd.f32 0.0, %v3456
      %v3458 = vpop.f32.mrb[0].mxu0
      %v3459 = vadd.f32 0.0, %v3458
      %v3460 = vpop.f32.mrb[0].mxu0
      %v3461 = vadd.f32 0.0, %v3460
      %v3462 = vpop.f32.mrb[0].mxu0
      %v3463 = vadd.f32 0.0, %v3462
      %3464 = vmatprep.mubr.bf16.mxu0 0
      %3465 = vmatmul.mubr.bf16.gmra.mrb[0].mxu0 %v903
      %v3466 = vpop.f32.mrb[0].mxu0
      %v3467 = vadd.f32 0.0, %v3466
      %v3468 = vpop.f32.mrb[0].mxu0
      %v3469 = vadd.f32 0.0, %v3468
      %v3470 = vpop.f32.mrb[0].mxu0
      %v3471 = vadd.f32 0.0, %v3470
      %v3472 = vpop.f32.mrb[0].mxu0
      %v3473 = vadd.f32 0.0, %v3472
      %3474 = vmatprep.mubr.bf16.mxu0 0
      %3475 = vmatmul.mubr.bf16.gmra.mrb[0].mxu0 %v906
      %v3476 = vpop.f32.mrb[0].mxu0
      %v3477 = vadd.f32 0.0, %v3476
      %v3478 = vpop.f32.mrb[0].mxu0
      %v3479 = vadd.f32 0.0, %v3478
      %v3480 = vpop.f32.mrb[0].mxu0
      %v3481 = vadd.f32 0.0, %v3480
      %v3482 = vpop.f32.mrb[0].mxu0
      %v3483 = vadd.f32 0.0, %v3482
      %3484 = vmatprep.mubr.bf16.mxu0 0
      %3485 = vmatmul.mubr.bf16.gmra.mrb[0].mxu0 %v909
      %v3486 = vpop.f32.mrb[0].mxu0
      %v3487 = vadd.f32 0.0, %v3486
      %v3488 = vpop.f32.mrb[0].mxu0
      %v3489 = vadd.f32 0.0, %v3488
      %v3490 = vpop.f32.mrb[0].mxu0
      %v3491 = vadd.f32 0.0, %v3490
      %v3492 = vpop.f32.mrb[0].mxu0
      %v3493 = vadd.f32 0.0, %v3492
      %3494 = vmatprep.mubr.bf16.mxu0 0
      %3495 = vmatmul.mubr.bf16.gmra.mrb[0].mxu0 %v912
      %v3496 = vpop.f32.mrb[0].mxu0
      %v3497 = vadd.f32 0.0, %v3496
      %v3498 = vpop.f32.mrb[0].mxu0
      %v3499 = vadd.f32 0.0, %v3498
      %v3500 = vpop.f32.mrb[0].mxu0
      %v3501 = vadd.f32 0.0, %v3500
      %v3502 = vpop.f32.mrb[0].mxu0
      %v3503 = vadd.f32 0.0, %v3502
      %3504 = vmatprep.mubr.bf16.mxu0 0
      %3505 = vmatmul.mubr.bf16.gmra.mrb[0].mxu0 %v915
      %v3506 = vpop.f32.mrb[0].mxu0
      %v3507 = vadd.f32 0.0, %v3506
      %v3508 = vpop.f32.mrb[0].mxu0
      %v3509 = vadd.f32 0.0, %v3508
      %v3510 = vpop.f32.mrb[0].mxu0
      %v3511 = vadd.f32 0.0, %v3510
      %v3512 = vpop.f32.mrb[0].mxu0
      %v3513 = vadd.f32 0.0, %v3512
      %3514 = vmatprep.mubr.bf16.mxu0 0
      %3515 = vmatmul.mubr.bf16.gmra.mrb[0].mxu0 %v918
      %v3516 = vpop.f32.mrb[0].mxu0
      %v3517 = vadd.f32 0.0, %v3516
      %v3518 = vpop.f32.mrb[0].mxu0
      %v3519 = vadd.f32 0.0, %v3518
      %v3520 = vpop.f32.mrb[0].mxu0
      %v3521 = vadd.f32 0.0, %v3520
      %v3522 = vpop.f32.mrb[0].mxu0
      %v3523 = vadd.f32 0.0, %v3522
      %3524 = vmatprep.mubr.bf16.mxu0 0
      %3525 = vmatmul.mubr.bf16.gmra.mrb[0].mxu0 %v921
      %v3526 = vpop.f32.mrb[0].mxu0
      %v3527 = vadd.f32 0.0, %v3526
      %v3528 = vpop.f32.mrb[0].mxu0
      %v3529 = vadd.f32 0.0, %v3528
      %v3530 = vpop.f32.mrb[0].mxu0
      %v3531 = vadd.f32 0.0, %v3530
      %v3532 = vpop.f32.mrb[0].mxu0
      %v3533 = vadd.f32 0.0, %v3532
      %3534 = vmatprep.mubr.bf16.mxu0 0
      %3535 = vmatmul.mubr.bf16.gmra.mrb[0].mxu0 %v924
      %v3536 = vpop.f32.mrb[0].mxu0
      %v3537 = vadd.f32 0.0, %v3536
      %v3538 = vpop.f32.mrb[0].mxu0
      %v3539 = vadd.f32 0.0, %v3538
      %v3540 = vpop.f32.mrb[0].mxu0
      %v3541 = vadd.f32 0.0, %v3540
      %v3542 = vpop.f32.mrb[0].mxu0
      %v3543 = vadd.f32 0.0, %v3542
      %3544 = vmatprep.mubr.bf16.mxu0 0
      %3545 = vmatmul.mubr.bf16.gmra.mrb[0].mxu0 %v927
      %v3546 = vpop.f32.mrb[0].mxu0
      %v3547 = vadd.f32 0.0, %v3546
      %v3548 = vpop.f32.mrb[0].mxu0
      %v3549 = vadd.f32 0.0, %v3548
      %v3550 = vpop.f32.mrb[0].mxu0
      %v3551 = vadd.f32 0.0, %v3550
      %v3552 = vpop.f32.mrb[0].mxu0
      %v3553 = vadd.f32 0.0, %v3552
      %3554 = vmatprep.mubr.bf16.mxu0 0
      %3555 = vmatmul.mubr.bf16.gmra.mrb[0].mxu0 %v930
      %v3556 = vpop.f32.mrb[0].mxu0
      %v3557 = vadd.f32 0.0, %v3556
      %v3558 = vpop.f32.mrb[0].mxu0
      %v3559 = vadd.f32 0.0, %v3558
      %v3560 = vpop.f32.mrb[0].mxu0
      %v3561 = vadd.f32 0.0, %v3560
      %v3562 = vpop.f32.mrb[0].mxu0
      %v3563 = vadd.f32 0.0, %v3562
      %3564 = vmatprep.mubr.bf16.mxu0 0
      %3565 = vmatmul.mubr.bf16.gmra.mrb[0].mxu0 %v933
      %v3566 = vpop.f32.mrb[0].mxu0
      %v3567 = vadd.f32 0.0, %v3566
      %v3568 = vpop.f32.mrb[0].mxu0
      %v3569 = vadd.f32 0.0, %v3568
      %v3570 = vpop.f32.mrb[0].mxu0
      %v3571 = vadd.f32 0.0, %v3570
      %v3572 = vpop.f32.mrb[0].mxu0
      %v3573 = vadd.f32 0.0, %v3572
      %3574 = vmatprep.mubr.bf16.mxu0 0
      %3575 = vmatmul.mubr.bf16.gmra.mrb[0].mxu0 %v936
      %v3576 = vpop.f32.mrb[0].mxu0
      %v3577 = vadd.f32 0.0, %v3576
      %v3578 = vpop.f32.mrb[0].mxu0
      %v3579 = vadd.f32 0.0, %v3578
      %v3580 = vpop.f32.mrb[0].mxu0
      %v3581 = vadd.f32 0.0, %v3580
      %v3582 = vpop.f32.mrb[0].mxu0
      %v3583 = vadd.f32 0.0, %v3582
      %3584 = vmatprep.mubr.bf16.mxu0 0
      %3585 = vmatmul.mubr.bf16.gmra.mrb[0].mxu0 %v939
      %v3586 = vpop.f32.mrb[0].mxu0
      %v3587 = vadd.f32 0.0, %v3586
      %v3588 = vpop.f32.mrb[0].mxu0
      %v3589 = vadd.f32 0.0, %v3588
      %v3590 = vpop.f32.mrb[0].mxu0
      %v3591 = vadd.f32 0.0, %v3590
      %v3592 = vpop.f32.mrb[0].mxu0
      %v3593 = vadd.f32 0.0, %v3592
      %3594 = vmatprep.mubr.bf16.mxu0 0
      %3595 = vmatmul.mubr.bf16.gmra.mrb[0].mxu0 %v942
      %v3596 = vpop.f32.mrb[0].mxu0
      %v3597 = vadd.f32 0.0, %v3596
      %v3598 = vpop.f32.mrb[0].mxu0
      %v3599 = vadd.f32 0.0, %v3598
      %v3600 = vpop.f32.mrb[0].mxu0
      %v3601 = vadd.f32 0.0, %v3600
      %v3602 = vpop.f32.mrb[0].mxu0
      %v3603 = vadd.f32 0.0, %v3602
      %3604 = vmatprep.mubr.bf16.mxu0 0
      %3605 = vmatmul.mubr.bf16.gmra.mrb[0].mxu0 %v945
      %v3606 = vpop.f32.mrb[0].mxu0
      %v3607 = vadd.f32 0.0, %v3606
      %v3608 = vpop.f32.mrb[0].mxu0
      %v3609 = vadd.f32 0.0, %v3608
      %v3610 = vpop.f32.mrb[0].mxu0
      %v3611 = vadd.f32 0.0, %v3610
      %v3612 = vpop.f32.mrb[0].mxu0
      %v3613 = vadd.f32 0.0, %v3612
      %3614 = vmatprep.mubr.bf16.mxu0 0
      %3615 = vmatmul.mubr.bf16.gmra.mrb[0].mxu0 %v948
      %v3616 = vpop.f32.mrb[0].mxu0
      %v3617 = vadd.f32 0.0, %v3616
      %v3618 = vpop.f32.mrb[0].mxu0
      %v3619 = vadd.f32 0.0, %v3618
      %v3620 = vpop.f32.mrb[0].mxu0
      %v3621 = vadd.f32 0.0, %v3620
      %v3622 = vpop.f32.mrb[0].mxu0
      %v3623 = vadd.f32 0.0, %v3622
      %3624 = vmatprep.mubr.bf16.mxu0 0
      %3625 = vmatmul.mubr.bf16.gmra.mrb[0].mxu0 %v951
      %v3626 = vpop.f32.mrb[0].mxu0
      %v3627 = vadd.f32 0.0, %v3626
      %v3628 = vpop.f32.mrb[0].mxu0
      %v3629 = vadd.f32 0.0, %v3628
      %v3630 = vpop.f32.mrb[0].mxu0
      %v3631 = vadd.f32 0.0, %v3630
      %v3632 = vpop.f32.mrb[0].mxu0
      %v3633 = vadd.f32 0.0, %v3632
      %3634 = vmatprep.mubr.bf16.mxu0 0
      %3635 = vmatmul.mubr.bf16.gmra.mrb[0].mxu0 %v954
      %v3636 = vpop.f32.mrb[0].mxu0
      %v3637 = vadd.f32 0.0, %v3636
      %v3638 = vpop.f32.mrb[0].mxu0
      %v3639 = vadd.f32 0.0, %v3638
      %v3640 = vpop.f32.mrb[0].mxu0
      %v3641 = vadd.f32 0.0, %v3640
      %v3642 = vpop.f32.mrb[0].mxu0
      %v3643 = vadd.f32 0.0, %v3642
      %3644 = vmatprep.mubr.bf16.mxu0 0
      %3645 = vmatmul.mubr.bf16.gmra.mrb[0].mxu0 %v957
      %v3646 = vpop.f32.mrb[0].mxu0
      %v3647 = vadd.f32 0.0, %v3646
      %v3648 = vpop.f32.mrb[0].mxu0
      %v3649 = vadd.f32 0.0, %v3648
      %v3650 = vpop.f32.mrb[0].mxu0
      %v3651 = vadd.f32 0.0, %v3650
      %v3652 = vpop.f32.mrb[0].mxu0
      %v3653 = vadd.f32 0.0, %v3652
      %3654 = vmatprep.mubr.bf16.mxu0 0
      %3655 = vmatmul.mubr.bf16.gmra.mrb[0].mxu0 %v960
      %v3656 = vpop.f32.mrb[0].mxu0
      %v3657 = vadd.f32 0.0, %v3656
      %v3658 = vpop.f32.mrb[0].mxu0
      %v3659 = vadd.f32 0.0, %v3658
      %v3660 = vpop.f32.mrb[0].mxu0
      %v3661 = vadd.f32 0.0, %v3660
      %v3662 = vpop.f32.mrb[0].mxu0
      %v3663 = vadd.f32 0.0, %v3662
      %3664 = vmatprep.mubr.bf16.mxu0 0
      %3665 = vmatmul.mubr.bf16.gmra.mrb[0].mxu0 %v963
      %v3666 = vpop.f32.mrb[0].mxu0
      %v3667 = vadd.f32 0.0, %v3666
      %v3668 = vpop.f32.mrb[0].mxu0
      %v3669 = vadd.f32 0.0, %v3668
      %v3670 = vpop.f32.mrb[0].mxu0
      %v3671 = vadd.f32 0.0, %v3670
      %v3672 = vpop.f32.mrb[0].mxu0
      %v3673 = vadd.f32 0.0, %v3672
      %3674 = vmatprep.mubr.bf16.mxu0 0
      %3675 = vmatmul.mubr.bf16.gmra.mrb[0].mxu0 %v966
      %v3676 = vpop.f32.mrb[0].mxu0
      %v3677 = vadd.f32 0.0, %v3676
      %v3678 = vpop.f32.mrb[0].mxu0
      %v3679 = vadd.f32 0.0, %v3678
      %v3680 = vpop.f32.mrb[0].mxu0
      %v3681 = vadd.f32 0.0, %v3680
      %v3682 = vpop.f32.mrb[0].mxu0
      %v3683 = vadd.f32 0.0, %v3682
      %3684 = vdwg.mxu0
      %v3685 = vld [vmem:[#allocation3] sm:$0xff]
      %v3686 = vmax.f32 %v1028, %v1032
      %v3687 = vmax.f32 %v3686, %v1038
      %v3688 = vmax.f32 %v3687, %v1042
      %v3689 = vmax.f32 %v3688, %v1048
      %v3690 = vmax.f32 %v3689, %v1052
      %v3691 = vmax.f32 %v3690, %v1058
      %v3692 = vmax.f32 %v3691, %v1062
      %v3693 = vmax.f32 %v3692, %v1068
      %v3694 = vmax.f32 %v3693, %v1072
      %v3695 = vmax.f32 %v3694, %v1078
      %v3696 = vmax.f32 %v3695, %v1082
      %v3697 = vmax.f32 %v3696, %v1088
      %v3698 = vmax.f32 %v3697, %v1092
      %v3699 = vmax.f32 %v3698, %v1098
      %v3700 = vmax.f32 %v3699, %v1102
      %v3701 = vmax.f32 %v3700, %v1108
      %v3702 = vmax.f32 %v3701, %v1112
      %v3703 = vmax.f32 %v3702, %v1118
      %v3704 = vmax.f32 %v3703, %v1122
      %v3705 = vmax.f32 %v3704, %v1128
      %v3706 = vmax.f32 %v3705, %v1132
      %v3707 = vmax.f32 %v3706, %v1138
      %v3708 = vmax.f32 %v3707, %v1142
      %v3709 = vmax.f32 %v3708, %v1148
      %v3710 = vmax.f32 %v3709, %v1152
      %v3711 = vmax.f32 %v3710, %v1158
      %v3712 = vmax.f32 %v3711, %v1162
      %v3713 = vmax.f32 %v3712, %v1168
      %v3714 = vmax.f32 %v3713, %v1172
      %v3715 = vmax.f32 %v3714, %v1178
      %v3716 = vmax.f32 %v3715, %v1182
      %v3717 = vmax.f32 %v3716, %v1188
      %v3718 = vmax.f32 %v3717, %v1192
      %v3719 = vmax.f32 %v3718, %v1198
      %v3720 = vmax.f32 %v3719, %v1202
      %v3721 = vmax.f32 %v3720, %v1208
      %v3722 = vmax.f32 %v3721, %v1212
      %v3723 = vmax.f32 %v3722, %v1218
      %v3724 = vmax.f32 %v3723, %v1222
      %v3725 = vmax.f32 %v3724, %v1228
      %v3726 = vmax.f32 %v3725, %v1232
      %v3727 = vmax.f32 %v3726, %v1238
      %v3728 = vmax.f32 %v3727, %v1242
      %v3729 = vmax.f32 %v3728, %v1248
      %v3730 = vmax.f32 %v3729, %v1252
      %v3731 = vmax.f32 %v3730, %v1258
      %v3732 = vmax.f32 %v3731, %v1262
      %v3733 = vmax.f32 %v3732, %v1268
      %v3734 = vmax.f32 %v3733, %v1272
      %v3735 = vmax.f32 %v3734, %v1278
      %v3736 = vmax.f32 %v3735, %v1282
      %v3737 = vmax.f32 %v3736, %v1288
      %v3738 = vmax.f32 %v3737, %v1292
      %v3739 = vmax.f32 %v3738, %v1298
      %v3740 = vmax.f32 %v3739, %v1302
      %v3741 = vmax.f32 %v3740, %v1308
      %v3742 = vmax.f32 %v3741, %v1312
      %v3743 = vmax.f32 %v3742, %v1318
      %v3744 = vmax.f32 %v3743, %v1322
      %v3745 = vmax.f32 %v3744, %v1328
      %v3746 = vmax.f32 %v3745, %v1332
      %v3747 = vmax.f32 %v3746, %v1338
      %v3748 = vmax.f32 %v3747, %v1342
      %v3749 = vmax.f32 %v3748, %v1348
      %v3750 = vmax.f32 %v3749, %v1352
      %v3751 = vmax.f32 %v3750, %v1358
      %v3752 = vmax.f32 %v3751, %v1362
      %v3753 = vmax.f32 %v3752, %v1368
      %v3754 = vmax.f32 %v3753, %v1372
      %v3755 = vmax.f32 %v3754, %v1378
      %v3756 = vmax.f32 %v3755, %v1382
      %v3757 = vmax.f32 %v3756, %v1388
      %v3758 = vmax.f32 %v3757, %v1392
      %v3759 = vmax.f32 %v3758, %v1398
      %v3760 = vmax.f32 %v3759, %v1402
      %v3761 = vmax.f32 %v3760, %v1408
      %v3762 = vmax.f32 %v3761, %v1412
      %v3763 = vmax.f32 %v3762, %v1418
      %v3764 = vmax.f32 %v3763, %v1422
      %v3765 = vmax.f32 %v3764, %v1428
      %v3766 = vmax.f32 %v3765, %v1432
      %v3767 = vmax.f32 %v3766, %v1438
      %v3768 = vmax.f32 %v3767, %v1442
      %v3769 = vmax.f32 %v3768, %v1448
      %v3770 = vmax.f32 %v3769, %v1452
      %v3771 = vmax.f32 %v3770, %v1458
      %v3772 = vmax.f32 %v3771, %v1462
      %v3773 = vmax.f32 %v3772, %v1468
      %v3774 = vmax.f32 %v3773, %v1472
      %v3775 = vmax.f32 %v3774, %v1478
      %v3776 = vmax.f32 %v3775, %v1482
      %v3777 = vmax.f32 %v3776, %v1488
      %v3778 = vmax.f32 %v3777, %v1492
      %v3779 = vmax.f32 %v3778, %v1498
      %v3780 = vmax.f32 %v3779, %v1502
      %v3781 = vmax.f32 %v3780, %v1508
      %v3782 = vmax.f32 %v3781, %v1512
      %v3783 = vmax.f32 %v3782, %v1518
      %v3784 = vmax.f32 %v3783, %v1522
      %v3785 = vmax.f32 %v3784, %v1528
      %v3786 = vmax.f32 %v3785, %v1532
      %v3787 = vmax.f32 %v3786, %v1538
      %v3788 = vmax.f32 %v3787, %v1542
      %v3789 = vmax.f32 %v3788, %v1548
      %v3790 = vmax.f32 %v3789, %v1552
      %v3791 = vmax.f32 %v3790, %v1558
      %v3792 = vmax.f32 %v3791, %v1562
      %v3793 = vmax.f32 %v3792, %v1568
      %v3794 = vmax.f32 %v3793, %v1572
      %v3795 = vmax.f32 %v3794, %v1578
      %v3796 = vmax.f32 %v3795, %v1582
      %v3797 = vmax.f32 %v3796, %v1588
      %v3798 = vmax.f32 %v3797, %v1592
      %v3799 = vmax.f32 %v3798, %v1598
      %v3800 = vmax.f32 %v3799, %v1602
      %v3801 = vmax.f32 %v3800, %v1608
      %v3802 = vmax.f32 %v3801, %v1612
      %v3803 = vmax.f32 %v3802, %v1618
      %v3804 = vmax.f32 %v3803, %v1622
      %v3805 = vmax.f32 %v3804, %v1628
      %v3806 = vmax.f32 %v3805, %v1632
      %v3807 = vmax.f32 %v3806, %v1638
      %v3808 = vmax.f32 %v3807, %v1642
      %v3809 = vmax.f32 %v3808, %v1648
      %v3810 = vmax.f32 %v3809, %v1652
      %v3811 = vmax.f32 %v3810, %v1658
      %v3812 = vmax.f32 %v3811, %v1662
      %v3813 = vrot.slane %v3812, 4
      %v3814 = vmax.f32 %v3812, %v3813
      %v3815 = vrot.slane %v3814, 2
      %v3816 = vmax.f32 %v3814, %v3815
      %v3817 = vrot.slane %v3816, 1
      %v3818 = vmax.f32 %v3816, %v3817
      %v3819 = vmax.f32 %v1030, %v1034
      %v3820 = vmax.f32 %v3819, %v1040
      %v3821 = vmax.f32 %v3820, %v1044
      %v3822 = vmax.f32 %v3821, %v1050
      %v3823 = vmax.f32 %v3822, %v1054
      %v3824 = vmax.f32 %v3823, %v1060
      %v3825 = vmax.f32 %v3824, %v1064
      %v3826 = vmax.f32 %v3825, %v1070
      %v3827 = vmax.f32 %v3826, %v1074
      %v3828 = vmax.f32 %v3827, %v1080
      %v3829 = vmax.f32 %v3828, %v1084
      %v3830 = vmax.f32 %v3829, %v1090
      %v3831 = vmax.f32 %v3830, %v1094
      %v3832 = vmax.f32 %v3831, %v1100
      %v3833 = vmax.f32 %v3832, %v1104
      %v3834 = vmax.f32 %v3833, %v1110
      %v3835 = vmax.f32 %v3834, %v1114
      %v3836 = vmax.f32 %v3835, %v1120
      %v3837 = vmax.f32 %v3836, %v1124
      %v3838 = vmax.f32 %v3837, %v1130
      %v3839 = vmax.f32 %v3838, %v1134
      %v3840 = vmax.f32 %v3839, %v1140
      %v3841 = vmax.f32 %v3840, %v1144
      %v3842 = vmax.f32 %v3841, %v1150
      %v3843 = vmax.f32 %v3842, %v1154
      %v3844 = vmax.f32 %v3843, %v1160
      %v3845 = vmax.f32 %v3844, %v1164
      %v3846 = vmax.f32 %v3845, %v1170
      %v3847 = vmax.f32 %v3846, %v1174
      %v3848 = vmax.f32 %v3847, %v1180
      %v3849 = vmax.f32 %v3848, %v1184
      %v3850 = vmax.f32 %v3849, %v1190
      %v3851 = vmax.f32 %v3850, %v1194
      %v3852 = vmax.f32 %v3851, %v1200
      %v3853 = vmax.f32 %v3852, %v1204
      %v3854 = vmax.f32 %v3853, %v1210
      %v3855 = vmax.f32 %v3854, %v1214
      %v3856 = vmax.f32 %v3855, %v1220
      %v3857 = vmax.f32 %v3856, %v1224
      %v3858 = vmax.f32 %v3857, %v1230
      %v3859 = vmax.f32 %v3858, %v1234
      %v3860 = vmax.f32 %v3859, %v1240
      %v3861 = vmax.f32 %v3860, %v1244
      %v3862 = vmax.f32 %v3861, %v1250
      %v3863 = vmax.f32 %v3862, %v1254
      %v3864 = vmax.f32 %v3863, %v1260
      %v3865 = vmax.f32 %v3864, %v1264
      %v3866 = vmax.f32 %v3865, %v1270
      %v3867 = vmax.f32 %v3866, %v1274
      %v3868 = vmax.f32 %v3867, %v1280
      %v3869 = vmax.f32 %v3868, %v1284
      %v3870 = vmax.f32 %v3869, %v1290
      %v3871 = vmax.f32 %v3870, %v1294
      %v3872 = vmax.f32 %v3871, %v1300
      %v3873 = vmax.f32 %v3872, %v1304
      %v3874 = vmax.f32 %v3873, %v1310
      %v3875 = vmax.f32 %v3874, %v1314
      %v3876 = vmax.f32 %v3875, %v1320
      %v3877 = vmax.f32 %v3876, %v1324
      %v3878 = vmax.f32 %v3877, %v1330
      %v3879 = vmax.f32 %v3878, %v1334
      %v3880 = vmax.f32 %v3879, %v1340
      %v3881 = vmax.f32 %v3880, %v1344
      %v3882 = vmax.f32 %v3881, %v1350
      %v3883 = vmax.f32 %v3882, %v1354
      %v3884 = vmax.f32 %v3883, %v1360
      %v3885 = vmax.f32 %v3884, %v1364
      %v3886 = vmax.f32 %v3885, %v1370
      %v3887 = vmax.f32 %v3886, %v1374
      %v3888 = vmax.f32 %v3887, %v1380
      %v3889 = vmax.f32 %v3888, %v1384
      %v3890 = vmax.f32 %v3889, %v1390
      %v3891 = vmax.f32 %v3890, %v1394
      %v3892 = vmax.f32 %v3891, %v1400
      %v3893 = vmax.f32 %v3892, %v1404
      %v3894 = vmax.f32 %v3893, %v1410
      %v3895 = vmax.f32 %v3894, %v1414
      %v3896 = vmax.f32 %v3895, %v1420
      %v3897 = vmax.f32 %v3896, %v1424
      %v3898 = vmax.f32 %v3897, %v1430
      %v3899 = vmax.f32 %v3898, %v1434
      %v3900 = vmax.f32 %v3899, %v1440
      %v3901 = vmax.f32 %v3900, %v1444
      %v3902 = vmax.f32 %v3901, %v1450
      %v3903 = vmax.f32 %v3902, %v1454
      %v3904 = vmax.f32 %v3903, %v1460
      %v3905 = vmax.f32 %v3904, %v1464
      %v3906 = vmax.f32 %v3905, %v1470
      %v3907 = vmax.f32 %v3906, %v1474
      %v3908 = vmax.f32 %v3907, %v1480
      %v3909 = vmax.f32 %v3908, %v1484
      %v3910 = vmax.f32 %v3909, %v1490
      %v3911 = vmax.f32 %v3910, %v1494
      %v3912 = vmax.f32 %v3911, %v1500
      %v3913 = vmax.f32 %v3912, %v1504
      %v3914 = vmax.f32 %v3913, %v1510
      %v3915 = vmax.f32 %v3914, %v1514
      %v3916 = vmax.f32 %v3915, %v1520
      %v3917 = vmax.f32 %v3916, %v1524
      %v3918 = vmax.f32 %v3917, %v1530
      %v3919 = vmax.f32 %v3918, %v1534
      %v3920 = vmax.f32 %v3919, %v1540
      %v3921 = vmax.f32 %v3920, %v1544
      %v3922 = vmax.f32 %v3921, %v1550
      %v3923 = vmax.f32 %v3922, %v1554
      %v3924 = vmax.f32 %v3923, %v1560
      %v3925 = vmax.f32 %v3924, %v1564
      %v3926 = vmax.f32 %v3925, %v1570
      %v3927 = vmax.f32 %v3926, %v1574
      %v3928 = vmax.f32 %v3927, %v1580
      %v3929 = vmax.f32 %v3928, %v1584
      %v3930 = vmax.f32 %v3929, %v1590
      %v3931 = vmax.f32 %v3930, %v1594
      %v3932 = vmax.f32 %v3931, %v1600
      %v3933 = vmax.f32 %v3932, %v1604
      %v3934 = vmax.f32 %v3933, %v1610
      %v3935 = vmax.f32 %v3934, %v1614
      %v3936 = vmax.f32 %v3935, %v1620
      %v3937 = vmax.f32 %v3936, %v1624
      %v3938 = vmax.f32 %v3937, %v1630
      %v3939 = vmax.f32 %v3938, %v1634
      %v3940 = vmax.f32 %v3939, %v1640
      %v3941 = vmax.f32 %v3940, %v1644
      %v3942 = vmax.f32 %v3941, %v1650
      %v3943 = vmax.f32 %v3942, %v1654
      %v3944 = vmax.f32 %v3943, %v1660
      %v3945 = vmax.f32 %v3944, %v1664
      %v3946 = vrot.slane %v3945, 4
      %v3947 = vmax.f32 %v3945, %v3946
      %v3948 = vrot.slane %v3947, 2
      %v3949 = vmax.f32 %v3947, %v3948
      %v3950 = vrot.slane %v3949, 1
      %v3951 = vmax.f32 %v3949, %v3950
      %v3952 = vmax.f32 %v1701, %v1705
      %v3953 = vmax.f32 %v3952, %v1711
      %v3954 = vmax.f32 %v3953, %v1715
      %v3955 = vmax.f32 %v3954, %v1721
      %v3956 = vmax.f32 %v3955, %v1725
      %v3957 = vmax.f32 %v3956, %v1731
      %v3958 = vmax.f32 %v3957, %v1735
      %v3959 = vmax.f32 %v3958, %v1741
      %v3960 = vmax.f32 %v3959, %v1745
      %v3961 = vmax.f32 %v3960, %v1751
      %v3962 = vmax.f32 %v3961, %v1755
      %v3963 = vmax.f32 %v3962, %v1761
      %v3964 = vmax.f32 %v3963, %v1765
      %v3965 = vmax.f32 %v3964, %v1771
      %v3966 = vmax.f32 %v3965, %v1775
      %v3967 = vmax.f32 %v3966, %v1781
      %v3968 = vmax.f32 %v3967, %v1785
      %v3969 = vmax.f32 %v3968, %v1791
      %v3970 = vmax.f32 %v3969, %v1795
      %v3971 = vmax.f32 %v3970, %v1801
      %v3972 = vmax.f32 %v3971, %v1805
      %v3973 = vmax.f32 %v3972, %v1811
      %v3974 = vmax.f32 %v3973, %v1815
      %v3975 = vmax.f32 %v3974, %v1821
      %v3976 = vmax.f32 %v3975, %v1825
      %v3977 = vmax.f32 %v3976, %v1831
      %v3978 = vmax.f32 %v3977, %v1835
      %v3979 = vmax.f32 %v3978, %v1841
      %v3980 = vmax.f32 %v3979, %v1845
      %v3981 = vmax.f32 %v3980, %v1851
      %v3982 = vmax.f32 %v3981, %v1855
      %v3983 = vmax.f32 %v3982, %v1861
      %v3984 = vmax.f32 %v3983, %v1865
      %v3985 = vmax.f32 %v3984, %v1871
      %v3986 = vmax.f32 %v3985, %v1875
      %v3987 = vmax.f32 %v3986, %v1881
      %v3988 = vmax.f32 %v3987, %v1885
      %v3989 = vmax.f32 %v3988, %v1891
      %v3990 = vmax.f32 %v3989, %v1895
      %v3991 = vmax.f32 %v3990, %v1901
      %v3992 = vmax.f32 %v3991, %v1905
      %v3993 = vmax.f32 %v3992, %v1911
      %v3994 = vmax.f32 %v3993, %v1915
      %v3995 = vmax.f32 %v3994, %v1921
      %v3996 = vmax.f32 %v3995, %v1925
      %v3997 = vmax.f32 %v3996, %v1931
      %v3998 = vmax.f32 %v3997, %v1935
      %v3999 = vmax.f32 %v3998, %v1941
      %v4000 = vmax.f32 %v3999, %v1945
      %v4001 = vmax.f32 %v4000, %v1951
      %v4002 = vmax.f32 %v4001, %v1955
      %v4003 = vmax.f32 %v4002, %v1961
      %v4004 = vmax.f32 %v4003, %v1965
      %v4005 = vmax.f32 %v4004, %v1971
      %v4006 = vmax.f32 %v4005, %v1975
      %v4007 = vmax.f32 %v4006, %v1981
      %v4008 = vmax.f32 %v4007, %v1985
      %v4009 = vmax.f32 %v4008, %v1991
      %v4010 = vmax.f32 %v4009, %v1995
      %v4011 = vmax.f32 %v4010, %v2001
      %v4012 = vmax.f32 %v4011, %v2005
      %v4013 = vmax.f32 %v4012, %v2011
      %v4014 = vmax.f32 %v4013, %v2015
      %v4015 = vmax.f32 %v4014, %v2021
      %v4016 = vmax.f32 %v4015, %v2025
      %v4017 = vmax.f32 %v4016, %v2031
      %v4018 = vmax.f32 %v4017, %v2035
      %v4019 = vmax.f32 %v4018, %v2041
      %v4020 = vmax.f32 %v4019, %v2045
      %v4021 = vmax.f32 %v4020, %v2051
      %v4022 = vmax.f32 %v4021, %v2055
      %v4023 = vmax.f32 %v4022, %v2061
      %v4024 = vmax.f32 %v4023, %v2065
      %v4025 = vmax.f32 %v4024, %v2071
      %v4026 = vmax.f32 %v4025, %v2075
      %v4027 = vmax.f32 %v4026, %v2081
      %v4028 = vmax.f32 %v4027, %v2085
      %v4029 = vmax.f32 %v4028, %v2091
      %v4030 = vmax.f32 %v4029, %v2095
      %v4031 = vmax.f32 %v4030, %v2101
      %v4032 = vmax.f32 %v4031, %v2105
      %v4033 = vmax.f32 %v4032, %v2111
      %v4034 = vmax.f32 %v4033, %v2115
      %v4035 = vmax.f32 %v4034, %v2121
      %v4036 = vmax.f32 %v4035, %v2125
      %v4037 = vmax.f32 %v4036, %v2131
      %v4038 = vmax.f32 %v4037, %v2135
      %v4039 = vmax.f32 %v4038, %v2141
      %v4040 = vmax.f32 %v4039, %v2145
      %v4041 = vmax.f32 %v4040, %v2151
      %v4042 = vmax.f32 %v4041, %v2155
      %v4043 = vmax.f32 %v4042, %v2161
      %v4044 = vmax.f32 %v4043, %v2165
      %v4045 = vmax.f32 %v4044, %v2171
      %v4046 = vmax.f32 %v4045, %v2175
      %v4047 = vmax.f32 %v4046, %v2181
      %v4048 = vmax.f32 %v4047, %v2185
      %v4049 = vmax.f32 %v4048, %v2191
      %v4050 = vmax.f32 %v4049, %v2195
      %v4051 = vmax.f32 %v4050, %v2201
      %v4052 = vmax.f32 %v4051, %v2205
      %v4053 = vmax.f32 %v4052, %v2211
      %v4054 = vmax.f32 %v4053, %v2215
      %v4055 = vmax.f32 %v4054, %v2221
      %v4056 = vmax.f32 %v4055, %v2225
      %v4057 = vmax.f32 %v4056, %v2231
      %v4058 = vmax.f32 %v4057, %v2235
      %v4059 = vmax.f32 %v4058, %v2241
      %v4060 = vmax.f32 %v4059, %v2245
      %v4061 = vmax.f32 %v4060, %v2251
      %v4062 = vmax.f32 %v4061, %v2255
      %v4063 = vmax.f32 %v4062, %v2261
      %v4064 = vmax.f32 %v4063, %v2265
      %v4065 = vmax.f32 %v4064, %v2271
      %v4066 = vmax.f32 %v4065, %v2275
      %v4067 = vmax.f32 %v4066, %v2281
      %v4068 = vmax.f32 %v4067, %v2285
      %v4069 = vmax.f32 %v4068, %v2291
      %v4070 = vmax.f32 %v4069, %v2295
      %v4071 = vmax.f32 %v4070, %v2301
      %v4072 = vmax.f32 %v4071, %v2305
      %v4073 = vmax.f32 %v4072, %v2311
      %v4074 = vmax.f32 %v4073, %v2315
      %v4075 = vmax.f32 %v4074, %v2321
      %v4076 = vmax.f32 %v4075, %v2325
      %v4077 = vmax.f32 %v4076, %v2331
      %v4078 = vmax.f32 %v4077, %v2335
      %v4079 = vrot.slane %v4078, 4
      %v4080 = vmax.f32 %v4078, %v4079
      %v4081 = vrot.slane %v4080, 2
      %v4082 = vmax.f32 %v4080, %v4081
      %v4083 = vrot.slane %v4082, 1
      %v4084 = vmax.f32 %v4082, %v4083
      %v4085 = vmax.f32 %v1703, %v1707
      %v4086 = vmax.f32 %v4085, %v1713
      %v4087 = vmax.f32 %v4086, %v1717
      %v4088 = vmax.f32 %v4087, %v1723
      %v4089 = vmax.f32 %v4088, %v1727
      %v4090 = vmax.f32 %v4089, %v1733
      %v4091 = vmax.f32 %v4090, %v1737
      %v4092 = vmax.f32 %v4091, %v1743
      %v4093 = vmax.f32 %v4092, %v1747
      %v4094 = vmax.f32 %v4093, %v1753
      %v4095 = vmax.f32 %v4094, %v1757
      %v4096 = vmax.f32 %v4095, %v1763
      %v4097 = vmax.f32 %v4096, %v1767
      %v4098 = vmax.f32 %v4097, %v1773
      %v4099 = vmax.f32 %v4098, %v1777
      %v4100 = vmax.f32 %v4099, %v1783
      %v4101 = vmax.f32 %v4100, %v1787
      %v4102 = vmax.f32 %v4101, %v1793
      %v4103 = vmax.f32 %v4102, %v1797
      %v4104 = vmax.f32 %v4103, %v1803
      %v4105 = vmax.f32 %v4104, %v1807
      %v4106 = vmax.f32 %v4105, %v1813
      %v4107 = vmax.f32 %v4106, %v1817
      %v4108 = vmax.f32 %v4107, %v1823
      %v4109 = vmax.f32 %v4108, %v1827
      %v4110 = vmax.f32 %v4109, %v1833
      %v4111 = vmax.f32 %v4110, %v1837
      %v4112 = vmax.f32 %v4111, %v1843
      %v4113 = vmax.f32 %v4112, %v1847
      %v4114 = vmax.f32 %v4113, %v1853
      %v4115 = vmax.f32 %v4114, %v1857
      %v4116 = vmax.f32 %v4115, %v1863
      %v4117 = vmax.f32 %v4116, %v1867
      %v4118 = vmax.f32 %v4117, %v1873
      %v4119 = vmax.f32 %v4118, %v1877
      %v4120 = vmax.f32 %v4119, %v1883
      %v4121 = vmax.f32 %v4120, %v1887
      %v4122 = vmax.f32 %v4121, %v1893
      %v4123 = vmax.f32 %v4122, %v1897
      %v4124 = vmax.f32 %v4123, %v1903
      %v4125 = vmax.f32 %v4124, %v1907
      %v4126 = vmax.f32 %v4125, %v1913
      %v4127 = vmax.f32 %v4126, %v1917
      %v4128 = vmax.f32 %v4127, %v1923
      %v4129 = vmax.f32 %v4128, %v1927
      %v4130 = vmax.f32 %v4129, %v1933
      %v4131 = vmax.f32 %v4130, %v1937
      %v4132 = vmax.f32 %v4131, %v1943
      %v4133 = vmax.f32 %v4132, %v1947
      %v4134 = vmax.f32 %v4133, %v1953
      %v4135 = vmax.f32 %v4134, %v1957
      %v4136 = vmax.f32 %v4135, %v1963
      %v4137 = vmax.f32 %v4136, %v1967
      %v4138 = vmax.f32 %v4137, %v1973
      %v4139 = vmax.f32 %v4138, %v1977
      %v4140 = vmax.f32 %v4139, %v1983
      %v4141 = vmax.f32 %v4140, %v1987
      %v4142 = vmax.f32 %v4141, %v1993
      %v4143 = vmax.f32 %v4142, %v1997
      %v4144 = vmax.f32 %v4143, %v2003
      %v4145 = vmax.f32 %v4144, %v2007
      %v4146 = vmax.f32 %v4145, %v2013
      %v4147 = vmax.f32 %v4146, %v2017
      %v4148 = vmax.f32 %v4147, %v2023
      %v4149 = vmax.f32 %v4148, %v2027
      %v4150 = vmax.f32 %v4149, %v2033
      %v4151 = vmax.f32 %v4150, %v2037
      %v4152 = vmax.f32 %v4151, %v2043
      %v4153 = vmax.f32 %v4152, %v2047
      %v4154 = vmax.f32 %v4153, %v2053
      %v4155 = vmax.f32 %v4154, %v2057
      %v4156 = vmax.f32 %v4155, %v2063
      %v4157 = vmax.f32 %v4156, %v2067
      %v4158 = vmax.f32 %v4157, %v2073
      %v4159 = vmax.f32 %v4158, %v2077
      %v4160 = vmax.f32 %v4159, %v2083
      %v4161 = vmax.f32 %v4160, %v2087
      %v4162 = vmax.f32 %v4161, %v2093
      %v4163 = vmax.f32 %v4162, %v2097
      %v4164 = vmax.f32 %v4163, %v2103
      %v4165 = vmax.f32 %v4164, %v2107
      %v4166 = vmax.f32 %v4165, %v2113
      %v4167 = vmax.f32 %v4166, %v2117
      %v4168 = vmax.f32 %v4167, %v2123
      %v4169 = vmax.f32 %v4168, %v2127
      %v4170 = vmax.f32 %v4169, %v2133
      %v4171 = vmax.f32 %v4170, %v2137
      %v4172 = vmax.f32 %v4171, %v2143
      %v4173 = vmax.f32 %v4172, %v2147
      %v4174 = vmax.f32 %v4173, %v2153
      %v4175 = vmax.f32 %v4174, %v2157
      %v4176 = vmax.f32 %v4175, %v2163
      %v4177 = vmax.f32 %v4176, %v2167
      %v4178 = vmax.f32 %v4177, %v2173
      %v4179 = vmax.f32 %v4178, %v2177
      %v4180 = vmax.f32 %v4179, %v2183
      %v4181 = vmax.f32 %v4180, %v2187
      %v4182 = vmax.f32 %v4181, %v2193
      %v4183 = vmax.f32 %v4182, %v2197
      %v4184 = vmax.f32 %v4183, %v2203
      %v4185 = vmax.f32 %v4184, %v2207
      %v4186 = vmax.f32 %v4185, %v2213
      %v4187 = vmax.f32 %v4186, %v2217
      %v4188 = vmax.f32 %v4187, %v2223
      %v4189 = vmax.f32 %v4188, %v2227
      %v4190 = vmax.f32 %v4189, %v2233
      %v4191 = vmax.f32 %v4190, %v2237
      %v4192 = vmax.f32 %v4191, %v2243
      %v4193 = vmax.f32 %v4192, %v2247
      %v4194 = vmax.f32 %v4193, %v2253
      %v4195 = vmax.f32 %v4194, %v2257
      %v4196 = vmax.f32 %v4195, %v2263
      %v4197 = vmax.f32 %v4196, %v2267
      %v4198 = vmax.f32 %v4197, %v2273
      %v4199 = vmax.f32 %v4198, %v2277
      %v4200 = vmax.f32 %v4199, %v2283
      %v4201 = vmax.f32 %v4200, %v2287
      %v4202 = vmax.f32 %v4201, %v2293
      %v4203 = vmax.f32 %v4202, %v2297
      %v4204 = vmax.f32 %v4203, %v2303
      %v4205 = vmax.f32 %v4204, %v2307
      %v4206 = vmax.f32 %v4205, %v2313
      %v4207 = vmax.f32 %v4206, %v2317
      %v4208 = vmax.f32 %v4207, %v2323
      %v4209 = vmax.f32 %v4208, %v2327
      %v4210 = vmax.f32 %v4209, %v2333
      %v4211 = vmax.f32 %v4210, %v2337
      %v4212 = vrot.slane %v4211, 4
      %v4213 = vmax.f32 %v4211, %v4212
      %v4214 = vrot.slane %v4213, 2
      %v4215 = vmax.f32 %v4213, %v4214
      %v4216 = vrot.slane %v4215, 1
      %v4217 = vmax.f32 %v4215, %v4216
      %v4218 = vmax.f32 %v2374, %v2378
      %v4219 = vmax.f32 %v4218, %v2384
      %v4220 = vmax.f32 %v4219, %v2388
      %v4221 = vmax.f32 %v4220, %v2394
      %v4222 = vmax.f32 %v4221, %v2398
      %v4223 = vmax.f32 %v4222, %v2404
      %v4224 = vmax.f32 %v4223, %v2408
      %v4225 = vmax.f32 %v4224, %v2414
      %v4226 = vmax.f32 %v4225, %v2418
      %v4227 = vmax.f32 %v4226, %v2424
      %v4228 = vmax.f32 %v4227, %v2428
      %v4229 = vmax.f32 %v4228, %v2434
      %v4230 = vmax.f32 %v4229, %v2438
      %v4231 = vmax.f32 %v4230, %v2444
      %v4232 = vmax.f32 %v4231, %v2448
      %v4233 = vmax.f32 %v4232, %v2454
      %v4234 = vmax.f32 %v4233, %v2458
      %v4235 = vmax.f32 %v4234, %v2464
      %v4236 = vmax.f32 %v4235, %v2468
      %v4237 = vmax.f32 %v4236, %v2474
      %v4238 = vmax.f32 %v4237, %v2478
      %v4239 = vmax.f32 %v4238, %v2484
      %v4240 = vmax.f32 %v4239, %v2488
      %v4241 = vmax.f32 %v4240, %v2494
      %v4242 = vmax.f32 %v4241, %v2498
      %v4243 = vmax.f32 %v4242, %v2504
      %v4244 = vmax.f32 %v4243, %v2508
      %v4245 = vmax.f32 %v4244, %v2514
      %v4246 = vmax.f32 %v4245, %v2518
      %v4247 = vmax.f32 %v4246, %v2524
      %v4248 = vmax.f32 %v4247, %v2528
      %v4249 = vmax.f32 %v4248, %v2534
      %v4250 = vmax.f32 %v4249, %v2538
      %v4251 = vmax.f32 %v4250, %v2544
      %v4252 = vmax.f32 %v4251, %v2548
      %v4253 = vmax.f32 %v4252, %v2554
      %v4254 = vmax.f32 %v4253, %v2558
      %v4255 = vmax.f32 %v4254, %v2564
      %v4256 = vmax.f32 %v4255, %v2568
      %v4257 = vmax.f32 %v4256, %v2574
      %v4258 = vmax.f32 %v4257, %v2578
      %v4259 = vmax.f32 %v4258, %v2584
      %v4260 = vmax.f32 %v4259, %v2588
      %v4261 = vmax.f32 %v4260, %v2594
      %v4262 = vmax.f32 %v4261, %v2598
      %v4263 = vmax.f32 %v4262, %v2604
      %v4264 = vmax.f32 %v4263, %v2608
      %v4265 = vmax.f32 %v4264, %v2614
      %v4266 = vmax.f32 %v4265, %v2618
      %v4267 = vmax.f32 %v4266, %v2624
      %v4268 = vmax.f32 %v4267, %v2628
      %v4269 = vmax.f32 %v4268, %v2634
      %v4270 = vmax.f32 %v4269, %v2638
      %v4271 = vmax.f32 %v4270, %v2644
      %v4272 = vmax.f32 %v4271, %v2648
      %v4273 = vmax.f32 %v4272, %v2654
      %v4274 = vmax.f32 %v4273, %v2658
      %v4275 = vmax.f32 %v4274, %v2664
      %v4276 = vmax.f32 %v4275, %v2668
      %v4277 = vmax.f32 %v4276, %v2674
      %v4278 = vmax.f32 %v4277, %v2678
      %v4279 = vmax.f32 %v4278, %v2684
      %v4280 = vmax.f32 %v4279, %v2688
      %v4281 = vmax.f32 %v4280, %v2694
      %v4282 = vmax.f32 %v4281, %v2698
      %v4283 = vmax.f32 %v4282, %v2704
      %v4284 = vmax.f32 %v4283, %v2708
      %v4285 = vmax.f32 %v4284, %v2714
      %v4286 = vmax.f32 %v4285, %v2718
      %v4287 = vmax.f32 %v4286, %v2724
      %v4288 = vmax.f32 %v4287, %v2728
      %v4289 = vmax.f32 %v4288, %v2734
      %v4290 = vmax.f32 %v4289, %v2738
      %v4291 = vmax.f32 %v4290, %v2744
      %v4292 = vmax.f32 %v4291, %v2748
      %v4293 = vmax.f32 %v4292, %v2754
      %v4294 = vmax.f32 %v4293, %v2758
      %v4295 = vmax.f32 %v4294, %v2764
      %v4296 = vmax.f32 %v4295, %v2768
      %v4297 = vmax.f32 %v4296, %v2774
      %v4298 = vmax.f32 %v4297, %v2778
      %v4299 = vmax.f32 %v4298, %v2784
      %v4300 = vmax.f32 %v4299, %v2788
      %v4301 = vmax.f32 %v4300, %v2794
      %v4302 = vmax.f32 %v4301, %v2798
      %v4303 = vmax.f32 %v4302, %v2804
      %v4304 = vmax.f32 %v4303, %v2808
      %v4305 = vmax.f32 %v4304, %v2814
      %v4306 = vmax.f32 %v4305, %v2818
      %v4307 = vmax.f32 %v4306, %v2824
      %v4308 = vmax.f32 %v4307, %v2828
      %v4309 = vmax.f32 %v4308, %v2834
      %v4310 = vmax.f32 %v4309, %v2838
      %v4311 = vmax.f32 %v4310, %v2844
      %v4312 = vmax.f32 %v4311, %v2848
      %v4313 = vmax.f32 %v4312, %v2854
      %v4314 = vmax.f32 %v4313, %v2858
      %v4315 = vmax.f32 %v4314, %v2864
      %v4316 = vmax.f32 %v4315, %v2868
      %v4317 = vmax.f32 %v4316, %v2874
      %v4318 = vmax.f32 %v4317, %v2878
      %v4319 = vmax.f32 %v4318, %v2884
      %v4320 = vmax.f32 %v4319, %v2888
      %v4321 = vmax.f32 %v4320, %v2894
      %v4322 = vmax.f32 %v4321, %v2898
      %v4323 = vmax.f32 %v4322, %v2904
      %v4324 = vmax.f32 %v4323, %v2908
      %v4325 = vmax.f32 %v4324, %v2914
      %v4326 = vmax.f32 %v4325, %v2918
      %v4327 = vmax.f32 %v4326, %v2924
      %v4328 = vmax.f32 %v4327, %v2928
      %v4329 = vmax.f32 %v4328, %v2934
      %v4330 = vmax.f32 %v4329, %v2938
      %v4331 = vmax.f32 %v4330, %v2944
      %v4332 = vmax.f32 %v4331, %v2948
      %v4333 = vmax.f32 %v4332, %v2954
      %v4334 = vmax.f32 %v4333, %v2958
      %v4335 = vmax.f32 %v4334, %v2964
      %v4336 = vmax.f32 %v4335, %v2968
      %v4337 = vmax.f32 %v4336, %v2974
      %v4338 = vmax.f32 %v4337, %v2978
      %v4339 = vmax.f32 %v4338, %v2984
      %v4340 = vmax.f32 %v4339, %v2988
      %v4341 = vmax.f32 %v4340, %v2994
      %v4342 = vmax.f32 %v4341, %v2998
      %v4343 = vmax.f32 %v4342, %v3004
      %v4344 = vmax.f32 %v4343, %v3008
      %v4345 = vrot.slane %v4344, 4
      %v4346 = vmax.f32 %v4344, %v4345
      %v4347 = vrot.slane %v4346, 2
      %v4348 = vmax.f32 %v4346, %v4347
      %v4349 = vrot.slane %v4348, 1
      %v4350 = vmax.f32 %v4348, %v4349
      %v4351 = vmax.f32 %v2376, %v2380
      %v4352 = vmax.f32 %v4351, %v2386
      %v4353 = vmax.f32 %v4352, %v2390
      %v4354 = vmax.f32 %v4353, %v2396
      %v4355 = vmax.f32 %v4354, %v2400
      %v4356 = vmax.f32 %v4355, %v2406
      %v4357 = vmax.f32 %v4356, %v2410
      %v4358 = vmax.f32 %v4357, %v2416
      %v4359 = vmax.f32 %v4358, %v2420
      %v4360 = vmax.f32 %v4359, %v2426
      %v4361 = vmax.f32 %v4360, %v2430
      %v4362 = vmax.f32 %v4361, %v2436
      %v4363 = vmax.f32 %v4362, %v2440
      %v4364 = vmax.f32 %v4363, %v2446
      %v4365 = vmax.f32 %v4364, %v2450
      %v4366 = vmax.f32 %v4365, %v2456
      %v4367 = vmax.f32 %v4366, %v2460
      %v4368 = vmax.f32 %v4367, %v2466
      %v4369 = vmax.f32 %v4368, %v2470
      %v4370 = vmax.f32 %v4369, %v2476
      %v4371 = vmax.f32 %v4370, %v2480
      %v4372 = vmax.f32 %v4371, %v2486
      %v4373 = vmax.f32 %v4372, %v2490
      %v4374 = vmax.f32 %v4373, %v2496
      %v4375 = vmax.f32 %v4374, %v2500
      %v4376 = vmax.f32 %v4375, %v2506
      %v4377 = vmax.f32 %v4376, %v2510
      %v4378 = vmax.f32 %v4377, %v2516
      %v4379 = vmax.f32 %v4378, %v2520
      %v4380 = vmax.f32 %v4379, %v2526
      %v4381 = vmax.f32 %v4380, %v2530
      %v4382 = vmax.f32 %v4381, %v2536
      %v4383 = vmax.f32 %v4382, %v2540
      %v4384 = vmax.f32 %v4383, %v2546
      %v4385 = vmax.f32 %v4384, %v2550
      %v4386 = vmax.f32 %v4385, %v2556
      %v4387 = vmax.f32 %v4386, %v2560
      %v4388 = vmax.f32 %v4387, %v2566
      %v4389 = vmax.f32 %v4388, %v2570
      %v4390 = vmax.f32 %v4389, %v2576
      %v4391 = vmax.f32 %v4390, %v2580
      %v4392 = vmax.f32 %v4391, %v2586
      %v4393 = vmax.f32 %v4392, %v2590
      %v4394 = vmax.f32 %v4393, %v2596
      %v4395 = vmax.f32 %v4394, %v2600
      %v4396 = vmax.f32 %v4395, %v2606
      %v4397 = vmax.f32 %v4396, %v2610
      %v4398 = vmax.f32 %v4397, %v2616
      %v4399 = vmax.f32 %v4398, %v2620
      %v4400 = vmax.f32 %v4399, %v2626
      %v4401 = vmax.f32 %v4400, %v2630
      %v4402 = vmax.f32 %v4401, %v2636
      %v4403 = vmax.f32 %v4402, %v2640
      %v4404 = vmax.f32 %v4403, %v2646
      %v4405 = vmax.f32 %v4404, %v2650
      %v4406 = vmax.f32 %v4405, %v2656
      %v4407 = vmax.f32 %v4406, %v2660
      %v4408 = vmax.f32 %v4407, %v2666
      %v4409 = vmax.f32 %v4408, %v2670
      %v4410 = vmax.f32 %v4409, %v2676
      %v4411 = vmax.f32 %v4410, %v2680
      %v4412 = vmax.f32 %v4411, %v2686
      %v4413 = vmax.f32 %v4412, %v2690
      %v4414 = vmax.f32 %v4413, %v2696
      %v4415 = vmax.f32 %v4414, %v2700
      %v4416 = vmax.f32 %v4415, %v2706
      %v4417 = vmax.f32 %v4416, %v2710
      %v4418 = vmax.f32 %v4417, %v2716
      %v4419 = vmax.f32 %v4418, %v2720
      %v4420 = vmax.f32 %v4419, %v2726
      %v4421 = vmax.f32 %v4420, %v2730
      %v4422 = vmax.f32 %v4421, %v2736
      %v4423 = vmax.f32 %v4422, %v2740
      %v4424 = vmax.f32 %v4423, %v2746
      %v4425 = vmax.f32 %v4424, %v2750
      %v4426 = vmax.f32 %v4425, %v2756
      %v4427 = vmax.f32 %v4426, %v2760
      %v4428 = vmax.f32 %v4427, %v2766
      %v4429 = vmax.f32 %v4428, %v2770
      %v4430 = vmax.f32 %v4429, %v2776
      %v4431 = vmax.f32 %v4430, %v2780
      %v4432 = vmax.f32 %v4431, %v2786
      %v4433 = vmax.f32 %v4432, %v2790
      %v4434 = vmax.f32 %v4433, %v2796
      %v4435 = vmax.f32 %v4434, %v2800
      %v4436 = vmax.f32 %v4435, %v2806
      %v4437 = vmax.f32 %v4436, %v2810
      %v4438 = vmax.f32 %v4437, %v2816
      %v4439 = vmax.f32 %v4438, %v2820
      %v4440 = vmax.f32 %v4439, %v2826
      %v4441 = vmax.f32 %v4440, %v2830
      %v4442 = vmax.f32 %v4441, %v2836
      %v4443 = vmax.f32 %v4442, %v2840
      %v4444 = vmax.f32 %v4443, %v2846
      %v4445 = vmax.f32 %v4444, %v2850
      %v4446 = vmax.f32 %v4445, %v2856
      %v4447 = vmax.f32 %v4446, %v2860
      %v4448 = vmax.f32 %v4447, %v2866
      %v4449 = vmax.f32 %v4448, %v2870
      %v4450 = vmax.f32 %v4449, %v2876
      %v4451 = vmax.f32 %v4450, %v2880
      %v4452 = vmax.f32 %v4451, %v2886
      %v4453 = vmax.f32 %v4452, %v2890
      %v4454 = vmax.f32 %v4453, %v2896
      %v4455 = vmax.f32 %v4454, %v2900
      %v4456 = vmax.f32 %v4455, %v2906
      %v4457 = vmax.f32 %v4456, %v2910
      %v4458 = vmax.f32 %v4457, %v2916
      %v4459 = vmax.f32 %v4458, %v2920
      %v4460 = vmax.f32 %v4459, %v2926
      %v4461 = vmax.f32 %v4460, %v2930
      %v4462 = vmax.f32 %v4461, %v2936
      %v4463 = vmax.f32 %v4462, %v2940
      %v4464 = vmax.f32 %v4463, %v2946
      %v4465 = vmax.f32 %v4464, %v2950
      %v4466 = vmax.f32 %v4465, %v2956
      %v4467 = vmax.f32 %v4466, %v2960
      %v4468 = vmax.f32 %v4467, %v2966
      %v4469 = vmax.f32 %v4468, %v2970
      %v4470 = vmax.f32 %v4469, %v2976
      %v4471 = vmax.f32 %v4470, %v2980
      %v4472 = vmax.f32 %v4471, %v2986
      %v4473 = vmax.f32 %v4472, %v2990
      %v4474 = vmax.f32 %v4473, %v2996
      %v4475 = vmax.f32 %v4474, %v3000
      %v4476 = vmax.f32 %v4475, %v3006
      %v4477 = vmax.f32 %v4476, %v3010
      %v4478 = vrot.slane %v4477, 4
      %v4479 = vmax.f32 %v4477, %v4478
      %v4480 = vrot.slane %v4479, 2
      %v4481 = vmax.f32 %v4479, %v4480
      %v4482 = vrot.slane %v4481, 1
      %v4483 = vmax.f32 %v4481, %v4482
      %v4484 = vmax.f32 %v3047, %v3051
      %v4485 = vmax.f32 %v4484, %v3057
      %v4486 = vmax.f32 %v4485, %v3061
      %v4487 = vmax.f32 %v4486, %v3067
      %v4488 = vmax.f32 %v4487, %v3071
      %v4489 = vmax.f32 %v4488, %v3077
      %v4490 = vmax.f32 %v4489, %v3081
      %v4491 = vmax.f32 %v4490, %v3087
      %v4492 = vmax.f32 %v4491, %v3091
      %v4493 = vmax.f32 %v4492, %v3097
      %v4494 = vmax.f32 %v4493, %v3101
      %v4495 = vmax.f32 %v4494, %v3107
      %v4496 = vmax.f32 %v4495, %v3111
      %v4497 = vmax.f32 %v4496, %v3117
      %v4498 = vmax.f32 %v4497, %v3121
      %v4499 = vmax.f32 %v4498, %v3127
      %v4500 = vmax.f32 %v4499, %v3131
      %v4501 = vmax.f32 %v4500, %v3137
      %v4502 = vmax.f32 %v4501, %v3141
      %v4503 = vmax.f32 %v4502, %v3147
      %v4504 = vmax.f32 %v4503, %v3151
      %v4505 = vmax.f32 %v4504, %v3157
      %v4506 = vmax.f32 %v4505, %v3161
      %v4507 = vmax.f32 %v4506, %v3167
      %v4508 = vmax.f32 %v4507, %v3171
      %v4509 = vmax.f32 %v4508, %v3177
      %v4510 = vmax.f32 %v4509, %v3181
      %v4511 = vmax.f32 %v4510, %v3187
      %v4512 = vmax.f32 %v4511, %v3191
      %v4513 = vmax.f32 %v4512, %v3197
      %v4514 = vmax.f32 %v4513, %v3201
      %v4515 = vmax.f32 %v4514, %v3207
      %v4516 = vmax.f32 %v4515, %v3211
      %v4517 = vmax.f32 %v4516, %v3217
      %v4518 = vmax.f32 %v4517, %v3221
      %v4519 = vmax.f32 %v4518, %v3227
      %v4520 = vmax.f32 %v4519, %v3231
      %v4521 = vmax.f32 %v4520, %v3237
      %v4522 = vmax.f32 %v4521, %v3241
      %v4523 = vmax.f32 %v4522, %v3247
      %v4524 = vmax.f32 %v4523, %v3251
      %v4525 = vmax.f32 %v4524, %v3257
      %v4526 = vmax.f32 %v4525, %v3261
      %v4527 = vmax.f32 %v4526, %v3267
      %v4528 = vmax.f32 %v4527, %v3271
      %v4529 = vmax.f32 %v4528, %v3277
      %v4530 = vmax.f32 %v4529, %v3281
      %v4531 = vmax.f32 %v4530, %v3287
      %v4532 = vmax.f32 %v4531, %v3291
      %v4533 = vmax.f32 %v4532, %v3297
      %v4534 = vmax.f32 %v4533, %v3301
      %v4535 = vmax.f32 %v4534, %v3307
      %v4536 = vmax.f32 %v4535, %v3311
      %v4537 = vmax.f32 %v4536, %v3317
      %v4538 = vmax.f32 %v4537, %v3321
      %v4539 = vmax.f32 %v4538, %v3327
      %v4540 = vmax.f32 %v4539, %v3331
      %v4541 = vmax.f32 %v4540, %v3337
      %v4542 = vmax.f32 %v4541, %v3341
      %v4543 = vmax.f32 %v4542, %v3347
      %v4544 = vmax.f32 %v4543, %v3351
      %v4545 = vmax.f32 %v4544, %v3357
      %v4546 = vmax.f32 %v4545, %v3361
      %v4547 = vmax.f32 %v4546, %v3367
      %v4548 = vmax.f32 %v4547, %v3371
      %v4549 = vmax.f32 %v4548, %v3377
      %v4550 = vmax.f32 %v4549, %v3381
      %v4551 = vmax.f32 %v4550, %v3387
      %v4552 = vmax.f32 %v4551, %v3391
      %v4553 = vmax.f32 %v4552, %v3397
      %v4554 = vmax.f32 %v4553, %v3401
      %v4555 = vmax.f32 %v4554, %v3407
      %v4556 = vmax.f32 %v4555, %v3411
      %v4557 = vmax.f32 %v4556, %v3417
      %v4558 = vmax.f32 %v4557, %v3421
      %v4559 = vmax.f32 %v4558, %v3427
      %v4560 = vmax.f32 %v4559, %v3431
      %v4561 = vmax.f32 %v4560, %v3437
      %v4562 = vmax.f32 %v4561, %v3441
      %v4563 = vmax.f32 %v4562, %v3447
      %v4564 = vmax.f32 %v4563, %v3451
      %v4565 = vmax.f32 %v4564, %v3457
      %v4566 = vmax.f32 %v4565, %v3461
      %v4567 = vmax.f32 %v4566, %v3467
      %v4568 = vmax.f32 %v4567, %v3471
      %v4569 = vmax.f32 %v4568, %v3477
      %v4570 = vmax.f32 %v4569, %v3481
      %v4571 = vmax.f32 %v4570, %v3487
      %v4572 = vmax.f32 %v4571, %v3491
      %v4573 = vmax.f32 %v4572, %v3497
      %v4574 = vmax.f32 %v4573, %v3501
      %v4575 = vmax.f32 %v4574, %v3507
      %v4576 = vmax.f32 %v4575, %v3511
      %v4577 = vmax.f32 %v4576, %v3517
      %v4578 = vmax.f32 %v4577, %v3521
      %v4579 = vmax.f32 %v4578, %v3527
      %v4580 = vmax.f32 %v4579, %v3531
      %v4581 = vmax.f32 %v4580, %v3537
      %v4582 = vmax.f32 %v4581, %v3541
      %v4583 = vmax.f32 %v4582, %v3547
      %v4584 = vmax.f32 %v4583, %v3551
      %v4585 = vmax.f32 %v4584, %v3557
      %v4586 = vmax.f32 %v4585, %v3561
      %v4587 = vmax.f32 %v4586, %v3567
      %v4588 = vmax.f32 %v4587, %v3571
      %v4589 = vmax.f32 %v4588, %v3577
      %v4590 = vmax.f32 %v4589, %v3581
      %v4591 = vmax.f32 %v4590, %v3587
      %v4592 = vmax.f32 %v4591, %v3591
      %v4593 = vmax.f32 %v4592, %v3597
      %v4594 = vmax.f32 %v4593, %v3601
      %v4595 = vmax.f32 %v4594, %v3607
      %v4596 = vmax.f32 %v4595, %v3611
      %v4597 = vmax.f32 %v4596, %v3617
      %v4598 = vmax.f32 %v4597, %v3621
      %v4599 = vmax.f32 %v4598, %v3627
      %v4600 = vmax.f32 %v4599, %v3631
      %v4601 = vmax.f32 %v4600, %v3637
      %v4602 = vmax.f32 %v4601, %v3641
      %v4603 = vmax.f32 %v4602, %v3647
      %v4604 = vmax.f32 %v4603, %v3651
      %v4605 = vmax.f32 %v4604, %v3657
      %v4606 = vmax.f32 %v4605, %v3661
      %v4607 = vmax.f32 %v4606, %v3667
      %v4608 = vmax.f32 %v4607, %v3671
      %v4609 = vmax.f32 %v4608, %v3677
      %v4610 = vmax.f32 %v4609, %v3681
      %v4611 = vrot.slane %v4610, 4
      %v4612 = vmax.f32 %v4610, %v4611
      %v4613 = vrot.slane %v4612, 2
      %v4614 = vmax.f32 %v4612, %v4613
      %v4615 = vrot.slane %v4614, 1
      %v4616 = vmax.f32 %v4614, %v4615
      %v4617 = vmax.f32 %v3049, %v3053
      %v4618 = vmax.f32 %v4617, %v3059
      %v4619 = vmax.f32 %v4618, %v3063
      %v4620 = vmax.f32 %v4619, %v3069
      %v4621 = vmax.f32 %v4620, %v3073
      %v4622 = vmax.f32 %v4621, %v3079
      %v4623 = vmax.f32 %v4622, %v3083
      %v4624 = vmax.f32 %v4623, %v3089
      %v4625 = vmax.f32 %v4624, %v3093
      %v4626 = vmax.f32 %v4625, %v3099
      %v4627 = vmax.f32 %v4626, %v3103
      %v4628 = vmax.f32 %v4627, %v3109
      %v4629 = vmax.f32 %v4628, %v3113
      %v4630 = vmax.f32 %v4629, %v3119
      %v4631 = vmax.f32 %v4630, %v3123
      %v4632 = vmax.f32 %v4631, %v3129
      %v4633 = vmax.f32 %v4632, %v3133
      %v4634 = vmax.f32 %v4633, %v3139
      %v4635 = vmax.f32 %v4634, %v3143
      %v4636 = vmax.f32 %v4635, %v3149
      %v4637 = vmax.f32 %v4636, %v3153
      %v4638 = vmax.f32 %v4637, %v3159
      %v4639 = vmax.f32 %v4638, %v3163
      %v4640 = vmax.f32 %v4639, %v3169
      %v4641 = vmax.f32 %v4640, %v3173
      %v4642 = vmax.f32 %v4641, %v3179
      %v4643 = vmax.f32 %v4642, %v3183
      %v4644 = vmax.f32 %v4643, %v3189
      %v4645 = vmax.f32 %v4644, %v3193
      %v4646 = vmax.f32 %v4645, %v3199
      %v4647 = vmax.f32 %v4646, %v3203
      %v4648 = vmax.f32 %v4647, %v3209
      %v4649 = vmax.f32 %v4648, %v3213
      %v4650 = vmax.f32 %v4649, %v3219
      %v4651 = vmax.f32 %v4650, %v3223
      %v4652 = vmax.f32 %v4651, %v3229
      %v4653 = vmax.f32 %v4652, %v3233
      %v4654 = vmax.f32 %v4653, %v3239
      %v4655 = vmax.f32 %v4654, %v3243
      %v4656 = vmax.f32 %v4655, %v3249
      %v4657 = vmax.f32 %v4656, %v3253
      %v4658 = vmax.f32 %v4657, %v3259
      %v4659 = vmax.f32 %v4658, %v3263
      %v4660 = vmax.f32 %v4659, %v3269
      %v4661 = vmax.f32 %v4660, %v3273
      %v4662 = vmax.f32 %v4661, %v3279
      %v4663 = vmax.f32 %v4662, %v3283
      %v4664 = vmax.f32 %v4663, %v3289
      %v4665 = vmax.f32 %v4664, %v3293
      %v4666 = vmax.f32 %v4665, %v3299
      %v4667 = vmax.f32 %v4666, %v3303
      %v4668 = vmax.f32 %v4667, %v3309
      %v4669 = vmax.f32 %v4668, %v3313
      %v4670 = vmax.f32 %v4669, %v3319
      %v4671 = vmax.f32 %v4670, %v3323
      %v4672 = vmax.f32 %v4671, %v3329
      %v4673 = vmax.f32 %v4672, %v3333
      %v4674 = vmax.f32 %v4673, %v3339
      %v4675 = vmax.f32 %v4674, %v3343
      %v4676 = vmax.f32 %v4675, %v3349
      %v4677 = vmax.f32 %v4676, %v3353
      %v4678 = vmax.f32 %v4677, %v3359
      %v4679 = vmax.f32 %v4678, %v3363
      %v4680 = vmax.f32 %v4679, %v3369
      %v4681 = vmax.f32 %v4680, %v3373
      %v4682 = vmax.f32 %v4681, %v3379
      %v4683 = vmax.f32 %v4682, %v3383
      %v4684 = vmax.f32 %v4683, %v3389
      %v4685 = vmax.f32 %v4684, %v3393
      %v4686 = vmax.f32 %v4685, %v3399
      %v4687 = vmax.f32 %v4686, %v3403
      %v4688 = vmax.f32 %v4687, %v3409
      %v4689 = vmax.f32 %v4688, %v3413
      %v4690 = vmax.f32 %v4689, %v3419
      %v4691 = vmax.f32 %v4690, %v3423
      %v4692 = vmax.f32 %v4691, %v3429
      %v4693 = vmax.f32 %v4692, %v3433
      %v4694 = vmax.f32 %v4693, %v3439
      %v4695 = vmax.f32 %v4694, %v3443
      %v4696 = vmax.f32 %v4695, %v3449
      %v4697 = vmax.f32 %v4696, %v3453
      %v4698 = vmax.f32 %v4697, %v3459
      %v4699 = vmax.f32 %v4698, %v3463
      %v4700 = vmax.f32 %v4699, %v3469
      %v4701 = vmax.f32 %v4700, %v3473
      %v4702 = vmax.f32 %v4701, %v3479
      %v4703 = vmax.f32 %v4702, %v3483
      %v4704 = vmax.f32 %v4703, %v3489
      %v4705 = vmax.f32 %v4704, %v3493
      %v4706 = vmax.f32 %v4705, %v3499
      %v4707 = vmax.f32 %v4706, %v3503
      %v4708 = vmax.f32 %v4707, %v3509
      %v4709 = vmax.f32 %v4708, %v3513
      %v4710 = vmax.f32 %v4709, %v3519
      %v4711 = vmax.f32 %v4710, %v3523
      %v4712 = vmax.f32 %v4711, %v3529
      %v4713 = vmax.f32 %v4712, %v3533
      %v4714 = vmax.f32 %v4713, %v3539
      %v4715 = vmax.f32 %v4714, %v3543
      %v4716 = vmax.f32 %v4715, %v3549
      %v4717 = vmax.f32 %v4716, %v3553
      %v4718 = vmax.f32 %v4717, %v3559
      %v4719 = vmax.f32 %v4718, %v3563
      %v4720 = vmax.f32 %v4719, %v3569
      %v4721 = vmax.f32 %v4720, %v3573
      %v4722 = vmax.f32 %v4721, %v3579
      %v4723 = vmax.f32 %v4722, %v3583
      %v4724 = vmax.f32 %v4723, %v3589
      %v4725 = vmax.f32 %v4724, %v3593
      %v4726 = vmax.f32 %v4725, %v3599
      %v4727 = vmax.f32 %v4726, %v3603
      %v4728 = vmax.f32 %v4727, %v3609
      %v4729 = vmax.f32 %v4728, %v3613
      %v4730 = vmax.f32 %v4729, %v3619
      %v4731 = vmax.f32 %v4730, %v3623
      %v4732 = vmax.f32 %v4731, %v3629
      %v4733 = vmax.f32 %v4732, %v3633
      %v4734 = vmax.f32 %v4733, %v3639
      %v4735 = vmax.f32 %v4734, %v3643
      %v4736 = vmax.f32 %v4735, %v3649
      %v4737 = vmax.f32 %v4736, %v3653
      %v4738 = vmax.f32 %v4737, %v3659
      %v4739 = vmax.f32 %v4738, %v3663
      %v4740 = vmax.f32 %v4739, %v3669
      %v4741 = vmax.f32 %v4740, %v3673
      %v4742 = vmax.f32 %v4741, %v3679
      %v4743 = vmax.f32 %v4742, %v3683
      %v4744 = vrot.slane %v4743, 4
      %v4745 = vmax.f32 %v4743, %v4744
      %v4746 = vrot.slane %v4745, 2
      %v4747 = vmax.f32 %v4745, %v4746
      %v4748 = vrot.slane %v4747, 1
      %v4749 = vmax.f32 %v4747, %v4748
      %v4758 = vcombine.low %v3818, %v3951
      %v4759 = vcombine.low %v4084, %v4217
      %v4760 = vcombine.low %v4350, %v4483
      %v4761 = vcombine.low %v4616, %v4749
      %v4763 = vunpack.c.l.s4 1966171168
      %v4764 = vunpack.c.0.s8 %v4763
      %v4765 = vlaneseq
      %v4766 = vshrl.u32 %v4765, 7
      %v4767 = vsub.s32 %v4764, %v4766
      %v4768 = vrot.slane %v4758, %v4767
      %v4770 = vunpack.c.l.s4 1966171168
      %v4771 = vunpack.c.0.s8 %v4770
      %v4772 = vlaneseq
      %v4773 = vshrl.u32 %v4772, 7
      %v4774 = vsub.s32 %v4771, %v4773
      %v4775 = vrot.slane %v4759, %v4774
      %v4777 = vunpack.c.l.s4 1966171168
      %v4778 = vunpack.c.0.s8 %v4777
      %v4779 = vlaneseq
      %v4780 = vshrl.u32 %v4779, 7
      %v4781 = vsub.s32 %v4778, %v4780
      %v4782 = vrot.slane %v4760, %v4781
      %v4784 = vunpack.c.l.s4 1966171168
      %v4785 = vunpack.c.0.s8 %v4784
      %v4786 = vlaneseq
      %v4787 = vshrl.u32 %v4786, 7
      %v4788 = vsub.s32 %v4785, %v4787
      %v4789 = vrot.slane %v4761, %v4788
      %v4790 = vcombine.low %v4768, %v4775
      %v4791 = vcombine.low %v4782, %v4789
      %v4793 = vunpack.c.l.s4 1966171168
      %v4794 = vunpack.c.0.s8 %v4793
      %v4795 = vlaneseq
      %v4796 = vshrl.u32 %v4795, 7
      %v4797 = vsub.s32 %v4794, %v4796
      %v4798 = vrot.slane %v4790, %v4797
      %v4800 = vunpack.c.l.s4 1966171168
      %v4801 = vunpack.c.0.s8 %v4800
      %v4802 = vlaneseq
      %v4803 = vshrl.u32 %v4802, 7
      %v4804 = vsub.s32 %v4801, %v4803
      %v4805 = vrot.slane %v4791, %v4804
      %v4806 = vcombine.low %v4798, %v4805
      %v4808 = vmax.f32 %v3685, %v4806
      %v4809 = vsub.f32 %v3685, %v4808
      %v4810 = vmul.f32 %v4809, 1.442695
      %v4811 = vpow.pop %v4810
      %v4813 = vlaneseq
      %v4814 = vshrl.u32 %v4813, 7
      %v4815 = vsub.s32 0, %v4814
      %v4816 = vrot.slane %v4808, %v4815
      %v4817 = vlaneseq
      %v4818 = vshrl.u32 %v4817, 7
      %v4819 = vsub.s32 1, %v4818
      %v4820 = vrot.slane %v4808, %v4819
      %v4821 = vlaneseq
      %v4822 = vshrl.u32 %v4821, 7
      %v4823 = vsub.s32 2, %v4822
      %v4824 = vrot.slane %v4808, %v4823
      %v4825 = vlaneseq
      %v4826 = vshrl.u32 %v4825, 7
      %v4827 = vsub.s32 3, %v4826
      %v4828 = vrot.slane %v4808, %v4827
      %v4829 = vlaneseq
      %v4830 = vshrl.u32 %v4829, 7
      %v4831 = vsub.s32 4, %v4830
      %v4832 = vrot.slane %v4808, %v4831
      %v4833 = vlaneseq
      %v4834 = vshrl.u32 %v4833, 7
      %v4835 = vsub.s32 5, %v4834
      %v4836 = vrot.slane %v4808, %v4835
      %v4837 = vlaneseq
      %v4838 = vshrl.u32 %v4837, 7
      %v4839 = vsub.s32 6, %v4838
      %v4840 = vrot.slane %v4808, %v4839
      %v4841 = vlaneseq
      %v4842 = vshrl.u32 %v4841, 7
      %v4843 = vsub.s32 7, %v4842
      %v4844 = vrot.slane %v4808, %v4843
      %v4853 = vsub.f32 %v1028, %v4816
      %v4854 = vsub.f32 %v1030, %v4820
      %v4855 = vsub.f32 %v1701, %v4824
      %v4856 = vsub.f32 %v1703, %v4828
      %v4857 = vsub.f32 %v2374, %v4832
      %v4858 = vsub.f32 %v2376, %v4836
      %v4859 = vsub.f32 %v3047, %v4840
      %v4860 = vsub.f32 %v3049, %v4844
      %v4861 = vsub.f32 %v1032, %v4816
      %v4862 = vsub.f32 %v1034, %v4820
      %v4863 = vsub.f32 %v1705, %v4824
      %v4864 = vsub.f32 %v1707, %v4828
      %v4865 = vsub.f32 %v2378, %v4832
      %v4866 = vsub.f32 %v2380, %v4836
      %v4867 = vsub.f32 %v3051, %v4840
      %v4868 = vsub.f32 %v3053, %v4844
      %v4869 = vsub.f32 %v1038, %v4816
      %v4870 = vsub.f32 %v1040, %v4820
      %v4871 = vsub.f32 %v1711, %v4824
      %v4872 = vsub.f32 %v1713, %v4828
      %v4873 = vsub.f32 %v2384, %v4832
      %v4874 = vsub.f32 %v2386, %v4836
      %v4875 = vsub.f32 %v3057, %v4840
      %v4876 = vsub.f32 %v3059, %v4844
      %v4877 = vsub.f32 %v1042, %v4816
      %v4878 = vsub.f32 %v1044, %v4820
      %v4879 = vsub.f32 %v1715, %v4824
      %v4880 = vsub.f32 %v1717, %v4828
      %v4881 = vsub.f32 %v2388, %v4832
      %v4882 = vsub.f32 %v2390, %v4836
      %v4883 = vsub.f32 %v3061, %v4840
      %v4884 = vsub.f32 %v3063, %v4844
      %v4885 = vsub.f32 %v1048, %v4816
      %v4886 = vsub.f32 %v1050, %v4820
      %v4887 = vsub.f32 %v1721, %v4824
      %v4888 = vsub.f32 %v1723, %v4828
      %v4889 = vsub.f32 %v2394, %v4832
      %v4890 = vsub.f32 %v2396, %v4836
      %v4891 = vsub.f32 %v3067, %v4840
      %v4892 = vsub.f32 %v3069, %v4844
      %v4893 = vsub.f32 %v1052, %v4816
      %v4894 = vsub.f32 %v1054, %v4820
      %v4895 = vsub.f32 %v1725, %v4824
      %v4896 = vsub.f32 %v1727, %v4828
      %v4897 = vsub.f32 %v2398, %v4832
      %v4898 = vsub.f32 %v2400, %v4836
      %v4899 = vsub.f32 %v3071, %v4840
      %v4900 = vsub.f32 %v3073, %v4844
      %v4901 = vsub.f32 %v1058, %v4816
      %v4902 = vsub.f32 %v1060, %v4820
      %v4903 = vsub.f32 %v1731, %v4824
      %v4904 = vsub.f32 %v1733, %v4828
      %v4905 = vsub.f32 %v2404, %v4832
      %v4906 = vsub.f32 %v2406, %v4836
      %v4907 = vsub.f32 %v3077, %v4840
      %v4908 = vsub.f32 %v3079, %v4844
      %v4909 = vsub.f32 %v1062, %v4816
      %v4910 = vsub.f32 %v1064, %v4820
      %v4911 = vsub.f32 %v1735, %v4824
      %v4912 = vsub.f32 %v1737, %v4828
      %v4913 = vsub.f32 %v2408, %v4832
      %v4914 = vsub.f32 %v2410, %v4836
      %v4915 = vsub.f32 %v3081, %v4840
      %v4916 = vsub.f32 %v3083, %v4844
      %v4917 = vsub.f32 %v1068, %v4816
      %v4918 = vsub.f32 %v1070, %v4820
      %v4919 = vsub.f32 %v1741, %v4824
      %v4920 = vsub.f32 %v1743, %v4828
      %v4921 = vsub.f32 %v2414, %v4832
      %v4922 = vsub.f32 %v2416, %v4836
      %v4923 = vsub.f32 %v3087, %v4840
      %v4924 = vsub.f32 %v3089, %v4844
      %v4925 = vsub.f32 %v1072, %v4816
      %v4926 = vsub.f32 %v1074, %v4820
      %v4927 = vsub.f32 %v1745, %v4824
      %v4928 = vsub.f32 %v1747, %v4828
      %v4929 = vsub.f32 %v2418, %v4832
      %v4930 = vsub.f32 %v2420, %v4836
      %v4931 = vsub.f32 %v3091, %v4840
      %v4932 = vsub.f32 %v3093, %v4844
      %v4933 = vsub.f32 %v1078, %v4816
      %v4934 = vsub.f32 %v1080, %v4820
      %v4935 = vsub.f32 %v1751, %v4824
      %v4936 = vsub.f32 %v1753, %v4828
      %v4937 = vsub.f32 %v2424, %v4832
      %v4938 = vsub.f32 %v2426, %v4836
      %v4939 = vsub.f32 %v3097, %v4840
      %v4940 = vsub.f32 %v3099, %v4844
      %v4941 = vsub.f32 %v1082, %v4816
      %v4942 = vsub.f32 %v1084, %v4820
      %v4943 = vsub.f32 %v1755, %v4824
      %v4944 = vsub.f32 %v1757, %v4828
      %v4945 = vsub.f32 %v2428, %v4832
      %v4946 = vsub.f32 %v2430, %v4836
      %v4947 = vsub.f32 %v3101, %v4840
      %v4948 = vsub.f32 %v3103, %v4844
      %v4949 = vsub.f32 %v1088, %v4816
      %v4950 = vsub.f32 %v1090, %v4820
      %v4951 = vsub.f32 %v1761, %v4824
      %v4952 = vsub.f32 %v1763, %v4828
      %v4953 = vsub.f32 %v2434, %v4832
      %v4954 = vsub.f32 %v2436, %v4836
      %v4955 = vsub.f32 %v3107, %v4840
      %v4956 = vsub.f32 %v3109, %v4844
      %v4957 = vsub.f32 %v1092, %v4816
      %v4958 = vsub.f32 %v1094, %v4820
      %v4959 = vsub.f32 %v1765, %v4824
      %v4960 = vsub.f32 %v1767, %v4828
      %v4961 = vsub.f32 %v2438, %v4832
      %v4962 = vsub.f32 %v2440, %v4836
      %v4963 = vsub.f32 %v3111, %v4840
      %v4964 = vsub.f32 %v3113, %v4844
      %v4965 = vsub.f32 %v1098, %v4816
      %v4966 = vsub.f32 %v1100, %v4820
      %v4967 = vsub.f32 %v1771, %v4824
      %v4968 = vsub.f32 %v1773, %v4828
      %v4969 = vsub.f32 %v2444, %v4832
      %v4970 = vsub.f32 %v2446, %v4836
      %v4971 = vsub.f32 %v3117, %v4840
      %v4972 = vsub.f32 %v3119, %v4844
      %v4973 = vsub.f32 %v1102, %v4816
      %v4974 = vsub.f32 %v1104, %v4820
      %v4975 = vsub.f32 %v1775, %v4824
      %v4976 = vsub.f32 %v1777, %v4828
      %v4977 = vsub.f32 %v2448, %v4832
      %v4978 = vsub.f32 %v2450, %v4836
      %v4979 = vsub.f32 %v3121, %v4840
      %v4980 = vsub.f32 %v3123, %v4844
      %v4981 = vsub.f32 %v1108, %v4816
      %v4982 = vsub.f32 %v1110, %v4820
      %v4983 = vsub.f32 %v1781, %v4824
      %v4984 = vsub.f32 %v1783, %v4828
      %v4985 = vsub.f32 %v2454, %v4832
      %v4986 = vsub.f32 %v2456, %v4836
      %v4987 = vsub.f32 %v3127, %v4840
      %v4988 = vsub.f32 %v3129, %v4844
      %v4989 = vsub.f32 %v1112, %v4816
      %v4990 = vsub.f32 %v1114, %v4820
      %v4991 = vsub.f32 %v1785, %v4824
      %v4992 = vsub.f32 %v1787, %v4828
      %v4993 = vsub.f32 %v2458, %v4832
      %v4994 = vsub.f32 %v2460, %v4836
      %v4995 = vsub.f32 %v3131, %v4840
      %v4996 = vsub.f32 %v3133, %v4844
      %v4997 = vsub.f32 %v1118, %v4816
      %v4998 = vsub.f32 %v1120, %v4820
      %v4999 = vsub.f32 %v1791, %v4824
      %v5000 = vsub.f32 %v1793, %v4828
      %v5001 = vsub.f32 %v2464, %v4832
      %v5002 = vsub.f32 %v2466, %v4836
      %v5003 = vsub.f32 %v3137, %v4840
      %v5004 = vsub.f32 %v3139, %v4844
      %v5005 = vsub.f32 %v1122, %v4816
      %v5006 = vsub.f32 %v1124, %v4820
      %v5007 = vsub.f32 %v1795, %v4824
      %v5008 = vsub.f32 %v1797, %v4828
      %v5009 = vsub.f32 %v2468, %v4832
      %v5010 = vsub.f32 %v2470, %v4836
      %v5011 = vsub.f32 %v3141, %v4840
      %v5012 = vsub.f32 %v3143, %v4844
      %v5013 = vsub.f32 %v1128, %v4816
      %v5014 = vsub.f32 %v1130, %v4820
      %v5015 = vsub.f32 %v1801, %v4824
      %v5016 = vsub.f32 %v1803, %v4828
      %v5017 = vsub.f32 %v2474, %v4832
      %v5018 = vsub.f32 %v2476, %v4836
      %v5019 = vsub.f32 %v3147, %v4840
      %v5020 = vsub.f32 %v3149, %v4844
      %v5021 = vsub.f32 %v1132, %v4816
      %v5022 = vsub.f32 %v1134, %v4820
      %v5023 = vsub.f32 %v1805, %v4824
      %v5024 = vsub.f32 %v1807, %v4828
      %v5025 = vsub.f32 %v2478, %v4832
      %v5026 = vsub.f32 %v2480, %v4836
      %v5027 = vsub.f32 %v3151, %v4840
      %v5028 = vsub.f32 %v3153, %v4844
      %v5029 = vsub.f32 %v1138, %v4816
      %v5030 = vsub.f32 %v1140, %v4820
      %v5031 = vsub.f32 %v1811, %v4824
      %v5032 = vsub.f32 %v1813, %v4828
      %v5033 = vsub.f32 %v2484, %v4832
      %v5034 = vsub.f32 %v2486, %v4836
      %v5035 = vsub.f32 %v3157, %v4840
      %v5036 = vsub.f32 %v3159, %v4844
      %v5037 = vsub.f32 %v1142, %v4816
      %v5038 = vsub.f32 %v1144, %v4820
      %v5039 = vsub.f32 %v1815, %v4824
      %v5040 = vsub.f32 %v1817, %v4828
      %v5041 = vsub.f32 %v2488, %v4832
      %v5042 = vsub.f32 %v2490, %v4836
      %v5043 = vsub.f32 %v3161, %v4840
      %v5044 = vsub.f32 %v3163, %v4844
      %v5045 = vsub.f32 %v1148, %v4816
      %v5046 = vsub.f32 %v1150, %v4820
      %v5047 = vsub.f32 %v1821, %v4824
      %v5048 = vsub.f32 %v1823, %v4828
      %v5049 = vsub.f32 %v2494, %v4832
      %v5050 = vsub.f32 %v2496, %v4836
      %v5051 = vsub.f32 %v3167, %v4840
      %v5052 = vsub.f32 %v3169, %v4844
      %v5053 = vsub.f32 %v1152, %v4816
      %v5054 = vsub.f32 %v1154, %v4820
      %v5055 = vsub.f32 %v1825, %v4824
      %v5056 = vsub.f32 %v1827, %v4828
      %v5057 = vsub.f32 %v2498, %v4832
      %v5058 = vsub.f32 %v2500, %v4836
      %v5059 = vsub.f32 %v3171, %v4840
      %v5060 = vsub.f32 %v3173, %v4844
      %v5061 = vsub.f32 %v1158, %v4816
      %v5062 = vsub.f32 %v1160, %v4820
      %v5063 = vsub.f32 %v1831, %v4824
      %v5064 = vsub.f32 %v1833, %v4828
      %v5065 = vsub.f32 %v2504, %v4832
      %v5066 = vsub.f32 %v2506, %v4836
      %v5067 = vsub.f32 %v3177, %v4840
      %v5068 = vsub.f32 %v3179, %v4844
      %v5069 = vsub.f32 %v1162, %v4816
      %v5070 = vsub.f32 %v1164, %v4820
      %v5071 = vsub.f32 %v1835, %v4824
      %v5072 = vsub.f32 %v1837, %v4828
      %v5073 = vsub.f32 %v2508, %v4832
      %v5074 = vsub.f32 %v2510, %v4836
      %v5075 = vsub.f32 %v3181, %v4840
      %v5076 = vsub.f32 %v3183, %v4844
      %v5077 = vsub.f32 %v1168, %v4816
      %v5078 = vsub.f32 %v1170, %v4820
      %v5079 = vsub.f32 %v1841, %v4824
      %v5080 = vsub.f32 %v1843, %v4828
      %v5081 = vsub.f32 %v2514, %v4832
      %v5082 = vsub.f32 %v2516, %v4836
      %v5083 = vsub.f32 %v3187, %v4840
      %v5084 = vsub.f32 %v3189, %v4844
      %v5085 = vsub.f32 %v1172, %v4816
      %v5086 = vsub.f32 %v1174, %v4820
      %v5087 = vsub.f32 %v1845, %v4824
      %v5088 = vsub.f32 %v1847, %v4828
      %v5089 = vsub.f32 %v2518, %v4832
      %v5090 = vsub.f32 %v2520, %v4836
      %v5091 = vsub.f32 %v3191, %v4840
      %v5092 = vsub.f32 %v3193, %v4844
      %v5093 = vsub.f32 %v1178, %v4816
      %v5094 = vsub.f32 %v1180, %v4820
      %v5095 = vsub.f32 %v1851, %v4824
      %v5096 = vsub.f32 %v1853, %v4828
      %v5097 = vsub.f32 %v2524, %v4832
      %v5098 = vsub.f32 %v2526, %v4836
      %v5099 = vsub.f32 %v3197, %v4840
      %v5100 = vsub.f32 %v3199, %v4844
      %v5101 = vsub.f32 %v1182, %v4816
      %v5102 = vsub.f32 %v1184, %v4820
      %v5103 = vsub.f32 %v1855, %v4824
      %v5104 = vsub.f32 %v1857, %v4828
      %v5105 = vsub.f32 %v2528, %v4832
      %v5106 = vsub.f32 %v2530, %v4836
      %v5107 = vsub.f32 %v3201, %v4840
      %v5108 = vsub.f32 %v3203, %v4844
      %v5109 = vsub.f32 %v1188, %v4816
      %v5110 = vsub.f32 %v1190, %v4820
      %v5111 = vsub.f32 %v1861, %v4824
      %v5112 = vsub.f32 %v1863, %v4828
      %v5113 = vsub.f32 %v2534, %v4832
      %v5114 = vsub.f32 %v2536, %v4836
      %v5115 = vsub.f32 %v3207, %v4840
      %v5116 = vsub.f32 %v3209, %v4844
      %v5117 = vsub.f32 %v1192, %v4816
      %v5118 = vsub.f32 %v1194, %v4820
      %v5119 = vsub.f32 %v1865, %v4824
      %v5120 = vsub.f32 %v1867, %v4828
      %v5121 = vsub.f32 %v2538, %v4832
      %v5122 = vsub.f32 %v2540, %v4836
      %v5123 = vsub.f32 %v3211, %v4840
      %v5124 = vsub.f32 %v3213, %v4844
      %v5125 = vsub.f32 %v1198, %v4816
      %v5126 = vsub.f32 %v1200, %v4820
      %v5127 = vsub.f32 %v1871, %v4824
      %v5128 = vsub.f32 %v1873, %v4828
      %v5129 = vsub.f32 %v2544, %v4832
      %v5130 = vsub.f32 %v2546, %v4836
      %v5131 = vsub.f32 %v3217, %v4840
      %v5132 = vsub.f32 %v3219, %v4844
      %v5133 = vsub.f32 %v1202, %v4816
      %v5134 = vsub.f32 %v1204, %v4820
      %v5135 = vsub.f32 %v1875, %v4824
      %v5136 = vsub.f32 %v1877, %v4828
      %v5137 = vsub.f32 %v2548, %v4832
      %v5138 = vsub.f32 %v2550, %v4836
      %v5139 = vsub.f32 %v3221, %v4840
      %v5140 = vsub.f32 %v3223, %v4844
      %v5141 = vsub.f32 %v1208, %v4816
      %v5142 = vsub.f32 %v1210, %v4820
      %v5143 = vsub.f32 %v1881, %v4824
      %v5144 = vsub.f32 %v1883, %v4828
      %v5145 = vsub.f32 %v2554, %v4832
      %v5146 = vsub.f32 %v2556, %v4836
      %v5147 = vsub.f32 %v3227, %v4840
      %v5148 = vsub.f32 %v3229, %v4844
      %v5149 = vsub.f32 %v1212, %v4816
      %v5150 = vsub.f32 %v1214, %v4820
      %v5151 = vsub.f32 %v1885, %v4824
      %v5152 = vsub.f32 %v1887, %v4828
      %v5153 = vsub.f32 %v2558, %v4832
      %v5154 = vsub.f32 %v2560, %v4836
      %v5155 = vsub.f32 %v3231, %v4840
      %v5156 = vsub.f32 %v3233, %v4844
      %v5157 = vsub.f32 %v1218, %v4816
      %v5158 = vsub.f32 %v1220, %v4820
      %v5159 = vsub.f32 %v1891, %v4824
      %v5160 = vsub.f32 %v1893, %v4828
      %v5161 = vsub.f32 %v2564, %v4832
      %v5162 = vsub.f32 %v2566, %v4836
      %v5163 = vsub.f32 %v3237, %v4840
      %v5164 = vsub.f32 %v3239, %v4844
      %v5165 = vsub.f32 %v1222, %v4816
      %v5166 = vsub.f32 %v1224, %v4820
      %v5167 = vsub.f32 %v1895, %v4824
      %v5168 = vsub.f32 %v1897, %v4828
      %v5169 = vsub.f32 %v2568, %v4832
      %v5170 = vsub.f32 %v2570, %v4836
      %v5171 = vsub.f32 %v3241, %v4840
      %v5172 = vsub.f32 %v3243, %v4844
      %v5173 = vsub.f32 %v1228, %v4816
      %v5174 = vsub.f32 %v1230, %v4820
      %v5175 = vsub.f32 %v1901, %v4824
      %v5176 = vsub.f32 %v1903, %v4828
      %v5177 = vsub.f32 %v2574, %v4832
      %v5178 = vsub.f32 %v2576, %v4836
      %v5179 = vsub.f32 %v3247, %v4840
      %v5180 = vsub.f32 %v3249, %v4844
      %v5181 = vsub.f32 %v1232, %v4816
      %v5182 = vsub.f32 %v1234, %v4820
      %v5183 = vsub.f32 %v1905, %v4824
      %v5184 = vsub.f32 %v1907, %v4828
      %v5185 = vsub.f32 %v2578, %v4832
      %v5186 = vsub.f32 %v2580, %v4836
      %v5187 = vsub.f32 %v3251, %v4840
      %v5188 = vsub.f32 %v3253, %v4844
      %v5189 = vsub.f32 %v1238, %v4816
      %v5190 = vsub.f32 %v1240, %v4820
      %v5191 = vsub.f32 %v1911, %v4824
      %v5192 = vsub.f32 %v1913, %v4828
      %v5193 = vsub.f32 %v2584, %v4832
      %v5194 = vsub.f32 %v2586, %v4836
      %v5195 = vsub.f32 %v3257, %v4840
      %v5196 = vsub.f32 %v3259, %v4844
      %v5197 = vsub.f32 %v1242, %v4816
      %v5198 = vsub.f32 %v1244, %v4820
      %v5199 = vsub.f32 %v1915, %v4824
      %v5200 = vsub.f32 %v1917, %v4828
      %v5201 = vsub.f32 %v2588, %v4832
      %v5202 = vsub.f32 %v2590, %v4836
      %v5203 = vsub.f32 %v3261, %v4840
      %v5204 = vsub.f32 %v3263, %v4844
      %v5205 = vsub.f32 %v1248, %v4816
      %v5206 = vsub.f32 %v1250, %v4820
      %v5207 = vsub.f32 %v1921, %v4824
      %v5208 = vsub.f32 %v1923, %v4828
      %v5209 = vsub.f32 %v2594, %v4832
      %v5210 = vsub.f32 %v2596, %v4836
      %v5211 = vsub.f32 %v3267, %v4840
      %v5212 = vsub.f32 %v3269, %v4844
      %v5213 = vsub.f32 %v1252, %v4816
      %v5214 = vsub.f32 %v1254, %v4820
      %v5215 = vsub.f32 %v1925, %v4824
      %v5216 = vsub.f32 %v1927, %v4828
      %v5217 = vsub.f32 %v2598, %v4832
      %v5218 = vsub.f32 %v2600, %v4836
      %v5219 = vsub.f32 %v3271, %v4840
      %v5220 = vsub.f32 %v3273, %v4844
      %v5221 = vsub.f32 %v1258, %v4816
      %v5222 = vsub.f32 %v1260, %v4820
      %v5223 = vsub.f32 %v1931, %v4824
      %v5224 = vsub.f32 %v1933, %v4828
      %v5225 = vsub.f32 %v2604, %v4832
      %v5226 = vsub.f32 %v2606, %v4836
      %v5227 = vsub.f32 %v3277, %v4840
      %v5228 = vsub.f32 %v3279, %v4844
      %v5229 = vsub.f32 %v1262, %v4816
      %v5230 = vsub.f32 %v1264, %v4820
      %v5231 = vsub.f32 %v1935, %v4824
      %v5232 = vsub.f32 %v1937, %v4828
      %v5233 = vsub.f32 %v2608, %v4832
      %v5234 = vsub.f32 %v2610, %v4836
      %v5235 = vsub.f32 %v3281, %v4840
      %v5236 = vsub.f32 %v3283, %v4844
      %v5237 = vsub.f32 %v1268, %v4816
      %v5238 = vsub.f32 %v1270, %v4820
      %v5239 = vsub.f32 %v1941, %v4824
      %v5240 = vsub.f32 %v1943, %v4828
      %v5241 = vsub.f32 %v2614, %v4832
      %v5242 = vsub.f32 %v2616, %v4836
      %v5243 = vsub.f32 %v3287, %v4840
      %v5244 = vsub.f32 %v3289, %v4844
      %v5245 = vsub.f32 %v1272, %v4816
      %v5246 = vsub.f32 %v1274, %v4820
      %v5247 = vsub.f32 %v1945, %v4824
      %v5248 = vsub.f32 %v1947, %v4828
      %v5249 = vsub.f32 %v2618, %v4832
      %v5250 = vsub.f32 %v2620, %v4836
      %v5251 = vsub.f32 %v3291, %v4840
      %v5252 = vsub.f32 %v3293, %v4844
      %v5253 = vsub.f32 %v1278, %v4816
      %v5254 = vsub.f32 %v1280, %v4820
      %v5255 = vsub.f32 %v1951, %v4824
      %v5256 = vsub.f32 %v1953, %v4828
      %v5257 = vsub.f32 %v2624, %v4832
      %v5258 = vsub.f32 %v2626, %v4836
      %v5259 = vsub.f32 %v3297, %v4840
      %v5260 = vsub.f32 %v3299, %v4844
      %v5261 = vsub.f32 %v1282, %v4816
      %v5262 = vsub.f32 %v1284, %v4820
      %v5263 = vsub.f32 %v1955, %v4824
      %v5264 = vsub.f32 %v1957, %v4828
      %v5265 = vsub.f32 %v2628, %v4832
      %v5266 = vsub.f32 %v2630, %v4836
      %v5267 = vsub.f32 %v3301, %v4840
      %v5268 = vsub.f32 %v3303, %v4844
      %v5269 = vsub.f32 %v1288, %v4816
      %v5270 = vsub.f32 %v1290, %v4820
      %v5271 = vsub.f32 %v1961, %v4824
      %v5272 = vsub.f32 %v1963, %v4828
      %v5273 = vsub.f32 %v2634, %v4832
      %v5274 = vsub.f32 %v2636, %v4836
      %v5275 = vsub.f32 %v3307, %v4840
      %v5276 = vsub.f32 %v3309, %v4844
      %v5277 = vsub.f32 %v1292, %v4816
      %v5278 = vsub.f32 %v1294, %v4820
      %v5279 = vsub.f32 %v1965, %v4824
      %v5280 = vsub.f32 %v1967, %v4828
      %v5281 = vsub.f32 %v2638, %v4832
      %v5282 = vsub.f32 %v2640, %v4836
      %v5283 = vsub.f32 %v3311, %v4840
      %v5284 = vsub.f32 %v3313, %v4844
      %v5285 = vsub.f32 %v1298, %v4816
      %v5286 = vsub.f32 %v1300, %v4820
      %v5287 = vsub.f32 %v1971, %v4824
      %v5288 = vsub.f32 %v1973, %v4828
      %v5289 = vsub.f32 %v2644, %v4832
      %v5290 = vsub.f32 %v2646, %v4836
      %v5291 = vsub.f32 %v3317, %v4840
      %v5292 = vsub.f32 %v3319, %v4844
      %v5293 = vsub.f32 %v1302, %v4816
      %v5294 = vsub.f32 %v1304, %v4820
      %v5295 = vsub.f32 %v1975, %v4824
      %v5296 = vsub.f32 %v1977, %v4828
      %v5297 = vsub.f32 %v2648, %v4832
      %v5298 = vsub.f32 %v2650, %v4836
      %v5299 = vsub.f32 %v3321, %v4840
      %v5300 = vsub.f32 %v3323, %v4844
      %v5301 = vsub.f32 %v1308, %v4816
      %v5302 = vsub.f32 %v1310, %v4820
      %v5303 = vsub.f32 %v1981, %v4824
      %v5304 = vsub.f32 %v1983, %v4828
      %v5305 = vsub.f32 %v2654, %v4832
      %v5306 = vsub.f32 %v2656, %v4836
      %v5307 = vsub.f32 %v3327, %v4840
      %v5308 = vsub.f32 %v3329, %v4844
      %v5309 = vsub.f32 %v1312, %v4816
      %v5310 = vsub.f32 %v1314, %v4820
      %v5311 = vsub.f32 %v1985, %v4824
      %v5312 = vsub.f32 %v1987, %v4828
      %v5313 = vsub.f32 %v2658, %v4832
      %v5314 = vsub.f32 %v2660, %v4836
      %v5315 = vsub.f32 %v3331, %v4840
      %v5316 = vsub.f32 %v3333, %v4844
      %v5317 = vsub.f32 %v1318, %v4816
      %v5318 = vsub.f32 %v1320, %v4820
      %v5319 = vsub.f32 %v1991, %v4824
      %v5320 = vsub.f32 %v1993, %v4828
      %v5321 = vsub.f32 %v2664, %v4832
      %v5322 = vsub.f32 %v2666, %v4836
      %v5323 = vsub.f32 %v3337, %v4840
      %v5324 = vsub.f32 %v3339, %v4844
      %v5325 = vsub.f32 %v1322, %v4816
      %v5326 = vsub.f32 %v1324, %v4820
      %v5327 = vsub.f32 %v1995, %v4824
      %v5328 = vsub.f32 %v1997, %v4828
      %v5329 = vsub.f32 %v2668, %v4832
      %v5330 = vsub.f32 %v2670, %v4836
      %v5331 = vsub.f32 %v3341, %v4840
      %v5332 = vsub.f32 %v3343, %v4844
      %v5333 = vsub.f32 %v1328, %v4816
      %v5334 = vsub.f32 %v1330, %v4820
      %v5335 = vsub.f32 %v2001, %v4824
      %v5336 = vsub.f32 %v2003, %v4828
      %v5337 = vsub.f32 %v2674, %v4832
      %v5338 = vsub.f32 %v2676, %v4836
      %v5339 = vsub.f32 %v3347, %v4840
      %v5340 = vsub.f32 %v3349, %v4844
      %v5341 = vsub.f32 %v1332, %v4816
      %v5342 = vsub.f32 %v1334, %v4820
      %v5343 = vsub.f32 %v2005, %v4824
      %v5344 = vsub.f32 %v2007, %v4828
      %v5345 = vsub.f32 %v2678, %v4832
      %v5346 = vsub.f32 %v2680, %v4836
      %v5347 = vsub.f32 %v3351, %v4840
      %v5348 = vsub.f32 %v3353, %v4844
      %v5349 = vsub.f32 %v1338, %v4816
      %v5350 = vsub.f32 %v1340, %v4820
      %v5351 = vsub.f32 %v2011, %v4824
      %v5352 = vsub.f32 %v2013, %v4828
      %v5353 = vsub.f32 %v2684, %v4832
      %v5354 = vsub.f32 %v2686, %v4836
      %v5355 = vsub.f32 %v3357, %v4840
      %v5356 = vsub.f32 %v3359, %v4844
      %v5357 = vsub.f32 %v1342, %v4816
      %v5358 = vsub.f32 %v1344, %v4820
      %v5359 = vsub.f32 %v2015, %v4824
      %v5360 = vsub.f32 %v2017, %v4828
      %v5361 = vsub.f32 %v2688, %v4832
      %v5362 = vsub.f32 %v2690, %v4836
      %v5363 = vsub.f32 %v3361, %v4840
      %v5364 = vsub.f32 %v3363, %v4844
      %v5365 = vsub.f32 %v1348, %v4816
      %v5366 = vsub.f32 %v1350, %v4820
      %v5367 = vsub.f32 %v2021, %v4824
      %v5368 = vsub.f32 %v2023, %v4828
      %v5369 = vsub.f32 %v2694, %v4832
      %v5370 = vsub.f32 %v2696, %v4836
      %v5371 = vsub.f32 %v3367, %v4840
      %v5372 = vsub.f32 %v3369, %v4844
      %v5373 = vsub.f32 %v1352, %v4816
      %v5374 = vsub.f32 %v1354, %v4820
      %v5375 = vsub.f32 %v2025, %v4824
      %v5376 = vsub.f32 %v2027, %v4828
      %v5377 = vsub.f32 %v2698, %v4832
      %v5378 = vsub.f32 %v2700, %v4836
      %v5379 = vsub.f32 %v3371, %v4840
      %v5380 = vsub.f32 %v3373, %v4844
      %v5381 = vsub.f32 %v1358, %v4816
      %v5382 = vsub.f32 %v1360, %v4820
      %v5383 = vsub.f32 %v2031, %v4824
      %v5384 = vsub.f32 %v2033, %v4828
      %v5385 = vsub.f32 %v2704, %v4832
      %v5386 = vsub.f32 %v2706, %v4836
      %v5387 = vsub.f32 %v3377, %v4840
      %v5388 = vsub.f32 %v3379, %v4844
      %v5389 = vsub.f32 %v1362, %v4816
      %v5390 = vsub.f32 %v1364, %v4820
      %v5391 = vsub.f32 %v2035, %v4824
      %v5392 = vsub.f32 %v2037, %v4828
      %v5393 = vsub.f32 %v2708, %v4832
      %v5394 = vsub.f32 %v2710, %v4836
      %v5395 = vsub.f32 %v3381, %v4840
      %v5396 = vsub.f32 %v3383, %v4844
      %v5397 = vsub.f32 %v1368, %v4816
      %v5398 = vsub.f32 %v1370, %v4820
      %v5399 = vsub.f32 %v2041, %v4824
      %v5400 = vsub.f32 %v2043, %v4828
      %v5401 = vsub.f32 %v2714, %v4832
      %v5402 = vsub.f32 %v2716, %v4836
      %v5403 = vsub.f32 %v3387, %v4840
      %v5404 = vsub.f32 %v3389, %v4844
      %v5405 = vsub.f32 %v1372, %v4816
      %v5406 = vsub.f32 %v1374, %v4820
      %v5407 = vsub.f32 %v2045, %v4824
      %v5408 = vsub.f32 %v2047, %v4828
      %v5409 = vsub.f32 %v2718, %v4832
      %v5410 = vsub.f32 %v2720, %v4836
      %v5411 = vsub.f32 %v3391, %v4840
      %v5412 = vsub.f32 %v3393, %v4844
      %v5413 = vsub.f32 %v1378, %v4816
      %v5414 = vsub.f32 %v1380, %v4820
      %v5415 = vsub.f32 %v2051, %v4824
      %v5416 = vsub.f32 %v2053, %v4828
      %v5417 = vsub.f32 %v2724, %v4832
      %v5418 = vsub.f32 %v2726, %v4836
      %v5419 = vsub.f32 %v3397, %v4840
      %v5420 = vsub.f32 %v3399, %v4844
      %v5421 = vsub.f32 %v1382, %v4816
      %v5422 = vsub.f32 %v1384, %v4820
      %v5423 = vsub.f32 %v2055, %v4824
      %v5424 = vsub.f32 %v2057, %v4828
      %v5425 = vsub.f32 %v2728, %v4832
      %v5426 = vsub.f32 %v2730, %v4836
      %v5427 = vsub.f32 %v3401, %v4840
      %v5428 = vsub.f32 %v3403, %v4844
      %v5429 = vsub.f32 %v1388, %v4816
      %v5430 = vsub.f32 %v1390, %v4820
      %v5431 = vsub.f32 %v2061, %v4824
      %v5432 = vsub.f32 %v2063, %v4828
      %v5433 = vsub.f32 %v2734, %v4832
      %v5434 = vsub.f32 %v2736, %v4836
      %v5435 = vsub.f32 %v3407, %v4840
      %v5436 = vsub.f32 %v3409, %v4844
      %v5437 = vsub.f32 %v1392, %v4816
      %v5438 = vsub.f32 %v1394, %v4820
      %v5439 = vsub.f32 %v2065, %v4824
      %v5440 = vsub.f32 %v2067, %v4828
      %v5441 = vsub.f32 %v2738, %v4832
      %v5442 = vsub.f32 %v2740, %v4836
      %v5443 = vsub.f32 %v3411, %v4840
      %v5444 = vsub.f32 %v3413, %v4844
      %v5445 = vsub.f32 %v1398, %v4816
      %v5446 = vsub.f32 %v1400, %v4820
      %v5447 = vsub.f32 %v2071, %v4824
      %v5448 = vsub.f32 %v2073, %v4828
      %v5449 = vsub.f32 %v2744, %v4832
      %v5450 = vsub.f32 %v2746, %v4836
      %v5451 = vsub.f32 %v3417, %v4840
      %v5452 = vsub.f32 %v3419, %v4844
      %v5453 = vsub.f32 %v1402, %v4816
      %v5454 = vsub.f32 %v1404, %v4820
      %v5455 = vsub.f32 %v2075, %v4824
      %v5456 = vsub.f32 %v2077, %v4828
      %v5457 = vsub.f32 %v2748, %v4832
      %v5458 = vsub.f32 %v2750, %v4836
      %v5459 = vsub.f32 %v3421, %v4840
      %v5460 = vsub.f32 %v3423, %v4844
      %v5461 = vsub.f32 %v1408, %v4816
      %v5462 = vsub.f32 %v1410, %v4820
      %v5463 = vsub.f32 %v2081, %v4824
      %v5464 = vsub.f32 %v2083, %v4828
      %v5465 = vsub.f32 %v2754, %v4832
      %v5466 = vsub.f32 %v2756, %v4836
      %v5467 = vsub.f32 %v3427, %v4840
      %v5468 = vsub.f32 %v3429, %v4844
      %v5469 = vsub.f32 %v1412, %v4816
      %v5470 = vsub.f32 %v1414, %v4820
      %v5471 = vsub.f32 %v2085, %v4824
      %v5472 = vsub.f32 %v2087, %v4828
      %v5473 = vsub.f32 %v2758, %v4832
      %v5474 = vsub.f32 %v2760, %v4836
      %v5475 = vsub.f32 %v3431, %v4840
      %v5476 = vsub.f32 %v3433, %v4844
      %v5477 = vsub.f32 %v1418, %v4816
      %v5478 = vsub.f32 %v1420, %v4820
      %v5479 = vsub.f32 %v2091, %v4824
      %v5480 = vsub.f32 %v2093, %v4828
      %v5481 = vsub.f32 %v2764, %v4832
      %v5482 = vsub.f32 %v2766, %v4836
      %v5483 = vsub.f32 %v3437, %v4840
      %v5484 = vsub.f32 %v3439, %v4844
      %v5485 = vsub.f32 %v1422, %v4816
      %v5486 = vsub.f32 %v1424, %v4820
      %v5487 = vsub.f32 %v2095, %v4824
      %v5488 = vsub.f32 %v2097, %v4828
      %v5489 = vsub.f32 %v2768, %v4832
      %v5490 = vsub.f32 %v2770, %v4836
      %v5491 = vsub.f32 %v3441, %v4840
      %v5492 = vsub.f32 %v3443, %v4844
      %v5493 = vsub.f32 %v1428, %v4816
      %v5494 = vsub.f32 %v1430, %v4820
      %v5495 = vsub.f32 %v2101, %v4824
      %v5496 = vsub.f32 %v2103, %v4828
      %v5497 = vsub.f32 %v2774, %v4832
      %v5498 = vsub.f32 %v2776, %v4836
      %v5499 = vsub.f32 %v3447, %v4840
      %v5500 = vsub.f32 %v3449, %v4844
      %v5501 = vsub.f32 %v1432, %v4816
      %v5502 = vsub.f32 %v1434, %v4820
      %v5503 = vsub.f32 %v2105, %v4824
      %v5504 = vsub.f32 %v2107, %v4828
      %v5505 = vsub.f32 %v2778, %v4832
      %v5506 = vsub.f32 %v2780, %v4836
      %v5507 = vsub.f32 %v3451, %v4840
      %v5508 = vsub.f32 %v3453, %v4844
      %v5509 = vsub.f32 %v1438, %v4816
      %v5510 = vsub.f32 %v1440, %v4820
      %v5511 = vsub.f32 %v2111, %v4824
      %v5512 = vsub.f32 %v2113, %v4828
      %v5513 = vsub.f32 %v2784, %v4832
      %v5514 = vsub.f32 %v2786, %v4836
      %v5515 = vsub.f32 %v3457, %v4840
      %v5516 = vsub.f32 %v3459, %v4844
      %v5517 = vsub.f32 %v1442, %v4816
      %v5518 = vsub.f32 %v1444, %v4820
      %v5519 = vsub.f32 %v2115, %v4824
      %v5520 = vsub.f32 %v2117, %v4828
      %v5521 = vsub.f32 %v2788, %v4832
      %v5522 = vsub.f32 %v2790, %v4836
      %v5523 = vsub.f32 %v3461, %v4840
      %v5524 = vsub.f32 %v3463, %v4844
      %v5525 = vsub.f32 %v1448, %v4816
      %v5526 = vsub.f32 %v1450, %v4820
      %v5527 = vsub.f32 %v2121, %v4824
      %v5528 = vsub.f32 %v2123, %v4828
      %v5529 = vsub.f32 %v2794, %v4832
      %v5530 = vsub.f32 %v2796, %v4836
      %v5531 = vsub.f32 %v3467, %v4840
      %v5532 = vsub.f32 %v3469, %v4844
      %v5533 = vsub.f32 %v1452, %v4816
      %v5534 = vsub.f32 %v1454, %v4820
      %v5535 = vsub.f32 %v2125, %v4824
      %v5536 = vsub.f32 %v2127, %v4828
      %v5537 = vsub.f32 %v2798, %v4832
      %v5538 = vsub.f32 %v2800, %v4836
      %v5539 = vsub.f32 %v3471, %v4840
      %v5540 = vsub.f32 %v3473, %v4844
      %v5541 = vsub.f32 %v1458, %v4816
      %v5542 = vsub.f32 %v1460, %v4820
      %v5543 = vsub.f32 %v2131, %v4824
      %v5544 = vsub.f32 %v2133, %v4828
      %v5545 = vsub.f32 %v2804, %v4832
      %v5546 = vsub.f32 %v2806, %v4836
      %v5547 = vsub.f32 %v3477, %v4840
      %v5548 = vsub.f32 %v3479, %v4844
      %v5549 = vsub.f32 %v1462, %v4816
      %v5550 = vsub.f32 %v1464, %v4820
      %v5551 = vsub.f32 %v2135, %v4824
      %v5552 = vsub.f32 %v2137, %v4828
      %v5553 = vsub.f32 %v2808, %v4832
      %v5554 = vsub.f32 %v2810, %v4836
      %v5555 = vsub.f32 %v3481, %v4840
      %v5556 = vsub.f32 %v3483, %v4844
      %v5557 = vsub.f32 %v1468, %v4816
      %v5558 = vsub.f32 %v1470, %v4820
      %v5559 = vsub.f32 %v2141, %v4824
      %v5560 = vsub.f32 %v2143, %v4828
      %v5561 = vsub.f32 %v2814, %v4832
      %v5562 = vsub.f32 %v2816, %v4836
      %v5563 = vsub.f32 %v3487, %v4840
      %v5564 = vsub.f32 %v3489, %v4844
      %v5565 = vsub.f32 %v1472, %v4816
      %v5566 = vsub.f32 %v1474, %v4820
      %v5567 = vsub.f32 %v2145, %v4824
      %v5568 = vsub.f32 %v2147, %v4828
      %v5569 = vsub.f32 %v2818, %v4832
      %v5570 = vsub.f32 %v2820, %v4836
      %v5571 = vsub.f32 %v3491, %v4840
      %v5572 = vsub.f32 %v3493, %v4844
      %v5573 = vsub.f32 %v1478, %v4816
      %v5574 = vsub.f32 %v1480, %v4820
      %v5575 = vsub.f32 %v2151, %v4824
      %v5576 = vsub.f32 %v2153, %v4828
      %v5577 = vsub.f32 %v2824, %v4832
      %v5578 = vsub.f32 %v2826, %v4836
      %v5579 = vsub.f32 %v3497, %v4840
      %v5580 = vsub.f32 %v3499, %v4844
      %v5581 = vsub.f32 %v1482, %v4816
      %v5582 = vsub.f32 %v1484, %v4820
      %v5583 = vsub.f32 %v2155, %v4824
      %v5584 = vsub.f32 %v2157, %v4828
      %v5585 = vsub.f32 %v2828, %v4832
      %v5586 = vsub.f32 %v2830, %v4836
      %v5587 = vsub.f32 %v3501, %v4840
      %v5588 = vsub.f32 %v3503, %v4844
      %v5589 = vsub.f32 %v1488, %v4816
      %v5590 = vsub.f32 %v1490, %v4820
      %v5591 = vsub.f32 %v2161, %v4824
      %v5592 = vsub.f32 %v2163, %v4828
      %v5593 = vsub.f32 %v2834, %v4832
      %v5594 = vsub.f32 %v2836, %v4836
      %v5595 = vsub.f32 %v3507, %v4840
      %v5596 = vsub.f32 %v3509, %v4844
      %v5597 = vsub.f32 %v1492, %v4816
      %v5598 = vsub.f32 %v1494, %v4820
      %v5599 = vsub.f32 %v2165, %v4824
      %v5600 = vsub.f32 %v2167, %v4828
      %v5601 = vsub.f32 %v2838, %v4832
      %v5602 = vsub.f32 %v2840, %v4836
      %v5603 = vsub.f32 %v3511, %v4840
      %v5604 = vsub.f32 %v3513, %v4844
      %v5605 = vsub.f32 %v1498, %v4816
      %v5606 = vsub.f32 %v1500, %v4820
      %v5607 = vsub.f32 %v2171, %v4824
      %v5608 = vsub.f32 %v2173, %v4828
      %v5609 = vsub.f32 %v2844, %v4832
      %v5610 = vsub.f32 %v2846, %v4836
      %v5611 = vsub.f32 %v3517, %v4840
      %v5612 = vsub.f32 %v3519, %v4844
      %v5613 = vsub.f32 %v1502, %v4816
      %v5614 = vsub.f32 %v1504, %v4820
      %v5615 = vsub.f32 %v2175, %v4824
      %v5616 = vsub.f32 %v2177, %v4828
      %v5617 = vsub.f32 %v2848, %v4832
      %v5618 = vsub.f32 %v2850, %v4836
      %v5619 = vsub.f32 %v3521, %v4840
      %v5620 = vsub.f32 %v3523, %v4844
      %v5621 = vsub.f32 %v1508, %v4816
      %v5622 = vsub.f32 %v1510, %v4820
      %v5623 = vsub.f32 %v2181, %v4824
      %v5624 = vsub.f32 %v2183, %v4828
      %v5625 = vsub.f32 %v2854, %v4832
      %v5626 = vsub.f32 %v2856, %v4836
      %v5627 = vsub.f32 %v3527, %v4840
      %v5628 = vsub.f32 %v3529, %v4844
      %v5629 = vsub.f32 %v1512, %v4816
      %v5630 = vsub.f32 %v1514, %v4820
      %v5631 = vsub.f32 %v2185, %v4824
      %v5632 = vsub.f32 %v2187, %v4828
      %v5633 = vsub.f32 %v2858, %v4832
      %v5634 = vsub.f32 %v2860, %v4836
      %v5635 = vsub.f32 %v3531, %v4840
      %v5636 = vsub.f32 %v3533, %v4844
      %v5637 = vsub.f32 %v1518, %v4816
      %v5638 = vsub.f32 %v1520, %v4820
      %v5639 = vsub.f32 %v2191, %v4824
      %v5640 = vsub.f32 %v2193, %v4828
      %v5641 = vsub.f32 %v2864, %v4832
      %v5642 = vsub.f32 %v2866, %v4836
      %v5643 = vsub.f32 %v3537, %v4840
      %v5644 = vsub.f32 %v3539, %v4844
      %v5645 = vsub.f32 %v1522, %v4816
      %v5646 = vsub.f32 %v1524, %v4820
      %v5647 = vsub.f32 %v2195, %v4824
      %v5648 = vsub.f32 %v2197, %v4828
      %v5649 = vsub.f32 %v2868, %v4832
      %v5650 = vsub.f32 %v2870, %v4836
      %v5651 = vsub.f32 %v3541, %v4840
      %v5652 = vsub.f32 %v3543, %v4844
      %v5653 = vsub.f32 %v1528, %v4816
      %v5654 = vsub.f32 %v1530, %v4820
      %v5655 = vsub.f32 %v2201, %v4824
      %v5656 = vsub.f32 %v2203, %v4828
      %v5657 = vsub.f32 %v2874, %v4832
      %v5658 = vsub.f32 %v2876, %v4836
      %v5659 = vsub.f32 %v3547, %v4840
      %v5660 = vsub.f32 %v3549, %v4844
      %v5661 = vsub.f32 %v1532, %v4816
      %v5662 = vsub.f32 %v1534, %v4820
      %v5663 = vsub.f32 %v2205, %v4824
      %v5664 = vsub.f32 %v2207, %v4828
      %v5665 = vsub.f32 %v2878, %v4832
      %v5666 = vsub.f32 %v2880, %v4836
      %v5667 = vsub.f32 %v3551, %v4840
      %v5668 = vsub.f32 %v3553, %v4844
      %v5669 = vsub.f32 %v1538, %v4816
      %v5670 = vsub.f32 %v1540, %v4820
      %v5671 = vsub.f32 %v2211, %v4824
      %v5672 = vsub.f32 %v2213, %v4828
      %v5673 = vsub.f32 %v2884, %v4832
      %v5674 = vsub.f32 %v2886, %v4836
      %v5675 = vsub.f32 %v3557, %v4840
      %v5676 = vsub.f32 %v3559, %v4844
      %v5677 = vsub.f32 %v1542, %v4816
      %v5678 = vsub.f32 %v1544, %v4820
      %v5679 = vsub.f32 %v2215, %v4824
      %v5680 = vsub.f32 %v2217, %v4828
      %v5681 = vsub.f32 %v2888, %v4832
      %v5682 = vsub.f32 %v2890, %v4836
      %v5683 = vsub.f32 %v3561, %v4840
      %v5684 = vsub.f32 %v3563, %v4844
      %v5685 = vsub.f32 %v1548, %v4816
      %v5686 = vsub.f32 %v1550, %v4820
      %v5687 = vsub.f32 %v2221, %v4824
      %v5688 = vsub.f32 %v2223, %v4828
      %v5689 = vsub.f32 %v2894, %v4832
      %v5690 = vsub.f32 %v2896, %v4836
      %v5691 = vsub.f32 %v3567, %v4840
      %v5692 = vsub.f32 %v3569, %v4844
      %v5693 = vsub.f32 %v1552, %v4816
      %v5694 = vsub.f32 %v1554, %v4820
      %v5695 = vsub.f32 %v2225, %v4824
      %v5696 = vsub.f32 %v2227, %v4828
      %v5697 = vsub.f32 %v2898, %v4832
      %v5698 = vsub.f32 %v2900, %v4836
      %v5699 = vsub.f32 %v3571, %v4840
      %v5700 = vsub.f32 %v3573, %v4844
      %v5701 = vsub.f32 %v1558, %v4816
      %v5702 = vsub.f32 %v1560, %v4820
      %v5703 = vsub.f32 %v2231, %v4824
      %v5704 = vsub.f32 %v2233, %v4828
      %v5705 = vsub.f32 %v2904, %v4832
      %v5706 = vsub.f32 %v2906, %v4836
      %v5707 = vsub.f32 %v3577, %v4840
      %v5708 = vsub.f32 %v3579, %v4844
      %v5709 = vsub.f32 %v1562, %v4816
      %v5710 = vsub.f32 %v1564, %v4820
      %v5711 = vsub.f32 %v2235, %v4824
      %v5712 = vsub.f32 %v2237, %v4828
      %v5713 = vsub.f32 %v2908, %v4832
      %v5714 = vsub.f32 %v2910, %v4836
      %v5715 = vsub.f32 %v3581, %v4840
      %v5716 = vsub.f32 %v3583, %v4844
      %v5717 = vsub.f32 %v1568, %v4816
      %v5718 = vsub.f32 %v1570, %v4820
      %v5719 = vsub.f32 %v2241, %v4824
      %v5720 = vsub.f32 %v2243, %v4828
      %v5721 = vsub.f32 %v2914, %v4832
      %v5722 = vsub.f32 %v2916, %v4836
      %v5723 = vsub.f32 %v3587, %v4840
      %v5724 = vsub.f32 %v3589, %v4844
      %v5725 = vsub.f32 %v1572, %v4816
      %v5726 = vsub.f32 %v1574, %v4820
      %v5727 = vsub.f32 %v2245, %v4824
      %v5728 = vsub.f32 %v2247, %v4828
      %v5729 = vsub.f32 %v2918, %v4832
      %v5730 = vsub.f32 %v2920, %v4836
      %v5731 = vsub.f32 %v3591, %v4840
      %v5732 = vsub.f32 %v3593, %v4844
      %v5733 = vsub.f32 %v1578, %v4816
      %v5734 = vsub.f32 %v1580, %v4820
      %v5735 = vsub.f32 %v2251, %v4824
      %v5736 = vsub.f32 %v2253, %v4828
      %v5737 = vsub.f32 %v2924, %v4832
      %v5738 = vsub.f32 %v2926, %v4836
      %v5739 = vsub.f32 %v3597, %v4840
      %v5740 = vsub.f32 %v3599, %v4844
      %v5741 = vsub.f32 %v1582, %v4816
      %v5742 = vsub.f32 %v1584, %v4820
      %v5743 = vsub.f32 %v2255, %v4824
      %v5744 = vsub.f32 %v2257, %v4828
      %v5745 = vsub.f32 %v2928, %v4832
      %v5746 = vsub.f32 %v2930, %v4836
      %v5747 = vsub.f32 %v3601, %v4840
      %v5748 = vsub.f32 %v3603, %v4844
      %v5749 = vsub.f32 %v1588, %v4816
      %v5750 = vsub.f32 %v1590, %v4820
      %v5751 = vsub.f32 %v2261, %v4824
      %v5752 = vsub.f32 %v2263, %v4828
      %v5753 = vsub.f32 %v2934, %v4832
      %v5754 = vsub.f32 %v2936, %v4836
      %v5755 = vsub.f32 %v3607, %v4840
      %v5756 = vsub.f32 %v3609, %v4844
      %v5757 = vsub.f32 %v1592, %v4816
      %v5758 = vsub.f32 %v1594, %v4820
      %v5759 = vsub.f32 %v2265, %v4824
      %v5760 = vsub.f32 %v2267, %v4828
      %v5761 = vsub.f32 %v2938, %v4832
      %v5762 = vsub.f32 %v2940, %v4836
      %v5763 = vsub.f32 %v3611, %v4840
      %v5764 = vsub.f32 %v3613, %v4844
      %v5765 = vsub.f32 %v1598, %v4816
      %v5766 = vsub.f32 %v1600, %v4820
      %v5767 = vsub.f32 %v2271, %v4824
      %v5768 = vsub.f32 %v2273, %v4828
      %v5769 = vsub.f32 %v2944, %v4832
      %v5770 = vsub.f32 %v2946, %v4836
      %v5771 = vsub.f32 %v3617, %v4840
      %v5772 = vsub.f32 %v3619, %v4844
      %v5773 = vsub.f32 %v1602, %v4816
      %v5774 = vsub.f32 %v1604, %v4820
      %v5775 = vsub.f32 %v2275, %v4824
      %v5776 = vsub.f32 %v2277, %v4828
      %v5777 = vsub.f32 %v2948, %v4832
      %v5778 = vsub.f32 %v2950, %v4836
      %v5779 = vsub.f32 %v3621, %v4840
      %v5780 = vsub.f32 %v3623, %v4844
      %v5781 = vsub.f32 %v1608, %v4816
      %v5782 = vsub.f32 %v1610, %v4820
      %v5783 = vsub.f32 %v2281, %v4824
      %v5784 = vsub.f32 %v2283, %v4828
      %v5785 = vsub.f32 %v2954, %v4832
      %v5786 = vsub.f32 %v2956, %v4836
      %v5787 = vsub.f32 %v3627, %v4840
      %v5788 = vsub.f32 %v3629, %v4844
      %v5789 = vsub.f32 %v1612, %v4816
      %v5790 = vsub.f32 %v1614, %v4820
      %v5791 = vsub.f32 %v2285, %v4824
      %v5792 = vsub.f32 %v2287, %v4828
      %v5793 = vsub.f32 %v2958, %v4832
      %v5794 = vsub.f32 %v2960, %v4836
      %v5795 = vsub.f32 %v3631, %v4840
      %v5796 = vsub.f32 %v3633, %v4844
      %v5797 = vsub.f32 %v1618, %v4816
      %v5798 = vsub.f32 %v1620, %v4820
      %v5799 = vsub.f32 %v2291, %v4824
      %v5800 = vsub.f32 %v2293, %v4828
      %v5801 = vsub.f32 %v2964, %v4832
      %v5802 = vsub.f32 %v2966, %v4836
      %v5803 = vsub.f32 %v3637, %v4840
      %v5804 = vsub.f32 %v3639, %v4844
      %v5805 = vsub.f32 %v1622, %v4816
      %v5806 = vsub.f32 %v1624, %v4820
      %v5807 = vsub.f32 %v2295, %v4824
      %v5808 = vsub.f32 %v2297, %v4828
      %v5809 = vsub.f32 %v2968, %v4832
      %v5810 = vsub.f32 %v2970, %v4836
      %v5811 = vsub.f32 %v3641, %v4840
      %v5812 = vsub.f32 %v3643, %v4844
      %v5813 = vsub.f32 %v1628, %v4816
      %v5814 = vsub.f32 %v1630, %v4820
      %v5815 = vsub.f32 %v2301, %v4824
      %v5816 = vsub.f32 %v2303, %v4828
      %v5817 = vsub.f32 %v2974, %v4832
      %v5818 = vsub.f32 %v2976, %v4836
      %v5819 = vsub.f32 %v3647, %v4840
      %v5820 = vsub.f32 %v3649, %v4844
      %v5821 = vsub.f32 %v1632, %v4816
      %v5822 = vsub.f32 %v1634, %v4820
      %v5823 = vsub.f32 %v2305, %v4824
      %v5824 = vsub.f32 %v2307, %v4828
      %v5825 = vsub.f32 %v2978, %v4832
      %v5826 = vsub.f32 %v2980, %v4836
      %v5827 = vsub.f32 %v3651, %v4840
      %v5828 = vsub.f32 %v3653, %v4844
      %v5829 = vsub.f32 %v1638, %v4816
      %v5830 = vsub.f32 %v1640, %v4820
      %v5831 = vsub.f32 %v2311, %v4824
      %v5832 = vsub.f32 %v2313, %v4828
      %v5833 = vsub.f32 %v2984, %v4832
      %v5834 = vsub.f32 %v2986, %v4836
      %v5835 = vsub.f32 %v3657, %v4840
      %v5836 = vsub.f32 %v3659, %v4844
      %v5837 = vsub.f32 %v1642, %v4816
      %v5838 = vsub.f32 %v1644, %v4820
      %v5839 = vsub.f32 %v2315, %v4824
      %v5840 = vsub.f32 %v2317, %v4828
      %v5841 = vsub.f32 %v2988, %v4832
      %v5842 = vsub.f32 %v2990, %v4836
      %v5843 = vsub.f32 %v3661, %v4840
      %v5844 = vsub.f32 %v3663, %v4844
      %v5845 = vsub.f32 %v1648, %v4816
      %v5846 = vsub.f32 %v1650, %v4820
      %v5847 = vsub.f32 %v2321, %v4824
      %v5848 = vsub.f32 %v2323, %v4828
      %v5849 = vsub.f32 %v2994, %v4832
      %v5850 = vsub.f32 %v2996, %v4836
      %v5851 = vsub.f32 %v3667, %v4840
      %v5852 = vsub.f32 %v3669, %v4844
      %v5853 = vsub.f32 %v1652, %v4816
      %v5854 = vsub.f32 %v1654, %v4820
      %v5855 = vsub.f32 %v2325, %v4824
      %v5856 = vsub.f32 %v2327, %v4828
      %v5857 = vsub.f32 %v2998, %v4832
      %v5858 = vsub.f32 %v3000, %v4836
      %v5859 = vsub.f32 %v3671, %v4840
      %v5860 = vsub.f32 %v3673, %v4844
      %v5861 = vsub.f32 %v1658, %v4816
      %v5862 = vsub.f32 %v1660, %v4820
      %v5863 = vsub.f32 %v2331, %v4824
      %v5864 = vsub.f32 %v2333, %v4828
      %v5865 = vsub.f32 %v3004, %v4832
      %v5866 = vsub.f32 %v3006, %v4836
      %v5867 = vsub.f32 %v3677, %v4840
      %v5868 = vsub.f32 %v3679, %v4844
      %v5869 = vsub.f32 %v1662, %v4816
      %v5870 = vsub.f32 %v1664, %v4820
      %v5871 = vsub.f32 %v2335, %v4824
      %v5872 = vsub.f32 %v2337, %v4828
      %v5873 = vsub.f32 %v3008, %v4832
      %v5874 = vsub.f32 %v3010, %v4836
      %v5875 = vsub.f32 %v3681, %v4840
      %v5876 = vsub.f32 %v3683, %v4844
      %v5877 = vmul.f32 %v4853, 1.442695
      %v5878 = vpow.pop %v5877
      %v5879 = vmul.f32 %v4854, 1.442695
      %v5880 = vpow.pop %v5879
      %v5881 = vmul.f32 %v4855, 1.442695
      %v5882 = vpow.pop %v5881
      %v5883 = vmul.f32 %v4856, 1.442695
      %v5884 = vpow.pop %v5883
      %v5885 = vmul.f32 %v4857, 1.442695
      %v5886 = vpow.pop %v5885
      %v5887 = vmul.f32 %v4858, 1.442695
      %v5888 = vpow.pop %v5887
      %v5889 = vmul.f32 %v4859, 1.442695
      %v5890 = vpow.pop %v5889
      %v5891 = vmul.f32 %v4860, 1.442695
      %v5892 = vpow.pop %v5891
      %v5893 = vmul.f32 %v4861, 1.442695
      %v5894 = vpow.pop %v5893
      %v5895 = vmul.f32 %v4862, 1.442695
      %v5896 = vpow.pop %v5895
      %v5897 = vmul.f32 %v4863, 1.442695
      %v5898 = vpow.pop %v5897
      %v5899 = vmul.f32 %v4864, 1.442695
      %v5900 = vpow.pop %v5899
      %v5901 = vmul.f32 %v4865, 1.442695
      %v5902 = vpow.pop %v5901
      %v5903 = vmul.f32 %v4866, 1.442695
      %v5904 = vpow.pop %v5903
      %v5905 = vmul.f32 %v4867, 1.442695
      %v5906 = vpow.pop %v5905
      %v5907 = vmul.f32 %v4868, 1.442695
      %v5908 = vpow.pop %v5907
      %v5909 = vmul.f32 %v4869, 1.442695
      %v5910 = vpow.pop %v5909
      %v5911 = vmul.f32 %v4870, 1.442695
      %v5912 = vpow.pop %v5911
      %v5913 = vmul.f32 %v4871, 1.442695
      %v5914 = vpow.pop %v5913
      %v5915 = vmul.f32 %v4872, 1.442695
      %v5916 = vpow.pop %v5915
      %v5917 = vmul.f32 %v4873, 1.442695
      %v5918 = vpow.pop %v5917
      %v5919 = vmul.f32 %v4874, 1.442695
      %v5920 = vpow.pop %v5919
      %v5921 = vmul.f32 %v4875, 1.442695
      %v5922 = vpow.pop %v5921
      %v5923 = vmul.f32 %v4876, 1.442695
      %v5924 = vpow.pop %v5923
      %v5925 = vmul.f32 %v4877, 1.442695
      %v5926 = vpow.pop %v5925
      %v5927 = vmul.f32 %v4878, 1.442695
      %v5928 = vpow.pop %v5927
      %v5929 = vmul.f32 %v4879, 1.442695
      %v5930 = vpow.pop %v5929
      %v5931 = vmul.f32 %v4880, 1.442695
      %v5932 = vpow.pop %v5931
      %v5933 = vmul.f32 %v4881, 1.442695
      %v5934 = vpow.pop %v5933
      %v5935 = vmul.f32 %v4882, 1.442695
      %v5936 = vpow.pop %v5935
      %v5937 = vmul.f32 %v4883, 1.442695
      %v5938 = vpow.pop %v5937
      %v5939 = vmul.f32 %v4884, 1.442695
      %v5940 = vpow.pop %v5939
      %v5941 = vmul.f32 %v4885, 1.442695
      %v5942 = vpow.pop %v5941
      %v5943 = vmul.f32 %v4886, 1.442695
      %v5944 = vpow.pop %v5943
      %v5945 = vmul.f32 %v4887, 1.442695
      %v5946 = vpow.pop %v5945
      %v5947 = vmul.f32 %v4888, 1.442695
      %v5948 = vpow.pop %v5947
      %v5949 = vmul.f32 %v4889, 1.442695
      %v5950 = vpow.pop %v5949
      %v5951 = vmul.f32 %v4890, 1.442695
      %v5952 = vpow.pop %v5951
      %v5953 = vmul.f32 %v4891, 1.442695
      %v5954 = vpow.pop %v5953
      %v5955 = vmul.f32 %v4892, 1.442695
      %v5956 = vpow.pop %v5955
      %v5957 = vmul.f32 %v4893, 1.442695
      %v5958 = vpow.pop %v5957
      %v5959 = vmul.f32 %v4894, 1.442695
      %v5960 = vpow.pop %v5959
      %v5961 = vmul.f32 %v4895, 1.442695
      %v5962 = vpow.pop %v5961
      %v5963 = vmul.f32 %v4896, 1.442695
      %v5964 = vpow.pop %v5963
      %v5965 = vmul.f32 %v4897, 1.442695
      %v5966 = vpow.pop %v5965
      %v5967 = vmul.f32 %v4898, 1.442695
      %v5968 = vpow.pop %v5967
      %v5969 = vmul.f32 %v4899, 1.442695
      %v5970 = vpow.pop %v5969
      %v5971 = vmul.f32 %v4900, 1.442695
      %v5972 = vpow.pop %v5971
      %v5973 = vmul.f32 %v4901, 1.442695
      %v5974 = vpow.pop %v5973
      %v5975 = vmul.f32 %v4902, 1.442695
      %v5976 = vpow.pop %v5975
      %v5977 = vmul.f32 %v4903, 1.442695
      %v5978 = vpow.pop %v5977
      %v5979 = vmul.f32 %v4904, 1.442695
      %v5980 = vpow.pop %v5979
      %v5981 = vmul.f32 %v4905, 1.442695
      %v5982 = vpow.pop %v5981
      %v5983 = vmul.f32 %v4906, 1.442695
      %v5984 = vpow.pop %v5983
      %v5985 = vmul.f32 %v4907, 1.442695
      %v5986 = vpow.pop %v5985
      %v5987 = vmul.f32 %v4908, 1.442695
      %v5988 = vpow.pop %v5987
      %v5989 = vmul.f32 %v4909, 1.442695
      %v5990 = vpow.pop %v5989
      %v5991 = vmul.f32 %v4910, 1.442695
      %v5992 = vpow.pop %v5991
      %v5993 = vmul.f32 %v4911, 1.442695
      %v5994 = vpow.pop %v5993
      %v5995 = vmul.f32 %v4912, 1.442695
      %v5996 = vpow.pop %v5995
      %v5997 = vmul.f32 %v4913, 1.442695
      %v5998 = vpow.pop %v5997
      %v5999 = vmul.f32 %v4914, 1.442695
      %v6000 = vpow.pop %v5999
      %v6001 = vmul.f32 %v4915, 1.442695
      %v6002 = vpow.pop %v6001
      %v6003 = vmul.f32 %v4916, 1.442695
      %v6004 = vpow.pop %v6003
      %v6005 = vmul.f32 %v4917, 1.442695
      %v6006 = vpow.pop %v6005
      %v6007 = vmul.f32 %v4918, 1.442695
      %v6008 = vpow.pop %v6007
      %v6009 = vmul.f32 %v4919, 1.442695
      %v6010 = vpow.pop %v6009
      %v6011 = vmul.f32 %v4920, 1.442695
      %v6012 = vpow.pop %v6011
      %v6013 = vmul.f32 %v4921, 1.442695
      %v6014 = vpow.pop %v6013
      %v6015 = vmul.f32 %v4922, 1.442695
      %v6016 = vpow.pop %v6015
      %v6017 = vmul.f32 %v4923, 1.442695
      %v6018 = vpow.pop %v6017
      %v6019 = vmul.f32 %v4924, 1.442695
      %v6020 = vpow.pop %v6019
      %v6021 = vmul.f32 %v4925, 1.442695
      %v6022 = vpow.pop %v6021
      %v6023 = vmul.f32 %v4926, 1.442695
      %v6024 = vpow.pop %v6023
      %v6025 = vmul.f32 %v4927, 1.442695
      %v6026 = vpow.pop %v6025
      %v6027 = vmul.f32 %v4928, 1.442695
      %v6028 = vpow.pop %v6027
      %v6029 = vmul.f32 %v4929, 1.442695
      %v6030 = vpow.pop %v6029
      %v6031 = vmul.f32 %v4930, 1.442695
      %v6032 = vpow.pop %v6031
      %v6033 = vmul.f32 %v4931, 1.442695
      %v6034 = vpow.pop %v6033
      %v6035 = vmul.f32 %v4932, 1.442695
      %v6036 = vpow.pop %v6035
      %v6037 = vmul.f32 %v4933, 1.442695
      %v6038 = vpow.pop %v6037
      %v6039 = vmul.f32 %v4934, 1.442695
      %v6040 = vpow.pop %v6039
      %v6041 = vmul.f32 %v4935, 1.442695
      %v6042 = vpow.pop %v6041
      %v6043 = vmul.f32 %v4936, 1.442695
      %v6044 = vpow.pop %v6043
      %v6045 = vmul.f32 %v4937, 1.442695
      %v6046 = vpow.pop %v6045
      %v6047 = vmul.f32 %v4938, 1.442695
      %v6048 = vpow.pop %v6047
      %v6049 = vmul.f32 %v4939, 1.442695
      %v6050 = vpow.pop %v6049
      %v6051 = vmul.f32 %v4940, 1.442695
      %v6052 = vpow.pop %v6051
      %v6053 = vmul.f32 %v4941, 1.442695
      %v6054 = vpow.pop %v6053
      %v6055 = vmul.f32 %v4942, 1.442695
      %v6056 = vpow.pop %v6055
      %v6057 = vmul.f32 %v4943, 1.442695
      %v6058 = vpow.pop %v6057
      %v6059 = vmul.f32 %v4944, 1.442695
      %v6060 = vpow.pop %v6059
      %v6061 = vmul.f32 %v4945, 1.442695
      %v6062 = vpow.pop %v6061
      %v6063 = vmul.f32 %v4946, 1.442695
      %v6064 = vpow.pop %v6063
      %v6065 = vmul.f32 %v4947, 1.442695
      %v6066 = vpow.pop %v6065
      %v6067 = vmul.f32 %v4948, 1.442695
      %v6068 = vpow.pop %v6067
      %v6069 = vmul.f32 %v4949, 1.442695
      %v6070 = vpow.pop %v6069
      %v6071 = vmul.f32 %v4950, 1.442695
      %v6072 = vpow.pop %v6071
      %v6073 = vmul.f32 %v4951, 1.442695
      %v6074 = vpow.pop %v6073
      %v6075 = vmul.f32 %v4952, 1.442695
      %v6076 = vpow.pop %v6075
      %v6077 = vmul.f32 %v4953, 1.442695
      %v6078 = vpow.pop %v6077
      %v6079 = vmul.f32 %v4954, 1.442695
      %v6080 = vpow.pop %v6079
      %v6081 = vmul.f32 %v4955, 1.442695
      %v6082 = vpow.pop %v6081
      %v6083 = vmul.f32 %v4956, 1.442695
      %v6084 = vpow.pop %v6083
      %v6085 = vmul.f32 %v4957, 1.442695
      %v6086 = vpow.pop %v6085
      %v6087 = vmul.f32 %v4958, 1.442695
      %v6088 = vpow.pop %v6087
      %v6089 = vmul.f32 %v4959, 1.442695
      %v6090 = vpow.pop %v6089
      %v6091 = vmul.f32 %v4960, 1.442695
      %v6092 = vpow.pop %v6091
      %v6093 = vmul.f32 %v4961, 1.442695
      %v6094 = vpow.pop %v6093
      %v6095 = vmul.f32 %v4962, 1.442695
      %v6096 = vpow.pop %v6095
      %v6097 = vmul.f32 %v4963, 1.442695
      %v6098 = vpow.pop %v6097
      %v6099 = vmul.f32 %v4964, 1.442695
      %v6100 = vpow.pop %v6099
      %v6101 = vmul.f32 %v4965, 1.442695
      %v6102 = vpow.pop %v6101
      %v6103 = vmul.f32 %v4966, 1.442695
      %v6104 = vpow.pop %v6103
      %v6105 = vmul.f32 %v4967, 1.442695
      %v6106 = vpow.pop %v6105
      %v6107 = vmul.f32 %v4968, 1.442695
      %v6108 = vpow.pop %v6107
      %v6109 = vmul.f32 %v4969, 1.442695
      %v6110 = vpow.pop %v6109
      %v6111 = vmul.f32 %v4970, 1.442695
      %v6112 = vpow.pop %v6111
      %v6113 = vmul.f32 %v4971, 1.442695
      %v6114 = vpow.pop %v6113
      %v6115 = vmul.f32 %v4972, 1.442695
      %v6116 = vpow.pop %v6115
      %v6117 = vmul.f32 %v4973, 1.442695
      %v6118 = vpow.pop %v6117
      %v6119 = vmul.f32 %v4974, 1.442695
      %v6120 = vpow.pop %v6119
      %v6121 = vmul.f32 %v4975, 1.442695
      %v6122 = vpow.pop %v6121
      %v6123 = vmul.f32 %v4976, 1.442695
      %v6124 = vpow.pop %v6123
      %v6125 = vmul.f32 %v4977, 1.442695
      %v6126 = vpow.pop %v6125
      %v6127 = vmul.f32 %v4978, 1.442695
      %v6128 = vpow.pop %v6127
      %v6129 = vmul.f32 %v4979, 1.442695
      %v6130 = vpow.pop %v6129
      %v6131 = vmul.f32 %v4980, 1.442695
      %v6132 = vpow.pop %v6131
      %v6133 = vmul.f32 %v4981, 1.442695
      %v6134 = vpow.pop %v6133
      %v6135 = vmul.f32 %v4982, 1.442695
      %v6136 = vpow.pop %v6135
      %v6137 = vmul.f32 %v4983, 1.442695
      %v6138 = vpow.pop %v6137
      %v6139 = vmul.f32 %v4984, 1.442695
      %v6140 = vpow.pop %v6139
      %v6141 = vmul.f32 %v4985, 1.442695
      %v6142 = vpow.pop %v6141
      %v6143 = vmul.f32 %v4986, 1.442695
      %v6144 = vpow.pop %v6143
      %v6145 = vmul.f32 %v4987, 1.442695
      %v6146 = vpow.pop %v6145
      %v6147 = vmul.f32 %v4988, 1.442695
      %v6148 = vpow.pop %v6147
      %v6149 = vmul.f32 %v4989, 1.442695
      %v6150 = vpow.pop %v6149
      %v6151 = vmul.f32 %v4990, 1.442695
      %v6152 = vpow.pop %v6151
      %v6153 = vmul.f32 %v4991, 1.442695
      %v6154 = vpow.pop %v6153
      %v6155 = vmul.f32 %v4992, 1.442695
      %v6156 = vpow.pop %v6155
      %v6157 = vmul.f32 %v4993, 1.442695
      %v6158 = vpow.pop %v6157
      %v6159 = vmul.f32 %v4994, 1.442695
      %v6160 = vpow.pop %v6159
      %v6161 = vmul.f32 %v4995, 1.442695
      %v6162 = vpow.pop %v6161
      %v6163 = vmul.f32 %v4996, 1.442695
      %v6164 = vpow.pop %v6163
      %v6165 = vmul.f32 %v4997, 1.442695
      %v6166 = vpow.pop %v6165
      %v6167 = vmul.f32 %v4998, 1.442695
      %v6168 = vpow.pop %v6167
      %v6169 = vmul.f32 %v4999, 1.442695
      %v6170 = vpow.pop %v6169
      %v6171 = vmul.f32 %v5000, 1.442695
      %v6172 = vpow.pop %v6171
      %v6173 = vmul.f32 %v5001, 1.442695
      %v6174 = vpow.pop %v6173
      %v6175 = vmul.f32 %v5002, 1.442695
      %v6176 = vpow.pop %v6175
      %v6177 = vmul.f32 %v5003, 1.442695
      %v6178 = vpow.pop %v6177
      %v6179 = vmul.f32 %v5004, 1.442695
      %v6180 = vpow.pop %v6179
      %v6181 = vmul.f32 %v5005, 1.442695
      %v6182 = vpow.pop %v6181
      %v6183 = vmul.f32 %v5006, 1.442695
      %v6184 = vpow.pop %v6183
      %v6185 = vmul.f32 %v5007, 1.442695
      %v6186 = vpow.pop %v6185
      %v6187 = vmul.f32 %v5008, 1.442695
      %v6188 = vpow.pop %v6187
      %v6189 = vmul.f32 %v5009, 1.442695
      %v6190 = vpow.pop %v6189
      %v6191 = vmul.f32 %v5010, 1.442695
      %v6192 = vpow.pop %v6191
      %v6193 = vmul.f32 %v5011, 1.442695
      %v6194 = vpow.pop %v6193
      %v6195 = vmul.f32 %v5012, 1.442695
      %v6196 = vpow.pop %v6195
      %v6197 = vmul.f32 %v5013, 1.442695
      %v6198 = vpow.pop %v6197
      %v6199 = vmul.f32 %v5014, 1.442695
      %v6200 = vpow.pop %v6199
      %v6201 = vmul.f32 %v5015, 1.442695
      %v6202 = vpow.pop %v6201
      %v6203 = vmul.f32 %v5016, 1.442695
      %v6204 = vpow.pop %v6203
      %v6205 = vmul.f32 %v5017, 1.442695
      %v6206 = vpow.pop %v6205
      %v6207 = vmul.f32 %v5018, 1.442695
      %v6208 = vpow.pop %v6207
      %v6209 = vmul.f32 %v5019, 1.442695
      %v6210 = vpow.pop %v6209
      %v6211 = vmul.f32 %v5020, 1.442695
      %v6212 = vpow.pop %v6211
      %v6213 = vmul.f32 %v5021, 1.442695
      %v6214 = vpow.pop %v6213
      %v6215 = vmul.f32 %v5022, 1.442695
      %v6216 = vpow.pop %v6215
      %v6217 = vmul.f32 %v5023, 1.442695
      %v6218 = vpow.pop %v6217
      %v6219 = vmul.f32 %v5024, 1.442695
      %v6220 = vpow.pop %v6219
      %v6221 = vmul.f32 %v5025, 1.442695
      %v6222 = vpow.pop %v6221
      %v6223 = vmul.f32 %v5026, 1.442695
      %v6224 = vpow.pop %v6223
      %v6225 = vmul.f32 %v5027, 1.442695
      %v6226 = vpow.pop %v6225
      %v6227 = vmul.f32 %v5028, 1.442695
      %v6228 = vpow.pop %v6227
      %v6229 = vmul.f32 %v5029, 1.442695
      %v6230 = vpow.pop %v6229
      %v6231 = vmul.f32 %v5030, 1.442695
      %v6232 = vpow.pop %v6231
      %v6233 = vmul.f32 %v5031, 1.442695
      %v6234 = vpow.pop %v6233
      %v6235 = vmul.f32 %v5032, 1.442695
      %v6236 = vpow.pop %v6235
      %v6237 = vmul.f32 %v5033, 1.442695
      %v6238 = vpow.pop %v6237
      %v6239 = vmul.f32 %v5034, 1.442695
      %v6240 = vpow.pop %v6239
      %v6241 = vmul.f32 %v5035, 1.442695
      %v6242 = vpow.pop %v6241
      %v6243 = vmul.f32 %v5036, 1.442695
      %v6244 = vpow.pop %v6243
      %v6245 = vmul.f32 %v5037, 1.442695
      %v6246 = vpow.pop %v6245
      %v6247 = vmul.f32 %v5038, 1.442695
      %v6248 = vpow.pop %v6247
      %v6249 = vmul.f32 %v5039, 1.442695
      %v6250 = vpow.pop %v6249
      %v6251 = vmul.f32 %v5040, 1.442695
      %v6252 = vpow.pop %v6251
      %v6253 = vmul.f32 %v5041, 1.442695
      %v6254 = vpow.pop %v6253
      %v6255 = vmul.f32 %v5042, 1.442695
      %v6256 = vpow.pop %v6255
      %v6257 = vmul.f32 %v5043, 1.442695
      %v6258 = vpow.pop %v6257
      %v6259 = vmul.f32 %v5044, 1.442695
      %v6260 = vpow.pop %v6259
      %v6261 = vmul.f32 %v5045, 1.442695
      %v6262 = vpow.pop %v6261
      %v6263 = vmul.f32 %v5046, 1.442695
      %v6264 = vpow.pop %v6263
      %v6265 = vmul.f32 %v5047, 1.442695
      %v6266 = vpow.pop %v6265
      %v6267 = vmul.f32 %v5048, 1.442695
      %v6268 = vpow.pop %v6267
      %v6269 = vmul.f32 %v5049, 1.442695
      %v6270 = vpow.pop %v6269
      %v6271 = vmul.f32 %v5050, 1.442695
      %v6272 = vpow.pop %v6271
      %v6273 = vmul.f32 %v5051, 1.442695
      %v6274 = vpow.pop %v6273
      %v6275 = vmul.f32 %v5052, 1.442695
      %v6276 = vpow.pop %v6275
      %v6277 = vmul.f32 %v5053, 1.442695
      %v6278 = vpow.pop %v6277
      %v6279 = vmul.f32 %v5054, 1.442695
      %v6280 = vpow.pop %v6279
      %v6281 = vmul.f32 %v5055, 1.442695
      %v6282 = vpow.pop %v6281
      %v6283 = vmul.f32 %v5056, 1.442695
      %v6284 = vpow.pop %v6283
      %v6285 = vmul.f32 %v5057, 1.442695
      %v6286 = vpow.pop %v6285
      %v6287 = vmul.f32 %v5058, 1.442695
      %v6288 = vpow.pop %v6287
      %v6289 = vmul.f32 %v5059, 1.442695
      %v6290 = vpow.pop %v6289
      %v6291 = vmul.f32 %v5060, 1.442695
      %v6292 = vpow.pop %v6291
      %v6293 = vmul.f32 %v5061, 1.442695
      %v6294 = vpow.pop %v6293
      %v6295 = vmul.f32 %v5062, 1.442695
      %v6296 = vpow.pop %v6295
      %v6297 = vmul.f32 %v5063, 1.442695
      %v6298 = vpow.pop %v6297
      %v6299 = vmul.f32 %v5064, 1.442695
      %v6300 = vpow.pop %v6299
      %v6301 = vmul.f32 %v5065, 1.442695
      %v6302 = vpow.pop %v6301
      %v6303 = vmul.f32 %v5066, 1.442695
      %v6304 = vpow.pop %v6303
      %v6305 = vmul.f32 %v5067, 1.442695
      %v6306 = vpow.pop %v6305
      %v6307 = vmul.f32 %v5068, 1.442695
      %v6308 = vpow.pop %v6307
      %v6309 = vmul.f32 %v5069, 1.442695
      %v6310 = vpow.pop %v6309
      %v6311 = vmul.f32 %v5070, 1.442695
      %v6312 = vpow.pop %v6311
      %v6313 = vmul.f32 %v5071, 1.442695
      %v6314 = vpow.pop %v6313
      %v6315 = vmul.f32 %v5072, 1.442695
      %v6316 = vpow.pop %v6315
      %v6317 = vmul.f32 %v5073, 1.442695
      %v6318 = vpow.pop %v6317
      %v6319 = vmul.f32 %v5074, 1.442695
      %v6320 = vpow.pop %v6319
      %v6321 = vmul.f32 %v5075, 1.442695
      %v6322 = vpow.pop %v6321
      %v6323 = vmul.f32 %v5076, 1.442695
      %v6324 = vpow.pop %v6323
      %v6325 = vmul.f32 %v5077, 1.442695
      %v6326 = vpow.pop %v6325
      %v6327 = vmul.f32 %v5078, 1.442695
      %v6328 = vpow.pop %v6327
      %v6329 = vmul.f32 %v5079, 1.442695
      %v6330 = vpow.pop %v6329
      %v6331 = vmul.f32 %v5080, 1.442695
      %v6332 = vpow.pop %v6331
      %v6333 = vmul.f32 %v5081, 1.442695
      %v6334 = vpow.pop %v6333
      %v6335 = vmul.f32 %v5082, 1.442695
      %v6336 = vpow.pop %v6335
      %v6337 = vmul.f32 %v5083, 1.442695
      %v6338 = vpow.pop %v6337
      %v6339 = vmul.f32 %v5084, 1.442695
      %v6340 = vpow.pop %v6339
      %v6341 = vmul.f32 %v5085, 1.442695
      %v6342 = vpow.pop %v6341
      %v6343 = vmul.f32 %v5086, 1.442695
      %v6344 = vpow.pop %v6343
      %v6345 = vmul.f32 %v5087, 1.442695
      %v6346 = vpow.pop %v6345
      %v6347 = vmul.f32 %v5088, 1.442695
      %v6348 = vpow.pop %v6347
      %v6349 = vmul.f32 %v5089, 1.442695
      %v6350 = vpow.pop %v6349
      %v6351 = vmul.f32 %v5090, 1.442695
      %v6352 = vpow.pop %v6351
      %v6353 = vmul.f32 %v5091, 1.442695
      %v6354 = vpow.pop %v6353
      %v6355 = vmul.f32 %v5092, 1.442695
      %v6356 = vpow.pop %v6355
      %v6357 = vmul.f32 %v5093, 1.442695
      %v6358 = vpow.pop %v6357
      %v6359 = vmul.f32 %v5094, 1.442695
      %v6360 = vpow.pop %v6359
      %v6361 = vmul.f32 %v5095, 1.442695
      %v6362 = vpow.pop %v6361
      %v6363 = vmul.f32 %v5096, 1.442695
      %v6364 = vpow.pop %v6363
      %v6365 = vmul.f32 %v5097, 1.442695
      %v6366 = vpow.pop %v6365
      %v6367 = vmul.f32 %v5098, 1.442695
      %v6368 = vpow.pop %v6367
      %v6369 = vmul.f32 %v5099, 1.442695
      %v6370 = vpow.pop %v6369
      %v6371 = vmul.f32 %v5100, 1.442695
      %v6372 = vpow.pop %v6371
      %v6373 = vmul.f32 %v5101, 1.442695
      %v6374 = vpow.pop %v6373
      %v6375 = vmul.f32 %v5102, 1.442695
      %v6376 = vpow.pop %v6375
      %v6377 = vmul.f32 %v5103, 1.442695
      %v6378 = vpow.pop %v6377
      %v6379 = vmul.f32 %v5104, 1.442695
      %v6380 = vpow.pop %v6379
      %v6381 = vmul.f32 %v5105, 1.442695
      %v6382 = vpow.pop %v6381
      %v6383 = vmul.f32 %v5106, 1.442695
      %v6384 = vpow.pop %v6383
      %v6385 = vmul.f32 %v5107, 1.442695
      %v6386 = vpow.pop %v6385
      %v6387 = vmul.f32 %v5108, 1.442695
      %v6388 = vpow.pop %v6387
      %v6389 = vmul.f32 %v5109, 1.442695
      %v6390 = vpow.pop %v6389
      %v6391 = vmul.f32 %v5110, 1.442695
      %v6392 = vpow.pop %v6391
      %v6393 = vmul.f32 %v5111, 1.442695
      %v6394 = vpow.pop %v6393
      %v6395 = vmul.f32 %v5112, 1.442695
      %v6396 = vpow.pop %v6395
      %v6397 = vmul.f32 %v5113, 1.442695
      %v6398 = vpow.pop %v6397
      %v6399 = vmul.f32 %v5114, 1.442695
      %v6400 = vpow.pop %v6399
      %v6401 = vmul.f32 %v5115, 1.442695
      %v6402 = vpow.pop %v6401
      %v6403 = vmul.f32 %v5116, 1.442695
      %v6404 = vpow.pop %v6403
      %v6405 = vmul.f32 %v5117, 1.442695
      %v6406 = vpow.pop %v6405
      %v6407 = vmul.f32 %v5118, 1.442695
      %v6408 = vpow.pop %v6407
      %v6409 = vmul.f32 %v5119, 1.442695
      %v6410 = vpow.pop %v6409
      %v6411 = vmul.f32 %v5120, 1.442695
      %v6412 = vpow.pop %v6411
      %v6413 = vmul.f32 %v5121, 1.442695
      %v6414 = vpow.pop %v6413
      %v6415 = vmul.f32 %v5122, 1.442695
      %v6416 = vpow.pop %v6415
      %v6417 = vmul.f32 %v5123, 1.442695
      %v6418 = vpow.pop %v6417
      %v6419 = vmul.f32 %v5124, 1.442695
      %v6420 = vpow.pop %v6419
      %v6421 = vmul.f32 %v5125, 1.442695
      %v6422 = vpow.pop %v6421
      %v6423 = vmul.f32 %v5126, 1.442695
      %v6424 = vpow.pop %v6423
      %v6425 = vmul.f32 %v5127, 1.442695
      %v6426 = vpow.pop %v6425
      %v6427 = vmul.f32 %v5128, 1.442695
      %v6428 = vpow.pop %v6427
      %v6429 = vmul.f32 %v5129, 1.442695
      %v6430 = vpow.pop %v6429
      %v6431 = vmul.f32 %v5130, 1.442695
      %v6432 = vpow.pop %v6431
      %v6433 = vmul.f32 %v5131, 1.442695
      %v6434 = vpow.pop %v6433
      %v6435 = vmul.f32 %v5132, 1.442695
      %v6436 = vpow.pop %v6435
      %v6437 = vmul.f32 %v5133, 1.442695
      %v6438 = vpow.pop %v6437
      %v6439 = vmul.f32 %v5134, 1.442695
      %v6440 = vpow.pop %v6439
      %v6441 = vmul.f32 %v5135, 1.442695
      %v6442 = vpow.pop %v6441
      %v6443 = vmul.f32 %v5136, 1.442695
      %v6444 = vpow.pop %v6443
      %v6445 = vmul.f32 %v5137, 1.442695
      %v6446 = vpow.pop %v6445
      %v6447 = vmul.f32 %v5138, 1.442695
      %v6448 = vpow.pop %v6447
      %v6449 = vmul.f32 %v5139, 1.442695
      %v6450 = vpow.pop %v6449
      %v6451 = vmul.f32 %v5140, 1.442695
      %v6452 = vpow.pop %v6451
      %v6453 = vmul.f32 %v5141, 1.442695
      %v6454 = vpow.pop %v6453
      %v6455 = vmul.f32 %v5142, 1.442695
      %v6456 = vpow.pop %v6455
      %v6457 = vmul.f32 %v5143, 1.442695
      %v6458 = vpow.pop %v6457
      %v6459 = vmul.f32 %v5144, 1.442695
      %v6460 = vpow.pop %v6459
      %v6461 = vmul.f32 %v5145, 1.442695
      %v6462 = vpow.pop %v6461
      %v6463 = vmul.f32 %v5146, 1.442695
      %v6464 = vpow.pop %v6463
      %v6465 = vmul.f32 %v5147, 1.442695
      %v6466 = vpow.pop %v6465
      %v6467 = vmul.f32 %v5148, 1.442695
      %v6468 = vpow.pop %v6467
      %v6469 = vmul.f32 %v5149, 1.442695
      %v6470 = vpow.pop %v6469
      %v6471 = vmul.f32 %v5150, 1.442695
      %v6472 = vpow.pop %v6471
      %v6473 = vmul.f32 %v5151, 1.442695
      %v6474 = vpow.pop %v6473
      %v6475 = vmul.f32 %v5152, 1.442695
      %v6476 = vpow.pop %v6475
      %v6477 = vmul.f32 %v5153, 1.442695
      %v6478 = vpow.pop %v6477
      %v6479 = vmul.f32 %v5154, 1.442695
      %v6480 = vpow.pop %v6479
      %v6481 = vmul.f32 %v5155, 1.442695
      %v6482 = vpow.pop %v6481
      %v6483 = vmul.f32 %v5156, 1.442695
      %v6484 = vpow.pop %v6483
      %v6485 = vmul.f32 %v5157, 1.442695
      %v6486 = vpow.pop %v6485
      %v6487 = vmul.f32 %v5158, 1.442695
      %v6488 = vpow.pop %v6487
      %v6489 = vmul.f32 %v5159, 1.442695
      %v6490 = vpow.pop %v6489
      %v6491 = vmul.f32 %v5160, 1.442695
      %v6492 = vpow.pop %v6491
      %v6493 = vmul.f32 %v5161, 1.442695
      %v6494 = vpow.pop %v6493
      %v6495 = vmul.f32 %v5162, 1.442695
      %v6496 = vpow.pop %v6495
      %v6497 = vmul.f32 %v5163, 1.442695
      %v6498 = vpow.pop %v6497
      %v6499 = vmul.f32 %v5164, 1.442695
      %v6500 = vpow.pop %v6499
      %v6501 = vmul.f32 %v5165, 1.442695
      %v6502 = vpow.pop %v6501
      %v6503 = vmul.f32 %v5166, 1.442695
      %v6504 = vpow.pop %v6503
      %v6505 = vmul.f32 %v5167, 1.442695
      %v6506 = vpow.pop %v6505
      %v6507 = vmul.f32 %v5168, 1.442695
      %v6508 = vpow.pop %v6507
      %v6509 = vmul.f32 %v5169, 1.442695
      %v6510 = vpow.pop %v6509
      %v6511 = vmul.f32 %v5170, 1.442695
      %v6512 = vpow.pop %v6511
      %v6513 = vmul.f32 %v5171, 1.442695
      %v6514 = vpow.pop %v6513
      %v6515 = vmul.f32 %v5172, 1.442695
      %v6516 = vpow.pop %v6515
      %v6517 = vmul.f32 %v5173, 1.442695
      %v6518 = vpow.pop %v6517
      %v6519 = vmul.f32 %v5174, 1.442695
      %v6520 = vpow.pop %v6519
      %v6521 = vmul.f32 %v5175, 1.442695
      %v6522 = vpow.pop %v6521
      %v6523 = vmul.f32 %v5176, 1.442695
      %v6524 = vpow.pop %v6523
      %v6525 = vmul.f32 %v5177, 1.442695
      %v6526 = vpow.pop %v6525
      %v6527 = vmul.f32 %v5178, 1.442695
      %v6528 = vpow.pop %v6527
      %v6529 = vmul.f32 %v5179, 1.442695
      %v6530 = vpow.pop %v6529
      %v6531 = vmul.f32 %v5180, 1.442695
      %v6532 = vpow.pop %v6531
      %v6533 = vmul.f32 %v5181, 1.442695
      %v6534 = vpow.pop %v6533
      %v6535 = vmul.f32 %v5182, 1.442695
      %v6536 = vpow.pop %v6535
      %v6537 = vmul.f32 %v5183, 1.442695
      %v6538 = vpow.pop %v6537
      %v6539 = vmul.f32 %v5184, 1.442695
      %v6540 = vpow.pop %v6539
      %v6541 = vmul.f32 %v5185, 1.442695
      %v6542 = vpow.pop %v6541
      %v6543 = vmul.f32 %v5186, 1.442695
      %v6544 = vpow.pop %v6543
      %v6545 = vmul.f32 %v5187, 1.442695
      %v6546 = vpow.pop %v6545
      %v6547 = vmul.f32 %v5188, 1.442695
      %v6548 = vpow.pop %v6547
      %v6549 = vmul.f32 %v5189, 1.442695
      %v6550 = vpow.pop %v6549
      %v6551 = vmul.f32 %v5190, 1.442695
      %v6552 = vpow.pop %v6551
      %v6553 = vmul.f32 %v5191, 1.442695
      %v6554 = vpow.pop %v6553
      %v6555 = vmul.f32 %v5192, 1.442695
      %v6556 = vpow.pop %v6555
      %v6557 = vmul.f32 %v5193, 1.442695
      %v6558 = vpow.pop %v6557
      %v6559 = vmul.f32 %v5194, 1.442695
      %v6560 = vpow.pop %v6559
      %v6561 = vmul.f32 %v5195, 1.442695
      %v6562 = vpow.pop %v6561
      %v6563 = vmul.f32 %v5196, 1.442695
      %v6564 = vpow.pop %v6563
      %v6565 = vmul.f32 %v5197, 1.442695
      %v6566 = vpow.pop %v6565
      %v6567 = vmul.f32 %v5198, 1.442695
      %v6568 = vpow.pop %v6567
      %v6569 = vmul.f32 %v5199, 1.442695
      %v6570 = vpow.pop %v6569
      %v6571 = vmul.f32 %v5200, 1.442695
      %v6572 = vpow.pop %v6571
      %v6573 = vmul.f32 %v5201, 1.442695
      %v6574 = vpow.pop %v6573
      %v6575 = vmul.f32 %v5202, 1.442695
      %v6576 = vpow.pop %v6575
      %v6577 = vmul.f32 %v5203, 1.442695
      %v6578 = vpow.pop %v6577
      %v6579 = vmul.f32 %v5204, 1.442695
      %v6580 = vpow.pop %v6579
      %v6581 = vmul.f32 %v5205, 1.442695
      %v6582 = vpow.pop %v6581
      %v6583 = vmul.f32 %v5206, 1.442695
      %v6584 = vpow.pop %v6583
      %v6585 = vmul.f32 %v5207, 1.442695
      %v6586 = vpow.pop %v6585
      %v6587 = vmul.f32 %v5208, 1.442695
      %v6588 = vpow.pop %v6587
      %v6589 = vmul.f32 %v5209, 1.442695
      %v6590 = vpow.pop %v6589
      %v6591 = vmul.f32 %v5210, 1.442695
      %v6592 = vpow.pop %v6591
      %v6593 = vmul.f32 %v5211, 1.442695
      %v6594 = vpow.pop %v6593
      %v6595 = vmul.f32 %v5212, 1.442695
      %v6596 = vpow.pop %v6595
      %v6597 = vmul.f32 %v5213, 1.442695
      %v6598 = vpow.pop %v6597
      %v6599 = vmul.f32 %v5214, 1.442695
      %v6600 = vpow.pop %v6599
      %v6601 = vmul.f32 %v5215, 1.442695
      %v6602 = vpow.pop %v6601
      %v6603 = vmul.f32 %v5216, 1.442695
      %v6604 = vpow.pop %v6603
      %v6605 = vmul.f32 %v5217, 1.442695
      %v6606 = vpow.pop %v6605
      %v6607 = vmul.f32 %v5218, 1.442695
      %v6608 = vpow.pop %v6607
      %v6609 = vmul.f32 %v5219, 1.442695
      %v6610 = vpow.pop %v6609
      %v6611 = vmul.f32 %v5220, 1.442695
      %v6612 = vpow.pop %v6611
      %v6613 = vmul.f32 %v5221, 1.442695
      %v6614 = vpow.pop %v6613
      %v6615 = vmul.f32 %v5222, 1.442695
      %v6616 = vpow.pop %v6615
      %v6617 = vmul.f32 %v5223, 1.442695
      %v6618 = vpow.pop %v6617
      %v6619 = vmul.f32 %v5224, 1.442695
      %v6620 = vpow.pop %v6619
      %v6621 = vmul.f32 %v5225, 1.442695
      %v6622 = vpow.pop %v6621
      %v6623 = vmul.f32 %v5226, 1.442695
      %v6624 = vpow.pop %v6623
      %v6625 = vmul.f32 %v5227, 1.442695
      %v6626 = vpow.pop %v6625
      %v6627 = vmul.f32 %v5228, 1.442695
      %v6628 = vpow.pop %v6627
      %v6629 = vmul.f32 %v5229, 1.442695
      %v6630 = vpow.pop %v6629
      %v6631 = vmul.f32 %v5230, 1.442695
      %v6632 = vpow.pop %v6631
      %v6633 = vmul.f32 %v5231, 1.442695
      %v6634 = vpow.pop %v6633
      %v6635 = vmul.f32 %v5232, 1.442695
      %v6636 = vpow.pop %v6635
      %v6637 = vmul.f32 %v5233, 1.442695
      %v6638 = vpow.pop %v6637
      %v6639 = vmul.f32 %v5234, 1.442695
      %v6640 = vpow.pop %v6639
      %v6641 = vmul.f32 %v5235, 1.442695
      %v6642 = vpow.pop %v6641
      %v6643 = vmul.f32 %v5236, 1.442695
      %v6644 = vpow.pop %v6643
      %v6645 = vmul.f32 %v5237, 1.442695
      %v6646 = vpow.pop %v6645
      %v6647 = vmul.f32 %v5238, 1.442695
      %v6648 = vpow.pop %v6647
      %v6649 = vmul.f32 %v5239, 1.442695
      %v6650 = vpow.pop %v6649
      %v6651 = vmul.f32 %v5240, 1.442695
      %v6652 = vpow.pop %v6651
      %v6653 = vmul.f32 %v5241, 1.442695
      %v6654 = vpow.pop %v6653
      %v6655 = vmul.f32 %v5242, 1.442695
      %v6656 = vpow.pop %v6655
      %v6657 = vmul.f32 %v5243, 1.442695
      %v6658 = vpow.pop %v6657
      %v6659 = vmul.f32 %v5244, 1.442695
      %v6660 = vpow.pop %v6659
      %v6661 = vmul.f32 %v5245, 1.442695
      %v6662 = vpow.pop %v6661
      %v6663 = vmul.f32 %v5246, 1.442695
      %v6664 = vpow.pop %v6663
      %v6665 = vmul.f32 %v5247, 1.442695
      %v6666 = vpow.pop %v6665
      %v6667 = vmul.f32 %v5248, 1.442695
      %v6668 = vpow.pop %v6667
      %v6669 = vmul.f32 %v5249, 1.442695
      %v6670 = vpow.pop %v6669
      %v6671 = vmul.f32 %v5250, 1.442695
      %v6672 = vpow.pop %v6671
      %v6673 = vmul.f32 %v5251, 1.442695
      %v6674 = vpow.pop %v6673
      %v6675 = vmul.f32 %v5252, 1.442695
      %v6676 = vpow.pop %v6675
      %v6677 = vmul.f32 %v5253, 1.442695
      %v6678 = vpow.pop %v6677
      %v6679 = vmul.f32 %v5254, 1.442695
      %v6680 = vpow.pop %v6679
      %v6681 = vmul.f32 %v5255, 1.442695
      %v6682 = vpow.pop %v6681
      %v6683 = vmul.f32 %v5256, 1.442695
      %v6684 = vpow.pop %v6683
      %v6685 = vmul.f32 %v5257, 1.442695
      %v6686 = vpow.pop %v6685
      %v6687 = vmul.f32 %v5258, 1.442695
      %v6688 = vpow.pop %v6687
      %v6689 = vmul.f32 %v5259, 1.442695
      %v6690 = vpow.pop %v6689
      %v6691 = vmul.f32 %v5260, 1.442695
      %v6692 = vpow.pop %v6691
      %v6693 = vmul.f32 %v5261, 1.442695
      %v6694 = vpow.pop %v6693
      %v6695 = vmul.f32 %v5262, 1.442695
      %v6696 = vpow.pop %v6695
      %v6697 = vmul.f32 %v5263, 1.442695
      %v6698 = vpow.pop %v6697
      %v6699 = vmul.f32 %v5264, 1.442695
      %v6700 = vpow.pop %v6699
      %v6701 = vmul.f32 %v5265, 1.442695
      %v6702 = vpow.pop %v6701
      %v6703 = vmul.f32 %v5266, 1.442695
      %v6704 = vpow.pop %v6703
      %v6705 = vmul.f32 %v5267, 1.442695
      %v6706 = vpow.pop %v6705
      %v6707 = vmul.f32 %v5268, 1.442695
      %v6708 = vpow.pop %v6707
      %v6709 = vmul.f32 %v5269, 1.442695
      %v6710 = vpow.pop %v6709
      %v6711 = vmul.f32 %v5270, 1.442695
      %v6712 = vpow.pop %v6711
      %v6713 = vmul.f32 %v5271, 1.442695
      %v6714 = vpow.pop %v6713
      %v6715 = vmul.f32 %v5272, 1.442695
      %v6716 = vpow.pop %v6715
      %v6717 = vmul.f32 %v5273, 1.442695
      %v6718 = vpow.pop %v6717
      %v6719 = vmul.f32 %v5274, 1.442695
      %v6720 = vpow.pop %v6719
      %v6721 = vmul.f32 %v5275, 1.442695
      %v6722 = vpow.pop %v6721
      %v6723 = vmul.f32 %v5276, 1.442695
      %v6724 = vpow.pop %v6723
      %v6725 = vmul.f32 %v5277, 1.442695
      %v6726 = vpow.pop %v6725
      %v6727 = vmul.f32 %v5278, 1.442695
      %v6728 = vpow.pop %v6727
      %v6729 = vmul.f32 %v5279, 1.442695
      %v6730 = vpow.pop %v6729
      %v6731 = vmul.f32 %v5280, 1.442695
      %v6732 = vpow.pop %v6731
      %v6733 = vmul.f32 %v5281, 1.442695
      %v6734 = vpow.pop %v6733
      %v6735 = vmul.f32 %v5282, 1.442695
      %v6736 = vpow.pop %v6735
      %v6737 = vmul.f32 %v5283, 1.442695
      %v6738 = vpow.pop %v6737
      %v6739 = vmul.f32 %v5284, 1.442695
      %v6740 = vpow.pop %v6739
      %v6741 = vmul.f32 %v5285, 1.442695
      %v6742 = vpow.pop %v6741
      %v6743 = vmul.f32 %v5286, 1.442695
      %v6744 = vpow.pop %v6743
      %v6745 = vmul.f32 %v5287, 1.442695
      %v6746 = vpow.pop %v6745
      %v6747 = vmul.f32 %v5288, 1.442695
      %v6748 = vpow.pop %v6747
      %v6749 = vmul.f32 %v5289, 1.442695
      %v6750 = vpow.pop %v6749
      %v6751 = vmul.f32 %v5290, 1.442695
      %v6752 = vpow.pop %v6751
      %v6753 = vmul.f32 %v5291, 1.442695
      %v6754 = vpow.pop %v6753
      %v6755 = vmul.f32 %v5292, 1.442695
      %v6756 = vpow.pop %v6755
      %v6757 = vmul.f32 %v5293, 1.442695
      %v6758 = vpow.pop %v6757
      %v6759 = vmul.f32 %v5294, 1.442695
      %v6760 = vpow.pop %v6759
      %v6761 = vmul.f32 %v5295, 1.442695
      %v6762 = vpow.pop %v6761
      %v6763 = vmul.f32 %v5296, 1.442695
      %v6764 = vpow.pop %v6763
      %v6765 = vmul.f32 %v5297, 1.442695
      %v6766 = vpow.pop %v6765
      %v6767 = vmul.f32 %v5298, 1.442695
      %v6768 = vpow.pop %v6767
      %v6769 = vmul.f32 %v5299, 1.442695
      %v6770 = vpow.pop %v6769
      %v6771 = vmul.f32 %v5300, 1.442695
      %v6772 = vpow.pop %v6771
      %v6773 = vmul.f32 %v5301, 1.442695
      %v6774 = vpow.pop %v6773
      %v6775 = vmul.f32 %v5302, 1.442695
      %v6776 = vpow.pop %v6775
      %v6777 = vmul.f32 %v5303, 1.442695
      %v6778 = vpow.pop %v6777
      %v6779 = vmul.f32 %v5304, 1.442695
      %v6780 = vpow.pop %v6779
      %v6781 = vmul.f32 %v5305, 1.442695
      %v6782 = vpow.pop %v6781
      %v6783 = vmul.f32 %v5306, 1.442695
      %v6784 = vpow.pop %v6783
      %v6785 = vmul.f32 %v5307, 1.442695
      %v6786 = vpow.pop %v6785
      %v6787 = vmul.f32 %v5308, 1.442695
      %v6788 = vpow.pop %v6787
      %v6789 = vmul.f32 %v5309, 1.442695
      %v6790 = vpow.pop %v6789
      %v6791 = vmul.f32 %v5310, 1.442695
      %v6792 = vpow.pop %v6791
      %v6793 = vmul.f32 %v5311, 1.442695
      %v6794 = vpow.pop %v6793
      %v6795 = vmul.f32 %v5312, 1.442695
      %v6796 = vpow.pop %v6795
      %v6797 = vmul.f32 %v5313, 1.442695
      %v6798 = vpow.pop %v6797
      %v6799 = vmul.f32 %v5314, 1.442695
      %v6800 = vpow.pop %v6799
      %v6801 = vmul.f32 %v5315, 1.442695
      %v6802 = vpow.pop %v6801
      %v6803 = vmul.f32 %v5316, 1.442695
      %v6804 = vpow.pop %v6803
      %v6805 = vmul.f32 %v5317, 1.442695
      %v6806 = vpow.pop %v6805
      %v6807 = vmul.f32 %v5318, 1.442695
      %v6808 = vpow.pop %v6807
      %v6809 = vmul.f32 %v5319, 1.442695
      %v6810 = vpow.pop %v6809
      %v6811 = vmul.f32 %v5320, 1.442695
      %v6812 = vpow.pop %v6811
      %v6813 = vmul.f32 %v5321, 1.442695
      %v6814 = vpow.pop %v6813
      %v6815 = vmul.f32 %v5322, 1.442695
      %v6816 = vpow.pop %v6815
      %v6817 = vmul.f32 %v5323, 1.442695
      %v6818 = vpow.pop %v6817
      %v6819 = vmul.f32 %v5324, 1.442695
      %v6820 = vpow.pop %v6819
      %v6821 = vmul.f32 %v5325, 1.442695
      %v6822 = vpow.pop %v6821
      %v6823 = vmul.f32 %v5326, 1.442695
      %v6824 = vpow.pop %v6823
      %v6825 = vmul.f32 %v5327, 1.442695
      %v6826 = vpow.pop %v6825
      %v6827 = vmul.f32 %v5328, 1.442695
      %v6828 = vpow.pop %v6827
      %v6829 = vmul.f32 %v5329, 1.442695
      %v6830 = vpow.pop %v6829
      %v6831 = vmul.f32 %v5330, 1.442695
      %v6832 = vpow.pop %v6831
      %v6833 = vmul.f32 %v5331, 1.442695
      %v6834 = vpow.pop %v6833
      %v6835 = vmul.f32 %v5332, 1.442695
      %v6836 = vpow.pop %v6835
      %v6837 = vmul.f32 %v5333, 1.442695
      %v6838 = vpow.pop %v6837
      %v6839 = vmul.f32 %v5334, 1.442695
      %v6840 = vpow.pop %v6839
      %v6841 = vmul.f32 %v5335, 1.442695
      %v6842 = vpow.pop %v6841
      %v6843 = vmul.f32 %v5336, 1.442695
      %v6844 = vpow.pop %v6843
      %v6845 = vmul.f32 %v5337, 1.442695
      %v6846 = vpow.pop %v6845
      %v6847 = vmul.f32 %v5338, 1.442695
      %v6848 = vpow.pop %v6847
      %v6849 = vmul.f32 %v5339, 1.442695
      %v6850 = vpow.pop %v6849
      %v6851 = vmul.f32 %v5340, 1.442695
      %v6852 = vpow.pop %v6851
      %v6853 = vmul.f32 %v5341, 1.442695
      %v6854 = vpow.pop %v6853
      %v6855 = vmul.f32 %v5342, 1.442695
      %v6856 = vpow.pop %v6855
      %v6857 = vmul.f32 %v5343, 1.442695
      %v6858 = vpow.pop %v6857
      %v6859 = vmul.f32 %v5344, 1.442695
      %v6860 = vpow.pop %v6859
      %v6861 = vmul.f32 %v5345, 1.442695
      %v6862 = vpow.pop %v6861
      %v6863 = vmul.f32 %v5346, 1.442695
      %v6864 = vpow.pop %v6863
      %v6865 = vmul.f32 %v5347, 1.442695
      %v6866 = vpow.pop %v6865
      %v6867 = vmul.f32 %v5348, 1.442695
      %v6868 = vpow.pop %v6867
      %v6869 = vmul.f32 %v5349, 1.442695
      %v6870 = vpow.pop %v6869
      %v6871 = vmul.f32 %v5350, 1.442695
      %v6872 = vpow.pop %v6871
      %v6873 = vmul.f32 %v5351, 1.442695
      %v6874 = vpow.pop %v6873
      %v6875 = vmul.f32 %v5352, 1.442695
      %v6876 = vpow.pop %v6875
      %v6877 = vmul.f32 %v5353, 1.442695
      %v6878 = vpow.pop %v6877
      %v6879 = vmul.f32 %v5354, 1.442695
      %v6880 = vpow.pop %v6879
      %v6881 = vmul.f32 %v5355, 1.442695
      %v6882 = vpow.pop %v6881
      %v6883 = vmul.f32 %v5356, 1.442695
      %v6884 = vpow.pop %v6883
      %v6885 = vmul.f32 %v5357, 1.442695
      %v6886 = vpow.pop %v6885
      %v6887 = vmul.f32 %v5358, 1.442695
      %v6888 = vpow.pop %v6887
      %v6889 = vmul.f32 %v5359, 1.442695
      %v6890 = vpow.pop %v6889
      %v6891 = vmul.f32 %v5360, 1.442695
      %v6892 = vpow.pop %v6891
      %v6893 = vmul.f32 %v5361, 1.442695
      %v6894 = vpow.pop %v6893
      %v6895 = vmul.f32 %v5362, 1.442695
      %v6896 = vpow.pop %v6895
      %v6897 = vmul.f32 %v5363, 1.442695
      %v6898 = vpow.pop %v6897
      %v6899 = vmul.f32 %v5364, 1.442695
      %v6900 = vpow.pop %v6899
      %v6901 = vmul.f32 %v5365, 1.442695
      %v6902 = vpow.pop %v6901
      %v6903 = vmul.f32 %v5366, 1.442695
      %v6904 = vpow.pop %v6903
      %v6905 = vmul.f32 %v5367, 1.442695
      %v6906 = vpow.pop %v6905
      %v6907 = vmul.f32 %v5368, 1.442695
      %v6908 = vpow.pop %v6907
      %v6909 = vmul.f32 %v5369, 1.442695
      %v6910 = vpow.pop %v6909
      %v6911 = vmul.f32 %v5370, 1.442695
      %v6912 = vpow.pop %v6911
      %v6913 = vmul.f32 %v5371, 1.442695
      %v6914 = vpow.pop %v6913
      %v6915 = vmul.f32 %v5372, 1.442695
      %v6916 = vpow.pop %v6915
      %v6917 = vmul.f32 %v5373, 1.442695
      %v6918 = vpow.pop %v6917
      %v6919 = vmul.f32 %v5374, 1.442695
      %v6920 = vpow.pop %v6919
      %v6921 = vmul.f32 %v5375, 1.442695
      %v6922 = vpow.pop %v6921
      %v6923 = vmul.f32 %v5376, 1.442695
      %v6924 = vpow.pop %v6923
      %v6925 = vmul.f32 %v5377, 1.442695
      %v6926 = vpow.pop %v6925
      %v6927 = vmul.f32 %v5378, 1.442695
      %v6928 = vpow.pop %v6927
      %v6929 = vmul.f32 %v5379, 1.442695
      %v6930 = vpow.pop %v6929
      %v6931 = vmul.f32 %v5380, 1.442695
      %v6932 = vpow.pop %v6931
      %v6933 = vmul.f32 %v5381, 1.442695
      %v6934 = vpow.pop %v6933
      %v6935 = vmul.f32 %v5382, 1.442695
      %v6936 = vpow.pop %v6935
      %v6937 = vmul.f32 %v5383, 1.442695
      %v6938 = vpow.pop %v6937
      %v6939 = vmul.f32 %v5384, 1.442695
      %v6940 = vpow.pop %v6939
      %v6941 = vmul.f32 %v5385, 1.442695
      %v6942 = vpow.pop %v6941
      %v6943 = vmul.f32 %v5386, 1.442695
      %v6944 = vpow.pop %v6943
      %v6945 = vmul.f32 %v5387, 1.442695
      %v6946 = vpow.pop %v6945
      %v6947 = vmul.f32 %v5388, 1.442695
      %v6948 = vpow.pop %v6947
      %v6949 = vmul.f32 %v5389, 1.442695
      %v6950 = vpow.pop %v6949
      %v6951 = vmul.f32 %v5390, 1.442695
      %v6952 = vpow.pop %v6951
      %v6953 = vmul.f32 %v5391, 1.442695
      %v6954 = vpow.pop %v6953
      %v6955 = vmul.f32 %v5392, 1.442695
      %v6956 = vpow.pop %v6955
      %v6957 = vmul.f32 %v5393, 1.442695
      %v6958 = vpow.pop %v6957
      %v6959 = vmul.f32 %v5394, 1.442695
      %v6960 = vpow.pop %v6959
      %v6961 = vmul.f32 %v5395, 1.442695
      %v6962 = vpow.pop %v6961
      %v6963 = vmul.f32 %v5396, 1.442695
      %v6964 = vpow.pop %v6963
      %v6965 = vmul.f32 %v5397, 1.442695
      %v6966 = vpow.pop %v6965
      %v6967 = vmul.f32 %v5398, 1.442695
      %v6968 = vpow.pop %v6967
      %v6969 = vmul.f32 %v5399, 1.442695
      %v6970 = vpow.pop %v6969
      %v6971 = vmul.f32 %v5400, 1.442695
      %v6972 = vpow.pop %v6971
      %v6973 = vmul.f32 %v5401, 1.442695
      %v6974 = vpow.pop %v6973
      %v6975 = vmul.f32 %v5402, 1.442695
      %v6976 = vpow.pop %v6975
      %v6977 = vmul.f32 %v5403, 1.442695
      %v6978 = vpow.pop %v6977
      %v6979 = vmul.f32 %v5404, 1.442695
      %v6980 = vpow.pop %v6979
      %v6981 = vmul.f32 %v5405, 1.442695
      %v6982 = vpow.pop %v6981
      %v6983 = vmul.f32 %v5406, 1.442695
      %v6984 = vpow.pop %v6983
      %v6985 = vmul.f32 %v5407, 1.442695
      %v6986 = vpow.pop %v6985
      %v6987 = vmul.f32 %v5408, 1.442695
      %v6988 = vpow.pop %v6987
      %v6989 = vmul.f32 %v5409, 1.442695
      %v6990 = vpow.pop %v6989
      %v6991 = vmul.f32 %v5410, 1.442695
      %v6992 = vpow.pop %v6991
      %v6993 = vmul.f32 %v5411, 1.442695
      %v6994 = vpow.pop %v6993
      %v6995 = vmul.f32 %v5412, 1.442695
      %v6996 = vpow.pop %v6995
      %v6997 = vmul.f32 %v5413, 1.442695
      %v6998 = vpow.pop %v6997
      %v6999 = vmul.f32 %v5414, 1.442695
      %v7000 = vpow.pop %v6999
      %v7001 = vmul.f32 %v5415, 1.442695
      %v7002 = vpow.pop %v7001
      %v7003 = vmul.f32 %v5416, 1.442695
      %v7004 = vpow.pop %v7003
      %v7005 = vmul.f32 %v5417, 1.442695
      %v7006 = vpow.pop %v7005
      %v7007 = vmul.f32 %v5418, 1.442695
      %v7008 = vpow.pop %v7007
      %v7009 = vmul.f32 %v5419, 1.442695
      %v7010 = vpow.pop %v7009
      %v7011 = vmul.f32 %v5420, 1.442695
      %v7012 = vpow.pop %v7011
      %v7013 = vmul.f32 %v5421, 1.442695
      %v7014 = vpow.pop %v7013
      %v7015 = vmul.f32 %v5422, 1.442695
      %v7016 = vpow.pop %v7015
      %v7017 = vmul.f32 %v5423, 1.442695
      %v7018 = vpow.pop %v7017
      %v7019 = vmul.f32 %v5424, 1.442695
      %v7020 = vpow.pop %v7019
      %v7021 = vmul.f32 %v5425, 1.442695
      %v7022 = vpow.pop %v7021
      %v7023 = vmul.f32 %v5426, 1.442695
      %v7024 = vpow.pop %v7023
      %v7025 = vmul.f32 %v5427, 1.442695
      %v7026 = vpow.pop %v7025
      %v7027 = vmul.f32 %v5428, 1.442695
      %v7028 = vpow.pop %v7027
      %v7029 = vmul.f32 %v5429, 1.442695
      %v7030 = vpow.pop %v7029
      %v7031 = vmul.f32 %v5430, 1.442695
      %v7032 = vpow.pop %v7031
      %v7033 = vmul.f32 %v5431, 1.442695
      %v7034 = vpow.pop %v7033
      %v7035 = vmul.f32 %v5432, 1.442695
      %v7036 = vpow.pop %v7035
      %v7037 = vmul.f32 %v5433, 1.442695
      %v7038 = vpow.pop %v7037
      %v7039 = vmul.f32 %v5434, 1.442695
      %v7040 = vpow.pop %v7039
      %v7041 = vmul.f32 %v5435, 1.442695
      %v7042 = vpow.pop %v7041
      %v7043 = vmul.f32 %v5436, 1.442695
      %v7044 = vpow.pop %v7043
      %v7045 = vmul.f32 %v5437, 1.442695
      %v7046 = vpow.pop %v7045
      %v7047 = vmul.f32 %v5438, 1.442695
      %v7048 = vpow.pop %v7047
      %v7049 = vmul.f32 %v5439, 1.442695
      %v7050 = vpow.pop %v7049
      %v7051 = vmul.f32 %v5440, 1.442695
      %v7052 = vpow.pop %v7051
      %v7053 = vmul.f32 %v5441, 1.442695
      %v7054 = vpow.pop %v7053
      %v7055 = vmul.f32 %v5442, 1.442695
      %v7056 = vpow.pop %v7055
      %v7057 = vmul.f32 %v5443, 1.442695
      %v7058 = vpow.pop %v7057
      %v7059 = vmul.f32 %v5444, 1.442695
      %v7060 = vpow.pop %v7059
      %v7061 = vmul.f32 %v5445, 1.442695
      %v7062 = vpow.pop %v7061
      %v7063 = vmul.f32 %v5446, 1.442695
      %v7064 = vpow.pop %v7063
      %v7065 = vmul.f32 %v5447, 1.442695
      %v7066 = vpow.pop %v7065
      %v7067 = vmul.f32 %v5448, 1.442695
      %v7068 = vpow.pop %v7067
      %v7069 = vmul.f32 %v5449, 1.442695
      %v7070 = vpow.pop %v7069
      %v7071 = vmul.f32 %v5450, 1.442695
      %v7072 = vpow.pop %v7071
      %v7073 = vmul.f32 %v5451, 1.442695
      %v7074 = vpow.pop %v7073
      %v7075 = vmul.f32 %v5452, 1.442695
      %v7076 = vpow.pop %v7075
      %v7077 = vmul.f32 %v5453, 1.442695
      %v7078 = vpow.pop %v7077
      %v7079 = vmul.f32 %v5454, 1.442695
      %v7080 = vpow.pop %v7079
      %v7081 = vmul.f32 %v5455, 1.442695
      %v7082 = vpow.pop %v7081
      %v7083 = vmul.f32 %v5456, 1.442695
      %v7084 = vpow.pop %v7083
      %v7085 = vmul.f32 %v5457, 1.442695
      %v7086 = vpow.pop %v7085
      %v7087 = vmul.f32 %v5458, 1.442695
      %v7088 = vpow.pop %v7087
      %v7089 = vmul.f32 %v5459, 1.442695
      %v7090 = vpow.pop %v7089
      %v7091 = vmul.f32 %v5460, 1.442695
      %v7092 = vpow.pop %v7091
      %v7093 = vmul.f32 %v5461, 1.442695
      %v7094 = vpow.pop %v7093
      %v7095 = vmul.f32 %v5462, 1.442695
      %v7096 = vpow.pop %v7095
      %v7097 = vmul.f32 %v5463, 1.442695
      %v7098 = vpow.pop %v7097
      %v7099 = vmul.f32 %v5464, 1.442695
      %v7100 = vpow.pop %v7099
      %v7101 = vmul.f32 %v5465, 1.442695
      %v7102 = vpow.pop %v7101
      %v7103 = vmul.f32 %v5466, 1.442695
      %v7104 = vpow.pop %v7103
      %v7105 = vmul.f32 %v5467, 1.442695
      %v7106 = vpow.pop %v7105
      %v7107 = vmul.f32 %v5468, 1.442695
      %v7108 = vpow.pop %v7107
      %v7109 = vmul.f32 %v5469, 1.442695
      %v7110 = vpow.pop %v7109
      %v7111 = vmul.f32 %v5470, 1.442695
      %v7112 = vpow.pop %v7111
      %v7113 = vmul.f32 %v5471, 1.442695
      %v7114 = vpow.pop %v7113
      %v7115 = vmul.f32 %v5472, 1.442695
      %v7116 = vpow.pop %v7115
      %v7117 = vmul.f32 %v5473, 1.442695
      %v7118 = vpow.pop %v7117
      %v7119 = vmul.f32 %v5474, 1.442695
      %v7120 = vpow.pop %v7119
      %v7121 = vmul.f32 %v5475, 1.442695
      %v7122 = vpow.pop %v7121
      %v7123 = vmul.f32 %v5476, 1.442695
      %v7124 = vpow.pop %v7123
      %v7125 = vmul.f32 %v5477, 1.442695
      %v7126 = vpow.pop %v7125
      %v7127 = vmul.f32 %v5478, 1.442695
      %v7128 = vpow.pop %v7127
      %v7129 = vmul.f32 %v5479, 1.442695
      %v7130 = vpow.pop %v7129
      %v7131 = vmul.f32 %v5480, 1.442695
      %v7132 = vpow.pop %v7131
      %v7133 = vmul.f32 %v5481, 1.442695
      %v7134 = vpow.pop %v7133
      %v7135 = vmul.f32 %v5482, 1.442695
      %v7136 = vpow.pop %v7135
      %v7137 = vmul.f32 %v5483, 1.442695
      %v7138 = vpow.pop %v7137
      %v7139 = vmul.f32 %v5484, 1.442695
      %v7140 = vpow.pop %v7139
      %v7141 = vmul.f32 %v5485, 1.442695
      %v7142 = vpow.pop %v7141
      %v7143 = vmul.f32 %v5486, 1.442695
      %v7144 = vpow.pop %v7143
      %v7145 = vmul.f32 %v5487, 1.442695
      %v7146 = vpow.pop %v7145
      %v7147 = vmul.f32 %v5488, 1.442695
      %v7148 = vpow.pop %v7147
      %v7149 = vmul.f32 %v5489, 1.442695
      %v7150 = vpow.pop %v7149
      %v7151 = vmul.f32 %v5490, 1.442695
      %v7152 = vpow.pop %v7151
      %v7153 = vmul.f32 %v5491, 1.442695
      %v7154 = vpow.pop %v7153
      %v7155 = vmul.f32 %v5492, 1.442695
      %v7156 = vpow.pop %v7155
      %v7157 = vmul.f32 %v5493, 1.442695
      %v7158 = vpow.pop %v7157
      %v7159 = vmul.f32 %v5494, 1.442695
      %v7160 = vpow.pop %v7159
      %v7161 = vmul.f32 %v5495, 1.442695
      %v7162 = vpow.pop %v7161
      %v7163 = vmul.f32 %v5496, 1.442695
      %v7164 = vpow.pop %v7163
      %v7165 = vmul.f32 %v5497, 1.442695
      %v7166 = vpow.pop %v7165
      %v7167 = vmul.f32 %v5498, 1.442695
      %v7168 = vpow.pop %v7167
      %v7169 = vmul.f32 %v5499, 1.442695
      %v7170 = vpow.pop %v7169
      %v7171 = vmul.f32 %v5500, 1.442695
      %v7172 = vpow.pop %v7171
      %v7173 = vmul.f32 %v5501, 1.442695
      %v7174 = vpow.pop %v7173
      %v7175 = vmul.f32 %v5502, 1.442695
      %v7176 = vpow.pop %v7175
      %v7177 = vmul.f32 %v5503, 1.442695
      %v7178 = vpow.pop %v7177
      %v7179 = vmul.f32 %v5504, 1.442695
      %v7180 = vpow.pop %v7179
      %v7181 = vmul.f32 %v5505, 1.442695
      %v7182 = vpow.pop %v7181
      %v7183 = vmul.f32 %v5506, 1.442695
      %v7184 = vpow.pop %v7183
      %v7185 = vmul.f32 %v5507, 1.442695
      %v7186 = vpow.pop %v7185
      %v7187 = vmul.f32 %v5508, 1.442695
      %v7188 = vpow.pop %v7187
      %v7189 = vmul.f32 %v5509, 1.442695
      %v7190 = vpow.pop %v7189
      %v7191 = vmul.f32 %v5510, 1.442695
      %v7192 = vpow.pop %v7191
      %v7193 = vmul.f32 %v5511, 1.442695
      %v7194 = vpow.pop %v7193
      %v7195 = vmul.f32 %v5512, 1.442695
      %v7196 = vpow.pop %v7195
      %v7197 = vmul.f32 %v5513, 1.442695
      %v7198 = vpow.pop %v7197
      %v7199 = vmul.f32 %v5514, 1.442695
      %v7200 = vpow.pop %v7199
      %v7201 = vmul.f32 %v5515, 1.442695
      %v7202 = vpow.pop %v7201
      %v7203 = vmul.f32 %v5516, 1.442695
      %v7204 = vpow.pop %v7203
      %v7205 = vmul.f32 %v5517, 1.442695
      %v7206 = vpow.pop %v7205
      %v7207 = vmul.f32 %v5518, 1.442695
      %v7208 = vpow.pop %v7207
      %v7209 = vmul.f32 %v5519, 1.442695
      %v7210 = vpow.pop %v7209
      %v7211 = vmul.f32 %v5520, 1.442695
      %v7212 = vpow.pop %v7211
      %v7213 = vmul.f32 %v5521, 1.442695
      %v7214 = vpow.pop %v7213
      %v7215 = vmul.f32 %v5522, 1.442695
      %v7216 = vpow.pop %v7215
      %v7217 = vmul.f32 %v5523, 1.442695
      %v7218 = vpow.pop %v7217
      %v7219 = vmul.f32 %v5524, 1.442695
      %v7220 = vpow.pop %v7219
      %v7221 = vmul.f32 %v5525, 1.442695
      %v7222 = vpow.pop %v7221
      %v7223 = vmul.f32 %v5526, 1.442695
      %v7224 = vpow.pop %v7223
      %v7225 = vmul.f32 %v5527, 1.442695
      %v7226 = vpow.pop %v7225
      %v7227 = vmul.f32 %v5528, 1.442695
      %v7228 = vpow.pop %v7227
      %v7229 = vmul.f32 %v5529, 1.442695
      %v7230 = vpow.pop %v7229
      %v7231 = vmul.f32 %v5530, 1.442695
      %v7232 = vpow.pop %v7231
      %v7233 = vmul.f32 %v5531, 1.442695
      %v7234 = vpow.pop %v7233
      %v7235 = vmul.f32 %v5532, 1.442695
      %v7236 = vpow.pop %v7235
      %v7237 = vmul.f32 %v5533, 1.442695
      %v7238 = vpow.pop %v7237
      %v7239 = vmul.f32 %v5534, 1.442695
      %v7240 = vpow.pop %v7239
      %v7241 = vmul.f32 %v5535, 1.442695
      %v7242 = vpow.pop %v7241
      %v7243 = vmul.f32 %v5536, 1.442695
      %v7244 = vpow.pop %v7243
      %v7245 = vmul.f32 %v5537, 1.442695
      %v7246 = vpow.pop %v7245
      %v7247 = vmul.f32 %v5538, 1.442695
      %v7248 = vpow.pop %v7247
      %v7249 = vmul.f32 %v5539, 1.442695
      %v7250 = vpow.pop %v7249
      %v7251 = vmul.f32 %v5540, 1.442695
      %v7252 = vpow.pop %v7251
      %v7253 = vmul.f32 %v5541, 1.442695
      %v7254 = vpow.pop %v7253
      %v7255 = vmul.f32 %v5542, 1.442695
      %v7256 = vpow.pop %v7255
      %v7257 = vmul.f32 %v5543, 1.442695
      %v7258 = vpow.pop %v7257
      %v7259 = vmul.f32 %v5544, 1.442695
      %v7260 = vpow.pop %v7259
      %v7261 = vmul.f32 %v5545, 1.442695
      %v7262 = vpow.pop %v7261
      %v7263 = vmul.f32 %v5546, 1.442695
      %v7264 = vpow.pop %v7263
      %v7265 = vmul.f32 %v5547, 1.442695
      %v7266 = vpow.pop %v7265
      %v7267 = vmul.f32 %v5548, 1.442695
      %v7268 = vpow.pop %v7267
      %v7269 = vmul.f32 %v5549, 1.442695
      %v7270 = vpow.pop %v7269
      %v7271 = vmul.f32 %v5550, 1.442695
      %v7272 = vpow.pop %v7271
      %v7273 = vmul.f32 %v5551, 1.442695
      %v7274 = vpow.pop %v7273
      %v7275 = vmul.f32 %v5552, 1.442695
      %v7276 = vpow.pop %v7275
      %v7277 = vmul.f32 %v5553, 1.442695
      %v7278 = vpow.pop %v7277
      %v7279 = vmul.f32 %v5554, 1.442695
      %v7280 = vpow.pop %v7279
      %v7281 = vmul.f32 %v5555, 1.442695
      %v7282 = vpow.pop %v7281
      %v7283 = vmul.f32 %v5556, 1.442695
      %v7284 = vpow.pop %v7283
      %v7285 = vmul.f32 %v5557, 1.442695
      %v7286 = vpow.pop %v7285
      %v7287 = vmul.f32 %v5558, 1.442695
      %v7288 = vpow.pop %v7287
      %v7289 = vmul.f32 %v5559, 1.442695
      %v7290 = vpow.pop %v7289
      %v7291 = vmul.f32 %v5560, 1.442695
      %v7292 = vpow.pop %v7291
      %v7293 = vmul.f32 %v5561, 1.442695
      %v7294 = vpow.pop %v7293
      %v7295 = vmul.f32 %v5562, 1.442695
      %v7296 = vpow.pop %v7295
      %v7297 = vmul.f32 %v5563, 1.442695
      %v7298 = vpow.pop %v7297
      %v7299 = vmul.f32 %v5564, 1.442695
      %v7300 = vpow.pop %v7299
      %v7301 = vmul.f32 %v5565, 1.442695
      %v7302 = vpow.pop %v7301
      %v7303 = vmul.f32 %v5566, 1.442695
      %v7304 = vpow.pop %v7303
      %v7305 = vmul.f32 %v5567, 1.442695
      %v7306 = vpow.pop %v7305
      %v7307 = vmul.f32 %v5568, 1.442695
      %v7308 = vpow.pop %v7307
      %v7309 = vmul.f32 %v5569, 1.442695
      %v7310 = vpow.pop %v7309
      %v7311 = vmul.f32 %v5570, 1.442695
      %v7312 = vpow.pop %v7311
      %v7313 = vmul.f32 %v5571, 1.442695
      %v7314 = vpow.pop %v7313
      %v7315 = vmul.f32 %v5572, 1.442695
      %v7316 = vpow.pop %v7315
      %v7317 = vmul.f32 %v5573, 1.442695
      %v7318 = vpow.pop %v7317
      %v7319 = vmul.f32 %v5574, 1.442695
      %v7320 = vpow.pop %v7319
      %v7321 = vmul.f32 %v5575, 1.442695
      %v7322 = vpow.pop %v7321
      %v7323 = vmul.f32 %v5576, 1.442695
      %v7324 = vpow.pop %v7323
      %v7325 = vmul.f32 %v5577, 1.442695
      %v7326 = vpow.pop %v7325
      %v7327 = vmul.f32 %v5578, 1.442695
      %v7328 = vpow.pop %v7327
      %v7329 = vmul.f32 %v5579, 1.442695
      %v7330 = vpow.pop %v7329
      %v7331 = vmul.f32 %v5580, 1.442695
      %v7332 = vpow.pop %v7331
      %v7333 = vmul.f32 %v5581, 1.442695
      %v7334 = vpow.pop %v7333
      %v7335 = vmul.f32 %v5582, 1.442695
      %v7336 = vpow.pop %v7335
      %v7337 = vmul.f32 %v5583, 1.442695
      %v7338 = vpow.pop %v7337
      %v7339 = vmul.f32 %v5584, 1.442695
      %v7340 = vpow.pop %v7339
      %v7341 = vmul.f32 %v5585, 1.442695
      %v7342 = vpow.pop %v7341
      %v7343 = vmul.f32 %v5586, 1.442695
      %v7344 = vpow.pop %v7343
      %v7345 = vmul.f32 %v5587, 1.442695
      %v7346 = vpow.pop %v7345
      %v7347 = vmul.f32 %v5588, 1.442695
      %v7348 = vpow.pop %v7347
      %v7349 = vmul.f32 %v5589, 1.442695
      %v7350 = vpow.pop %v7349
      %v7351 = vmul.f32 %v5590, 1.442695
      %v7352 = vpow.pop %v7351
      %v7353 = vmul.f32 %v5591, 1.442695
      %v7354 = vpow.pop %v7353
      %v7355 = vmul.f32 %v5592, 1.442695
      %v7356 = vpow.pop %v7355
      %v7357 = vmul.f32 %v5593, 1.442695
      %v7358 = vpow.pop %v7357
      %v7359 = vmul.f32 %v5594, 1.442695
      %v7360 = vpow.pop %v7359
      %v7361 = vmul.f32 %v5595, 1.442695
      %v7362 = vpow.pop %v7361
      %v7363 = vmul.f32 %v5596, 1.442695
      %v7364 = vpow.pop %v7363
      %v7365 = vmul.f32 %v5597, 1.442695
      %v7366 = vpow.pop %v7365
      %v7367 = vmul.f32 %v5598, 1.442695
      %v7368 = vpow.pop %v7367
      %v7369 = vmul.f32 %v5599, 1.442695
      %v7370 = vpow.pop %v7369
      %v7371 = vmul.f32 %v5600, 1.442695
      %v7372 = vpow.pop %v7371
      %v7373 = vmul.f32 %v5601, 1.442695
      %v7374 = vpow.pop %v7373
      %v7375 = vmul.f32 %v5602, 1.442695
      %v7376 = vpow.pop %v7375
      %v7377 = vmul.f32 %v5603, 1.442695
      %v7378 = vpow.pop %v7377
      %v7379 = vmul.f32 %v5604, 1.442695
      %v7380 = vpow.pop %v7379
      %v7381 = vmul.f32 %v5605, 1.442695
      %v7382 = vpow.pop %v7381
      %v7383 = vmul.f32 %v5606, 1.442695
      %v7384 = vpow.pop %v7383
      %v7385 = vmul.f32 %v5607, 1.442695
      %v7386 = vpow.pop %v7385
      %v7387 = vmul.f32 %v5608, 1.442695
      %v7388 = vpow.pop %v7387
      %v7389 = vmul.f32 %v5609, 1.442695
      %v7390 = vpow.pop %v7389
      %v7391 = vmul.f32 %v5610, 1.442695
      %v7392 = vpow.pop %v7391
      %v7393 = vmul.f32 %v5611, 1.442695
      %v7394 = vpow.pop %v7393
      %v7395 = vmul.f32 %v5612, 1.442695
      %v7396 = vpow.pop %v7395
      %v7397 = vmul.f32 %v5613, 1.442695
      %v7398 = vpow.pop %v7397
      %v7399 = vmul.f32 %v5614, 1.442695
      %v7400 = vpow.pop %v7399
      %v7401 = vmul.f32 %v5615, 1.442695
      %v7402 = vpow.pop %v7401
      %v7403 = vmul.f32 %v5616, 1.442695
      %v7404 = vpow.pop %v7403
      %v7405 = vmul.f32 %v5617, 1.442695
      %v7406 = vpow.pop %v7405
      %v7407 = vmul.f32 %v5618, 1.442695
      %v7408 = vpow.pop %v7407
      %v7409 = vmul.f32 %v5619, 1.442695
      %v7410 = vpow.pop %v7409
      %v7411 = vmul.f32 %v5620, 1.442695
      %v7412 = vpow.pop %v7411
      %v7413 = vmul.f32 %v5621, 1.442695
      %v7414 = vpow.pop %v7413
      %v7415 = vmul.f32 %v5622, 1.442695
      %v7416 = vpow.pop %v7415
      %v7417 = vmul.f32 %v5623, 1.442695
      %v7418 = vpow.pop %v7417
      %v7419 = vmul.f32 %v5624, 1.442695
      %v7420 = vpow.pop %v7419
      %v7421 = vmul.f32 %v5625, 1.442695
      %v7422 = vpow.pop %v7421
      %v7423 = vmul.f32 %v5626, 1.442695
      %v7424 = vpow.pop %v7423
      %v7425 = vmul.f32 %v5627, 1.442695
      %v7426 = vpow.pop %v7425
      %v7427 = vmul.f32 %v5628, 1.442695
      %v7428 = vpow.pop %v7427
      %v7429 = vmul.f32 %v5629, 1.442695
      %v7430 = vpow.pop %v7429
      %v7431 = vmul.f32 %v5630, 1.442695
      %v7432 = vpow.pop %v7431
      %v7433 = vmul.f32 %v5631, 1.442695
      %v7434 = vpow.pop %v7433
      %v7435 = vmul.f32 %v5632, 1.442695
      %v7436 = vpow.pop %v7435
      %v7437 = vmul.f32 %v5633, 1.442695
      %v7438 = vpow.pop %v7437
      %v7439 = vmul.f32 %v5634, 1.442695
      %v7440 = vpow.pop %v7439
      %v7441 = vmul.f32 %v5635, 1.442695
      %v7442 = vpow.pop %v7441
      %v7443 = vmul.f32 %v5636, 1.442695
      %v7444 = vpow.pop %v7443
      %v7445 = vmul.f32 %v5637, 1.442695
      %v7446 = vpow.pop %v7445
      %v7447 = vmul.f32 %v5638, 1.442695
      %v7448 = vpow.pop %v7447
      %v7449 = vmul.f32 %v5639, 1.442695
      %v7450 = vpow.pop %v7449
      %v7451 = vmul.f32 %v5640, 1.442695
      %v7452 = vpow.pop %v7451
      %v7453 = vmul.f32 %v5641, 1.442695
      %v7454 = vpow.pop %v7453
      %v7455 = vmul.f32 %v5642, 1.442695
      %v7456 = vpow.pop %v7455
      %v7457 = vmul.f32 %v5643, 1.442695
      %v7458 = vpow.pop %v7457
      %v7459 = vmul.f32 %v5644, 1.442695
      %v7460 = vpow.pop %v7459
      %v7461 = vmul.f32 %v5645, 1.442695
      %v7462 = vpow.pop %v7461
      %v7463 = vmul.f32 %v5646, 1.442695
      %v7464 = vpow.pop %v7463
      %v7465 = vmul.f32 %v5647, 1.442695
      %v7466 = vpow.pop %v7465
      %v7467 = vmul.f32 %v5648, 1.442695
      %v7468 = vpow.pop %v7467
      %v7469 = vmul.f32 %v5649, 1.442695
      %v7470 = vpow.pop %v7469
      %v7471 = vmul.f32 %v5650, 1.442695
      %v7472 = vpow.pop %v7471
      %v7473 = vmul.f32 %v5651, 1.442695
      %v7474 = vpow.pop %v7473
      %v7475 = vmul.f32 %v5652, 1.442695
      %v7476 = vpow.pop %v7475
      %v7477 = vmul.f32 %v5653, 1.442695
      %v7478 = vpow.pop %v7477
      %v7479 = vmul.f32 %v5654, 1.442695
      %v7480 = vpow.pop %v7479
      %v7481 = vmul.f32 %v5655, 1.442695
      %v7482 = vpow.pop %v7481
      %v7483 = vmul.f32 %v5656, 1.442695
      %v7484 = vpow.pop %v7483
      %v7485 = vmul.f32 %v5657, 1.442695
      %v7486 = vpow.pop %v7485
      %v7487 = vmul.f32 %v5658, 1.442695
      %v7488 = vpow.pop %v7487
      %v7489 = vmul.f32 %v5659, 1.442695
      %v7490 = vpow.pop %v7489
      %v7491 = vmul.f32 %v5660, 1.442695
      %v7492 = vpow.pop %v7491
      %v7493 = vmul.f32 %v5661, 1.442695
      %v7494 = vpow.pop %v7493
      %v7495 = vmul.f32 %v5662, 1.442695
      %v7496 = vpow.pop %v7495
      %v7497 = vmul.f32 %v5663, 1.442695
      %v7498 = vpow.pop %v7497
      %v7499 = vmul.f32 %v5664, 1.442695
      %v7500 = vpow.pop %v7499
      %v7501 = vmul.f32 %v5665, 1.442695
      %v7502 = vpow.pop %v7501
      %v7503 = vmul.f32 %v5666, 1.442695
      %v7504 = vpow.pop %v7503
      %v7505 = vmul.f32 %v5667, 1.442695
      %v7506 = vpow.pop %v7505
      %v7507 = vmul.f32 %v5668, 1.442695
      %v7508 = vpow.pop %v7507
      %v7509 = vmul.f32 %v5669, 1.442695
      %v7510 = vpow.pop %v7509
      %v7511 = vmul.f32 %v5670, 1.442695
      %v7512 = vpow.pop %v7511
      %v7513 = vmul.f32 %v5671, 1.442695
      %v7514 = vpow.pop %v7513
      %v7515 = vmul.f32 %v5672, 1.442695
      %v7516 = vpow.pop %v7515
      %v7517 = vmul.f32 %v5673, 1.442695
      %v7518 = vpow.pop %v7517
      %v7519 = vmul.f32 %v5674, 1.442695
      %v7520 = vpow.pop %v7519
      %v7521 = vmul.f32 %v5675, 1.442695
      %v7522 = vpow.pop %v7521
      %v7523 = vmul.f32 %v5676, 1.442695
      %v7524 = vpow.pop %v7523
      %v7525 = vmul.f32 %v5677, 1.442695
      %v7526 = vpow.pop %v7525
      %v7527 = vmul.f32 %v5678, 1.442695
      %v7528 = vpow.pop %v7527
      %v7529 = vmul.f32 %v5679, 1.442695
      %v7530 = vpow.pop %v7529
      %v7531 = vmul.f32 %v5680, 1.442695
      %v7532 = vpow.pop %v7531
      %v7533 = vmul.f32 %v5681, 1.442695
      %v7534 = vpow.pop %v7533
      %v7535 = vmul.f32 %v5682, 1.442695
      %v7536 = vpow.pop %v7535
      %v7537 = vmul.f32 %v5683, 1.442695
      %v7538 = vpow.pop %v7537
      %v7539 = vmul.f32 %v5684, 1.442695
      %v7540 = vpow.pop %v7539
      %v7541 = vmul.f32 %v5685, 1.442695
      %v7542 = vpow.pop %v7541
      %v7543 = vmul.f32 %v5686, 1.442695
      %v7544 = vpow.pop %v7543
      %v7545 = vmul.f32 %v5687, 1.442695
      %v7546 = vpow.pop %v7545
      %v7547 = vmul.f32 %v5688, 1.442695
      %v7548 = vpow.pop %v7547
      %v7549 = vmul.f32 %v5689, 1.442695
      %v7550 = vpow.pop %v7549
      %v7551 = vmul.f32 %v5690, 1.442695
      %v7552 = vpow.pop %v7551
      %v7553 = vmul.f32 %v5691, 1.442695
      %v7554 = vpow.pop %v7553
      %v7555 = vmul.f32 %v5692, 1.442695
      %v7556 = vpow.pop %v7555
      %v7557 = vmul.f32 %v5693, 1.442695
      %v7558 = vpow.pop %v7557
      %v7559 = vmul.f32 %v5694, 1.442695
      %v7560 = vpow.pop %v7559
      %v7561 = vmul.f32 %v5695, 1.442695
      %v7562 = vpow.pop %v7561
      %v7563 = vmul.f32 %v5696, 1.442695
      %v7564 = vpow.pop %v7563
      %v7565 = vmul.f32 %v5697, 1.442695
      %v7566 = vpow.pop %v7565
      %v7567 = vmul.f32 %v5698, 1.442695
      %v7568 = vpow.pop %v7567
      %v7569 = vmul.f32 %v5699, 1.442695
      %v7570 = vpow.pop %v7569
      %v7571 = vmul.f32 %v5700, 1.442695
      %v7572 = vpow.pop %v7571
      %v7573 = vmul.f32 %v5701, 1.442695
      %v7574 = vpow.pop %v7573
      %v7575 = vmul.f32 %v5702, 1.442695
      %v7576 = vpow.pop %v7575
      %v7577 = vmul.f32 %v5703, 1.442695
      %v7578 = vpow.pop %v7577
      %v7579 = vmul.f32 %v5704, 1.442695
      %v7580 = vpow.pop %v7579
      %v7581 = vmul.f32 %v5705, 1.442695
      %v7582 = vpow.pop %v7581
      %v7583 = vmul.f32 %v5706, 1.442695
      %v7584 = vpow.pop %v7583
      %v7585 = vmul.f32 %v5707, 1.442695
      %v7586 = vpow.pop %v7585
      %v7587 = vmul.f32 %v5708, 1.442695
      %v7588 = vpow.pop %v7587
      %v7589 = vmul.f32 %v5709, 1.442695
      %v7590 = vpow.pop %v7589
      %v7591 = vmul.f32 %v5710, 1.442695
      %v7592 = vpow.pop %v7591
      %v7593 = vmul.f32 %v5711, 1.442695
      %v7594 = vpow.pop %v7593
      %v7595 = vmul.f32 %v5712, 1.442695
      %v7596 = vpow.pop %v7595
      %v7597 = vmul.f32 %v5713, 1.442695
      %v7598 = vpow.pop %v7597
      %v7599 = vmul.f32 %v5714, 1.442695
      %v7600 = vpow.pop %v7599
      %v7601 = vmul.f32 %v5715, 1.442695
      %v7602 = vpow.pop %v7601
      %v7603 = vmul.f32 %v5716, 1.442695
      %v7604 = vpow.pop %v7603
      %v7605 = vmul.f32 %v5717, 1.442695
      %v7606 = vpow.pop %v7605
      %v7607 = vmul.f32 %v5718, 1.442695
      %v7608 = vpow.pop %v7607
      %v7609 = vmul.f32 %v5719, 1.442695
      %v7610 = vpow.pop %v7609
      %v7611 = vmul.f32 %v5720, 1.442695
      %v7612 = vpow.pop %v7611
      %v7613 = vmul.f32 %v5721, 1.442695
      %v7614 = vpow.pop %v7613
      %v7615 = vmul.f32 %v5722, 1.442695
      %v7616 = vpow.pop %v7615
      %v7617 = vmul.f32 %v5723, 1.442695
      %v7618 = vpow.pop %v7617
      %v7619 = vmul.f32 %v5724, 1.442695
      %v7620 = vpow.pop %v7619
      %v7621 = vmul.f32 %v5725, 1.442695
      %v7622 = vpow.pop %v7621
      %v7623 = vmul.f32 %v5726, 1.442695
      %v7624 = vpow.pop %v7623
      %v7625 = vmul.f32 %v5727, 1.442695
      %v7626 = vpow.pop %v7625
      %v7627 = vmul.f32 %v5728, 1.442695
      %v7628 = vpow.pop %v7627
      %v7629 = vmul.f32 %v5729, 1.442695
      %v7630 = vpow.pop %v7629
      %v7631 = vmul.f32 %v5730, 1.442695
      %v7632 = vpow.pop %v7631
      %v7633 = vmul.f32 %v5731, 1.442695
      %v7634 = vpow.pop %v7633
      %v7635 = vmul.f32 %v5732, 1.442695
      %v7636 = vpow.pop %v7635
      %v7637 = vmul.f32 %v5733, 1.442695
      %v7638 = vpow.pop %v7637
      %v7639 = vmul.f32 %v5734, 1.442695
      %v7640 = vpow.pop %v7639
      %v7641 = vmul.f32 %v5735, 1.442695
      %v7642 = vpow.pop %v7641
      %v7643 = vmul.f32 %v5736, 1.442695
      %v7644 = vpow.pop %v7643
      %v7645 = vmul.f32 %v5737, 1.442695
      %v7646 = vpow.pop %v7645
      %v7647 = vmul.f32 %v5738, 1.442695
      %v7648 = vpow.pop %v7647
      %v7649 = vmul.f32 %v5739, 1.442695
      %v7650 = vpow.pop %v7649
      %v7651 = vmul.f32 %v5740, 1.442695
      %v7652 = vpow.pop %v7651
      %v7653 = vmul.f32 %v5741, 1.442695
      %v7654 = vpow.pop %v7653
      %v7655 = vmul.f32 %v5742, 1.442695
      %v7656 = vpow.pop %v7655
      %v7657 = vmul.f32 %v5743, 1.442695
      %v7658 = vpow.pop %v7657
      %v7659 = vmul.f32 %v5744, 1.442695
      %v7660 = vpow.pop %v7659
      %v7661 = vmul.f32 %v5745, 1.442695
      %v7662 = vpow.pop %v7661
      %v7663 = vmul.f32 %v5746, 1.442695
      %v7664 = vpow.pop %v7663
      %v7665 = vmul.f32 %v5747, 1.442695
      %v7666 = vpow.pop %v7665
      %v7667 = vmul.f32 %v5748, 1.442695
      %v7668 = vpow.pop %v7667
      %v7669 = vmul.f32 %v5749, 1.442695
      %v7670 = vpow.pop %v7669
      %v7671 = vmul.f32 %v5750, 1.442695
      %v7672 = vpow.pop %v7671
      %v7673 = vmul.f32 %v5751, 1.442695
      %v7674 = vpow.pop %v7673
      %v7675 = vmul.f32 %v5752, 1.442695
      %v7676 = vpow.pop %v7675
      %v7677 = vmul.f32 %v5753, 1.442695
      %v7678 = vpow.pop %v7677
      %v7679 = vmul.f32 %v5754, 1.442695
      %v7680 = vpow.pop %v7679
      %v7681 = vmul.f32 %v5755, 1.442695
      %v7682 = vpow.pop %v7681
      %v7683 = vmul.f32 %v5756, 1.442695
      %v7684 = vpow.pop %v7683
      %v7685 = vmul.f32 %v5757, 1.442695
      %v7686 = vpow.pop %v7685
      %v7687 = vmul.f32 %v5758, 1.442695
      %v7688 = vpow.pop %v7687
      %v7689 = vmul.f32 %v5759, 1.442695
      %v7690 = vpow.pop %v7689
      %v7691 = vmul.f32 %v5760, 1.442695
      %v7692 = vpow.pop %v7691
      %v7693 = vmul.f32 %v5761, 1.442695
      %v7694 = vpow.pop %v7693
      %v7695 = vmul.f32 %v5762, 1.442695
      %v7696 = vpow.pop %v7695
      %v7697 = vmul.f32 %v5763, 1.442695
      %v7698 = vpow.pop %v7697
      %v7699 = vmul.f32 %v5764, 1.442695
      %v7700 = vpow.pop %v7699
      %v7701 = vmul.f32 %v5765, 1.442695
      %v7702 = vpow.pop %v7701
      %v7703 = vmul.f32 %v5766, 1.442695
      %v7704 = vpow.pop %v7703
      %v7705 = vmul.f32 %v5767, 1.442695
      %v7706 = vpow.pop %v7705
      %v7707 = vmul.f32 %v5768, 1.442695
      %v7708 = vpow.pop %v7707
      %v7709 = vmul.f32 %v5769, 1.442695
      %v7710 = vpow.pop %v7709
      %v7711 = vmul.f32 %v5770, 1.442695
      %v7712 = vpow.pop %v7711
      %v7713 = vmul.f32 %v5771, 1.442695
      %v7714 = vpow.pop %v7713
      %v7715 = vmul.f32 %v5772, 1.442695
      %v7716 = vpow.pop %v7715
      %v7717 = vmul.f32 %v5773, 1.442695
      %v7718 = vpow.pop %v7717
      %v7719 = vmul.f32 %v5774, 1.442695
      %v7720 = vpow.pop %v7719
      %v7721 = vmul.f32 %v5775, 1.442695
      %v7722 = vpow.pop %v7721
      %v7723 = vmul.f32 %v5776, 1.442695
      %v7724 = vpow.pop %v7723
      %v7725 = vmul.f32 %v5777, 1.442695
      %v7726 = vpow.pop %v7725
      %v7727 = vmul.f32 %v5778, 1.442695
      %v7728 = vpow.pop %v7727
      %v7729 = vmul.f32 %v5779, 1.442695
      %v7730 = vpow.pop %v7729
      %v7731 = vmul.f32 %v5780, 1.442695
      %v7732 = vpow.pop %v7731
      %v7733 = vmul.f32 %v5781, 1.442695
      %v7734 = vpow.pop %v7733
      %v7735 = vmul.f32 %v5782, 1.442695
      %v7736 = vpow.pop %v7735
      %v7737 = vmul.f32 %v5783, 1.442695
      %v7738 = vpow.pop %v7737
      %v7739 = vmul.f32 %v5784, 1.442695
      %v7740 = vpow.pop %v7739
      %v7741 = vmul.f32 %v5785, 1.442695
      %v7742 = vpow.pop %v7741
      %v7743 = vmul.f32 %v5786, 1.442695
      %v7744 = vpow.pop %v7743
      %v7745 = vmul.f32 %v5787, 1.442695
      %v7746 = vpow.pop %v7745
      %v7747 = vmul.f32 %v5788, 1.442695
      %v7748 = vpow.pop %v7747
      %v7749 = vmul.f32 %v5789, 1.442695
      %v7750 = vpow.pop %v7749
      %v7751 = vmul.f32 %v5790, 1.442695
      %v7752 = vpow.pop %v7751
      %v7753 = vmul.f32 %v5791, 1.442695
      %v7754 = vpow.pop %v7753
      %v7755 = vmul.f32 %v5792, 1.442695
      %v7756 = vpow.pop %v7755
      %v7757 = vmul.f32 %v5793, 1.442695
      %v7758 = vpow.pop %v7757
      %v7759 = vmul.f32 %v5794, 1.442695
      %v7760 = vpow.pop %v7759
      %v7761 = vmul.f32 %v5795, 1.442695
      %v7762 = vpow.pop %v7761
      %v7763 = vmul.f32 %v5796, 1.442695
      %v7764 = vpow.pop %v7763
      %v7765 = vmul.f32 %v5797, 1.442695
      %v7766 = vpow.pop %v7765
      %v7767 = vmul.f32 %v5798, 1.442695
      %v7768 = vpow.pop %v7767
      %v7769 = vmul.f32 %v5799, 1.442695
      %v7770 = vpow.pop %v7769
      %v7771 = vmul.f32 %v5800, 1.442695
      %v7772 = vpow.pop %v7771
      %v7773 = vmul.f32 %v5801, 1.442695
      %v7774 = vpow.pop %v7773
      %v7775 = vmul.f32 %v5802, 1.442695
      %v7776 = vpow.pop %v7775
      %v7777 = vmul.f32 %v5803, 1.442695
      %v7778 = vpow.pop %v7777
      %v7779 = vmul.f32 %v5804, 1.442695
      %v7780 = vpow.pop %v7779
      %v7781 = vmul.f32 %v5805, 1.442695
      %v7782 = vpow.pop %v7781
      %v7783 = vmul.f32 %v5806, 1.442695
      %v7784 = vpow.pop %v7783
      %v7785 = vmul.f32 %v5807, 1.442695
      %v7786 = vpow.pop %v7785
      %v7787 = vmul.f32 %v5808, 1.442695
      %v7788 = vpow.pop %v7787
      %v7789 = vmul.f32 %v5809, 1.442695
      %v7790 = vpow.pop %v7789
      %v7791 = vmul.f32 %v5810, 1.442695
      %v7792 = vpow.pop %v7791
      %v7793 = vmul.f32 %v5811, 1.442695
      %v7794 = vpow.pop %v7793
      %v7795 = vmul.f32 %v5812, 1.442695
      %v7796 = vpow.pop %v7795
      %v7797 = vmul.f32 %v5813, 1.442695
      %v7798 = vpow.pop %v7797
      %v7799 = vmul.f32 %v5814, 1.442695
      %v7800 = vpow.pop %v7799
      %v7801 = vmul.f32 %v5815, 1.442695
      %v7802 = vpow.pop %v7801
      %v7803 = vmul.f32 %v5816, 1.442695
      %v7804 = vpow.pop %v7803
      %v7805 = vmul.f32 %v5817, 1.442695
      %v7806 = vpow.pop %v7805
      %v7807 = vmul.f32 %v5818, 1.442695
      %v7808 = vpow.pop %v7807
      %v7809 = vmul.f32 %v5819, 1.442695
      %v7810 = vpow.pop %v7809
      %v7811 = vmul.f32 %v5820, 1.442695
      %v7812 = vpow.pop %v7811
      %v7813 = vmul.f32 %v5821, 1.442695
      %v7814 = vpow.pop %v7813
      %v7815 = vmul.f32 %v5822, 1.442695
      %v7816 = vpow.pop %v7815
      %v7817 = vmul.f32 %v5823, 1.442695
      %v7818 = vpow.pop %v7817
      %v7819 = vmul.f32 %v5824, 1.442695
      %v7820 = vpow.pop %v7819
      %v7821 = vmul.f32 %v5825, 1.442695
      %v7822 = vpow.pop %v7821
      %v7823 = vmul.f32 %v5826, 1.442695
      %v7824 = vpow.pop %v7823
      %v7825 = vmul.f32 %v5827, 1.442695
      %v7826 = vpow.pop %v7825
      %v7827 = vmul.f32 %v5828, 1.442695
      %v7828 = vpow.pop %v7827
      %v7829 = vmul.f32 %v5829, 1.442695
      %v7830 = vpow.pop %v7829
      %v7831 = vmul.f32 %v5830, 1.442695
      %v7832 = vpow.pop %v7831
      %v7833 = vmul.f32 %v5831, 1.442695
      %v7834 = vpow.pop %v7833
      %v7835 = vmul.f32 %v5832, 1.442695
      %v7836 = vpow.pop %v7835
      %v7837 = vmul.f32 %v5833, 1.442695
      %v7838 = vpow.pop %v7837
      %v7839 = vmul.f32 %v5834, 1.442695
      %v7840 = vpow.pop %v7839
      %v7841 = vmul.f32 %v5835, 1.442695
      %v7842 = vpow.pop %v7841
      %v7843 = vmul.f32 %v5836, 1.442695
      %v7844 = vpow.pop %v7843
      %v7845 = vmul.f32 %v5837, 1.442695
      %v7846 = vpow.pop %v7845
      %v7847 = vmul.f32 %v5838, 1.442695
      %v7848 = vpow.pop %v7847
      %v7849 = vmul.f32 %v5839, 1.442695
      %v7850 = vpow.pop %v7849
      %v7851 = vmul.f32 %v5840, 1.442695
      %v7852 = vpow.pop %v7851
      %v7853 = vmul.f32 %v5841, 1.442695
      %v7854 = vpow.pop %v7853
      %v7855 = vmul.f32 %v5842, 1.442695
      %v7856 = vpow.pop %v7855
      %v7857 = vmul.f32 %v5843, 1.442695
      %v7858 = vpow.pop %v7857
      %v7859 = vmul.f32 %v5844, 1.442695
      %v7860 = vpow.pop %v7859
      %v7861 = vmul.f32 %v5845, 1.442695
      %v7862 = vpow.pop %v7861
      %v7863 = vmul.f32 %v5846, 1.442695
      %v7864 = vpow.pop %v7863
      %v7865 = vmul.f32 %v5847, 1.442695
      %v7866 = vpow.pop %v7865
      %v7867 = vmul.f32 %v5848, 1.442695
      %v7868 = vpow.pop %v7867
      %v7869 = vmul.f32 %v5849, 1.442695
      %v7870 = vpow.pop %v7869
      %v7871 = vmul.f32 %v5850, 1.442695
      %v7872 = vpow.pop %v7871
      %v7873 = vmul.f32 %v5851, 1.442695
      %v7874 = vpow.pop %v7873
      %v7875 = vmul.f32 %v5852, 1.442695
      %v7876 = vpow.pop %v7875
      %v7877 = vmul.f32 %v5853, 1.442695
      %v7878 = vpow.pop %v7877
      %v7879 = vmul.f32 %v5854, 1.442695
      %v7880 = vpow.pop %v7879
      %v7881 = vmul.f32 %v5855, 1.442695
      %v7882 = vpow.pop %v7881
      %v7883 = vmul.f32 %v5856, 1.442695
      %v7884 = vpow.pop %v7883
      %v7885 = vmul.f32 %v5857, 1.442695
      %v7886 = vpow.pop %v7885
      %v7887 = vmul.f32 %v5858, 1.442695
      %v7888 = vpow.pop %v7887
      %v7889 = vmul.f32 %v5859, 1.442695
      %v7890 = vpow.pop %v7889
      %v7891 = vmul.f32 %v5860, 1.442695
      %v7892 = vpow.pop %v7891
      %v7893 = vmul.f32 %v5861, 1.442695
      %v7894 = vpow.pop %v7893
      %v7895 = vmul.f32 %v5862, 1.442695
      %v7896 = vpow.pop %v7895
      %v7897 = vmul.f32 %v5863, 1.442695
      %v7898 = vpow.pop %v7897
      %v7899 = vmul.f32 %v5864, 1.442695
      %v7900 = vpow.pop %v7899
      %v7901 = vmul.f32 %v5865, 1.442695
      %v7902 = vpow.pop %v7901
      %v7903 = vmul.f32 %v5866, 1.442695
      %v7904 = vpow.pop %v7903
      %v7905 = vmul.f32 %v5867, 1.442695
      %v7906 = vpow.pop %v7905
      %v7907 = vmul.f32 %v5868, 1.442695
      %v7908 = vpow.pop %v7907
      %v7909 = vmul.f32 %v5869, 1.442695
      %v7910 = vpow.pop %v7909
      %v7911 = vmul.f32 %v5870, 1.442695
      %v7912 = vpow.pop %v7911
      %v7913 = vmul.f32 %v5871, 1.442695
      %v7914 = vpow.pop %v7913
      %v7915 = vmul.f32 %v5872, 1.442695
      %v7916 = vpow.pop %v7915
      %v7917 = vmul.f32 %v5873, 1.442695
      %v7918 = vpow.pop %v7917
      %v7919 = vmul.f32 %v5874, 1.442695
      %v7920 = vpow.pop %v7919
      %v7921 = vmul.f32 %v5875, 1.442695
      %v7922 = vpow.pop %v7921
      %v7923 = vmul.f32 %v5876, 1.442695
      %v7924 = vpow.pop %v7923
      %v7925 = vld [vmem:[#allocation4] sm:$0xff]
      %v7926 = vmul.f32 %v4811, %v7925
      %v7927 = vadd.f32 %v5878, %v5894
      %v7928 = vadd.f32 %v7927, %v5910
      %v7929 = vadd.f32 %v7928, %v5926
      %v7930 = vadd.f32 %v7929, %v5942
      %v7931 = vadd.f32 %v7930, %v5958
      %v7932 = vadd.f32 %v7931, %v5974
      %v7933 = vadd.f32 %v7932, %v5990
      %v7934 = vadd.f32 %v7933, %v6006
      %v7935 = vadd.f32 %v7934, %v6022
      %v7936 = vadd.f32 %v7935, %v6038
      %v7937 = vadd.f32 %v7936, %v6054
      %v7938 = vadd.f32 %v7937, %v6070
      %v7939 = vadd.f32 %v7938, %v6086
      %v7940 = vadd.f32 %v7939, %v6102
      %v7941 = vadd.f32 %v7940, %v6118
      %v7942 = vadd.f32 %v7941, %v6134
      %v7943 = vadd.f32 %v7942, %v6150
      %v7944 = vadd.f32 %v7943, %v6166
      %v7945 = vadd.f32 %v7944, %v6182
      %v7946 = vadd.f32 %v7945, %v6198
      %v7947 = vadd.f32 %v7946, %v6214
      %v7948 = vadd.f32 %v7947, %v6230
      %v7949 = vadd.f32 %v7948, %v6246
      %v7950 = vadd.f32 %v7949, %v6262
      %v7951 = vadd.f32 %v7950, %v6278
      %v7952 = vadd.f32 %v7951, %v6294
      %v7953 = vadd.f32 %v7952, %v6310
      %v7954 = vadd.f32 %v7953, %v6326
      %v7955 = vadd.f32 %v7954, %v6342
      %v7956 = vadd.f32 %v7955, %v6358
      %v7957 = vadd.f32 %v7956, %v6374
      %v7958 = vadd.f32 %v7957, %v6390
      %v7959 = vadd.f32 %v7958, %v6406
      %v7960 = vadd.f32 %v7959, %v6422
      %v7961 = vadd.f32 %v7960, %v6438
      %v7962 = vadd.f32 %v7961, %v6454
      %v7963 = vadd.f32 %v7962, %v6470
      %v7964 = vadd.f32 %v7963, %v6486
      %v7965 = vadd.f32 %v7964, %v6502
      %v7966 = vadd.f32 %v7965, %v6518
      %v7967 = vadd.f32 %v7966, %v6534
      %v7968 = vadd.f32 %v7967, %v6550
      %v7969 = vadd.f32 %v7968, %v6566
      %v7970 = vadd.f32 %v7969, %v6582
      %v7971 = vadd.f32 %v7970, %v6598
      %v7972 = vadd.f32 %v7971, %v6614
      %v7973 = vadd.f32 %v7972, %v6630
      %v7974 = vadd.f32 %v7973, %v6646
      %v7975 = vadd.f32 %v7974, %v6662
      %v7976 = vadd.f32 %v7975, %v6678
      %v7977 = vadd.f32 %v7976, %v6694
      %v7978 = vadd.f32 %v7977, %v6710
      %v7979 = vadd.f32 %v7978, %v6726
      %v7980 = vadd.f32 %v7979, %v6742
      %v7981 = vadd.f32 %v7980, %v6758
      %v7982 = vadd.f32 %v7981, %v6774
      %v7983 = vadd.f32 %v7982, %v6790
      %v7984 = vadd.f32 %v7983, %v6806
      %v7985 = vadd.f32 %v7984, %v6822
      %v7986 = vadd.f32 %v7985, %v6838
      %v7987 = vadd.f32 %v7986, %v6854
      %v7988 = vadd.f32 %v7987, %v6870
      %v7989 = vadd.f32 %v7988, %v6886
      %v7990 = vadd.f32 %v7989, %v6902
      %v7991 = vadd.f32 %v7990, %v6918
      %v7992 = vadd.f32 %v7991, %v6934
      %v7993 = vadd.f32 %v7992, %v6950
      %v7994 = vadd.f32 %v7993, %v6966
      %v7995 = vadd.f32 %v7994, %v6982
      %v7996 = vadd.f32 %v7995, %v6998
      %v7997 = vadd.f32 %v7996, %v7014
      %v7998 = vadd.f32 %v7997, %v7030
      %v7999 = vadd.f32 %v7998, %v7046
      %v8000 = vadd.f32 %v7999, %v7062
      %v8001 = vadd.f32 %v8000, %v7078
      %v8002 = vadd.f32 %v8001, %v7094
      %v8003 = vadd.f32 %v8002, %v7110
      %v8004 = vadd.f32 %v8003, %v7126
      %v8005 = vadd.f32 %v8004, %v7142
      %v8006 = vadd.f32 %v8005, %v7158
      %v8007 = vadd.f32 %v8006, %v7174
      %v8008 = vadd.f32 %v8007, %v7190
      %v8009 = vadd.f32 %v8008, %v7206
      %v8010 = vadd.f32 %v8009, %v7222
      %v8011 = vadd.f32 %v8010, %v7238
      %v8012 = vadd.f32 %v8011, %v7254
      %v8013 = vadd.f32 %v8012, %v7270
      %v8014 = vadd.f32 %v8013, %v7286
      %v8015 = vadd.f32 %v8014, %v7302
      %v8016 = vadd.f32 %v8015, %v7318
      %v8017 = vadd.f32 %v8016, %v7334
      %v8018 = vadd.f32 %v8017, %v7350
      %v8019 = vadd.f32 %v8018, %v7366
      %v8020 = vadd.f32 %v8019, %v7382
      %v8021 = vadd.f32 %v8020, %v7398
      %v8022 = vadd.f32 %v8021, %v7414
      %v8023 = vadd.f32 %v8022, %v7430
      %v8024 = vadd.f32 %v8023, %v7446
      %v8025 = vadd.f32 %v8024, %v7462
      %v8026 = vadd.f32 %v8025, %v7478
      %v8027 = vadd.f32 %v8026, %v7494
      %v8028 = vadd.f32 %v8027, %v7510
      %v8029 = vadd.f32 %v8028, %v7526
      %v8030 = vadd.f32 %v8029, %v7542
      %v8031 = vadd.f32 %v8030, %v7558
      %v8032 = vadd.f32 %v8031, %v7574
      %v8033 = vadd.f32 %v8032, %v7590
      %v8034 = vadd.f32 %v8033, %v7606
      %v8035 = vadd.f32 %v8034, %v7622
      %v8036 = vadd.f32 %v8035, %v7638
      %v8037 = vadd.f32 %v8036, %v7654
      %v8038 = vadd.f32 %v8037, %v7670
      %v8039 = vadd.f32 %v8038, %v7686
      %v8040 = vadd.f32 %v8039, %v7702
      %v8041 = vadd.f32 %v8040, %v7718
      %v8042 = vadd.f32 %v8041, %v7734
      %v8043 = vadd.f32 %v8042, %v7750
      %v8044 = vadd.f32 %v8043, %v7766
      %v8045 = vadd.f32 %v8044, %v7782
      %v8046 = vadd.f32 %v8045, %v7798
      %v8047 = vadd.f32 %v8046, %v7814
      %v8048 = vadd.f32 %v8047, %v7830
      %v8049 = vadd.f32 %v8048, %v7846
      %v8050 = vadd.f32 %v8049, %v7862
      %v8051 = vadd.f32 %v8050, %v7878
      %v8052 = vadd.f32 %v8051, %v7894
      %v8053 = vadd.f32 %v8052, %v7910
      %v8054 = vrot.slane %v8053, 4
      %v8055 = vadd.f32 %v8053, %v8054
      %v8056 = vrot.slane %v8055, 2
      %v8057 = vadd.f32 %v8055, %v8056
      %v8058 = vrot.slane %v8057, 1
      %v8059 = vadd.f32 %v8057, %v8058
      %v8060 = vadd.f32 %v5880, %v5896
      %v8061 = vadd.f32 %v8060, %v5912
      %v8062 = vadd.f32 %v8061, %v5928
      %v8063 = vadd.f32 %v8062, %v5944
      %v8064 = vadd.f32 %v8063, %v5960
      %v8065 = vadd.f32 %v8064, %v5976
      %v8066 = vadd.f32 %v8065, %v5992
      %v8067 = vadd.f32 %v8066, %v6008
      %v8068 = vadd.f32 %v8067, %v6024
      %v8069 = vadd.f32 %v8068, %v6040
      %v8070 = vadd.f32 %v8069, %v6056
      %v8071 = vadd.f32 %v8070, %v6072
      %v8072 = vadd.f32 %v8071, %v6088
      %v8073 = vadd.f32 %v8072, %v6104
      %v8074 = vadd.f32 %v8073, %v6120
      %v8075 = vadd.f32 %v8074, %v6136
      %v8076 = vadd.f32 %v8075, %v6152
      %v8077 = vadd.f32 %v8076, %v6168
      %v8078 = vadd.f32 %v8077, %v6184
      %v8079 = vadd.f32 %v8078, %v6200
      %v8080 = vadd.f32 %v8079, %v6216
      %v8081 = vadd.f32 %v8080, %v6232
      %v8082 = vadd.f32 %v8081, %v6248
      %v8083 = vadd.f32 %v8082, %v6264
      %v8084 = vadd.f32 %v8083, %v6280
      %v8085 = vadd.f32 %v8084, %v6296
      %v8086 = vadd.f32 %v8085, %v6312
      %v8087 = vadd.f32 %v8086, %v6328
      %v8088 = vadd.f32 %v8087, %v6344
      %v8089 = vadd.f32 %v8088, %v6360
      %v8090 = vadd.f32 %v8089, %v6376
      %v8091 = vadd.f32 %v8090, %v6392
      %v8092 = vadd.f32 %v8091, %v6408
      %v8093 = vadd.f32 %v8092, %v6424
      %v8094 = vadd.f32 %v8093, %v6440
      %v8095 = vadd.f32 %v8094, %v6456
      %v8096 = vadd.f32 %v8095, %v6472
      %v8097 = vadd.f32 %v8096, %v6488
      %v8098 = vadd.f32 %v8097, %v6504
      %v8099 = vadd.f32 %v8098, %v6520
      %v8100 = vadd.f32 %v8099, %v6536
      %v8101 = vadd.f32 %v8100, %v6552
      %v8102 = vadd.f32 %v8101, %v6568
      %v8103 = vadd.f32 %v8102, %v6584
      %v8104 = vadd.f32 %v8103, %v6600
      %v8105 = vadd.f32 %v8104, %v6616
      %v8106 = vadd.f32 %v8105, %v6632
      %v8107 = vadd.f32 %v8106, %v6648
      %v8108 = vadd.f32 %v8107, %v6664
      %v8109 = vadd.f32 %v8108, %v6680
      %v8110 = vadd.f32 %v8109, %v6696
      %v8111 = vadd.f32 %v8110, %v6712
      %v8112 = vadd.f32 %v8111, %v6728
      %v8113 = vadd.f32 %v8112, %v6744
      %v8114 = vadd.f32 %v8113, %v6760
      %v8115 = vadd.f32 %v8114, %v6776
      %v8116 = vadd.f32 %v8115, %v6792
      %v8117 = vadd.f32 %v8116, %v6808
      %v8118 = vadd.f32 %v8117, %v6824
      %v8119 = vadd.f32 %v8118, %v6840
      %v8120 = vadd.f32 %v8119, %v6856
      %v8121 = vadd.f32 %v8120, %v6872
      %v8122 = vadd.f32 %v8121, %v6888
      %v8123 = vadd.f32 %v8122, %v6904
      %v8124 = vadd.f32 %v8123, %v6920
      %v8125 = vadd.f32 %v8124, %v6936
      %v8126 = vadd.f32 %v8125, %v6952
      %v8127 = vadd.f32 %v8126, %v6968
      %v8128 = vadd.f32 %v8127, %v6984
      %v8129 = vadd.f32 %v8128, %v7000
      %v8130 = vadd.f32 %v8129, %v7016
      %v8131 = vadd.f32 %v8130, %v7032
      %v8132 = vadd.f32 %v8131, %v7048
      %v8133 = vadd.f32 %v8132, %v7064
      %v8134 = vadd.f32 %v8133, %v7080
      %v8135 = vadd.f32 %v8134, %v7096
      %v8136 = vadd.f32 %v8135, %v7112
      %v8137 = vadd.f32 %v8136, %v7128
      %v8138 = vadd.f32 %v8137, %v7144
      %v8139 = vadd.f32 %v8138, %v7160
      %v8140 = vadd.f32 %v8139, %v7176
      %v8141 = vadd.f32 %v8140, %v7192
      %v8142 = vadd.f32 %v8141, %v7208
      %v8143 = vadd.f32 %v8142, %v7224
      %v8144 = vadd.f32 %v8143, %v7240
      %v8145 = vadd.f32 %v8144, %v7256
      %v8146 = vadd.f32 %v8145, %v7272
      %v8147 = vadd.f32 %v8146, %v7288
      %v8148 = vadd.f32 %v8147, %v7304
      %v8149 = vadd.f32 %v8148, %v7320
      %v8150 = vadd.f32 %v8149, %v7336
      %v8151 = vadd.f32 %v8150, %v7352
      %v8152 = vadd.f32 %v8151, %v7368
      %v8153 = vadd.f32 %v8152, %v7384
      %v8154 = vadd.f32 %v8153, %v7400
      %v8155 = vadd.f32 %v8154, %v7416
      %v8156 = vadd.f32 %v8155, %v7432
      %v8157 = vadd.f32 %v8156, %v7448
      %v8158 = vadd.f32 %v8157, %v7464
      %v8159 = vadd.f32 %v8158, %v7480
      %v8160 = vadd.f32 %v8159, %v7496
      %v8161 = vadd.f32 %v8160, %v7512
      %v8162 = vadd.f32 %v8161, %v7528
      %v8163 = vadd.f32 %v8162, %v7544
      %v8164 = vadd.f32 %v8163, %v7560
      %v8165 = vadd.f32 %v8164, %v7576
      %v8166 = vadd.f32 %v8165, %v7592
      %v8167 = vadd.f32 %v8166, %v7608
      %v8168 = vadd.f32 %v8167, %v7624
      %v8169 = vadd.f32 %v8168, %v7640
      %v8170 = vadd.f32 %v8169, %v7656
      %v8171 = vadd.f32 %v8170, %v7672
      %v8172 = vadd.f32 %v8171, %v7688
      %v8173 = vadd.f32 %v8172, %v7704
      %v8174 = vadd.f32 %v8173, %v7720
      %v8175 = vadd.f32 %v8174, %v7736
      %v8176 = vadd.f32 %v8175, %v7752
      %v8177 = vadd.f32 %v8176, %v7768
      %v8178 = vadd.f32 %v8177, %v7784
      %v8179 = vadd.f32 %v8178, %v7800
      %v8180 = vadd.f32 %v8179, %v7816
      %v8181 = vadd.f32 %v8180, %v7832
      %v8182 = vadd.f32 %v8181, %v7848
      %v8183 = vadd.f32 %v8182, %v7864
      %v8184 = vadd.f32 %v8183, %v7880
      %v8185 = vadd.f32 %v8184, %v7896
      %v8186 = vadd.f32 %v8185, %v7912
      %v8187 = vrot.slane %v8186, 4
      %v8188 = vadd.f32 %v8186, %v8187
      %v8189 = vrot.slane %v8188, 2
      %v8190 = vadd.f32 %v8188, %v8189
      %v8191 = vrot.slane %v8190, 1
      %v8192 = vadd.f32 %v8190, %v8191
      %v8193 = vadd.f32 %v5882, %v5898
      %v8194 = vadd.f32 %v8193, %v5914
      %v8195 = vadd.f32 %v8194, %v5930
      %v8196 = vadd.f32 %v8195, %v5946
      %v8197 = vadd.f32 %v8196, %v5962
      %v8198 = vadd.f32 %v8197, %v5978
      %v8199 = vadd.f32 %v8198, %v5994
      %v8200 = vadd.f32 %v8199, %v6010
      %v8201 = vadd.f32 %v8200, %v6026
      %v8202 = vadd.f32 %v8201, %v6042
      %v8203 = vadd.f32 %v8202, %v6058
      %v8204 = vadd.f32 %v8203, %v6074
      %v8205 = vadd.f32 %v8204, %v6090
      %v8206 = vadd.f32 %v8205, %v6106
      %v8207 = vadd.f32 %v8206, %v6122
      %v8208 = vadd.f32 %v8207, %v6138
      %v8209 = vadd.f32 %v8208, %v6154
      %v8210 = vadd.f32 %v8209, %v6170
      %v8211 = vadd.f32 %v8210, %v6186
      %v8212 = vadd.f32 %v8211, %v6202
      %v8213 = vadd.f32 %v8212, %v6218
      %v8214 = vadd.f32 %v8213, %v6234
      %v8215 = vadd.f32 %v8214, %v6250
      %v8216 = vadd.f32 %v8215, %v6266
      %v8217 = vadd.f32 %v8216, %v6282
      %v8218 = vadd.f32 %v8217, %v6298
      %v8219 = vadd.f32 %v8218, %v6314
      %v8220 = vadd.f32 %v8219, %v6330
      %v8221 = vadd.f32 %v8220, %v6346
      %v8222 = vadd.f32 %v8221, %v6362
      %v8223 = vadd.f32 %v8222, %v6378
      %v8224 = vadd.f32 %v8223, %v6394
      %v8225 = vadd.f32 %v8224, %v6410
      %v8226 = vadd.f32 %v8225, %v6426
      %v8227 = vadd.f32 %v8226, %v6442
      %v8228 = vadd.f32 %v8227, %v6458
      %v8229 = vadd.f32 %v8228, %v6474
      %v8230 = vadd.f32 %v8229, %v6490
      %v8231 = vadd.f32 %v8230, %v6506
      %v8232 = vadd.f32 %v8231, %v6522
      %v8233 = vadd.f32 %v8232, %v6538
      %v8234 = vadd.f32 %v8233, %v6554
      %v8235 = vadd.f32 %v8234, %v6570
      %v8236 = vadd.f32 %v8235, %v6586
      %v8237 = vadd.f32 %v8236, %v6602
      %v8238 = vadd.f32 %v8237, %v6618
      %v8239 = vadd.f32 %v8238, %v6634
      %v8240 = vadd.f32 %v8239, %v6650
      %v8241 = vadd.f32 %v8240, %v6666
      %v8242 = vadd.f32 %v8241, %v6682
      %v8243 = vadd.f32 %v8242, %v6698
      %v8244 = vadd.f32 %v8243, %v6714
      %v8245 = vadd.f32 %v8244, %v6730
      %v8246 = vadd.f32 %v8245, %v6746
      %v8247 = vadd.f32 %v8246, %v6762
      %v8248 = vadd.f32 %v8247, %v6778
      %v8249 = vadd.f32 %v8248, %v6794
      %v8250 = vadd.f32 %v8249, %v6810
      %v8251 = vadd.f32 %v8250, %v6826
      %v8252 = vadd.f32 %v8251, %v6842
      %v8253 = vadd.f32 %v8252, %v6858
      %v8254 = vadd.f32 %v8253, %v6874
      %v8255 = vadd.f32 %v8254, %v6890
      %v8256 = vadd.f32 %v8255, %v6906
      %v8257 = vadd.f32 %v8256, %v6922
      %v8258 = vadd.f32 %v8257, %v6938
      %v8259 = vadd.f32 %v8258, %v6954
      %v8260 = vadd.f32 %v8259, %v6970
      %v8261 = vadd.f32 %v8260, %v6986
      %v8262 = vadd.f32 %v8261, %v7002
      %v8263 = vadd.f32 %v8262, %v7018
      %v8264 = vadd.f32 %v8263, %v7034
      %v8265 = vadd.f32 %v8264, %v7050
      %v8266 = vadd.f32 %v8265, %v7066
      %v8267 = vadd.f32 %v8266, %v7082
      %v8268 = vadd.f32 %v8267, %v7098
      %v8269 = vadd.f32 %v8268, %v7114
      %v8270 = vadd.f32 %v8269, %v7130
      %v8271 = vadd.f32 %v8270, %v7146
      %v8272 = vadd.f32 %v8271, %v7162
      %v8273 = vadd.f32 %v8272, %v7178
      %v8274 = vadd.f32 %v8273, %v7194
      %v8275 = vadd.f32 %v8274, %v7210
      %v8276 = vadd.f32 %v8275, %v7226
      %v8277 = vadd.f32 %v8276, %v7242
      %v8278 = vadd.f32 %v8277, %v7258
      %v8279 = vadd.f32 %v8278, %v7274
      %v8280 = vadd.f32 %v8279, %v7290
      %v8281 = vadd.f32 %v8280, %v7306
      %v8282 = vadd.f32 %v8281, %v7322
      %v8283 = vadd.f32 %v8282, %v7338
      %v8284 = vadd.f32 %v8283, %v7354
      %v8285 = vadd.f32 %v8284, %v7370
      %v8286 = vadd.f32 %v8285, %v7386
      %v8287 = vadd.f32 %v8286, %v7402
      %v8288 = vadd.f32 %v8287, %v7418
      %v8289 = vadd.f32 %v8288, %v7434
      %v8290 = vadd.f32 %v8289, %v7450
      %v8291 = vadd.f32 %v8290, %v7466
      %v8292 = vadd.f32 %v8291, %v7482
      %v8293 = vadd.f32 %v8292, %v7498
      %v8294 = vadd.f32 %v8293, %v7514
      %v8295 = vadd.f32 %v8294, %v7530
      %v8296 = vadd.f32 %v8295, %v7546
      %v8297 = vadd.f32 %v8296, %v7562
      %v8298 = vadd.f32 %v8297, %v7578
      %v8299 = vadd.f32 %v8298, %v7594
      %v8300 = vadd.f32 %v8299, %v7610
      %v8301 = vadd.f32 %v8300, %v7626
      %v8302 = vadd.f32 %v8301, %v7642
      %v8303 = vadd.f32 %v8302, %v7658
      %v8304 = vadd.f32 %v8303, %v7674
      %v8305 = vadd.f32 %v8304, %v7690
      %v8306 = vadd.f32 %v8305, %v7706
      %v8307 = vadd.f32 %v8306, %v7722
      %v8308 = vadd.f32 %v8307, %v7738
      %v8309 = vadd.f32 %v8308, %v7754
      %v8310 = vadd.f32 %v8309, %v7770
      %v8311 = vadd.f32 %v8310, %v7786
      %v8312 = vadd.f32 %v8311, %v7802
      %v8313 = vadd.f32 %v8312, %v7818
      %v8314 = vadd.f32 %v8313, %v7834
      %v8315 = vadd.f32 %v8314, %v7850
      %v8316 = vadd.f32 %v8315, %v7866
      %v8317 = vadd.f32 %v8316, %v7882
      %v8318 = vadd.f32 %v8317, %v7898
      %v8319 = vadd.f32 %v8318, %v7914
      %v8320 = vrot.slane %v8319, 4
      %v8321 = vadd.f32 %v8319, %v8320
      %v8322 = vrot.slane %v8321, 2
      %v8323 = vadd.f32 %v8321, %v8322
      %v8324 = vrot.slane %v8323, 1
      %v8325 = vadd.f32 %v8323, %v8324
      %v8326 = vadd.f32 %v5884, %v5900
      %v8327 = vadd.f32 %v8326, %v5916
      %v8328 = vadd.f32 %v8327, %v5932
      %v8329 = vadd.f32 %v8328, %v5948
      %v8330 = vadd.f32 %v8329, %v5964
      %v8331 = vadd.f32 %v8330, %v5980
      %v8332 = vadd.f32 %v8331, %v5996
      %v8333 = vadd.f32 %v8332, %v6012
      %v8334 = vadd.f32 %v8333, %v6028
      %v8335 = vadd.f32 %v8334, %v6044
      %v8336 = vadd.f32 %v8335, %v6060
      %v8337 = vadd.f32 %v8336, %v6076
      %v8338 = vadd.f32 %v8337, %v6092
      %v8339 = vadd.f32 %v8338, %v6108
      %v8340 = vadd.f32 %v8339, %v6124
      %v8341 = vadd.f32 %v8340, %v6140
      %v8342 = vadd.f32 %v8341, %v6156
      %v8343 = vadd.f32 %v8342, %v6172
      %v8344 = vadd.f32 %v8343, %v6188
      %v8345 = vadd.f32 %v8344, %v6204
      %v8346 = vadd.f32 %v8345, %v6220
      %v8347 = vadd.f32 %v8346, %v6236
      %v8348 = vadd.f32 %v8347, %v6252
      %v8349 = vadd.f32 %v8348, %v6268
      %v8350 = vadd.f32 %v8349, %v6284
      %v8351 = vadd.f32 %v8350, %v6300
      %v8352 = vadd.f32 %v8351, %v6316
      %v8353 = vadd.f32 %v8352, %v6332
      %v8354 = vadd.f32 %v8353, %v6348
      %v8355 = vadd.f32 %v8354, %v6364
      %v8356 = vadd.f32 %v8355, %v6380
      %v8357 = vadd.f32 %v8356, %v6396
      %v8358 = vadd.f32 %v8357, %v6412
      %v8359 = vadd.f32 %v8358, %v6428
      %v8360 = vadd.f32 %v8359, %v6444
      %v8361 = vadd.f32 %v8360, %v6460
      %v8362 = vadd.f32 %v8361, %v6476
      %v8363 = vadd.f32 %v8362, %v6492
      %v8364 = vadd.f32 %v8363, %v6508
      %v8365 = vadd.f32 %v8364, %v6524
      %v8366 = vadd.f32 %v8365, %v6540
      %v8367 = vadd.f32 %v8366, %v6556
      %v8368 = vadd.f32 %v8367, %v6572
      %v8369 = vadd.f32 %v8368, %v6588
      %v8370 = vadd.f32 %v8369, %v6604
      %v8371 = vadd.f32 %v8370, %v6620
      %v8372 = vadd.f32 %v8371, %v6636
      %v8373 = vadd.f32 %v8372, %v6652
      %v8374 = vadd.f32 %v8373, %v6668
      %v8375 = vadd.f32 %v8374, %v6684
      %v8376 = vadd.f32 %v8375, %v6700
      %v8377 = vadd.f32 %v8376, %v6716
      %v8378 = vadd.f32 %v8377, %v6732
      %v8379 = vadd.f32 %v8378, %v6748
      %v8380 = vadd.f32 %v8379, %v6764
      %v8381 = vadd.f32 %v8380, %v6780
      %v8382 = vadd.f32 %v8381, %v6796
      %v8383 = vadd.f32 %v8382, %v6812
      %v8384 = vadd.f32 %v8383, %v6828
      %v8385 = vadd.f32 %v8384, %v6844
      %v8386 = vadd.f32 %v8385, %v6860
      %v8387 = vadd.f32 %v8386, %v6876
      %v8388 = vadd.f32 %v8387, %v6892
      %v8389 = vadd.f32 %v8388, %v6908
      %v8390 = vadd.f32 %v8389, %v6924
      %v8391 = vadd.f32 %v8390, %v6940
      %v8392 = vadd.f32 %v8391, %v6956
      %v8393 = vadd.f32 %v8392, %v6972
      %v8394 = vadd.f32 %v8393, %v6988
      %v8395 = vadd.f32 %v8394, %v7004
      %v8396 = vadd.f32 %v8395, %v7020
      %v8397 = vadd.f32 %v8396, %v7036
      %v8398 = vadd.f32 %v8397, %v7052
      %v8399 = vadd.f32 %v8398, %v7068
      %v8400 = vadd.f32 %v8399, %v7084
      %v8401 = vadd.f32 %v8400, %v7100
      %v8402 = vadd.f32 %v8401, %v7116
      %v8403 = vadd.f32 %v8402, %v7132
      %v8404 = vadd.f32 %v8403, %v7148
      %v8405 = vadd.f32 %v8404, %v7164
      %v8406 = vadd.f32 %v8405, %v7180
      %v8407 = vadd.f32 %v8406, %v7196
      %v8408 = vadd.f32 %v8407, %v7212
      %v8409 = vadd.f32 %v8408, %v7228
      %v8410 = vadd.f32 %v8409, %v7244
      %v8411 = vadd.f32 %v8410, %v7260
      %v8412 = vadd.f32 %v8411, %v7276
      %v8413 = vadd.f32 %v8412, %v7292
      %v8414 = vadd.f32 %v8413, %v7308
      %v8415 = vadd.f32 %v8414, %v7324
      %v8416 = vadd.f32 %v8415, %v7340
      %v8417 = vadd.f32 %v8416, %v7356
      %v8418 = vadd.f32 %v8417, %v7372
      %v8419 = vadd.f32 %v8418, %v7388
      %v8420 = vadd.f32 %v8419, %v7404
      %v8421 = vadd.f32 %v8420, %v7420
      %v8422 = vadd.f32 %v8421, %v7436
      %v8423 = vadd.f32 %v8422, %v7452
      %v8424 = vadd.f32 %v8423, %v7468
      %v8425 = vadd.f32 %v8424, %v7484
      %v8426 = vadd.f32 %v8425, %v7500
      %v8427 = vadd.f32 %v8426, %v7516
      %v8428 = vadd.f32 %v8427, %v7532
      %v8429 = vadd.f32 %v8428, %v7548
      %v8430 = vadd.f32 %v8429, %v7564
      %v8431 = vadd.f32 %v8430, %v7580
      %v8432 = vadd.f32 %v8431, %v7596
      %v8433 = vadd.f32 %v8432, %v7612
      %v8434 = vadd.f32 %v8433, %v7628
      %v8435 = vadd.f32 %v8434, %v7644
      %v8436 = vadd.f32 %v8435, %v7660
      %v8437 = vadd.f32 %v8436, %v7676
      %v8438 = vadd.f32 %v8437, %v7692
      %v8439 = vadd.f32 %v8438, %v7708
      %v8440 = vadd.f32 %v8439, %v7724
      %v8441 = vadd.f32 %v8440, %v7740
      %v8442 = vadd.f32 %v8441, %v7756
      %v8443 = vadd.f32 %v8442, %v7772
      %v8444 = vadd.f32 %v8443, %v7788
      %v8445 = vadd.f32 %v8444, %v7804
      %v8446 = vadd.f32 %v8445, %v7820
      %v8447 = vadd.f32 %v8446, %v7836
      %v8448 = vadd.f32 %v8447, %v7852
      %v8449 = vadd.f32 %v8448, %v7868
      %v8450 = vadd.f32 %v8449, %v7884
      %v8451 = vadd.f32 %v8450, %v7900
      %v8452 = vadd.f32 %v8451, %v7916
      %v8453 = vrot.slane %v8452, 4
      %v8454 = vadd.f32 %v8452, %v8453
      %v8455 = vrot.slane %v8454, 2
      %v8456 = vadd.f32 %v8454, %v8455
      %v8457 = vrot.slane %v8456, 1
      %v8458 = vadd.f32 %v8456, %v8457
      %v8459 = vadd.f32 %v5886, %v5902
      %v8460 = vadd.f32 %v8459, %v5918
      %v8461 = vadd.f32 %v8460, %v5934
      %v8462 = vadd.f32 %v8461, %v5950
      %v8463 = vadd.f32 %v8462, %v5966
      %v8464 = vadd.f32 %v8463, %v5982
      %v8465 = vadd.f32 %v8464, %v5998
      %v8466 = vadd.f32 %v8465, %v6014
      %v8467 = vadd.f32 %v8466, %v6030
      %v8468 = vadd.f32 %v8467, %v6046
      %v8469 = vadd.f32 %v8468, %v6062
      %v8470 = vadd.f32 %v8469, %v6078
      %v8471 = vadd.f32 %v8470, %v6094
      %v8472 = vadd.f32 %v8471, %v6110
      %v8473 = vadd.f32 %v8472, %v6126
      %v8474 = vadd.f32 %v8473, %v6142
      %v8475 = vadd.f32 %v8474, %v6158
      %v8476 = vadd.f32 %v8475, %v6174
      %v8477 = vadd.f32 %v8476, %v6190
      %v8478 = vadd.f32 %v8477, %v6206
      %v8479 = vadd.f32 %v8478, %v6222
      %v8480 = vadd.f32 %v8479, %v6238
      %v8481 = vadd.f32 %v8480, %v6254
      %v8482 = vadd.f32 %v8481, %v6270
      %v8483 = vadd.f32 %v8482, %v6286
      %v8484 = vadd.f32 %v8483, %v6302
      %v8485 = vadd.f32 %v8484, %v6318
      %v8486 = vadd.f32 %v8485, %v6334
      %v8487 = vadd.f32 %v8486, %v6350
      %v8488 = vadd.f32 %v8487, %v6366
      %v8489 = vadd.f32 %v8488, %v6382
      %v8490 = vadd.f32 %v8489, %v6398
      %v8491 = vadd.f32 %v8490, %v6414
      %v8492 = vadd.f32 %v8491, %v6430
      %v8493 = vadd.f32 %v8492, %v6446
      %v8494 = vadd.f32 %v8493, %v6462
      %v8495 = vadd.f32 %v8494, %v6478
      %v8496 = vadd.f32 %v8495, %v6494
      %v8497 = vadd.f32 %v8496, %v6510
      %v8498 = vadd.f32 %v8497, %v6526
      %v8499 = vadd.f32 %v8498, %v6542
      %v8500 = vadd.f32 %v8499, %v6558
      %v8501 = vadd.f32 %v8500, %v6574
      %v8502 = vadd.f32 %v8501, %v6590
      %v8503 = vadd.f32 %v8502, %v6606
      %v8504 = vadd.f32 %v8503, %v6622
      %v8505 = vadd.f32 %v8504, %v6638
      %v8506 = vadd.f32 %v8505, %v6654
      %v8507 = vadd.f32 %v8506, %v6670
      %v8508 = vadd.f32 %v8507, %v6686
      %v8509 = vadd.f32 %v8508, %v6702
      %v8510 = vadd.f32 %v8509, %v6718
      %v8511 = vadd.f32 %v8510, %v6734
      %v8512 = vadd.f32 %v8511, %v6750
      %v8513 = vadd.f32 %v8512, %v6766
      %v8514 = vadd.f32 %v8513, %v6782
      %v8515 = vadd.f32 %v8514, %v6798
      %v8516 = vadd.f32 %v8515, %v6814
      %v8517 = vadd.f32 %v8516, %v6830
      %v8518 = vadd.f32 %v8517, %v6846
      %v8519 = vadd.f32 %v8518, %v6862
      %v8520 = vadd.f32 %v8519, %v6878
      %v8521 = vadd.f32 %v8520, %v6894
      %v8522 = vadd.f32 %v8521, %v6910
      %v8523 = vadd.f32 %v8522, %v6926
      %v8524 = vadd.f32 %v8523, %v6942
      %v8525 = vadd.f32 %v8524, %v6958
      %v8526 = vadd.f32 %v8525, %v6974
      %v8527 = vadd.f32 %v8526, %v6990
      %v8528 = vadd.f32 %v8527, %v7006
      %v8529 = vadd.f32 %v8528, %v7022
      %v8530 = vadd.f32 %v8529, %v7038
      %v8531 = vadd.f32 %v8530, %v7054
      %v8532 = vadd.f32 %v8531, %v7070
      %v8533 = vadd.f32 %v8532, %v7086
      %v8534 = vadd.f32 %v8533, %v7102
      %v8535 = vadd.f32 %v8534, %v7118
      %v8536 = vadd.f32 %v8535, %v7134
      %v8537 = vadd.f32 %v8536, %v7150
      %v8538 = vadd.f32 %v8537, %v7166
      %v8539 = vadd.f32 %v8538, %v7182
      %v8540 = vadd.f32 %v8539, %v7198
      %v8541 = vadd.f32 %v8540, %v7214
      %v8542 = vadd.f32 %v8541, %v7230
      %v8543 = vadd.f32 %v8542, %v7246
      %v8544 = vadd.f32 %v8543, %v7262
      %v8545 = vadd.f32 %v8544, %v7278
      %v8546 = vadd.f32 %v8545, %v7294
      %v8547 = vadd.f32 %v8546, %v7310
      %v8548 = vadd.f32 %v8547, %v7326
      %v8549 = vadd.f32 %v8548, %v7342
      %v8550 = vadd.f32 %v8549, %v7358
      %v8551 = vadd.f32 %v8550, %v7374
      %v8552 = vadd.f32 %v8551, %v7390
      %v8553 = vadd.f32 %v8552, %v7406
      %v8554 = vadd.f32 %v8553, %v7422
      %v8555 = vadd.f32 %v8554, %v7438
      %v8556 = vadd.f32 %v8555, %v7454
      %v8557 = vadd.f32 %v8556, %v7470
      %v8558 = vadd.f32 %v8557, %v7486
      %v8559 = vadd.f32 %v8558, %v7502
      %v8560 = vadd.f32 %v8559, %v7518
      %v8561 = vadd.f32 %v8560, %v7534
      %v8562 = vadd.f32 %v8561, %v7550
      %v8563 = vadd.f32 %v8562, %v7566
      %v8564 = vadd.f32 %v8563, %v7582
      %v8565 = vadd.f32 %v8564, %v7598
      %v8566 = vadd.f32 %v8565, %v7614
      %v8567 = vadd.f32 %v8566, %v7630
      %v8568 = vadd.f32 %v8567, %v7646
      %v8569 = vadd.f32 %v8568, %v7662
      %v8570 = vadd.f32 %v8569, %v7678
      %v8571 = vadd.f32 %v8570, %v7694
      %v8572 = vadd.f32 %v8571, %v7710
      %v8573 = vadd.f32 %v8572, %v7726
      %v8574 = vadd.f32 %v8573, %v7742
      %v8575 = vadd.f32 %v8574, %v7758
      %v8576 = vadd.f32 %v8575, %v7774
      %v8577 = vadd.f32 %v8576, %v7790
      %v8578 = vadd.f32 %v8577, %v7806
      %v8579 = vadd.f32 %v8578, %v7822
      %v8580 = vadd.f32 %v8579, %v7838
      %v8581 = vadd.f32 %v8580, %v7854
      %v8582 = vadd.f32 %v8581, %v7870
      %v8583 = vadd.f32 %v8582, %v7886
      %v8584 = vadd.f32 %v8583, %v7902
      %v8585 = vadd.f32 %v8584, %v7918
      %v8586 = vrot.slane %v8585, 4
      %v8587 = vadd.f32 %v8585, %v8586
      %v8588 = vrot.slane %v8587, 2
      %v8589 = vadd.f32 %v8587, %v8588
      %v8590 = vrot.slane %v8589, 1
      %v8591 = vadd.f32 %v8589, %v8590
      %v8592 = vadd.f32 %v5888, %v5904
      %v8593 = vadd.f32 %v8592, %v5920
      %v8594 = vadd.f32 %v8593, %v5936
      %v8595 = vadd.f32 %v8594, %v5952
      %v8596 = vadd.f32 %v8595, %v5968
      %v8597 = vadd.f32 %v8596, %v5984
      %v8598 = vadd.f32 %v8597, %v6000
      %v8599 = vadd.f32 %v8598, %v6016
      %v8600 = vadd.f32 %v8599, %v6032
      %v8601 = vadd.f32 %v8600, %v6048
      %v8602 = vadd.f32 %v8601, %v6064
      %v8603 = vadd.f32 %v8602, %v6080
      %v8604 = vadd.f32 %v8603, %v6096
      %v8605 = vadd.f32 %v8604, %v6112
      %v8606 = vadd.f32 %v8605, %v6128
      %v8607 = vadd.f32 %v8606, %v6144
      %v8608 = vadd.f32 %v8607, %v6160
      %v8609 = vadd.f32 %v8608, %v6176
      %v8610 = vadd.f32 %v8609, %v6192
      %v8611 = vadd.f32 %v8610, %v6208
      %v8612 = vadd.f32 %v8611, %v6224
      %v8613 = vadd.f32 %v8612, %v6240
      %v8614 = vadd.f32 %v8613, %v6256
      %v8615 = vadd.f32 %v8614, %v6272
      %v8616 = vadd.f32 %v8615, %v6288
      %v8617 = vadd.f32 %v8616, %v6304
      %v8618 = vadd.f32 %v8617, %v6320
      %v8619 = vadd.f32 %v8618, %v6336
      %v8620 = vadd.f32 %v8619, %v6352
      %v8621 = vadd.f32 %v8620, %v6368
      %v8622 = vadd.f32 %v8621, %v6384
      %v8623 = vadd.f32 %v8622, %v6400
      %v8624 = vadd.f32 %v8623, %v6416
      %v8625 = vadd.f32 %v8624, %v6432
      %v8626 = vadd.f32 %v8625, %v6448
      %v8627 = vadd.f32 %v8626, %v6464
      %v8628 = vadd.f32 %v8627, %v6480
      %v8629 = vadd.f32 %v8628, %v6496
      %v8630 = vadd.f32 %v8629, %v6512
      %v8631 = vadd.f32 %v8630, %v6528
      %v8632 = vadd.f32 %v8631, %v6544
      %v8633 = vadd.f32 %v8632, %v6560
      %v8634 = vadd.f32 %v8633, %v6576
      %v8635 = vadd.f32 %v8634, %v6592
      %v8636 = vadd.f32 %v8635, %v6608
      %v8637 = vadd.f32 %v8636, %v6624
      %v8638 = vadd.f32 %v8637, %v6640
      %v8639 = vadd.f32 %v8638, %v6656
      %v8640 = vadd.f32 %v8639, %v6672
      %v8641 = vadd.f32 %v8640, %v6688
      %v8642 = vadd.f32 %v8641, %v6704
      %v8643 = vadd.f32 %v8642, %v6720
      %v8644 = vadd.f32 %v8643, %v6736
      %v8645 = vadd.f32 %v8644, %v6752
      %v8646 = vadd.f32 %v8645, %v6768
      %v8647 = vadd.f32 %v8646, %v6784
      %v8648 = vadd.f32 %v8647, %v6800
      %v8649 = vadd.f32 %v8648, %v6816
      %v8650 = vadd.f32 %v8649, %v6832
      %v8651 = vadd.f32 %v8650, %v6848
      %v8652 = vadd.f32 %v8651, %v6864
      %v8653 = vadd.f32 %v8652, %v6880
      %v8654 = vadd.f32 %v8653, %v6896
      %v8655 = vadd.f32 %v8654, %v6912
      %v8656 = vadd.f32 %v8655, %v6928
      %v8657 = vadd.f32 %v8656, %v6944
      %v8658 = vadd.f32 %v8657, %v6960
      %v8659 = vadd.f32 %v8658, %v6976
      %v8660 = vadd.f32 %v8659, %v6992
      %v8661 = vadd.f32 %v8660, %v7008
      %v8662 = vadd.f32 %v8661, %v7024
      %v8663 = vadd.f32 %v8662, %v7040
      %v8664 = vadd.f32 %v8663, %v7056
      %v8665 = vadd.f32 %v8664, %v7072
      %v8666 = vadd.f32 %v8665, %v7088
      %v8667 = vadd.f32 %v8666, %v7104
      %v8668 = vadd.f32 %v8667, %v7120
      %v8669 = vadd.f32 %v8668, %v7136
      %v8670 = vadd.f32 %v8669, %v7152
      %v8671 = vadd.f32 %v8670, %v7168
      %v8672 = vadd.f32 %v8671, %v7184
      %v8673 = vadd.f32 %v8672, %v7200
      %v8674 = vadd.f32 %v8673, %v7216
      %v8675 = vadd.f32 %v8674, %v7232
      %v8676 = vadd.f32 %v8675, %v7248
      %v8677 = vadd.f32 %v8676, %v7264
      %v8678 = vadd.f32 %v8677, %v7280
      %v8679 = vadd.f32 %v8678, %v7296
      %v8680 = vadd.f32 %v8679, %v7312
      %v8681 = vadd.f32 %v8680, %v7328
      %v8682 = vadd.f32 %v8681, %v7344
      %v8683 = vadd.f32 %v8682, %v7360
      %v8684 = vadd.f32 %v8683, %v7376
      %v8685 = vadd.f32 %v8684, %v7392
      %v8686 = vadd.f32 %v8685, %v7408
      %v8687 = vadd.f32 %v8686, %v7424
      %v8688 = vadd.f32 %v8687, %v7440
      %v8689 = vadd.f32 %v8688, %v7456
      %v8690 = vadd.f32 %v8689, %v7472
      %v8691 = vadd.f32 %v8690, %v7488
      %v8692 = vadd.f32 %v8691, %v7504
      %v8693 = vadd.f32 %v8692, %v7520
      %v8694 = vadd.f32 %v8693, %v7536
      %v8695 = vadd.f32 %v8694, %v7552
      %v8696 = vadd.f32 %v8695, %v7568
      %v8697 = vadd.f32 %v8696, %v7584
      %v8698 = vadd.f32 %v8697, %v7600
      %v8699 = vadd.f32 %v8698, %v7616
      %v8700 = vadd.f32 %v8699, %v7632
      %v8701 = vadd.f32 %v8700, %v7648
      %v8702 = vadd.f32 %v8701, %v7664
      %v8703 = vadd.f32 %v8702, %v7680
      %v8704 = vadd.f32 %v8703, %v7696
      %v8705 = vadd.f32 %v8704, %v7712
      %v8706 = vadd.f32 %v8705, %v7728
      %v8707 = vadd.f32 %v8706, %v7744
      %v8708 = vadd.f32 %v8707, %v7760
      %v8709 = vadd.f32 %v8708, %v7776
      %v8710 = vadd.f32 %v8709, %v7792
      %v8711 = vadd.f32 %v8710, %v7808
      %v8712 = vadd.f32 %v8711, %v7824
      %v8713 = vadd.f32 %v8712, %v7840
      %v8714 = vadd.f32 %v8713, %v7856
      %v8715 = vadd.f32 %v8714, %v7872
      %v8716 = vadd.f32 %v8715, %v7888
      %v8717 = vadd.f32 %v8716, %v7904
      %v8718 = vadd.f32 %v8717, %v7920
      %v8719 = vrot.slane %v8718, 4
      %v8720 = vadd.f32 %v8718, %v8719
      %v8721 = vrot.slane %v8720, 2
      %v8722 = vadd.f32 %v8720, %v8721
      %v8723 = vrot.slane %v8722, 1
      %v8724 = vadd.f32 %v8722, %v8723
      %v8725 = vadd.f32 %v5890, %v5906
      %v8726 = vadd.f32 %v8725, %v5922
      %v8727 = vadd.f32 %v8726, %v5938
      %v8728 = vadd.f32 %v8727, %v5954
      %v8729 = vadd.f32 %v8728, %v5970
      %v8730 = vadd.f32 %v8729, %v5986
      %v8731 = vadd.f32 %v8730, %v6002
      %v8732 = vadd.f32 %v8731, %v6018
      %v8733 = vadd.f32 %v8732, %v6034
      %v8734 = vadd.f32 %v8733, %v6050
      %v8735 = vadd.f32 %v8734, %v6066
      %v8736 = vadd.f32 %v8735, %v6082
      %v8737 = vadd.f32 %v8736, %v6098
      %v8738 = vadd.f32 %v8737, %v6114
      %v8739 = vadd.f32 %v8738, %v6130
      %v8740 = vadd.f32 %v8739, %v6146
      %v8741 = vadd.f32 %v8740, %v6162
      %v8742 = vadd.f32 %v8741, %v6178
      %v8743 = vadd.f32 %v8742, %v6194
      %v8744 = vadd.f32 %v8743, %v6210
      %v8745 = vadd.f32 %v8744, %v6226
      %v8746 = vadd.f32 %v8745, %v6242
      %v8747 = vadd.f32 %v8746, %v6258
      %v8748 = vadd.f32 %v8747, %v6274
      %v8749 = vadd.f32 %v8748, %v6290
      %v8750 = vadd.f32 %v8749, %v6306
      %v8751 = vadd.f32 %v8750, %v6322
      %v8752 = vadd.f32 %v8751, %v6338
      %v8753 = vadd.f32 %v8752, %v6354
      %v8754 = vadd.f32 %v8753, %v6370
      %v8755 = vadd.f32 %v8754, %v6386
      %v8756 = vadd.f32 %v8755, %v6402
      %v8757 = vadd.f32 %v8756, %v6418
      %v8758 = vadd.f32 %v8757, %v6434
      %v8759 = vadd.f32 %v8758, %v6450
      %v8760 = vadd.f32 %v8759, %v6466
      %v8761 = vadd.f32 %v8760, %v6482
      %v8762 = vadd.f32 %v8761, %v6498
      %v8763 = vadd.f32 %v8762, %v6514
      %v8764 = vadd.f32 %v8763, %v6530
      %v8765 = vadd.f32 %v8764, %v6546
      %v8766 = vadd.f32 %v8765, %v6562
      %v8767 = vadd.f32 %v8766, %v6578
      %v8768 = vadd.f32 %v8767, %v6594
      %v8769 = vadd.f32 %v8768, %v6610
      %v8770 = vadd.f32 %v8769, %v6626
      %v8771 = vadd.f32 %v8770, %v6642
      %v8772 = vadd.f32 %v8771, %v6658
      %v8773 = vadd.f32 %v8772, %v6674
      %v8774 = vadd.f32 %v8773, %v6690
      %v8775 = vadd.f32 %v8774, %v6706
      %v8776 = vadd.f32 %v8775, %v6722
      %v8777 = vadd.f32 %v8776, %v6738
      %v8778 = vadd.f32 %v8777, %v6754
      %v8779 = vadd.f32 %v8778, %v6770
      %v8780 = vadd.f32 %v8779, %v6786
      %v8781 = vadd.f32 %v8780, %v6802
      %v8782 = vadd.f32 %v8781, %v6818
      %v8783 = vadd.f32 %v8782, %v6834
      %v8784 = vadd.f32 %v8783, %v6850
      %v8785 = vadd.f32 %v8784, %v6866
      %v8786 = vadd.f32 %v8785, %v6882
      %v8787 = vadd.f32 %v8786, %v6898
      %v8788 = vadd.f32 %v8787, %v6914
      %v8789 = vadd.f32 %v8788, %v6930
      %v8790 = vadd.f32 %v8789, %v6946
      %v8791 = vadd.f32 %v8790, %v6962
      %v8792 = vadd.f32 %v8791, %v6978
      %v8793 = vadd.f32 %v8792, %v6994
      %v8794 = vadd.f32 %v8793, %v7010
      %v8795 = vadd.f32 %v8794, %v7026
      %v8796 = vadd.f32 %v8795, %v7042
      %v8797 = vadd.f32 %v8796, %v7058
      %v8798 = vadd.f32 %v8797, %v7074
      %v8799 = vadd.f32 %v8798, %v7090
      %v8800 = vadd.f32 %v8799, %v7106
      %v8801 = vadd.f32 %v8800, %v7122
      %v8802 = vadd.f32 %v8801, %v7138
      %v8803 = vadd.f32 %v8802, %v7154
      %v8804 = vadd.f32 %v8803, %v7170
      %v8805 = vadd.f32 %v8804, %v7186
      %v8806 = vadd.f32 %v8805, %v7202
      %v8807 = vadd.f32 %v8806, %v7218
      %v8808 = vadd.f32 %v8807, %v7234
      %v8809 = vadd.f32 %v8808, %v7250
      %v8810 = vadd.f32 %v8809, %v7266
      %v8811 = vadd.f32 %v8810, %v7282
      %v8812 = vadd.f32 %v8811, %v7298
      %v8813 = vadd.f32 %v8812, %v7314
      %v8814 = vadd.f32 %v8813, %v7330
      %v8815 = vadd.f32 %v8814, %v7346
      %v8816 = vadd.f32 %v8815, %v7362
      %v8817 = vadd.f32 %v8816, %v7378
      %v8818 = vadd.f32 %v8817, %v7394
      %v8819 = vadd.f32 %v8818, %v7410
      %v8820 = vadd.f32 %v8819, %v7426
      %v8821 = vadd.f32 %v8820, %v7442
      %v8822 = vadd.f32 %v8821, %v7458
      %v8823 = vadd.f32 %v8822, %v7474
      %v8824 = vadd.f32 %v8823, %v7490
      %v8825 = vadd.f32 %v8824, %v7506
      %v8826 = vadd.f32 %v8825, %v7522
      %v8827 = vadd.f32 %v8826, %v7538
      %v8828 = vadd.f32 %v8827, %v7554
      %v8829 = vadd.f32 %v8828, %v7570
      %v8830 = vadd.f32 %v8829, %v7586
      %v8831 = vadd.f32 %v8830, %v7602
      %v8832 = vadd.f32 %v8831, %v7618
      %v8833 = vadd.f32 %v8832, %v7634
      %v8834 = vadd.f32 %v8833, %v7650
      %v8835 = vadd.f32 %v8834, %v7666
      %v8836 = vadd.f32 %v8835, %v7682
      %v8837 = vadd.f32 %v8836, %v7698
      %v8838 = vadd.f32 %v8837, %v7714
      %v8839 = vadd.f32 %v8838, %v7730
      %v8840 = vadd.f32 %v8839, %v7746
      %v8841 = vadd.f32 %v8840, %v7762
      %v8842 = vadd.f32 %v8841, %v7778
      %v8843 = vadd.f32 %v8842, %v7794
      %v8844 = vadd.f32 %v8843, %v7810
      %v8845 = vadd.f32 %v8844, %v7826
      %v8846 = vadd.f32 %v8845, %v7842
      %v8847 = vadd.f32 %v8846, %v7858
      %v8848 = vadd.f32 %v8847, %v7874
      %v8849 = vadd.f32 %v8848, %v7890
      %v8850 = vadd.f32 %v8849, %v7906
      %v8851 = vadd.f32 %v8850, %v7922
      %v8852 = vrot.slane %v8851, 4
      %v8853 = vadd.f32 %v8851, %v8852
      %v8854 = vrot.slane %v8853, 2
      %v8855 = vadd.f32 %v8853, %v8854
      %v8856 = vrot.slane %v8855, 1
      %v8857 = vadd.f32 %v8855, %v8856
      %v8858 = vadd.f32 %v5892, %v5908
      %v8859 = vadd.f32 %v8858, %v5924
      %v8860 = vadd.f32 %v8859, %v5940
      %v8861 = vadd.f32 %v8860, %v5956
      %v8862 = vadd.f32 %v8861, %v5972
      %v8863 = vadd.f32 %v8862, %v5988
      %v8864 = vadd.f32 %v8863, %v6004
      %v8865 = vadd.f32 %v8864, %v6020
      %v8866 = vadd.f32 %v8865, %v6036
      %v8867 = vadd.f32 %v8866, %v6052
      %v8868 = vadd.f32 %v8867, %v6068
      %v8869 = vadd.f32 %v8868, %v6084
      %v8870 = vadd.f32 %v8869, %v6100
      %v8871 = vadd.f32 %v8870, %v6116
      %v8872 = vadd.f32 %v8871, %v6132
      %v8873 = vadd.f32 %v8872, %v6148
      %v8874 = vadd.f32 %v8873, %v6164
      %v8875 = vadd.f32 %v8874, %v6180
      %v8876 = vadd.f32 %v8875, %v6196
      %v8877 = vadd.f32 %v8876, %v6212
      %v8878 = vadd.f32 %v8877, %v6228
      %v8879 = vadd.f32 %v8878, %v6244
      %v8880 = vadd.f32 %v8879, %v6260
      %v8881 = vadd.f32 %v8880, %v6276
      %v8882 = vadd.f32 %v8881, %v6292
      %v8883 = vadd.f32 %v8882, %v6308
      %v8884 = vadd.f32 %v8883, %v6324
      %v8885 = vadd.f32 %v8884, %v6340
      %v8886 = vadd.f32 %v8885, %v6356
      %v8887 = vadd.f32 %v8886, %v6372
      %v8888 = vadd.f32 %v8887, %v6388
      %v8889 = vadd.f32 %v8888, %v6404
      %v8890 = vadd.f32 %v8889, %v6420
      %v8891 = vadd.f32 %v8890, %v6436
      %v8892 = vadd.f32 %v8891, %v6452
      %v8893 = vadd.f32 %v8892, %v6468
      %v8894 = vadd.f32 %v8893, %v6484
      %v8895 = vadd.f32 %v8894, %v6500
      %v8896 = vadd.f32 %v8895, %v6516
      %v8897 = vadd.f32 %v8896, %v6532
      %v8898 = vadd.f32 %v8897, %v6548
      %v8899 = vadd.f32 %v8898, %v6564
      %v8900 = vadd.f32 %v8899, %v6580
      %v8901 = vadd.f32 %v8900, %v6596
      %v8902 = vadd.f32 %v8901, %v6612
      %v8903 = vadd.f32 %v8902, %v6628
      %v8904 = vadd.f32 %v8903, %v6644
      %v8905 = vadd.f32 %v8904, %v6660
      %v8906 = vadd.f32 %v8905, %v6676
      %v8907 = vadd.f32 %v8906, %v6692
      %v8908 = vadd.f32 %v8907, %v6708
      %v8909 = vadd.f32 %v8908, %v6724
      %v8910 = vadd.f32 %v8909, %v6740
      %v8911 = vadd.f32 %v8910, %v6756
      %v8912 = vadd.f32 %v8911, %v6772
      %v8913 = vadd.f32 %v8912, %v6788
      %v8914 = vadd.f32 %v8913, %v6804
      %v8915 = vadd.f32 %v8914, %v6820
      %v8916 = vadd.f32 %v8915, %v6836
      %v8917 = vadd.f32 %v8916, %v6852
      %v8918 = vadd.f32 %v8917, %v6868
      %v8919 = vadd.f32 %v8918, %v6884
      %v8920 = vadd.f32 %v8919, %v6900
      %v8921 = vadd.f32 %v8920, %v6916
      %v8922 = vadd.f32 %v8921, %v6932
      %v8923 = vadd.f32 %v8922, %v6948
      %v8924 = vadd.f32 %v8923, %v6964
      %v8925 = vadd.f32 %v8924, %v6980
      %v8926 = vadd.f32 %v8925, %v6996
      %v8927 = vadd.f32 %v8926, %v7012
      %v8928 = vadd.f32 %v8927, %v7028
      %v8929 = vadd.f32 %v8928, %v7044
      %v8930 = vadd.f32 %v8929, %v7060
      %v8931 = vadd.f32 %v8930, %v7076
      %v8932 = vadd.f32 %v8931, %v7092
      %v8933 = vadd.f32 %v8932, %v7108
      %v8934 = vadd.f32 %v8933, %v7124
      %v8935 = vadd.f32 %v8934, %v7140
      %v8936 = vadd.f32 %v8935, %v7156
      %v8937 = vadd.f32 %v8936, %v7172
      %v8938 = vadd.f32 %v8937, %v7188
      %v8939 = vadd.f32 %v8938, %v7204
      %v8940 = vadd.f32 %v8939, %v7220
      %v8941 = vadd.f32 %v8940, %v7236
      %v8942 = vadd.f32 %v8941, %v7252
      %v8943 = vadd.f32 %v8942, %v7268
      %v8944 = vadd.f32 %v8943, %v7284
      %v8945 = vadd.f32 %v8944, %v7300
      %v8946 = vadd.f32 %v8945, %v7316
      %v8947 = vadd.f32 %v8946, %v7332
      %v8948 = vadd.f32 %v8947, %v7348
      %v8949 = vadd.f32 %v8948, %v7364
      %v8950 = vadd.f32 %v8949, %v7380
      %v8951 = vadd.f32 %v8950, %v7396
      %v8952 = vadd.f32 %v8951, %v7412
      %v8953 = vadd.f32 %v8952, %v7428
      %v8954 = vadd.f32 %v8953, %v7444
      %v8955 = vadd.f32 %v8954, %v7460
      %v8956 = vadd.f32 %v8955, %v7476
      %v8957 = vadd.f32 %v8956, %v7492
      %v8958 = vadd.f32 %v8957, %v7508
      %v8959 = vadd.f32 %v8958, %v7524
      %v8960 = vadd.f32 %v8959, %v7540
      %v8961 = vadd.f32 %v8960, %v7556
      %v8962 = vadd.f32 %v8961, %v7572
      %v8963 = vadd.f32 %v8962, %v7588
      %v8964 = vadd.f32 %v8963, %v7604
      %v8965 = vadd.f32 %v8964, %v7620
      %v8966 = vadd.f32 %v8965, %v7636
      %v8967 = vadd.f32 %v8966, %v7652
      %v8968 = vadd.f32 %v8967, %v7668
      %v8969 = vadd.f32 %v8968, %v7684
      %v8970 = vadd.f32 %v8969, %v7700
      %v8971 = vadd.f32 %v8970, %v7716
      %v8972 = vadd.f32 %v8971, %v7732
      %v8973 = vadd.f32 %v8972, %v7748
      %v8974 = vadd.f32 %v8973, %v7764
      %v8975 = vadd.f32 %v8974, %v7780
      %v8976 = vadd.f32 %v8975, %v7796
      %v8977 = vadd.f32 %v8976, %v7812
      %v8978 = vadd.f32 %v8977, %v7828
      %v8979 = vadd.f32 %v8978, %v7844
      %v8980 = vadd.f32 %v8979, %v7860
      %v8981 = vadd.f32 %v8980, %v7876
      %v8982 = vadd.f32 %v8981, %v7892
      %v8983 = vadd.f32 %v8982, %v7908
      %v8984 = vadd.f32 %v8983, %v7924
      %v8985 = vrot.slane %v8984, 4
      %v8986 = vadd.f32 %v8984, %v8985
      %v8987 = vrot.slane %v8986, 2
      %v8988 = vadd.f32 %v8986, %v8987
      %v8989 = vrot.slane %v8988, 1
      %v8990 = vadd.f32 %v8988, %v8989
      %v8999 = vcombine.low %v8059, %v8192
      %v9000 = vcombine.low %v8325, %v8458
      %v9001 = vcombine.low %v8591, %v8724
      %v9002 = vcombine.low %v8857, %v8990
      %v9004 = vunpack.c.l.s4 1966171168
      %v9005 = vunpack.c.0.s8 %v9004
      %v9006 = vlaneseq
      %v9007 = vshrl.u32 %v9006, 7
      %v9008 = vsub.s32 %v9005, %v9007
      %v9009 = vrot.slane %v8999, %v9008
      %v9011 = vunpack.c.l.s4 1966171168
      %v9012 = vunpack.c.0.s8 %v9011
      %v9013 = vlaneseq
      %v9014 = vshrl.u32 %v9013, 7
      %v9015 = vsub.s32 %v9012, %v9014
      %v9016 = vrot.slane %v9000, %v9015
      %v9018 = vunpack.c.l.s4 1966171168
      %v9019 = vunpack.c.0.s8 %v9018
      %v9020 = vlaneseq
      %v9021 = vshrl.u32 %v9020, 7
      %v9022 = vsub.s32 %v9019, %v9021
      %v9023 = vrot.slane %v9001, %v9022
      %v9025 = vunpack.c.l.s4 1966171168
      %v9026 = vunpack.c.0.s8 %v9025
      %v9027 = vlaneseq
      %v9028 = vshrl.u32 %v9027, 7
      %v9029 = vsub.s32 %v9026, %v9028
      %v9030 = vrot.slane %v9002, %v9029
      %v9031 = vcombine.low %v9009, %v9016
      %v9032 = vcombine.low %v9023, %v9030
      %v9034 = vunpack.c.l.s4 1966171168
      %v9035 = vunpack.c.0.s8 %v9034
      %v9036 = vlaneseq
      %v9037 = vshrl.u32 %v9036, 7
      %v9038 = vsub.s32 %v9035, %v9037
      %v9039 = vrot.slane %v9031, %v9038
      %v9041 = vunpack.c.l.s4 1966171168
      %v9042 = vunpack.c.0.s8 %v9041
      %v9043 = vlaneseq
      %v9044 = vshrl.u32 %v9043, 7
      %v9045 = vsub.s32 %v9042, %v9044
      %v9046 = vrot.slane %v9032, %v9045
      %v9047 = vcombine.low %v9039, %v9046
      %v9049 = vadd.f32 %v7926, %v9047
      %9050 = vst [vmem:[#allocation4] sm:$0xff] %v9049
      %9051 = vst [vmem:[#allocation3] sm:$0xff] %v4808
      %v9052 = vpack.c.bf16 %v5894, %v5878
      %v9053 = vpack.c.bf16 %v5896, %v5880
      %v9054 = vpack.c.bf16 %v5898, %v5882
      %v9055 = vpack.c.bf16 %v5900, %v5884
      %v9056 = vpack.c.bf16 %v5902, %v5886
      %v9057 = vpack.c.bf16 %v5904, %v5888
      %v9058 = vpack.c.bf16 %v5906, %v5890
      %v9059 = vpack.c.bf16 %v5908, %v5892
      %v9060 = vpack.c.bf16 %v5926, %v5910
      %v9061 = vpack.c.bf16 %v5928, %v5912
      %v9062 = vpack.c.bf16 %v5930, %v5914
      %v9063 = vpack.c.bf16 %v5932, %v5916
      %v9064 = vpack.c.bf16 %v5934, %v5918
      %v9065 = vpack.c.bf16 %v5936, %v5920
      %v9066 = vpack.c.bf16 %v5938, %v5922
      %v9067 = vpack.c.bf16 %v5940, %v5924
      %v9068 = vpack.c.bf16 %v5958, %v5942
      %v9069 = vpack.c.bf16 %v5960, %v5944
      %v9070 = vpack.c.bf16 %v5962, %v5946
      %v9071 = vpack.c.bf16 %v5964, %v5948
      %v9072 = vpack.c.bf16 %v5966, %v5950
      %v9073 = vpack.c.bf16 %v5968, %v5952
      %v9074 = vpack.c.bf16 %v5970, %v5954
      %v9075 = vpack.c.bf16 %v5972, %v5956
      %v9076 = vpack.c.bf16 %v5990, %v5974
      %v9077 = vpack.c.bf16 %v5992, %v5976
      %v9078 = vpack.c.bf16 %v5994, %v5978
      %v9079 = vpack.c.bf16 %v5996, %v5980
      %v9080 = vpack.c.bf16 %v5998, %v5982
      %v9081 = vpack.c.bf16 %v6000, %v5984
      %v9082 = vpack.c.bf16 %v6002, %v5986
      %v9083 = vpack.c.bf16 %v6004, %v5988
      %v9084 = vpack.c.bf16 %v6022, %v6006
      %v9085 = vpack.c.bf16 %v6024, %v6008
      %v9086 = vpack.c.bf16 %v6026, %v6010
      %v9087 = vpack.c.bf16 %v6028, %v6012
      %v9088 = vpack.c.bf16 %v6030, %v6014
      %v9089 = vpack.c.bf16 %v6032, %v6016
      %v9090 = vpack.c.bf16 %v6034, %v6018
      %v9091 = vpack.c.bf16 %v6036, %v6020
      %v9092 = vpack.c.bf16 %v6054, %v6038
      %v9093 = vpack.c.bf16 %v6056, %v6040
      %v9094 = vpack.c.bf16 %v6058, %v6042
      %v9095 = vpack.c.bf16 %v6060, %v6044
      %v9096 = vpack.c.bf16 %v6062, %v6046
      %v9097 = vpack.c.bf16 %v6064, %v6048
      %v9098 = vpack.c.bf16 %v6066, %v6050
      %v9099 = vpack.c.bf16 %v6068, %v6052
      %v9100 = vpack.c.bf16 %v6086, %v6070
      %v9101 = vpack.c.bf16 %v6088, %v6072
      %v9102 = vpack.c.bf16 %v6090, %v6074
      %v9103 = vpack.c.bf16 %v6092, %v6076
      %v9104 = vpack.c.bf16 %v6094, %v6078
      %v9105 = vpack.c.bf16 %v6096, %v6080
      %v9106 = vpack.c.bf16 %v6098, %v6082
      %v9107 = vpack.c.bf16 %v6100, %v6084
      %v9108 = vpack.c.bf16 %v6118, %v6102
      %v9109 = vpack.c.bf16 %v6120, %v6104
      %v9110 = vpack.c.bf16 %v6122, %v6106
      %v9111 = vpack.c.bf16 %v6124, %v6108
      %v9112 = vpack.c.bf16 %v6126, %v6110
      %v9113 = vpack.c.bf16 %v6128, %v6112
      %v9114 = vpack.c.bf16 %v6130, %v6114
      %v9115 = vpack.c.bf16 %v6132, %v6116
      %v9116 = vpack.c.bf16 %v6150, %v6134
      %v9117 = vpack.c.bf16 %v6152, %v6136
      %v9118 = vpack.c.bf16 %v6154, %v6138
      %v9119 = vpack.c.bf16 %v6156, %v6140
      %v9120 = vpack.c.bf16 %v6158, %v6142
      %v9121 = vpack.c.bf16 %v6160, %v6144
      %v9122 = vpack.c.bf16 %v6162, %v6146
      %v9123 = vpack.c.bf16 %v6164, %v6148
      %v9124 = vpack.c.bf16 %v6182, %v6166
      %v9125 = vpack.c.bf16 %v6184, %v6168
      %v9126 = vpack.c.bf16 %v6186, %v6170
      %v9127 = vpack.c.bf16 %v6188, %v6172
      %v9128 = vpack.c.bf16 %v6190, %v6174
      %v9129 = vpack.c.bf16 %v6192, %v6176
      %v9130 = vpack.c.bf16 %v6194, %v6178
      %v9131 = vpack.c.bf16 %v6196, %v6180
      %v9132 = vpack.c.bf16 %v6214, %v6198
      %v9133 = vpack.c.bf16 %v6216, %v6200
      %v9134 = vpack.c.bf16 %v6218, %v6202
      %v9135 = vpack.c.bf16 %v6220, %v6204
      %v9136 = vpack.c.bf16 %v6222, %v6206
      %v9137 = vpack.c.bf16 %v6224, %v6208
      %v9138 = vpack.c.bf16 %v6226, %v6210
      %v9139 = vpack.c.bf16 %v6228, %v6212
      %v9140 = vpack.c.bf16 %v6246, %v6230
      %v9141 = vpack.c.bf16 %v6248, %v6232
      %v9142 = vpack.c.bf16 %v6250, %v6234
      %v9143 = vpack.c.bf16 %v6252, %v6236
      %v9144 = vpack.c.bf16 %v6254, %v6238
      %v9145 = vpack.c.bf16 %v6256, %v6240
      %v9146 = vpack.c.bf16 %v6258, %v6242
      %v9147 = vpack.c.bf16 %v6260, %v6244
      %v9148 = vpack.c.bf16 %v6278, %v6262
      %v9149 = vpack.c.bf16 %v6280, %v6264
      %v9150 = vpack.c.bf16 %v6282, %v6266
      %v9151 = vpack.c.bf16 %v6284, %v6268
      %v9152 = vpack.c.bf16 %v6286, %v6270
      %v9153 = vpack.c.bf16 %v6288, %v6272
      %v9154 = vpack.c.bf16 %v6290, %v6274
      %v9155 = vpack.c.bf16 %v6292, %v6276
      %v9156 = vpack.c.bf16 %v6310, %v6294
      %v9157 = vpack.c.bf16 %v6312, %v6296
      %v9158 = vpack.c.bf16 %v6314, %v6298
      %v9159 = vpack.c.bf16 %v6316, %v6300
      %v9160 = vpack.c.bf16 %v6318, %v6302
      %v9161 = vpack.c.bf16 %v6320, %v6304
      %v9162 = vpack.c.bf16 %v6322, %v6306
      %v9163 = vpack.c.bf16 %v6324, %v6308
      %v9164 = vpack.c.bf16 %v6342, %v6326
      %v9165 = vpack.c.bf16 %v6344, %v6328
      %v9166 = vpack.c.bf16 %v6346, %v6330
      %v9167 = vpack.c.bf16 %v6348, %v6332
      %v9168 = vpack.c.bf16 %v6350, %v6334
      %v9169 = vpack.c.bf16 %v6352, %v6336
      %v9170 = vpack.c.bf16 %v6354, %v6338
      %v9171 = vpack.c.bf16 %v6356, %v6340
      %v9172 = vpack.c.bf16 %v6374, %v6358
      %v9173 = vpack.c.bf16 %v6376, %v6360
      %v9174 = vpack.c.bf16 %v6378, %v6362
      %v9175 = vpack.c.bf16 %v6380, %v6364
      %v9176 = vpack.c.bf16 %v6382, %v6366
      %v9177 = vpack.c.bf16 %v6384, %v6368
      %v9178 = vpack.c.bf16 %v6386, %v6370
      %v9179 = vpack.c.bf16 %v6388, %v6372
      %v9180 = vpack.c.bf16 %v6406, %v6390
      %v9181 = vpack.c.bf16 %v6408, %v6392
      %v9182 = vpack.c.bf16 %v6410, %v6394
      %v9183 = vpack.c.bf16 %v6412, %v6396
      %v9184 = vpack.c.bf16 %v6414, %v6398
      %v9185 = vpack.c.bf16 %v6416, %v6400
      %v9186 = vpack.c.bf16 %v6418, %v6402
      %v9187 = vpack.c.bf16 %v6420, %v6404
      %v9188 = vpack.c.bf16 %v6438, %v6422
      %v9189 = vpack.c.bf16 %v6440, %v6424
      %v9190 = vpack.c.bf16 %v6442, %v6426
      %v9191 = vpack.c.bf16 %v6444, %v6428
      %v9192 = vpack.c.bf16 %v6446, %v6430
      %v9193 = vpack.c.bf16 %v6448, %v6432
      %v9194 = vpack.c.bf16 %v6450, %v6434
      %v9195 = vpack.c.bf16 %v6452, %v6436
      %v9196 = vpack.c.bf16 %v6470, %v6454
      %v9197 = vpack.c.bf16 %v6472, %v6456
      %v9198 = vpack.c.bf16 %v6474, %v6458
      %v9199 = vpack.c.bf16 %v6476, %v6460
      %v9200 = vpack.c.bf16 %v6478, %v6462
      %v9201 = vpack.c.bf16 %v6480, %v6464
      %v9202 = vpack.c.bf16 %v6482, %v6466
      %v9203 = vpack.c.bf16 %v6484, %v6468
      %v9204 = vpack.c.bf16 %v6502, %v6486
      %v9205 = vpack.c.bf16 %v6504, %v6488
      %v9206 = vpack.c.bf16 %v6506, %v6490
      %v9207 = vpack.c.bf16 %v6508, %v6492
      %v9208 = vpack.c.bf16 %v6510, %v6494
      %v9209 = vpack.c.bf16 %v6512, %v6496
      %v9210 = vpack.c.bf16 %v6514, %v6498
      %v9211 = vpack.c.bf16 %v6516, %v6500
      %v9212 = vpack.c.bf16 %v6534, %v6518
      %v9213 = vpack.c.bf16 %v6536, %v6520
      %v9214 = vpack.c.bf16 %v6538, %v6522
      %v9215 = vpack.c.bf16 %v6540, %v6524
      %v9216 = vpack.c.bf16 %v6542, %v6526
      %v9217 = vpack.c.bf16 %v6544, %v6528
      %v9218 = vpack.c.bf16 %v6546, %v6530
      %v9219 = vpack.c.bf16 %v6548, %v6532
      %v9220 = vpack.c.bf16 %v6566, %v6550
      %v9221 = vpack.c.bf16 %v6568, %v6552
      %v9222 = vpack.c.bf16 %v6570, %v6554
      %v9223 = vpack.c.bf16 %v6572, %v6556
      %v9224 = vpack.c.bf16 %v6574, %v6558
      %v9225 = vpack.c.bf16 %v6576, %v6560
      %v9226 = vpack.c.bf16 %v6578, %v6562
      %v9227 = vpack.c.bf16 %v6580, %v6564
      %v9228 = vpack.c.bf16 %v6598, %v6582
      %v9229 = vpack.c.bf16 %v6600, %v6584
      %v9230 = vpack.c.bf16 %v6602, %v6586
      %v9231 = vpack.c.bf16 %v6604, %v6588
      %v9232 = vpack.c.bf16 %v6606, %v6590
      %v9233 = vpack.c.bf16 %v6608, %v6592
      %v9234 = vpack.c.bf16 %v6610, %v6594
      %v9235 = vpack.c.bf16 %v6612, %v6596
      %v9236 = vpack.c.bf16 %v6630, %v6614
      %v9237 = vpack.c.bf16 %v6632, %v6616
      %v9238 = vpack.c.bf16 %v6634, %v6618
      %v9239 = vpack.c.bf16 %v6636, %v6620
      %v9240 = vpack.c.bf16 %v6638, %v6622
      %v9241 = vpack.c.bf16 %v6640, %v6624
      %v9242 = vpack.c.bf16 %v6642, %v6626
      %v9243 = vpack.c.bf16 %v6644, %v6628
      %v9244 = vpack.c.bf16 %v6662, %v6646
      %v9245 = vpack.c.bf16 %v6664, %v6648
      %v9246 = vpack.c.bf16 %v6666, %v6650
      %v9247 = vpack.c.bf16 %v6668, %v6652
      %v9248 = vpack.c.bf16 %v6670, %v6654
      %v9249 = vpack.c.bf16 %v6672, %v6656
      %v9250 = vpack.c.bf16 %v6674, %v6658
      %v9251 = vpack.c.bf16 %v6676, %v6660
      %v9252 = vpack.c.bf16 %v6694, %v6678
      %v9253 = vpack.c.bf16 %v6696, %v6680
      %v9254 = vpack.c.bf16 %v6698, %v6682
      %v9255 = vpack.c.bf16 %v6700, %v6684
      %v9256 = vpack.c.bf16 %v6702, %v6686
      %v9257 = vpack.c.bf16 %v6704, %v6688
      %v9258 = vpack.c.bf16 %v6706, %v6690
      %v9259 = vpack.c.bf16 %v6708, %v6692
      %v9260 = vpack.c.bf16 %v6726, %v6710
      %v9261 = vpack.c.bf16 %v6728, %v6712
      %v9262 = vpack.c.bf16 %v6730, %v6714
      %v9263 = vpack.c.bf16 %v6732, %v6716
      %v9264 = vpack.c.bf16 %v6734, %v6718
      %v9265 = vpack.c.bf16 %v6736, %v6720
      %v9266 = vpack.c.bf16 %v6738, %v6722
      %v9267 = vpack.c.bf16 %v6740, %v6724
      %v9268 = vpack.c.bf16 %v6758, %v6742
      %v9269 = vpack.c.bf16 %v6760, %v6744
      %v9270 = vpack.c.bf16 %v6762, %v6746
      %v9271 = vpack.c.bf16 %v6764, %v6748
      %v9272 = vpack.c.bf16 %v6766, %v6750
      %v9273 = vpack.c.bf16 %v6768, %v6752
      %v9274 = vpack.c.bf16 %v6770, %v6754
      %v9275 = vpack.c.bf16 %v6772, %v6756
      %v9276 = vpack.c.bf16 %v6790, %v6774
      %v9277 = vpack.c.bf16 %v6792, %v6776
      %v9278 = vpack.c.bf16 %v6794, %v6778
      %v9279 = vpack.c.bf16 %v6796, %v6780
      %v9280 = vpack.c.bf16 %v6798, %v6782
      %v9281 = vpack.c.bf16 %v6800, %v6784
      %v9282 = vpack.c.bf16 %v6802, %v6786
      %v9283 = vpack.c.bf16 %v6804, %v6788
      %v9284 = vpack.c.bf16 %v6822, %v6806
      %v9285 = vpack.c.bf16 %v6824, %v6808
      %v9286 = vpack.c.bf16 %v6826, %v6810
      %v9287 = vpack.c.bf16 %v6828, %v6812
      %v9288 = vpack.c.bf16 %v6830, %v6814
      %v9289 = vpack.c.bf16 %v6832, %v6816
      %v9290 = vpack.c.bf16 %v6834, %v6818
      %v9291 = vpack.c.bf16 %v6836, %v6820
      %v9292 = vpack.c.bf16 %v6854, %v6838
      %v9293 = vpack.c.bf16 %v6856, %v6840
      %v9294 = vpack.c.bf16 %v6858, %v6842
      %v9295 = vpack.c.bf16 %v6860, %v6844
      %v9296 = vpack.c.bf16 %v6862, %v6846
      %v9297 = vpack.c.bf16 %v6864, %v6848
      %v9298 = vpack.c.bf16 %v6866, %v6850
      %v9299 = vpack.c.bf16 %v6868, %v6852
      %v9300 = vpack.c.bf16 %v6886, %v6870
      %v9301 = vpack.c.bf16 %v6888, %v6872
      %v9302 = vpack.c.bf16 %v6890, %v6874
      %v9303 = vpack.c.bf16 %v6892, %v6876
      %v9304 = vpack.c.bf16 %v6894, %v6878
      %v9305 = vpack.c.bf16 %v6896, %v6880
      %v9306 = vpack.c.bf16 %v6898, %v6882
      %v9307 = vpack.c.bf16 %v6900, %v6884
      %v9308 = vpack.c.bf16 %v6918, %v6902
      %v9309 = vpack.c.bf16 %v6920, %v6904
      %v9310 = vpack.c.bf16 %v6922, %v6906
      %v9311 = vpack.c.bf16 %v6924, %v6908
      %v9312 = vpack.c.bf16 %v6926, %v6910
      %v9313 = vpack.c.bf16 %v6928, %v6912
      %v9314 = vpack.c.bf16 %v6930, %v6914
      %v9315 = vpack.c.bf16 %v6932, %v6916
      %v9316 = vpack.c.bf16 %v6950, %v6934
      %v9317 = vpack.c.bf16 %v6952, %v6936
      %v9318 = vpack.c.bf16 %v6954, %v6938
      %v9319 = vpack.c.bf16 %v6956, %v6940
      %v9320 = vpack.c.bf16 %v6958, %v6942
      %v9321 = vpack.c.bf16 %v6960, %v6944
      %v9322 = vpack.c.bf16 %v6962, %v6946
      %v9323 = vpack.c.bf16 %v6964, %v6948
      %v9324 = vpack.c.bf16 %v6982, %v6966
      %v9325 = vpack.c.bf16 %v6984, %v6968
      %v9326 = vpack.c.bf16 %v6986, %v6970
      %v9327 = vpack.c.bf16 %v6988, %v6972
      %v9328 = vpack.c.bf16 %v6990, %v6974
      %v9329 = vpack.c.bf16 %v6992, %v6976
      %v9330 = vpack.c.bf16 %v6994, %v6978
      %v9331 = vpack.c.bf16 %v6996, %v6980
      %v9332 = vpack.c.bf16 %v7014, %v6998
      %v9333 = vpack.c.bf16 %v7016, %v7000
      %v9334 = vpack.c.bf16 %v7018, %v7002
      %v9335 = vpack.c.bf16 %v7020, %v7004
      %v9336 = vpack.c.bf16 %v7022, %v7006
      %v9337 = vpack.c.bf16 %v7024, %v7008
      %v9338 = vpack.c.bf16 %v7026, %v7010
      %v9339 = vpack.c.bf16 %v7028, %v7012
      %v9340 = vpack.c.bf16 %v7046, %v7030
      %v9341 = vpack.c.bf16 %v7048, %v7032
      %v9342 = vpack.c.bf16 %v7050, %v7034
      %v9343 = vpack.c.bf16 %v7052, %v7036
      %v9344 = vpack.c.bf16 %v7054, %v7038
      %v9345 = vpack.c.bf16 %v7056, %v7040
      %v9346 = vpack.c.bf16 %v7058, %v7042
      %v9347 = vpack.c.bf16 %v7060, %v7044
      %v9348 = vpack.c.bf16 %v7078, %v7062
      %v9349 = vpack.c.bf16 %v7080, %v7064
      %v9350 = vpack.c.bf16 %v7082, %v7066
      %v9351 = vpack.c.bf16 %v7084, %v7068
      %v9352 = vpack.c.bf16 %v7086, %v7070
      %v9353 = vpack.c.bf16 %v7088, %v7072
      %v9354 = vpack.c.bf16 %v7090, %v7074
      %v9355 = vpack.c.bf16 %v7092, %v7076
      %v9356 = vpack.c.bf16 %v7110, %v7094
      %v9357 = vpack.c.bf16 %v7112, %v7096
      %v9358 = vpack.c.bf16 %v7114, %v7098
      %v9359 = vpack.c.bf16 %v7116, %v7100
      %v9360 = vpack.c.bf16 %v7118, %v7102
      %v9361 = vpack.c.bf16 %v7120, %v7104
      %v9362 = vpack.c.bf16 %v7122, %v7106
      %v9363 = vpack.c.bf16 %v7124, %v7108
      %v9364 = vpack.c.bf16 %v7142, %v7126
      %v9365 = vpack.c.bf16 %v7144, %v7128
      %v9366 = vpack.c.bf16 %v7146, %v7130
      %v9367 = vpack.c.bf16 %v7148, %v7132
      %v9368 = vpack.c.bf16 %v7150, %v7134
      %v9369 = vpack.c.bf16 %v7152, %v7136
      %v9370 = vpack.c.bf16 %v7154, %v7138
      %v9371 = vpack.c.bf16 %v7156, %v7140
      %v9372 = vpack.c.bf16 %v7174, %v7158
      %v9373 = vpack.c.bf16 %v7176, %v7160
      %v9374 = vpack.c.bf16 %v7178, %v7162
      %v9375 = vpack.c.bf16 %v7180, %v7164
      %v9376 = vpack.c.bf16 %v7182, %v7166
      %v9377 = vpack.c.bf16 %v7184, %v7168
      %v9378 = vpack.c.bf16 %v7186, %v7170
      %v9379 = vpack.c.bf16 %v7188, %v7172
      %v9380 = vpack.c.bf16 %v7206, %v7190
      %v9381 = vpack.c.bf16 %v7208, %v7192
      %v9382 = vpack.c.bf16 %v7210, %v7194
      %v9383 = vpack.c.bf16 %v7212, %v7196
      %v9384 = vpack.c.bf16 %v7214, %v7198
      %v9385 = vpack.c.bf16 %v7216, %v7200
      %v9386 = vpack.c.bf16 %v7218, %v7202
      %v9387 = vpack.c.bf16 %v7220, %v7204
      %v9388 = vpack.c.bf16 %v7238, %v7222
      %v9389 = vpack.c.bf16 %v7240, %v7224
      %v9390 = vpack.c.bf16 %v7242, %v7226
      %v9391 = vpack.c.bf16 %v7244, %v7228
      %v9392 = vpack.c.bf16 %v7246, %v7230
      %v9393 = vpack.c.bf16 %v7248, %v7232
      %v9394 = vpack.c.bf16 %v7250, %v7234
      %v9395 = vpack.c.bf16 %v7252, %v7236
      %v9396 = vpack.c.bf16 %v7270, %v7254
      %v9397 = vpack.c.bf16 %v7272, %v7256
      %v9398 = vpack.c.bf16 %v7274, %v7258
      %v9399 = vpack.c.bf16 %v7276, %v7260
      %v9400 = vpack.c.bf16 %v7278, %v7262
      %v9401 = vpack.c.bf16 %v7280, %v7264
      %v9402 = vpack.c.bf16 %v7282, %v7266
      %v9403 = vpack.c.bf16 %v7284, %v7268
      %v9404 = vpack.c.bf16 %v7302, %v7286
      %v9405 = vpack.c.bf16 %v7304, %v7288
      %v9406 = vpack.c.bf16 %v7306, %v7290
      %v9407 = vpack.c.bf16 %v7308, %v7292
      %v9408 = vpack.c.bf16 %v7310, %v7294
      %v9409 = vpack.c.bf16 %v7312, %v7296
      %v9410 = vpack.c.bf16 %v7314, %v7298
      %v9411 = vpack.c.bf16 %v7316, %v7300
      %v9412 = vpack.c.bf16 %v7334, %v7318
      %v9413 = vpack.c.bf16 %v7336, %v7320
      %v9414 = vpack.c.bf16 %v7338, %v7322
      %v9415 = vpack.c.bf16 %v7340, %v7324
      %v9416 = vpack.c.bf16 %v7342, %v7326
      %v9417 = vpack.c.bf16 %v7344, %v7328
      %v9418 = vpack.c.bf16 %v7346, %v7330
      %v9419 = vpack.c.bf16 %v7348, %v7332
      %v9420 = vpack.c.bf16 %v7366, %v7350
      %v9421 = vpack.c.bf16 %v7368, %v7352
      %v9422 = vpack.c.bf16 %v7370, %v7354
      %v9423 = vpack.c.bf16 %v7372, %v7356
      %v9424 = vpack.c.bf16 %v7374, %v7358
      %v9425 = vpack.c.bf16 %v7376, %v7360
      %v9426 = vpack.c.bf16 %v7378, %v7362
      %v9427 = vpack.c.bf16 %v7380, %v7364
      %v9428 = vpack.c.bf16 %v7398, %v7382
      %v9429 = vpack.c.bf16 %v7400, %v7384
      %v9430 = vpack.c.bf16 %v7402, %v7386
      %v9431 = vpack.c.bf16 %v7404, %v7388
      %v9432 = vpack.c.bf16 %v7406, %v7390
      %v9433 = vpack.c.bf16 %v7408, %v7392
      %v9434 = vpack.c.bf16 %v7410, %v7394
      %v9435 = vpack.c.bf16 %v7412, %v7396
      %v9436 = vpack.c.bf16 %v7430, %v7414
      %v9437 = vpack.c.bf16 %v7432, %v7416
      %v9438 = vpack.c.bf16 %v7434, %v7418
      %v9439 = vpack.c.bf16 %v7436, %v7420
      %v9440 = vpack.c.bf16 %v7438, %v7422
      %v9441 = vpack.c.bf16 %v7440, %v7424
      %v9442 = vpack.c.bf16 %v7442, %v7426
      %v9443 = vpack.c.bf16 %v7444, %v7428
      %v9444 = vpack.c.bf16 %v7462, %v7446
      %v9445 = vpack.c.bf16 %v7464, %v7448
      %v9446 = vpack.c.bf16 %v7466, %v7450
      %v9447 = vpack.c.bf16 %v7468, %v7452
      %v9448 = vpack.c.bf16 %v7470, %v7454
      %v9449 = vpack.c.bf16 %v7472, %v7456
      %v9450 = vpack.c.bf16 %v7474, %v7458
      %v9451 = vpack.c.bf16 %v7476, %v7460
      %v9452 = vpack.c.bf16 %v7494, %v7478
      %v9453 = vpack.c.bf16 %v7496, %v7480
      %v9454 = vpack.c.bf16 %v7498, %v7482
      %v9455 = vpack.c.bf16 %v7500, %v7484
      %v9456 = vpack.c.bf16 %v7502, %v7486
      %v9457 = vpack.c.bf16 %v7504, %v7488
      %v9458 = vpack.c.bf16 %v7506, %v7490
      %v9459 = vpack.c.bf16 %v7508, %v7492
      %v9460 = vpack.c.bf16 %v7526, %v7510
      %v9461 = vpack.c.bf16 %v7528, %v7512
      %v9462 = vpack.c.bf16 %v7530, %v7514
      %v9463 = vpack.c.bf16 %v7532, %v7516
      %v9464 = vpack.c.bf16 %v7534, %v7518
      %v9465 = vpack.c.bf16 %v7536, %v7520
      %v9466 = vpack.c.bf16 %v7538, %v7522
      %v9467 = vpack.c.bf16 %v7540, %v7524
      %v9468 = vpack.c.bf16 %v7558, %v7542
      %v9469 = vpack.c.bf16 %v7560, %v7544
      %v9470 = vpack.c.bf16 %v7562, %v7546
      %v9471 = vpack.c.bf16 %v7564, %v7548
      %v9472 = vpack.c.bf16 %v7566, %v7550
      %v9473 = vpack.c.bf16 %v7568, %v7552
      %v9474 = vpack.c.bf16 %v7570, %v7554
      %v9475 = vpack.c.bf16 %v7572, %v7556
      %v9476 = vpack.c.bf16 %v7590, %v7574
      %v9477 = vpack.c.bf16 %v7592, %v7576
      %v9478 = vpack.c.bf16 %v7594, %v7578
      %v9479 = vpack.c.bf16 %v7596, %v7580
      %v9480 = vpack.c.bf16 %v7598, %v7582
      %v9481 = vpack.c.bf16 %v7600, %v7584
      %v9482 = vpack.c.bf16 %v7602, %v7586
      %v9483 = vpack.c.bf16 %v7604, %v7588
      %v9484 = vpack.c.bf16 %v7622, %v7606
      %v9485 = vpack.c.bf16 %v7624, %v7608
      %v9486 = vpack.c.bf16 %v7626, %v7610
      %v9487 = vpack.c.bf16 %v7628, %v7612
      %v9488 = vpack.c.bf16 %v7630, %v7614
      %v9489 = vpack.c.bf16 %v7632, %v7616
      %v9490 = vpack.c.bf16 %v7634, %v7618
      %v9491 = vpack.c.bf16 %v7636, %v7620
      %v9492 = vpack.c.bf16 %v7654, %v7638
      %v9493 = vpack.c.bf16 %v7656, %v7640
      %v9494 = vpack.c.bf16 %v7658, %v7642
      %v9495 = vpack.c.bf16 %v7660, %v7644
      %v9496 = vpack.c.bf16 %v7662, %v7646
      %v9497 = vpack.c.bf16 %v7664, %v7648
      %v9498 = vpack.c.bf16 %v7666, %v7650
      %v9499 = vpack.c.bf16 %v7668, %v7652
      %v9500 = vpack.c.bf16 %v7686, %v7670
      %v9501 = vpack.c.bf16 %v7688, %v7672
      %v9502 = vpack.c.bf16 %v7690, %v7674
      %v9503 = vpack.c.bf16 %v7692, %v7676
      %v9504 = vpack.c.bf16 %v7694, %v7678
      %v9505 = vpack.c.bf16 %v7696, %v7680
      %v9506 = vpack.c.bf16 %v7698, %v7682
      %v9507 = vpack.c.bf16 %v7700, %v7684
      %v9508 = vpack.c.bf16 %v7718, %v7702
      %v9509 = vpack.c.bf16 %v7720, %v7704
      %v9510 = vpack.c.bf16 %v7722, %v7706
      %v9511 = vpack.c.bf16 %v7724, %v7708
      %v9512 = vpack.c.bf16 %v7726, %v7710
      %v9513 = vpack.c.bf16 %v7728, %v7712
      %v9514 = vpack.c.bf16 %v7730, %v7714
      %v9515 = vpack.c.bf16 %v7732, %v7716
      %v9516 = vpack.c.bf16 %v7750, %v7734
      %v9517 = vpack.c.bf16 %v7752, %v7736
      %v9518 = vpack.c.bf16 %v7754, %v7738
      %v9519 = vpack.c.bf16 %v7756, %v7740
      %v9520 = vpack.c.bf16 %v7758, %v7742
      %v9521 = vpack.c.bf16 %v7760, %v7744
      %v9522 = vpack.c.bf16 %v7762, %v7746
      %v9523 = vpack.c.bf16 %v7764, %v7748
      %v9524 = vpack.c.bf16 %v7782, %v7766
      %v9525 = vpack.c.bf16 %v7784, %v7768
      %v9526 = vpack.c.bf16 %v7786, %v7770
      %v9527 = vpack.c.bf16 %v7788, %v7772
      %v9528 = vpack.c.bf16 %v7790, %v7774
      %v9529 = vpack.c.bf16 %v7792, %v7776
      %v9530 = vpack.c.bf16 %v7794, %v7778
      %v9531 = vpack.c.bf16 %v7796, %v7780
      %v9532 = vpack.c.bf16 %v7814, %v7798
      %v9533 = vpack.c.bf16 %v7816, %v7800
      %v9534 = vpack.c.bf16 %v7818, %v7802
      %v9535 = vpack.c.bf16 %v7820, %v7804
      %v9536 = vpack.c.bf16 %v7822, %v7806
      %v9537 = vpack.c.bf16 %v7824, %v7808
      %v9538 = vpack.c.bf16 %v7826, %v7810
      %v9539 = vpack.c.bf16 %v7828, %v7812
      %v9540 = vpack.c.bf16 %v7846, %v7830
      %v9541 = vpack.c.bf16 %v7848, %v7832
      %v9542 = vpack.c.bf16 %v7850, %v7834
      %v9543 = vpack.c.bf16 %v7852, %v7836
      %v9544 = vpack.c.bf16 %v7854, %v7838
      %v9545 = vpack.c.bf16 %v7856, %v7840
      %v9546 = vpack.c.bf16 %v7858, %v7842
      %v9547 = vpack.c.bf16 %v7860, %v7844
      %v9548 = vpack.c.bf16 %v7878, %v7862
      %v9549 = vpack.c.bf16 %v7880, %v7864
      %v9550 = vpack.c.bf16 %v7882, %v7866
      %v9551 = vpack.c.bf16 %v7884, %v7868
      %v9552 = vpack.c.bf16 %v7886, %v7870
      %v9553 = vpack.c.bf16 %v7888, %v7872
      %v9554 = vpack.c.bf16 %v7890, %v7874
      %v9555 = vpack.c.bf16 %v7892, %v7876
      %v9556 = vpack.c.bf16 %v7910, %v7894
      %v9557 = vpack.c.bf16 %v7912, %v7896
      %v9558 = vpack.c.bf16 %v7914, %v7898
      %v9559 = vpack.c.bf16 %v7916, %v7900
      %v9560 = vpack.c.bf16 %v7918, %v7902
      %v9561 = vpack.c.bf16 %v7920, %v7904
      %v9562 = vpack.c.bf16 %v7922, %v7906
      %v9563 = vpack.c.bf16 %v7924, %v7908
      %v9568 = vunpack.c.l.b16 %v591
      %v9569 = vunpack.c.h.b16 %v591
      %v9570 = vunpack.c.l.b16 %v592
      %v9571 = vunpack.c.h.b16 %v592
      %v9572 = vunpack.c.l.b16 %v593
      %v9573 = vunpack.c.h.b16 %v593
      %v9574 = vunpack.c.l.b16 %v594
      %v9575 = vunpack.c.h.b16 %v594
      %v9576 = vpack.c.b16 %v9568, %v9568
      %v9577 = vpack.c.b16 %v9569, %v9569
      %v9578 = vpack.c.b16 %v9570, %v9570
      %v9579 = vpack.c.b16 %v9571, %v9571
      %v9580 = vpack.c.b16 %v9572, %v9572
      %v9581 = vpack.c.b16 %v9573, %v9573
      %v9582 = vpack.c.b16 %v9574, %v9574
      %v9583 = vpack.c.b16 %v9575, %v9575
      %9592 = vmatprep.subr.bf16.mxu0 %v9053
      %9593 = vmatpush1.bf16.msra.mxu0 %v9052
      %9594 = vmatprep.subr.bf16.mxu0 %v9061
      %9595 = vmatpush1.bf16.msra.mxu0 %v9060
      %9596 = vmatprep.subr.bf16.mxu0 %v9069
      %9597 = vmatpush1.bf16.msra.mxu0 %v9068
      %9598 = vmatprep.subr.bf16.mxu0 %v9077
      %9599 = vmatpush1.bf16.msra.mxu0 %v9076
      %9600 = vmatprep.subr.bf16.mxu0 %v9085
      %9601 = vmatpush1.bf16.msra.mxu0 %v9084
      %9602 = vmatprep.subr.bf16.mxu0 %v9093
      %9603 = vmatpush1.bf16.msra.mxu0 %v9092
      %9604 = vmatprep.subr.bf16.mxu0 %v9101
      %9605 = vmatpush1.bf16.msra.mxu0 %v9100
      %9606 = vmatprep.subr.bf16.mxu0 %v9109
      %9607 = vmatpush1.bf16.msra.mxu0 %v9108
      %9608 = vmatprep.subr.bf16.mxu0 %v9117
      %9609 = vmatpush1.bf16.msra.mxu0 %v9116
      %9610 = vmatprep.subr.bf16.mxu0 %v9125
      %9611 = vmatpush1.bf16.msra.mxu0 %v9124
      %9612 = vmatprep.subr.bf16.mxu0 %v9133
      %9613 = vmatpush1.bf16.msra.mxu0 %v9132
      %9614 = vmatprep.subr.bf16.mxu0 %v9141
      %9615 = vmatpush1.bf16.msra.mxu0 %v9140
      %9616 = vmatprep.subr.bf16.mxu0 %v9149
      %9617 = vmatpush1.bf16.msra.mxu0 %v9148
      %9618 = vmatprep.subr.bf16.mxu0 %v9157
      %9619 = vmatpush1.bf16.msra.mxu0 %v9156
      %9620 = vmatprep.subr.bf16.mxu0 %v9165
      %9621 = vmatpush1.bf16.msra.mxu0 %v9164
      %9622 = vmatprep.subr.bf16.mxu0 %v9173
      %9623 = vmatpush1.bf16.msra.mxu0 %v9172
      %9624 = vmatprep.mubr.bf16.mxu0 %v9577
      %9625 = vmatmul.mubr.bf16.gmra.mrb[0].mxu0 %v9576
      %v9626 = vpop.f32.mrb[0].mxu0
      %v9627 = vadd.f32 0.0, %v9626
      %v9628 = vpop.f32.mrb[0].mxu0
      %v9629 = vadd.f32 0.0, %v9628
      %v9630 = vpop.f32.mrb[0].mxu0
      %v9631 = vpop.f32.mrb[0].mxu0
      %9632 = vdwg.mxu0
      %9633 = vmatprep.subr.bf16.mxu0 %v9181
      %9634 = vmatpush1.bf16.msra.mxu0 %v9180
      %9635 = vmatprep.subr.bf16.mxu0 %v9189
      %9636 = vmatpush1.bf16.msra.mxu0 %v9188
      %9637 = vmatprep.subr.bf16.mxu0 %v9197
      %9638 = vmatpush1.bf16.msra.mxu0 %v9196
      %9639 = vmatprep.subr.bf16.mxu0 %v9205
      %9640 = vmatpush1.bf16.msra.mxu0 %v9204
      %9641 = vmatprep.subr.bf16.mxu0 %v9213
      %9642 = vmatpush1.bf16.msra.mxu0 %v9212
      %9643 = vmatprep.subr.bf16.mxu0 %v9221
      %9644 = vmatpush1.bf16.msra.mxu0 %v9220
      %9645 = vmatprep.subr.bf16.mxu0 %v9229
      %9646 = vmatpush1.bf16.msra.mxu0 %v9228
      %9647 = vmatprep.subr.bf16.mxu0 %v9237
      %9648 = vmatpush1.bf16.msra.mxu0 %v9236
      %9649 = vmatprep.subr.bf16.mxu0 %v9245
      %9650 = vmatpush1.bf16.msra.mxu0 %v9244
      %9651 = vmatprep.subr.bf16.mxu0 %v9253
      %9652 = vmatpush1.bf16.msra.mxu0 %v9252
      %9653 = vmatprep.subr.bf16.mxu0 %v9261
      %9654 = vmatpush1.bf16.msra.mxu0 %v9260
      %9655 = vmatprep.subr.bf16.mxu0 %v9269
      %9656 = vmatpush1.bf16.msra.mxu0 %v9268
      %9657 = vmatprep.subr.bf16.mxu0 %v9277
      %9658 = vmatpush1.bf16.msra.mxu0 %v9276
      %9659 = vmatprep.subr.bf16.mxu0 %v9285
      %9660 = vmatpush1.bf16.msra.mxu0 %v9284
      %9661 = vmatprep.subr.bf16.mxu0 %v9293
      %9662 = vmatpush1.bf16.msra.mxu0 %v9292
      %9663 = vmatprep.subr.bf16.mxu0 %v9301
      %9664 = vmatpush1.bf16.msra.mxu0 %v9300
      %9665 = vmatprep.mubr.bf16.mxu0 %v9579
      %9666 = vmatmul.mubr.bf16.gmra.mrb[0].mxu0 %v9578
      %v9667 = vpop.f32.mrb[0].mxu0
      %v9668 = vadd.f32 %v9627, %v9667
      %v9669 = vpop.f32.mrb[0].mxu0
      %v9670 = vadd.f32 %v9629, %v9669
      %v9671 = vpop.f32.mrb[0].mxu0
      %v9672 = vpop.f32.mrb[0].mxu0
      %9673 = vdwg.mxu0
      %9674 = vmatprep.subr.bf16.mxu0 %v9309
      %9675 = vmatpush1.bf16.msra.mxu0 %v9308
      %9676 = vmatprep.subr.bf16.mxu0 %v9317
      %9677 = vmatpush1.bf16.msra.mxu0 %v9316
      %9678 = vmatprep.subr.bf16.mxu0 %v9325
      %9679 = vmatpush1.bf16.msra.mxu0 %v9324
      %9680 = vmatprep.subr.bf16.mxu0 %v9333
      %9681 = vmatpush1.bf16.msra.mxu0 %v9332
      %9682 = vmatprep.subr.bf16.mxu0 %v9341
      %9683 = vmatpush1.bf16.msra.mxu0 %v9340
      %9684 = vmatprep.subr.bf16.mxu0 %v9349
      %9685 = vmatpush1.bf16.msra.mxu0 %v9348
      %9686 = vmatprep.subr.bf16.mxu0 %v9357
      %9687 = vmatpush1.bf16.msra.mxu0 %v9356
      %9688 = vmatprep.subr.bf16.mxu0 %v9365
      %9689 = vmatpush1.bf16.msra.mxu0 %v9364
      %9690 = vmatprep.subr.bf16.mxu0 %v9373
      %9691 = vmatpush1.bf16.msra.mxu0 %v9372
      %9692 = vmatprep.subr.bf16.mxu0 %v9381
      %9693 = vmatpush1.bf16.msra.mxu0 %v9380
      %9694 = vmatprep.subr.bf16.mxu0 %v9389
      %9695 = vmatpush1.bf16.msra.mxu0 %v9388
      %9696 = vmatprep.subr.bf16.mxu0 %v9397
      %9697 = vmatpush1.bf16.msra.mxu0 %v9396
      %9698 = vmatprep.subr.bf16.mxu0 %v9405
      %9699 = vmatpush1.bf16.msra.mxu0 %v9404
      %9700 = vmatprep.subr.bf16.mxu0 %v9413
      %9701 = vmatpush1.bf16.msra.mxu0 %v9412
      %9702 = vmatprep.subr.bf16.mxu0 %v9421
      %9703 = vmatpush1.bf16.msra.mxu0 %v9420
      %9704 = vmatprep.subr.bf16.mxu0 %v9429
      %9705 = vmatpush1.bf16.msra.mxu0 %v9428
      %9706 = vmatprep.mubr.bf16.mxu0 %v9581
      %9707 = vmatmul.mubr.bf16.gmra.mrb[0].mxu0 %v9580
      %v9708 = vpop.f32.mrb[0].mxu0
      %v9709 = vadd.f32 %v9668, %v9708
      %v9710 = vpop.f32.mrb[0].mxu0
      %v9711 = vadd.f32 %v9670, %v9710
      %v9712 = vpop.f32.mrb[0].mxu0
      %v9713 = vpop.f32.mrb[0].mxu0
      %9714 = vdwg.mxu0
      %9715 = vmatprep.subr.bf16.mxu0 %v9437
      %9716 = vmatpush1.bf16.msra.mxu0 %v9436
      %9717 = vmatprep.subr.bf16.mxu0 %v9445
      %9718 = vmatpush1.bf16.msra.mxu0 %v9444
      %9719 = vmatprep.subr.bf16.mxu0 %v9453
      %9720 = vmatpush1.bf16.msra.mxu0 %v9452
      %9721 = vmatprep.subr.bf16.mxu0 %v9461
      %9722 = vmatpush1.bf16.msra.mxu0 %v9460
      %9723 = vmatprep.subr.bf16.mxu0 %v9469
      %9724 = vmatpush1.bf16.msra.mxu0 %v9468
      %9725 = vmatprep.subr.bf16.mxu0 %v9477
      %9726 = vmatpush1.bf16.msra.mxu0 %v9476
      %9727 = vmatprep.subr.bf16.mxu0 %v9485
      %9728 = vmatpush1.bf16.msra.mxu0 %v9484
      %9729 = vmatprep.subr.bf16.mxu0 %v9493
      %9730 = vmatpush1.bf16.msra.mxu0 %v9492
      %9731 = vmatprep.subr.bf16.mxu0 %v9501
      %9732 = vmatpush1.bf16.msra.mxu0 %v9500
      %9733 = vmatprep.subr.bf16.mxu0 %v9509
      %9734 = vmatpush1.bf16.msra.mxu0 %v9508
      %9735 = vmatprep.subr.bf16.mxu0 %v9517
      %9736 = vmatpush1.bf16.msra.mxu0 %v9516
      %9737 = vmatprep.subr.bf16.mxu0 %v9525
      %9738 = vmatpush1.bf16.msra.mxu0 %v9524
      %9739 = vmatprep.subr.bf16.mxu0 %v9533
      %9740 = vmatpush1.bf16.msra.mxu0 %v9532
      %9741 = vmatprep.subr.bf16.mxu0 %v9541
      %9742 = vmatpush1.bf16.msra.mxu0 %v9540
      %9743 = vmatprep.subr.bf16.mxu0 %v9549
      %9744 = vmatpush1.bf16.msra.mxu0 %v9548
      %9745 = vmatprep.subr.bf16.mxu0 %v9557
      %9746 = vmatpush1.bf16.msra.mxu0 %v9556
      %9747 = vmatprep.mubr.bf16.mxu0 %v9583
      %9748 = vmatmul.mubr.bf16.gmra.mrb[0].mxu0 %v9582
      %v9749 = vpop.f32.mrb[0].mxu0
      %v9750 = vadd.f32 %v9709, %v9749
      %v9751 = vpop.f32.mrb[0].mxu0
      %v9752 = vadd.f32 %v9711, %v9751
      %v9753 = vpop.f32.mrb[0].mxu0
      %v9754 = vpop.f32.mrb[0].mxu0
      %9755 = vdwg.mxu0
      %9756 = vmatprep.subr.bf16.mxu0 %v9055
      %9757 = vmatpush1.bf16.msra.mxu0 %v9054
      %9758 = vmatprep.subr.bf16.mxu0 %v9063
      %9759 = vmatpush1.bf16.msra.mxu0 %v9062
      %9760 = vmatprep.subr.bf16.mxu0 %v9071
      %9761 = vmatpush1.bf16.msra.mxu0 %v9070
      %9762 = vmatprep.subr.bf16.mxu0 %v9079
      %9763 = vmatpush1.bf16.msra.mxu0 %v9078
      %9764 = vmatprep.subr.bf16.mxu0 %v9087
      %9765 = vmatpush1.bf16.msra.mxu0 %v9086
      %9766 = vmatprep.subr.bf16.mxu0 %v9095
      %9767 = vmatpush1.bf16.msra.mxu0 %v9094
      %9768 = vmatprep.subr.bf16.mxu0 %v9103
      %9769 = vmatpush1.bf16.msra.mxu0 %v9102
      %9770 = vmatprep.subr.bf16.mxu0 %v9111
      %9771 = vmatpush1.bf16.msra.mxu0 %v9110
      %9772 = vmatprep.subr.bf16.mxu0 %v9119
      %9773 = vmatpush1.bf16.msra.mxu0 %v9118
      %9774 = vmatprep.subr.bf16.mxu0 %v9127
      %9775 = vmatpush1.bf16.msra.mxu0 %v9126
      %9776 = vmatprep.subr.bf16.mxu0 %v9135
      %9777 = vmatpush1.bf16.msra.mxu0 %v9134
      %9778 = vmatprep.subr.bf16.mxu0 %v9143
      %9779 = vmatpush1.bf16.msra.mxu0 %v9142
      %9780 = vmatprep.subr.bf16.mxu0 %v9151
      %9781 = vmatpush1.bf16.msra.mxu0 %v9150
      %9782 = vmatprep.subr.bf16.mxu0 %v9159
      %9783 = vmatpush1.bf16.msra.mxu0 %v9158
      %9784 = vmatprep.subr.bf16.mxu0 %v9167
      %9785 = vmatpush1.bf16.msra.mxu0 %v9166
      %9786 = vmatprep.subr.bf16.mxu0 %v9175
      %9787 = vmatpush1.bf16.msra.mxu0 %v9174
      %9788 = vmatprep.mubr.bf16.mxu0 %v9577
      %9789 = vmatmul.mubr.bf16.gmra.mrb[0].mxu0 %v9576
      %v9790 = vpop.f32.mrb[0].mxu0
      %v9791 = vadd.f32 0.0, %v9790
      %v9792 = vpop.f32.mrb[0].mxu0
      %v9793 = vadd.f32 0.0, %v9792
      %v9794 = vpop.f32.mrb[0].mxu0
      %v9795 = vpop.f32.mrb[0].mxu0
      %9796 = vdwg.mxu0
      %9797 = vmatprep.subr.bf16.mxu0 %v9183
      %9798 = vmatpush1.bf16.msra.mxu0 %v9182
      %9799 = vmatprep.subr.bf16.mxu0 %v9191
      %9800 = vmatpush1.bf16.msra.mxu0 %v9190
      %9801 = vmatprep.subr.bf16.mxu0 %v9199
      %9802 = vmatpush1.bf16.msra.mxu0 %v9198
      %9803 = vmatprep.subr.bf16.mxu0 %v9207
      %9804 = vmatpush1.bf16.msra.mxu0 %v9206
      %9805 = vmatprep.subr.bf16.mxu0 %v9215
      %9806 = vmatpush1.bf16.msra.mxu0 %v9214
      %9807 = vmatprep.subr.bf16.mxu0 %v9223
      %9808 = vmatpush1.bf16.msra.mxu0 %v9222
      %9809 = vmatprep.subr.bf16.mxu0 %v9231
      %9810 = vmatpush1.bf16.msra.mxu0 %v9230
      %9811 = vmatprep.subr.bf16.mxu0 %v9239
      %9812 = vmatpush1.bf16.msra.mxu0 %v9238
      %9813 = vmatprep.subr.bf16.mxu0 %v9247
      %9814 = vmatpush1.bf16.msra.mxu0 %v9246
      %9815 = vmatprep.subr.bf16.mxu0 %v9255
      %9816 = vmatpush1.bf16.msra.mxu0 %v9254
      %9817 = vmatprep.subr.bf16.mxu0 %v9263
      %9818 = vmatpush1.bf16.msra.mxu0 %v9262
      %9819 = vmatprep.subr.bf16.mxu0 %v9271
      %9820 = vmatpush1.bf16.msra.mxu0 %v9270
      %9821 = vmatprep.subr.bf16.mxu0 %v9279
      %9822 = vmatpush1.bf16.msra.mxu0 %v9278
      %9823 = vmatprep.subr.bf16.mxu0 %v9287
      %9824 = vmatpush1.bf16.msra.mxu0 %v9286
      %9825 = vmatprep.subr.bf16.mxu0 %v9295
      %9826 = vmatpush1.bf16.msra.mxu0 %v9294
      %9827 = vmatprep.subr.bf16.mxu0 %v9303
      %9828 = vmatpush1.bf16.msra.mxu0 %v9302
      %9829 = vmatprep.mubr.bf16.mxu0 %v9579
      %9830 = vmatmul.mubr.bf16.gmra.mrb[0].mxu0 %v9578
      %v9831 = vpop.f32.mrb[0].mxu0
      %v9832 = vadd.f32 %v9791, %v9831
      %v9833 = vpop.f32.mrb[0].mxu0
      %v9834 = vadd.f32 %v9793, %v9833
      %v9835 = vpop.f32.mrb[0].mxu0
      %v9836 = vpop.f32.mrb[0].mxu0
      %9837 = vdwg.mxu0
      %9838 = vmatprep.subr.bf16.mxu0 %v9311
      %9839 = vmatpush1.bf16.msra.mxu0 %v9310
      %9840 = vmatprep.subr.bf16.mxu0 %v9319
      %9841 = vmatpush1.bf16.msra.mxu0 %v9318
      %9842 = vmatprep.subr.bf16.mxu0 %v9327
      %9843 = vmatpush1.bf16.msra.mxu0 %v9326
      %9844 = vmatprep.subr.bf16.mxu0 %v9335
      %9845 = vmatpush1.bf16.msra.mxu0 %v9334
      %9846 = vmatprep.subr.bf16.mxu0 %v9343
      %9847 = vmatpush1.bf16.msra.mxu0 %v9342
      %9848 = vmatprep.subr.bf16.mxu0 %v9351
      %9849 = vmatpush1.bf16.msra.mxu0 %v9350
      %9850 = vmatprep.subr.bf16.mxu0 %v9359
      %9851 = vmatpush1.bf16.msra.mxu0 %v9358
      %9852 = vmatprep.subr.bf16.mxu0 %v9367
      %9853 = vmatpush1.bf16.msra.mxu0 %v9366
      %9854 = vmatprep.subr.bf16.mxu0 %v9375
      %9855 = vmatpush1.bf16.msra.mxu0 %v9374
      %9856 = vmatprep.subr.bf16.mxu0 %v9383
      %9857 = vmatpush1.bf16.msra.mxu0 %v9382
      %9858 = vmatprep.subr.bf16.mxu0 %v9391
      %9859 = vmatpush1.bf16.msra.mxu0 %v9390
      %9860 = vmatprep.subr.bf16.mxu0 %v9399
      %9861 = vmatpush1.bf16.msra.mxu0 %v9398
      %9862 = vmatprep.subr.bf16.mxu0 %v9407
      %9863 = vmatpush1.bf16.msra.mxu0 %v9406
      %9864 = vmatprep.subr.bf16.mxu0 %v9415
      %9865 = vmatpush1.bf16.msra.mxu0 %v9414
      %9866 = vmatprep.subr.bf16.mxu0 %v9423
      %9867 = vmatpush1.bf16.msra.mxu0 %v9422
      %9868 = vmatprep.subr.bf16.mxu0 %v9431
      %9869 = vmatpush1.bf16.msra.mxu0 %v9430
      %9870 = vmatprep.mubr.bf16.mxu0 %v9581
      %9871 = vmatmul.mubr.bf16.gmra.mrb[0].mxu0 %v9580
      %v9872 = vpop.f32.mrb[0].mxu0
      %v9873 = vadd.f32 %v9832, %v9872
      %v9874 = vpop.f32.mrb[0].mxu0
      %v9875 = vadd.f32 %v9834, %v9874
      %v9876 = vpop.f32.mrb[0].mxu0
      %v9877 = vpop.f32.mrb[0].mxu0
      %9878 = vdwg.mxu0
      %9879 = vmatprep.subr.bf16.mxu0 %v9439
      %9880 = vmatpush1.bf16.msra.mxu0 %v9438
      %9881 = vmatprep.subr.bf16.mxu0 %v9447
      %9882 = vmatpush1.bf16.msra.mxu0 %v9446
      %9883 = vmatprep.subr.bf16.mxu0 %v9455
      %9884 = vmatpush1.bf16.msra.mxu0 %v9454
      %9885 = vmatprep.subr.bf16.mxu0 %v9463
      %9886 = vmatpush1.bf16.msra.mxu0 %v9462
      %9887 = vmatprep.subr.bf16.mxu0 %v9471
      %9888 = vmatpush1.bf16.msra.mxu0 %v9470
      %9889 = vmatprep.subr.bf16.mxu0 %v9479
      %9890 = vmatpush1.bf16.msra.mxu0 %v9478
      %9891 = vmatprep.subr.bf16.mxu0 %v9487
      %9892 = vmatpush1.bf16.msra.mxu0 %v9486
      %9893 = vmatprep.subr.bf16.mxu0 %v9495
      %9894 = vmatpush1.bf16.msra.mxu0 %v9494
      %9895 = vmatprep.subr.bf16.mxu0 %v9503
      %9896 = vmatpush1.bf16.msra.mxu0 %v9502
      %9897 = vmatprep.subr.bf16.mxu0 %v9511
      %9898 = vmatpush1.bf16.msra.mxu0 %v9510
      %9899 = vmatprep.subr.bf16.mxu0 %v9519
      %9900 = vmatpush1.bf16.msra.mxu0 %v9518
      %9901 = vmatprep.subr.bf16.mxu0 %v9527
      %9902 = vmatpush1.bf16.msra.mxu0 %v9526
      %9903 = vmatprep.subr.bf16.mxu0 %v9535
      %9904 = vmatpush1.bf16.msra.mxu0 %v9534
      %9905 = vmatprep.subr.bf16.mxu0 %v9543
      %9906 = vmatpush1.bf16.msra.mxu0 %v9542
      %9907 = vmatprep.subr.bf16.mxu0 %v9551
      %9908 = vmatpush1.bf16.msra.mxu0 %v9550
      %9909 = vmatprep.subr.bf16.mxu0 %v9559
      %9910 = vmatpush1.bf16.msra.mxu0 %v9558
      %9911 = vmatprep.mubr.bf16.mxu0 %v9583
      %9912 = vmatmul.mubr.bf16.gmra.mrb[0].mxu0 %v9582
      %v9913 = vpop.f32.mrb[0].mxu0
      %v9914 = vadd.f32 %v9873, %v9913
      %v9915 = vpop.f32.mrb[0].mxu0
      %v9916 = vadd.f32 %v9875, %v9915
      %v9917 = vpop.f32.mrb[0].mxu0
      %v9918 = vpop.f32.mrb[0].mxu0
      %9919 = vdwg.mxu0
      %9920 = vmatprep.subr.bf16.mxu0 %v9057
      %9921 = vmatpush1.bf16.msra.mxu0 %v9056
      %9922 = vmatprep.subr.bf16.mxu0 %v9065
      %9923 = vmatpush1.bf16.msra.mxu0 %v9064
      %9924 = vmatprep.subr.bf16.mxu0 %v9073
      %9925 = vmatpush1.bf16.msra.mxu0 %v9072
      %9926 = vmatprep.subr.bf16.mxu0 %v9081
      %9927 = vmatpush1.bf16.msra.mxu0 %v9080
      %9928 = vmatprep.subr.bf16.mxu0 %v9089
      %9929 = vmatpush1.bf16.msra.mxu0 %v9088
      %9930 = vmatprep.subr.bf16.mxu0 %v9097
      %9931 = vmatpush1.bf16.msra.mxu0 %v9096
      %9932 = vmatprep.subr.bf16.mxu0 %v9105
      %9933 = vmatpush1.bf16.msra.mxu0 %v9104
      %9934 = vmatprep.subr.bf16.mxu0 %v9113
      %9935 = vmatpush1.bf16.msra.mxu0 %v9112
      %9936 = vmatprep.subr.bf16.mxu0 %v9121
      %9937 = vmatpush1.bf16.msra.mxu0 %v9120
      %9938 = vmatprep.subr.bf16.mxu0 %v9129
      %9939 = vmatpush1.bf16.msra.mxu0 %v9128
      %9940 = vmatprep.subr.bf16.mxu0 %v9137
      %9941 = vmatpush1.bf16.msra.mxu0 %v9136
      %9942 = vmatprep.subr.bf16.mxu0 %v9145
      %9943 = vmatpush1.bf16.msra.mxu0 %v9144
      %9944 = vmatprep.subr.bf16.mxu0 %v9153
      %9945 = vmatpush1.bf16.msra.mxu0 %v9152
      %9946 = vmatprep.subr.bf16.mxu0 %v9161
      %9947 = vmatpush1.bf16.msra.mxu0 %v9160
      %9948 = vmatprep.subr.bf16.mxu0 %v9169
      %9949 = vmatpush1.bf16.msra.mxu0 %v9168
      %9950 = vmatprep.subr.bf16.mxu0 %v9177
      %9951 = vmatpush1.bf16.msra.mxu0 %v9176
      %9952 = vmatprep.mubr.bf16.mxu0 %v9577
      %9953 = vmatmul.mubr.bf16.gmra.mrb[0].mxu0 %v9576
      %v9954 = vpop.f32.mrb[0].mxu0
      %v9955 = vadd.f32 0.0, %v9954
      %v9956 = vpop.f32.mrb[0].mxu0
      %v9957 = vadd.f32 0.0, %v9956
      %v9958 = vpop.f32.mrb[0].mxu0
      %v9959 = vpop.f32.mrb[0].mxu0
      %9960 = vdwg.mxu0
      %9961 = vmatprep.subr.bf16.mxu0 %v9185
      %9962 = vmatpush1.bf16.msra.mxu0 %v9184
      %9963 = vmatprep.subr.bf16.mxu0 %v9193
      %9964 = vmatpush1.bf16.msra.mxu0 %v9192
      %9965 = vmatprep.subr.bf16.mxu0 %v9201
      %9966 = vmatpush1.bf16.msra.mxu0 %v9200
      %9967 = vmatprep.subr.bf16.mxu0 %v9209
      %9968 = vmatpush1.bf16.msra.mxu0 %v9208
      %9969 = vmatprep.subr.bf16.mxu0 %v9217
      %9970 = vmatpush1.bf16.msra.mxu0 %v9216
      %9971 = vmatprep.subr.bf16.mxu0 %v9225
      %9972 = vmatpush1.bf16.msra.mxu0 %v9224
      %9973 = vmatprep.subr.bf16.mxu0 %v9233
      %9974 = vmatpush1.bf16.msra.mxu0 %v9232
      %9975 = vmatprep.subr.bf16.mxu0 %v9241
      %9976 = vmatpush1.bf16.msra.mxu0 %v9240
      %9977 = vmatprep.subr.bf16.mxu0 %v9249
      %9978 = vmatpush1.bf16.msra.mxu0 %v9248
      %9979 = vmatprep.subr.bf16.mxu0 %v9257
      %9980 = vmatpush1.bf16.msra.mxu0 %v9256
      %9981 = vmatprep.subr.bf16.mxu0 %v9265
      %9982 = vmatpush1.bf16.msra.mxu0 %v9264
      %9983 = vmatprep.subr.bf16.mxu0 %v9273
      %9984 = vmatpush1.bf16.msra.mxu0 %v9272
      %9985 = vmatprep.subr.bf16.mxu0 %v9281
      %9986 = vmatpush1.bf16.msra.mxu0 %v9280
      %9987 = vmatprep.subr.bf16.mxu0 %v9289
      %9988 = vmatpush1.bf16.msra.mxu0 %v9288
      %9989 = vmatprep.subr.bf16.mxu0 %v9297
      %9990 = vmatpush1.bf16.msra.mxu0 %v9296
      %9991 = vmatprep.subr.bf16.mxu0 %v9305
      %9992 = vmatpush1.bf16.msra.mxu0 %v9304
      %9993 = vmatprep.mubr.bf16.mxu0 %v9579
      %9994 = vmatmul.mubr.bf16.gmra.mrb[0].mxu0 %v9578
      %v9995 = vpop.f32.mrb[0].mxu0
      %v9996 = vadd.f32 %v9955, %v9995
      %v9997 = vpop.f32.mrb[0].mxu0
      %v9998 = vadd.f32 %v9957, %v9997
      %v9999 = vpop.f32.mrb[0].mxu0
      %v10000 = vpop.f32.mrb[0].mxu0
      %10001 = vdwg.mxu0
      %10002 = vmatprep.subr.bf16.mxu0 %v9313
      %10003 = vmatpush1.bf16.msra.mxu0 %v9312
      %10004 = vmatprep.subr.bf16.mxu0 %v9321
      %10005 = vmatpush1.bf16.msra.mxu0 %v9320
      %10006 = vmatprep.subr.bf16.mxu0 %v9329
      %10007 = vmatpush1.bf16.msra.mxu0 %v9328
      %10008 = vmatprep.subr.bf16.mxu0 %v9337
      %10009 = vmatpush1.bf16.msra.mxu0 %v9336
      %10010 = vmatprep.subr.bf16.mxu0 %v9345
      %10011 = vmatpush1.bf16.msra.mxu0 %v9344
      %10012 = vmatprep.subr.bf16.mxu0 %v9353
      %10013 = vmatpush1.bf16.msra.mxu0 %v9352
      %10014 = vmatprep.subr.bf16.mxu0 %v9361
      %10015 = vmatpush1.bf16.msra.mxu0 %v9360
      %10016 = vmatprep.subr.bf16.mxu0 %v9369
      %10017 = vmatpush1.bf16.msra.mxu0 %v9368
      %10018 = vmatprep.subr.bf16.mxu0 %v9377
      %10019 = vmatpush1.bf16.msra.mxu0 %v9376
      %10020 = vmatprep.subr.bf16.mxu0 %v9385
      %10021 = vmatpush1.bf16.msra.mxu0 %v9384
      %10022 = vmatprep.subr.bf16.mxu0 %v9393
      %10023 = vmatpush1.bf16.msra.mxu0 %v9392
      %10024 = vmatprep.subr.bf16.mxu0 %v9401
      %10025 = vmatpush1.bf16.msra.mxu0 %v9400
      %10026 = vmatprep.subr.bf16.mxu0 %v9409
      %10027 = vmatpush1.bf16.msra.mxu0 %v9408
      %10028 = vmatprep.subr.bf16.mxu0 %v9417
      %10029 = vmatpush1.bf16.msra.mxu0 %v9416
      %10030 = vmatprep.subr.bf16.mxu0 %v9425
      %10031 = vmatpush1.bf16.msra.mxu0 %v9424
      %10032 = vmatprep.subr.bf16.mxu0 %v9433
      %10033 = vmatpush1.bf16.msra.mxu0 %v9432
      %10034 = vmatprep.mubr.bf16.mxu0 %v9581
      %10035 = vmatmul.mubr.bf16.gmra.mrb[0].mxu0 %v9580
      %v10036 = vpop.f32.mrb[0].mxu0
      %v10037 = vadd.f32 %v9996, %v10036
      %v10038 = vpop.f32.mrb[0].mxu0
      %v10039 = vadd.f32 %v9998, %v10038
      %v10040 = vpop.f32.mrb[0].mxu0
      %v10041 = vpop.f32.mrb[0].mxu0
      %10042 = vdwg.mxu0
      %10043 = vmatprep.subr.bf16.mxu0 %v9441
      %10044 = vmatpush1.bf16.msra.mxu0 %v9440
      %10045 = vmatprep.subr.bf16.mxu0 %v9449
      %10046 = vmatpush1.bf16.msra.mxu0 %v9448
      %10047 = vmatprep.subr.bf16.mxu0 %v9457
      %10048 = vmatpush1.bf16.msra.mxu0 %v9456
      %10049 = vmatprep.subr.bf16.mxu0 %v9465
      %10050 = vmatpush1.bf16.msra.mxu0 %v9464
      %10051 = vmatprep.subr.bf16.mxu0 %v9473
      %10052 = vmatpush1.bf16.msra.mxu0 %v9472
      %10053 = vmatprep.subr.bf16.mxu0 %v9481
      %10054 = vmatpush1.bf16.msra.mxu0 %v9480
      %10055 = vmatprep.subr.bf16.mxu0 %v9489
      %10056 = vmatpush1.bf16.msra.mxu0 %v9488
      %10057 = vmatprep.subr.bf16.mxu0 %v9497
      %10058 = vmatpush1.bf16.msra.mxu0 %v9496
      %10059 = vmatprep.subr.bf16.mxu0 %v9505
      %10060 = vmatpush1.bf16.msra.mxu0 %v9504
      %10061 = vmatprep.subr.bf16.mxu0 %v9513
      %10062 = vmatpush1.bf16.msra.mxu0 %v9512
      %10063 = vmatprep.subr.bf16.mxu0 %v9521
      %10064 = vmatpush1.bf16.msra.mxu0 %v9520
      %10065 = vmatprep.subr.bf16.mxu0 %v9529
      %10066 = vmatpush1.bf16.msra.mxu0 %v9528
      %10067 = vmatprep.subr.bf16.mxu0 %v9537
      %10068 = vmatpush1.bf16.msra.mxu0 %v9536
      %10069 = vmatprep.subr.bf16.mxu0 %v9545
      %10070 = vmatpush1.bf16.msra.mxu0 %v9544
      %10071 = vmatprep.subr.bf16.mxu0 %v9553
      %10072 = vmatpush1.bf16.msra.mxu0 %v9552
      %10073 = vmatprep.subr.bf16.mxu0 %v9561
      %10074 = vmatpush1.bf16.msra.mxu0 %v9560
      %10075 = vmatprep.mubr.bf16.mxu0 %v9583
      %10076 = vmatmul.mubr.bf16.gmra.mrb[0].mxu0 %v9582
      %v10077 = vpop.f32.mrb[0].mxu0
      %v10078 = vadd.f32 %v10037, %v10077
      %v10079 = vpop.f32.mrb[0].mxu0
      %v10080 = vadd.f32 %v10039, %v10079
      %v10081 = vpop.f32.mrb[0].mxu0
      %v10082 = vpop.f32.mrb[0].mxu0
      %10083 = vdwg.mxu0
      %10084 = vmatprep.subr.bf16.mxu0 %v9059
      %10085 = vmatpush1.bf16.msra.mxu0 %v9058
      %10086 = vmatprep.subr.bf16.mxu0 %v9067
      %10087 = vmatpush1.bf16.msra.mxu0 %v9066
      %10088 = vmatprep.subr.bf16.mxu0 %v9075
      %10089 = vmatpush1.bf16.msra.mxu0 %v9074
      %10090 = vmatprep.subr.bf16.mxu0 %v9083
      %10091 = vmatpush1.bf16.msra.mxu0 %v9082
      %10092 = vmatprep.subr.bf16.mxu0 %v9091
      %10093 = vmatpush1.bf16.msra.mxu0 %v9090
      %10094 = vmatprep.subr.bf16.mxu0 %v9099
      %10095 = vmatpush1.bf16.msra.mxu0 %v9098
      %10096 = vmatprep.subr.bf16.mxu0 %v9107
      %10097 = vmatpush1.bf16.msra.mxu0 %v9106
      %10098 = vmatprep.subr.bf16.mxu0 %v9115
      %10099 = vmatpush1.bf16.msra.mxu0 %v9114
      %10100 = vmatprep.subr.bf16.mxu0 %v9123
      %10101 = vmatpush1.bf16.msra.mxu0 %v9122
      %10102 = vmatprep.subr.bf16.mxu0 %v9131
      %10103 = vmatpush1.bf16.msra.mxu0 %v9130
      %10104 = vmatprep.subr.bf16.mxu0 %v9139
      %10105 = vmatpush1.bf16.msra.mxu0 %v9138
      %10106 = vmatprep.subr.bf16.mxu0 %v9147
      %10107 = vmatpush1.bf16.msra.mxu0 %v9146
      %10108 = vmatprep.subr.bf16.mxu0 %v9155
      %10109 = vmatpush1.bf16.msra.mxu0 %v9154
      %10110 = vmatprep.subr.bf16.mxu0 %v9163
      %10111 = vmatpush1.bf16.msra.mxu0 %v9162
      %10112 = vmatprep.subr.bf16.mxu0 %v9171
      %10113 = vmatpush1.bf16.msra.mxu0 %v9170
      %10114 = vmatprep.subr.bf16.mxu0 %v9179
      %10115 = vmatpush1.bf16.msra.mxu0 %v9178
      %10116 = vmatprep.mubr.bf16.mxu0 %v9577
      %10117 = vmatmul.mubr.bf16.gmra.mrb[0].mxu0 %v9576
      %v10118 = vpop.f32.mrb[0].mxu0
      %v10119 = vadd.f32 0.0, %v10118
      %v10120 = vpop.f32.mrb[0].mxu0
      %v10121 = vadd.f32 0.0, %v10120
      %v10122 = vpop.f32.mrb[0].mxu0
      %v10123 = vpop.f32.mrb[0].mxu0
      %10124 = vdwg.mxu0
      %10125 = vmatprep.subr.bf16.mxu0 %v9187
      %10126 = vmatpush1.bf16.msra.mxu0 %v9186
      %10127 = vmatprep.subr.bf16.mxu0 %v9195
      %10128 = vmatpush1.bf16.msra.mxu0 %v9194
      %10129 = vmatprep.subr.bf16.mxu0 %v9203
      %10130 = vmatpush1.bf16.msra.mxu0 %v9202
      %10131 = vmatprep.subr.bf16.mxu0 %v9211
      %10132 = vmatpush1.bf16.msra.mxu0 %v9210
      %10133 = vmatprep.subr.bf16.mxu0 %v9219
      %10134 = vmatpush1.bf16.msra.mxu0 %v9218
      %10135 = vmatprep.subr.bf16.mxu0 %v9227
      %10136 = vmatpush1.bf16.msra.mxu0 %v9226
      %10137 = vmatprep.subr.bf16.mxu0 %v9235
      %10138 = vmatpush1.bf16.msra.mxu0 %v9234
      %10139 = vmatprep.subr.bf16.mxu0 %v9243
      %10140 = vmatpush1.bf16.msra.mxu0 %v9242
      %10141 = vmatprep.subr.bf16.mxu0 %v9251
      %10142 = vmatpush1.bf16.msra.mxu0 %v9250
      %10143 = vmatprep.subr.bf16.mxu0 %v9259
      %10144 = vmatpush1.bf16.msra.mxu0 %v9258
      %10145 = vmatprep.subr.bf16.mxu0 %v9267
      %10146 = vmatpush1.bf16.msra.mxu0 %v9266
      %10147 = vmatprep.subr.bf16.mxu0 %v9275
      %10148 = vmatpush1.bf16.msra.mxu0 %v9274
      %10149 = vmatprep.subr.bf16.mxu0 %v9283
      %10150 = vmatpush1.bf16.msra.mxu0 %v9282
      %10151 = vmatprep.subr.bf16.mxu0 %v9291
      %10152 = vmatpush1.bf16.msra.mxu0 %v9290
      %10153 = vmatprep.subr.bf16.mxu0 %v9299
      %10154 = vmatpush1.bf16.msra.mxu0 %v9298
      %10155 = vmatprep.subr.bf16.mxu0 %v9307
      %10156 = vmatpush1.bf16.msra.mxu0 %v9306
      %10157 = vmatprep.mubr.bf16.mxu0 %v9579
      %10158 = vmatmul.mubr.bf16.gmra.mrb[0].mxu0 %v9578
      %v10159 = vpop.f32.mrb[0].mxu0
      %v10160 = vadd.f32 %v10119, %v10159
      %v10161 = vpop.f32.mrb[0].mxu0
      %v10162 = vadd.f32 %v10121, %v10161
      %v10163 = vpop.f32.mrb[0].mxu0
      %v10164 = vpop.f32.mrb[0].mxu0
      %10165 = vdwg.mxu0
      %10166 = vmatprep.subr.bf16.mxu0 %v9315
      %10167 = vmatpush1.bf16.msra.mxu0 %v9314
      %10168 = vmatprep.subr.bf16.mxu0 %v9323
      %10169 = vmatpush1.bf16.msra.mxu0 %v9322
      %10170 = vmatprep.subr.bf16.mxu0 %v9331
      %10171 = vmatpush1.bf16.msra.mxu0 %v9330
      %10172 = vmatprep.subr.bf16.mxu0 %v9339
      %10173 = vmatpush1.bf16.msra.mxu0 %v9338
      %10174 = vmatprep.subr.bf16.mxu0 %v9347
      %10175 = vmatpush1.bf16.msra.mxu0 %v9346
      %10176 = vmatprep.subr.bf16.mxu0 %v9355
      %10177 = vmatpush1.bf16.msra.mxu0 %v9354
      %10178 = vmatprep.subr.bf16.mxu0 %v9363
      %10179 = vmatpush1.bf16.msra.mxu0 %v9362
      %10180 = vmatprep.subr.bf16.mxu0 %v9371
      %10181 = vmatpush1.bf16.msra.mxu0 %v9370
      %10182 = vmatprep.subr.bf16.mxu0 %v9379
      %10183 = vmatpush1.bf16.msra.mxu0 %v9378
      %10184 = vmatprep.subr.bf16.mxu0 %v9387
      %10185 = vmatpush1.bf16.msra.mxu0 %v9386
      %10186 = vmatprep.subr.bf16.mxu0 %v9395
      %10187 = vmatpush1.bf16.msra.mxu0 %v9394
      %10188 = vmatprep.subr.bf16.mxu0 %v9403
      %10189 = vmatpush1.bf16.msra.mxu0 %v9402
      %10190 = vmatprep.subr.bf16.mxu0 %v9411
      %10191 = vmatpush1.bf16.msra.mxu0 %v9410
      %10192 = vmatprep.subr.bf16.mxu0 %v9419
      %10193 = vmatpush1.bf16.msra.mxu0 %v9418
      %10194 = vmatprep.subr.bf16.mxu0 %v9427
      %10195 = vmatpush1.bf16.msra.mxu0 %v9426
      %10196 = vmatprep.subr.bf16.mxu0 %v9435
      %10197 = vmatpush1.bf16.msra.mxu0 %v9434
      %10198 = vmatprep.mubr.bf16.mxu0 %v9581
      %10199 = vmatmul.mubr.bf16.gmra.mrb[0].mxu0 %v9580
      %v10200 = vpop.f32.mrb[0].mxu0
      %v10201 = vadd.f32 %v10160, %v10200
      %v10202 = vpop.f32.mrb[0].mxu0
      %v10203 = vadd.f32 %v10162, %v10202
      %v10204 = vpop.f32.mrb[0].mxu0
      %v10205 = vpop.f32.mrb[0].mxu0
      %10206 = vdwg.mxu0
      %10207 = vmatprep.subr.bf16.mxu0 %v9443
      %10208 = vmatpush1.bf16.msra.mxu0 %v9442
      %10209 = vmatprep.subr.bf16.mxu0 %v9451
      %10210 = vmatpush1.bf16.msra.mxu0 %v9450
      %10211 = vmatprep.subr.bf16.mxu0 %v9459
      %10212 = vmatpush1.bf16.msra.mxu0 %v9458
      %10213 = vmatprep.subr.bf16.mxu0 %v9467
      %10214 = vmatpush1.bf16.msra.mxu0 %v9466
      %10215 = vmatprep.subr.bf16.mxu0 %v9475
      %10216 = vmatpush1.bf16.msra.mxu0 %v9474
      %10217 = vmatprep.subr.bf16.mxu0 %v9483
      %10218 = vmatpush1.bf16.msra.mxu0 %v9482
      %10219 = vmatprep.subr.bf16.mxu0 %v9491
      %10220 = vmatpush1.bf16.msra.mxu0 %v9490
      %10221 = vmatprep.subr.bf16.mxu0 %v9499
      %10222 = vmatpush1.bf16.msra.mxu0 %v9498
      %10223 = vmatprep.subr.bf16.mxu0 %v9507
      %10224 = vmatpush1.bf16.msra.mxu0 %v9506
      %10225 = vmatprep.subr.bf16.mxu0 %v9515
      %10226 = vmatpush1.bf16.msra.mxu0 %v9514
      %10227 = vmatprep.subr.bf16.mxu0 %v9523
      %10228 = vmatpush1.bf16.msra.mxu0 %v9522
      %10229 = vmatprep.subr.bf16.mxu0 %v9531
      %10230 = vmatpush1.bf16.msra.mxu0 %v9530
      %10231 = vmatprep.subr.bf16.mxu0 %v9539
      %10232 = vmatpush1.bf16.msra.mxu0 %v9538
      %10233 = vmatprep.subr.bf16.mxu0 %v9547
      %10234 = vmatpush1.bf16.msra.mxu0 %v9546
      %10235 = vmatprep.subr.bf16.mxu0 %v9555
      %10236 = vmatpush1.bf16.msra.mxu0 %v9554
      %10237 = vmatprep.subr.bf16.mxu0 %v9563
      %10238 = vmatpush1.bf16.msra.mxu0 %v9562
      %10239 = vmatprep.mubr.bf16.mxu0 %v9583
      %10240 = vmatmul.mubr.bf16.gmra.mrb[0].mxu0 %v9582
      %v10241 = vpop.f32.mrb[0].mxu0
      %v10242 = vadd.f32 %v10201, %v10241
      %v10243 = vpop.f32.mrb[0].mxu0
      %v10244 = vadd.f32 %v10203, %v10243
      %v10245 = vpop.f32.mrb[0].mxu0
      %v10246 = vpop.f32.mrb[0].mxu0
      %10247 = vdwg.mxu0
      %v10248 = vld [vmem:[#allocation5] sm:$0xff]
      %v10249 = vld [vmem:[#allocation5 + $0x8] sm:$0xff]
      %v10250 = vld [vmem:[#allocation5 + $0x10] sm:$0xff]
      %v10251 = vld [vmem:[#allocation5 + $0x18] sm:$0xff]
      %v10252 = vld [vmem:[#allocation5 + $0x20] sm:$0xff]
      %v10253 = vld [vmem:[#allocation5 + $0x28] sm:$0xff]
      %v10254 = vld [vmem:[#allocation5 + $0x30] sm:$0xff]
      %v10255 = vld [vmem:[#allocation5 + $0x38] sm:$0xff]
      %v10257 = vlaneseq
      %v10258 = vshrl.u32 %v10257, 7
      %v10259 = vsub.s32 0, %v10258
      %v10260 = vrot.slane %v4811, %v10259
      %v10261 = vlaneseq
      %v10262 = vshrl.u32 %v10261, 7
      %v10263 = vsub.s32 1, %v10262
      %v10264 = vrot.slane %v4811, %v10263
      %v10265 = vlaneseq
      %v10266 = vshrl.u32 %v10265, 7
      %v10267 = vsub.s32 2, %v10266
      %v10268 = vrot.slane %v4811, %v10267
      %v10269 = vlaneseq
      %v10270 = vshrl.u32 %v10269, 7
      %v10271 = vsub.s32 3, %v10270
      %v10272 = vrot.slane %v4811, %v10271
      %v10273 = vlaneseq
      %v10274 = vshrl.u32 %v10273, 7
      %v10275 = vsub.s32 4, %v10274
      %v10276 = vrot.slane %v4811, %v10275
      %v10277 = vlaneseq
      %v10278 = vshrl.u32 %v10277, 7
      %v10279 = vsub.s32 5, %v10278
      %v10280 = vrot.slane %v4811, %v10279
      %v10281 = vlaneseq
      %v10282 = vshrl.u32 %v10281, 7
      %v10283 = vsub.s32 6, %v10282
      %v10284 = vrot.slane %v4811, %v10283
      %v10285 = vlaneseq
      %v10286 = vshrl.u32 %v10285, 7
      %v10287 = vsub.s32 7, %v10286
      %v10288 = vrot.slane %v4811, %v10287
      %v10297 = vmul.f32 %v10260, %v10248
      %v10298 = vmul.f32 %v10264, %v10249
      %v10299 = vmul.f32 %v10268, %v10250
      %v10300 = vmul.f32 %v10272, %v10251
      %v10301 = vmul.f32 %v10276, %v10252
      %v10302 = vmul.f32 %v10280, %v10253
      %v10303 = vmul.f32 %v10284, %v10254
      %v10304 = vmul.f32 %v10288, %v10255
      %v10305 = vadd.f32 %v10297, %v9750
      %v10306 = vadd.f32 %v10298, %v9752
      %v10307 = vadd.f32 %v10299, %v9914
      %v10308 = vadd.f32 %v10300, %v9916
      %v10309 = vadd.f32 %v10301, %v10078
      %v10310 = vadd.f32 %v10302, %v10080
      %v10311 = vadd.f32 %v10303, %v10242
      %v10312 = vadd.f32 %v10304, %v10244
      %10313 = vst [vmem:[#allocation5] sm:$0xff] %v10305
      %10314 = vst [vmem:[#allocation5 + $0x8] sm:$0xff] %v10306
      %10315 = vst [vmem:[#allocation5 + $0x10] sm:$0xff] %v10307
      %10316 = vst [vmem:[#allocation5 + $0x18] sm:$0xff] %v10308
      %10317 = vst [vmem:[#allocation5 + $0x20] sm:$0xff] %v10309
      %10318 = vst [vmem:[#allocation5 + $0x28] sm:$0xff] %v10310
      %10319 = vst [vmem:[#allocation5 + $0x30] sm:$0xff] %v10311
      %10320 = vst [vmem:[#allocation5 + $0x38] sm:$0xff] %v10312
      // Predicated region
      $region41: #{gcn_forward.4} parent=35 // pred_check
        %p10321 = pneg %p327
      $region42: #{gcn_forward.4} parent=35 // pred_check_branch
        %10323 = sbr.rel (%p10321) target = $region44
      $region43: #{gcn_forward.4} parent=35 // pred_region
        %v10324 = vld [vmem:[#allocation4] sm:$0xff]
        %v10325 = vrcp.pop %v10324
        %v10326 = vld [vmem:[#allocation5] sm:$0xff]
        %v10327 = vld [vmem:[#allocation5 + $0x8] sm:$0xff]
        %v10328 = vld [vmem:[#allocation5 + $0x10] sm:$0xff]
        %v10329 = vld [vmem:[#allocation5 + $0x18] sm:$0xff]
        %v10330 = vld [vmem:[#allocation5 + $0x20] sm:$0xff]
        %v10331 = vld [vmem:[#allocation5 + $0x28] sm:$0xff]
        %v10332 = vld [vmem:[#allocation5 + $0x30] sm:$0xff]
        %v10333 = vld [vmem:[#allocation5 + $0x38] sm:$0xff]
        %v10335 = vlaneseq
        %v10336 = vshrl.u32 %v10335, 7
        %v10337 = vsub.s32 0, %v10336
        %v10338 = vrot.slane %v10325, %v10337
        %v10339 = vlaneseq
        %v10340 = vshrl.u32 %v10339, 7
        %v10341 = vsub.s32 1, %v10340
        %v10342 = vrot.slane %v10325, %v10341
        %v10343 = vlaneseq
        %v10344 = vshrl.u32 %v10343, 7
        %v10345 = vsub.s32 2, %v10344
        %v10346 = vrot.slane %v10325, %v10345
        %v10347 = vlaneseq
        %v10348 = vshrl.u32 %v10347, 7
        %v10349 = vsub.s32 3, %v10348
        %v10350 = vrot.slane %v10325, %v10349
        %v10351 = vlaneseq
        %v10352 = vshrl.u32 %v10351, 7
        %v10353 = vsub.s32 4, %v10352
        %v10354 = vrot.slane %v10325, %v10353
        %v10355 = vlaneseq
        %v10356 = vshrl.u32 %v10355, 7
        %v10357 = vsub.s32 5, %v10356
        %v10358 = vrot.slane %v10325, %v10357
        %v10359 = vlaneseq
        %v10360 = vshrl.u32 %v10359, 7
        %v10361 = vsub.s32 6, %v10360
        %v10362 = vrot.slane %v10325, %v10361
        %v10363 = vlaneseq
        %v10364 = vshrl.u32 %v10363, 7
        %v10365 = vsub.s32 7, %v10364
        %v10366 = vrot.slane %v10325, %v10365
        %v10375 = vmul.f32 %v10326, %v10338
        %v10376 = vmul.f32 %v10327, %v10342
        %v10377 = vmul.f32 %v10328, %v10346
        %v10378 = vmul.f32 %v10329, %v10350
        %v10379 = vmul.f32 %v10330, %v10354
        %v10380 = vmul.f32 %v10331, %v10358
        %v10381 = vmul.f32 %v10332, %v10362
        %v10382 = vmul.f32 %v10333, %v10366
        %v10383 = vpack.c.bf16 %v10375, %v10375
        %v10384 = vpack.c.bf16 %v10376, %v10376
        %v10385 = vpack.c.bf16 %v10377, %v10377
        %v10386 = vpack.c.bf16 %v10378, %v10378
        %v10387 = vpack.c.bf16 %v10379, %v10379
        %v10388 = vpack.c.bf16 %v10380, %v10380
        %v10389 = vpack.c.bf16 %v10381, %v10381
        %v10390 = vpack.c.bf16 %v10382, %v10382
        %v10391 = vld [vmem:[%s3] sm:$0xf]
        %v10393 = vsel %vm775, %v10391, 0
        %v10396 = vsel %vm968, %v10383, 0
        %v10399 = vsel %vm968, %v10384, 0
        %v10402 = vsel %vm968, %v10385, 0
        %v10405 = vsel %vm968, %v10386, 0
        %v10408 = vsel %vm968, %v10387, 0
        %v10411 = vsel %vm968, %v10388, 0
        %v10414 = vsel %vm968, %v10389, 0
        %v10417 = vsel %vm968, %v10390, 0
        %10419 = vmatprep.subr.bf16.mxu0 %v10399
        %10420 = vmatpush1.bf16.msra.mxu0 %v10396
        %10421 = vmatprep.subr.bf16.mxu0 0
        %10422 = vmatpush1.bf16.msra.mxu0 0
        %10423 = vmatprep.subr.bf16.mxu0 0
        %10424 = vmatpush1.bf16.msra.mxu0 0
        %10425 = vmatprep.subr.bf16.mxu0 0
        %10426 = vmatpush1.bf16.msra.mxu0 0
        %10427 = vmatprep.subr.bf16.mxu0 0
        %10428 = vmatpush1.bf16.msra.mxu0 0
        %10429 = vmatprep.subr.bf16.mxu0 0
        %10430 = vmatpush1.bf16.msra.mxu0 0
        %10431 = vmatprep.subr.bf16.mxu0 0
        %10432 = vmatpush1.bf16.msra.mxu0 0
        %10433 = vmatprep.subr.bf16.mxu0 0
        %10434 = vmatpush1.bf16.msra.mxu0 0
        %10435 = vmatprep.subr.bf16.mxu0 0
        %10436 = vmatpush1.bf16.msra.mxu0 0
        %10437 = vmatprep.subr.bf16.mxu0 0
        %10438 = vmatpush1.bf16.msra.mxu0 0
        %10439 = vmatprep.subr.bf16.mxu0 0
        %10440 = vmatpush1.bf16.msra.mxu0 0
        %10441 = vmatprep.subr.bf16.mxu0 0
        %10442 = vmatpush1.bf16.msra.mxu0 0
        %10443 = vmatprep.subr.bf16.mxu0 0
        %10444 = vmatpush1.bf16.msra.mxu0 0
        %10445 = vmatprep.subr.bf16.mxu0 0
        %10446 = vmatpush1.bf16.msra.mxu0 0
        %10447 = vmatprep.subr.bf16.mxu0 0
        %10448 = vmatpush1.bf16.msra.mxu0 0
        %10449 = vmatprep.subr.bf16.mxu0 0
        %10450 = vmatpush1.bf16.msra.mxu0 0
        %10451 = vmatprep.mubr.bf16.mxu0 0
        %10452 = vmatmul.mubr.bf16.gmra.mrb[0].mxu0 %v10393
        %v10453 = vpop.f32.mrb[0].mxu0
        %v10454 = vadd.f32 0.0, %v10453
        %v10455 = vpop.f32.mrb[0].mxu0
        %v10456 = vadd.f32 0.0, %v10455
        %v10457 = vpop.f32.mrb[0].mxu0
        %v10458 = vpop.f32.mrb[0].mxu0
        %10459 = vdwg.mxu0
        %10460 = vmatprep.subr.bf16.mxu0 %v10405
        %10461 = vmatpush1.bf16.msra.mxu0 %v10402
        %10462 = vmatprep.subr.bf16.mxu0 0
        %10463 = vmatpush1.bf16.msra.mxu0 0
        %10464 = vmatprep.subr.bf16.mxu0 0
        %10465 = vmatpush1.bf16.msra.mxu0 0
        %10466 = vmatprep.subr.bf16.mxu0 0
        %10467 = vmatpush1.bf16.msra.mxu0 0
        %10468 = vmatprep.subr.bf16.mxu0 0
        %10469 = vmatpush1.bf16.msra.mxu0 0
        %10470 = vmatprep.subr.bf16.mxu0 0
        %10471 = vmatpush1.bf16.msra.mxu0 0
        %10472 = vmatprep.subr.bf16.mxu0 0
        %10473 = vmatpush1.bf16.msra.mxu0 0
        %10474 = vmatprep.subr.bf16.mxu0 0
        %10475 = vmatpush1.bf16.msra.mxu0 0
        %10476 = vmatprep.subr.bf16.mxu0 0
        %10477 = vmatpush1.bf16.msra.mxu0 0
        %10478 = vmatprep.subr.bf16.mxu0 0
        %10479 = vmatpush1.bf16.msra.mxu0 0
        %10480 = vmatprep.subr.bf16.mxu0 0
        %10481 = vmatpush1.bf16.msra.mxu0 0
        %10482 = vmatprep.subr.bf16.mxu0 0
        %10483 = vmatpush1.bf16.msra.mxu0 0
        %10484 = vmatprep.subr.bf16.mxu0 0
        %10485 = vmatpush1.bf16.msra.mxu0 0
        %10486 = vmatprep.subr.bf16.mxu0 0
        %10487 = vmatpush1.bf16.msra.mxu0 0
        %10488 = vmatprep.subr.bf16.mxu0 0
        %10489 = vmatpush1.bf16.msra.mxu0 0
        %10490 = vmatprep.subr.bf16.mxu0 0
        %10491 = vmatpush1.bf16.msra.mxu0 0
        %10492 = vmatprep.mubr.bf16.mxu0 0
        %10493 = vmatmul.mubr.bf16.gmra.mrb[0].mxu0 %v10393
        %v10494 = vpop.f32.mrb[0].mxu0
        %v10495 = vadd.f32 0.0, %v10494
        %v10496 = vpop.f32.mrb[0].mxu0
        %v10497 = vadd.f32 0.0, %v10496
        %v10498 = vpop.f32.mrb[0].mxu0
        %v10499 = vpop.f32.mrb[0].mxu0
        %10500 = vdwg.mxu0
        %10501 = vmatprep.subr.bf16.mxu0 %v10411
        %10502 = vmatpush1.bf16.msra.mxu0 %v10408
        %10503 = vmatprep.subr.bf16.mxu0 0
        %10504 = vmatpush1.bf16.msra.mxu0 0
        %10505 = vmatprep.subr.bf16.mxu0 0
        %10506 = vmatpush1.bf16.msra.mxu0 0
        %10507 = vmatprep.subr.bf16.mxu0 0
        %10508 = vmatpush1.bf16.msra.mxu0 0
        %10509 = vmatprep.subr.bf16.mxu0 0
        %10510 = vmatpush1.bf16.msra.mxu0 0
        %10511 = vmatprep.subr.bf16.mxu0 0
        %10512 = vmatpush1.bf16.msra.mxu0 0
        %10513 = vmatprep.subr.bf16.mxu0 0
        %10514 = vmatpush1.bf16.msra.mxu0 0
        %10515 = vmatprep.subr.bf16.mxu0 0
        %10516 = vmatpush1.bf16.msra.mxu0 0
        %10517 = vmatprep.subr.bf16.mxu0 0
        %10518 = vmatpush1.bf16.msra.mxu0 0
        %10519 = vmatprep.subr.bf16.mxu0 0
        %10520 = vmatpush1.bf16.msra.mxu0 0
        %10521 = vmatprep.subr.bf16.mxu0 0
        %10522 = vmatpush1.bf16.msra.mxu0 0
        %10523 = vmatprep.subr.bf16.mxu0 0
        %10524 = vmatpush1.bf16.msra.mxu0 0
        %10525 = vmatprep.subr.bf16.mxu0 0
        %10526 = vmatpush1.bf16.msra.mxu0 0
        %10527 = vmatprep.subr.bf16.mxu0 0
        %10528 = vmatpush1.bf16.msra.mxu0 0
        %10529 = vmatprep.subr.bf16.mxu0 0
        %10530 = vmatpush1.bf16.msra.mxu0 0
        %10531 = vmatprep.subr.bf16.mxu0 0
        %10532 = vmatpush1.bf16.msra.mxu0 0
        %10533 = vmatprep.mubr.bf16.mxu0 0
        %10534 = vmatmul.mubr.bf16.gmra.mrb[0].mxu0 %v10393
        %v10535 = vpop.f32.mrb[0].mxu0
        %v10536 = vadd.f32 0.0, %v10535
        %v10537 = vpop.f32.mrb[0].mxu0
        %v10538 = vadd.f32 0.0, %v10537
        %v10539 = vpop.f32.mrb[0].mxu0
        %v10540 = vpop.f32.mrb[0].mxu0
        %10541 = vdwg.mxu0
        %10542 = vmatprep.subr.bf16.mxu0 %v10417
        %10543 = vmatpush1.bf16.msra.mxu0 %v10414
        %10544 = vmatprep.subr.bf16.mxu0 0
        %10545 = vmatpush1.bf16.msra.mxu0 0
        %10546 = vmatprep.subr.bf16.mxu0 0
        %10547 = vmatpush1.bf16.msra.mxu0 0
        %10548 = vmatprep.subr.bf16.mxu0 0
        %10549 = vmatpush1.bf16.msra.mxu0 0
        %10550 = vmatprep.subr.bf16.mxu0 0
        %10551 = vmatpush1.bf16.msra.mxu0 0
        %10552 = vmatprep.subr.bf16.mxu0 0
        %10553 = vmatpush1.bf16.msra.mxu0 0
        %10554 = vmatprep.subr.bf16.mxu0 0
        %10555 = vmatpush1.bf16.msra.mxu0 0
        %10556 = vmatprep.subr.bf16.mxu0 0
        %10557 = vmatpush1.bf16.msra.mxu0 0
        %10558 = vmatprep.subr.bf16.mxu0 0
        %10559 = vmatpush1.bf16.msra.mxu0 0
        %10560 = vmatprep.subr.bf16.mxu0 0
        %10561 = vmatpush1.bf16.msra.mxu0 0
        %10562 = vmatprep.subr.bf16.mxu0 0
        %10563 = vmatpush1.bf16.msra.mxu0 0
        %10564 = vmatprep.subr.bf16.mxu0 0
        %10565 = vmatpush1.bf16.msra.mxu0 0
        %10566 = vmatprep.subr.bf16.mxu0 0
        %10567 = vmatpush1.bf16.msra.mxu0 0
        %10568 = vmatprep.subr.bf16.mxu0 0
        %10569 = vmatpush1.bf16.msra.mxu0 0
        %10570 = vmatprep.subr.bf16.mxu0 0
        %10571 = vmatpush1.bf16.msra.mxu0 0
        %10572 = vmatprep.subr.bf16.mxu0 0
        %10573 = vmatpush1.bf16.msra.mxu0 0
        %10574 = vmatprep.mubr.bf16.mxu0 0
        %10575 = vmatmul.mubr.bf16.gmra.mrb[0].mxu0 %v10393
        %v10576 = vpop.f32.mrb[0].mxu0
        %v10577 = vadd.f32 0.0, %v10576
        %v10578 = vpop.f32.mrb[0].mxu0
        %v10579 = vadd.f32 0.0, %v10578
        %v10580 = vpop.f32.mrb[0].mxu0
        %v10581 = vpop.f32.mrb[0].mxu0
        %10582 = vdwg.mxu0
        %v10583 = vpack.c.bf16 %v10454, %v10454
        %v10584 = vpack.c.bf16 %v10456, %v10456
        %v10585 = vpack.c.bf16 %v10495, %v10495
        %v10586 = vpack.c.bf16 %v10497, %v10497
        %v10587 = vpack.c.bf16 %v10536, %v10536
        %v10588 = vpack.c.bf16 %v10538, %v10538
        %v10589 = vpack.c.bf16 %v10577, %v10577
        %v10590 = vpack.c.bf16 %v10579, %v10579
        %v10599 = vunpack.c.l.b16 %v10583
        %v10600 = vunpack.c.l.b16 %v10584
        %v10601 = vunpack.c.l.b16 %v10585
        %v10602 = vunpack.c.l.b16 %v10586
        %v10603 = vunpack.c.l.b16 %v10587
        %v10604 = vunpack.c.l.b16 %v10588
        %v10605 = vunpack.c.l.b16 %v10589
        %v10606 = vunpack.c.l.b16 %v10590
        %v10607 = vpack.c.b16 %v10600, %v10599
        %v10608 = vpack.c.b16 %v10602, %v10601
        %v10609 = vpack.c.b16 %v10604, %v10603
        %v10610 = vpack.c.b16 %v10606, %v10605
        %10615 = vst [vmem:[%s317] sm:$0xff] %v10607
        %10616 = vst [vmem:[%s317 + $0x8] sm:$0xff] %v10608
        %10617 = vst [vmem:[%s317 + $0x10] sm:$0xff] %v10609
        %10618 = vst [vmem:[%s317 + $0x18] sm:$0xff] %v10610
        %v10619 = vadd.f32 %v10454, %v10456
        %v10620 = vadd.f32 %v10619, %v10495
        %v10621 = vadd.f32 %v10620, %v10497
        %v10622 = vadd.f32 %v10621, %v10536
        %v10623 = vadd.f32 %v10622, %v10538
        %v10624 = vadd.f32 %v10623, %v10577
        %v10625 = vadd.f32 %v10624, %v10579
        %10626 = vadd.xlane.f32.xlu0 %v10625
        %v10627 = vpop.xlane.xlu0 %10626
        %v10629 = vlaneseq
        %v10630 = vand.u32 %v10629, 127
        %v10631 = vlaneseq
        %v10632 = vshrl.u32 %v10631, 7
        %v10633 = vsub.s32 %v10630, %v10632
        %v10634 = vrot.slane %v10627, %v10633
        %vm10636 = vcmask 57344
        %10637 = vst.msk [vmem:[%s325] sm:$0x1] %vm10636, %v10634
        %v10638 = vmul.f32 %v10454, %v10454
        %v10639 = vmul.f32 %v10456, %v10456
        %v10640 = vmul.f32 %v10495, %v10495
        %v10641 = vmul.f32 %v10497, %v10497
        %v10642 = vmul.f32 %v10536, %v10536
        %v10643 = vmul.f32 %v10538, %v10538
        %v10644 = vmul.f32 %v10577, %v10577
        %v10645 = vmul.f32 %v10579, %v10579
        %v10646 = vadd.f32 %v10638, %v10639
        %v10647 = vadd.f32 %v10646, %v10640
        %v10648 = vadd.f32 %v10647, %v10641
        %v10649 = vadd.f32 %v10648, %v10642
        %v10650 = vadd.f32 %v10649, %v10643
        %v10651 = vadd.f32 %v10650, %v10644
        %v10652 = vadd.f32 %v10651, %v10645
        %10653 = vadd.xlane.f32.xlu0 %v10652
        %v10654 = vpop.xlane.xlu0 %10653
        %v10656 = vlaneseq
        %v10657 = vshrl.u32 %v10656, 7
        %v10658 = vsub.s32 %v10630, %v10657
        %v10659 = vrot.slane %v10654, %v10658
        %10661 = vst.msk [vmem:[%s325 + $0x1] sm:$0x1] %vm10636, %v10659
      $region44: #{gcn_forward.4} parent=35 // pred_fallthru
        _
      %s10662 = smul.u32 8, %s23
      %p10663 = scmp.lt.s32.totalorder %s22, 1
      %s10664 = scalar_select %p10663, %s22, 1
      %p10665 = scmp.lt.s32.totalorder %s10662, 7
      %s10666 = scalar_select %p10665, %s10662, 7
      %s10667 = smul.addr %s10664, 8
      %s10668 = sadd.s32 %s10666, %s10667
      %s10669 = smul.addr %s10668, 4
      %s10670 = scalar_lea.vmem %s4, %s10669
      %p10671 = scmp.lt.s32.totalorder %s22, 1
      %s10672 = scalar_select %p10671, %s22, 1
      %p10673 = scmp.lt.s32.totalorder %s23, 0
      %s10674 = scalar_select %p10673, %s23, 0
      %s10675 = sadd.s32 %s10674, %s10672
      %s10676 = smul.addr %s10675, 2
      %s10677 = scalar_lea.vmem %s5, %s10676
      // Predicated region
      $region45: #{gcn_forward.4} parent=35 // pred_check
        %p10678 = pneg %p154
      $region46: #{gcn_forward.4} parent=35 // pred_check_branch
        %10680 = sbr.rel (%p10678) target = $region48
      $region47: #{gcn_forward.4} parent=35 // pred_region
        %s10681 = smul.u32 8, %s23
      $region48: #{gcn_forward.4} parent=35 // pred_fallthru
        _
      // Predicated region
      $region49: #{gcn_forward.4} parent=35 // pred_check
        %p10682 = pneg %p182
      $region50: #{gcn_forward.4} parent=35 // pred_check_branch
        %10684 = sbr.rel (%p10682) target = $region52
      $region51: #{gcn_forward.4} parent=35 // pred_region
        _
      $region52: #{gcn_forward.4} parent=35 // pred_fallthru
        _
    $region36: #{gcn_forward.4} parent=5 // pred_fallthru
      _
    %p10685 = scmp.le.s32.totalorder 2, %s12
    // Predicated region
    $region53: #{gcn_forward.4} parent=5 // pred_check
      %p10686 = pneg %p10685
    $region54: #{gcn_forward.4} parent=5 // pred_check_branch
      %10688 = sbr.rel (%p10686) target = $region56
    $region55: #{gcn_forward.4} parent=5 // pred_region
      %s10689 = ssub.s32 %s12, 2
      // Predicated region
      $region57: #{gcn_forward.4} parent=55 // pred_check
        %p10690 = pneg %p160
      $region58: #{gcn_forward.4} parent=55 // pred_check_branch
        %10692 = sbr.rel (%p10690) target = $region60
      $region59: #{gcn_forward.4} parent=55 // pred_region
        %s10693 = smul.u32 8, %s26
        %p10694 = scmp.lt.s32.totalorder %s25, 1
        %s10695 = scalar_select %p10694, %s25, 1
        %p10696 = scmp.lt.s32.totalorder %s10693, 7
        %s10697 = scalar_select %p10696, %s10693, 7
        %s10698 = smul.addr %s10695, 8
        %s10699 = sadd.s32 %s10697, %s10698
        %s10700 = smul.addr %s10699, 4
        %s10701 = scalar_lea.vmem %s4, %s10700
      $region60: #{gcn_forward.4} parent=55 // pred_fallthru
        _
      // Predicated region
      $region61: #{gcn_forward.4} parent=55 // pred_check
        %p10702 = pneg %p188
      $region62: #{gcn_forward.4} parent=55 // pred_check_branch
        %10704 = sbr.rel (%p10702) target = $region64
      $region63: #{gcn_forward.4} parent=55 // pred_region
        %p10705 = scmp.lt.s32.totalorder %s25, 1
        %s10706 = scalar_select %p10705, %s25, 1
        %p10707 = scmp.lt.s32.totalorder %s26, 0
        %s10708 = scalar_select %p10707, %s26, 0
        %s10709 = sadd.s32 %s10708, %s10706
        %s10710 = smul.addr %s10709, 2
        %s10711 = scalar_lea.vmem %s5, %s10710
      $region64: #{gcn_forward.4} parent=55 // pred_fallthru
        _
    $region56: #{gcn_forward.4} parent=5 // pred_fallthru
      _
  $region6: #{gcn_forward.4} parent=0 // loop_footer
    %s16 = sadd.s32 1, %s12
  $region7: #{gcn_forward.4} parent=0 // loop_footer_branch
    %11 = sbr.rel target = $region3
  $region8: #{gcn_forward.4} parent=0 // loop_exit
    _

</llo_original>
